<compile_context>
chip_gen: v7x
topology: tpu7x:2x2x1
jax: 0.10.0
libtpu: 0.0.40
codegen_flags: <defaults>
</compile_context>

<pallas_src>
import functools

import jax
import jax.numpy as jnp
from jax import lax
from jax.experimental import pallas as pl
from jax.experimental.pallas import tpu as pltpu


LATENT_DIMS = 8
# (Cin, Cout) of the three stride-2 convs; spatial halves 128 -> 64 -> 32 -> 16.
LAYERS = ((3, 16), (16, 32), (32, 32))


def _group_factor(wo, cout):
    """# of output pixels packed into the lane dim -> lane-dense N = g*Cout = 128."""
    # TODO(synk): on v6e/v7x the MXU is 256 wide; allowing N up to 256 (g*Cout)
    # would fill it better but increases the block-diagonal FLOP inflation and
    # needs generation-specific dispatch -- left at 128 (memory-bound regime).
    return max(1, min(wo, 128 // min(cout, 128)))


# ----------------------------------------------------------------------------
# Pallas conv kernels: one full stride-2 3x3 conv (+ bias + ReLU) per grid step.
#   t_ref : bf16 tap planes for one image
#   w_ref : (2, K, N) bf16 block-diagonal expanded weights, N = g*Cout
#   b_ref : (1, N)    f32  bias tiled g times
#   o_ref : (M, N)    bf16/f32 grouped output, M = Ho*Wo/g
# The 3x3 / stride-2 conv reduces to two matmuls against the two kernel-row
# groups dh in {0,1}: acc = T[rows 0..M) @ W0 + T[rows wg..wg+M) @ W1.
# ----------------------------------------------------------------------------
def _conv_kernel(t_ref, w_ref, b_ref, o_ref, *, m_out, row_off):
    # Single tap plane (R, K); row_off (= wg) is a multiple of 8 -> aligned.
    x0 = t_ref[pl.ds(0, m_out), :]
    x1 = t_ref[pl.ds(row_off, m_out), :]
    acc = jnp.dot(x0, w_ref[0], preferred_element_type=jnp.float32)
    acc = acc + jnp.dot(x1, w_ref[1], preferred_element_type=jnp.float32)
    o_ref[...] = jnp.maximum(acc + b_ref[...], 0.0).astype(o_ref.dtype)


def _conv_kernel_stacked(t_ref, w_ref, b_ref, o_ref):
    # Two pre-shifted tap views (2, M, K); both start sublane-aligned at row 0.
    acc = jnp.dot(t_ref[0], w_ref[0], preferred_element_type=jnp.float32)
    acc = acc + jnp.dot(t_ref[1], w_ref[1], preferred_element_type=jnp.float32)
    o_ref[...] = jnp.maximum(acc + b_ref[...], 0.0).astype(o_ref.dtype)


def conv3x3_s2_relu(x_nhwc, w_exp, b_exp, out_dtype=jnp.bfloat16):
    """3x3 conv, stride 2, padding 1, + ReLU.  x: (B,H,W,C) bf16 NHWC."""
    B, H, W, C = x_nhwc.shape
    Ho, Wo = H // 2, W // 2
    K, N = w_exp.shape[1], w_exp.shape[2]
    g = K // (6 * C)            # pixels grouped per output row (lane packing)
    cout = N // g
    wg = Wo // g                # output-row groups per image row
    M = Ho * wg                 # output rows per image
    R = (Ho + 1) * wg           # tap rows per image

    # --- XLA glue: compact bf16 tap planes (pad + 6 strided slices) ---------
    # TODO(synk): fusing this stride-2 tap rearrangement into the conv kernel
    # (e.g. by writing the conv output in a space-to-depth layout, or fusing
    # all layers into one pallas_call) needs strided gathers that BlockSpec
    # index_maps cannot express; it stays in XLA for now.
    xp = jnp.pad(x_nhwc, ((0, 0), (1, 1), (1, 1), (0, 0)))
    planes = [xp[:, ph:ph + 2 * Ho + 2:2, kw:kw + 2 * Wo:2, :]
              for ph in range(2) for kw in range(3)]      # 6 x (B, Ho+1, Wo, C)
    taps = jnp.stack(planes, axis=3).reshape(B, R, K)      # rows=(i,wo_g) lanes=(q,tap,c)

    if wg % 8 == 0:
        kernel = functools.partial(_conv_kernel, m_out=M, row_off=wg)
        tap_arg = taps
        tap_spec = pl.BlockSpec((None, R, K), lambda i: (i, 0, 0))
    else:
        # Sublane-unaligned row offset (layer 3, wg=4): materialize the two
        # shifted views so both kernel operands start at row 0 (cheap, small).
        kernel = _conv_kernel_stacked
        tap_arg = jnp.stack([taps[:, :M], taps[:, wg:wg + M]], axis=1)
        tap_spec = pl.BlockSpec((None, 2, M, K), lambda i: (i, 0, 0, 0))

    out = pl.pallas_call(
        kernel,
        out_shape=jax.ShapeDtypeStruct((B, M, N), out_dtype),
        grid=(B,),
        in_specs=[
            tap_spec,
            pl.BlockSpec((2, K, N), lambda i: (0, 0, 0)),
            pl.BlockSpec((1, N), lambda i: (0, 0)),
        ],
        out_specs=pl.BlockSpec((None, M, N), lambda i: (i, 0, 0)),
        compiler_params=pltpu.CompilerParams(
            dimension_semantics=("parallel",)),
    )(tap_arg, w_exp, b_exp)
    return out.reshape(B, Ho, Wo, cout)


# ----------------------------------------------------------------------------
# Pallas kernel: fused VAE head — single (D, 2L) matmul, reparam, KL reduction.
#   x_ref  : (B, D)    f32  NHWC-flattened conv3 features
#   w_ref  : (D, 2L)   f32  lane-stacked [fc_mu ; fc_logvar], rows permuted at
#                            init to match PyTorch's NCHW x.view(B, -1)
#   b_ref  : (1, 2L)   f32
#   eps_ref: (B, L)    f32  N(0,1) reparameterization noise
# ----------------------------------------------------------------------------
def _head_kernel(x_ref, w_ref, b_ref, eps_ref, z_ref, kl_ref, *, latent_dims):
    x = x_ref[...]
    ml = jnp.dot(x, w_ref[...], preferred_element_type=jnp.float32) + b_ref[...]
    mu = ml[:, :latent_dims]
    logvar = ml[:, latent_dims:]
    sigma = jnp.exp(0.5 * logvar)
    z_ref[...] = mu + sigma * eps_ref[...]
    kl_ref[...] = 0.5 * jnp.sum(
        jnp.exp(logvar) + mu * mu - 1.0 - logvar, keepdims=True)


def vae_head(feat, w_fc, b_fc, eps):
    B, L = eps.shape
    z, kl = pl.pallas_call(
        functools.partial(_head_kernel, latent_dims=L),
        out_shape=(jax.ShapeDtypeStruct((B, L), jnp.float32),
                   jax.ShapeDtypeStruct((1, 1), jnp.float32)),
    )(feat, w_fc, b_fc, eps)
    return z, kl[0, 0]


# ----------------------------------------------------------------------------
# Parameter init (PyTorch-style uniform) + one-time kernel-weight preparation
# ----------------------------------------------------------------------------
def init_params(key, latent_dims):
    ks = jax.random.split(key, 10)

    def unif(k, shape, fan_in):
        bound = 1.0 / float(fan_in) ** 0.5
        return jax.random.uniform(k, shape, jnp.float32, -bound, bound)

    D = 16 * 16 * 32
    return {
        # conv weights in HWIO
        "w1": unif(ks[0], (3, 3, 3, 16), 3 * 9),
        "b1": unif(ks[1], (16,), 3 * 9),
        "w2": unif(ks[2], (3, 3, 16, 32), 16 * 9),
        "b2": unif(ks[3], (32,), 16 * 9),
        "w3": unif(ks[4], (3, 3, 32, 32), 32 * 9),
        "b3": unif(ks[5], (32,), 32 * 9),
        # fc weights (D, L); rows follow PyTorch's NCHW x.view(B,-1) order
        "w_mu": unif(ks[6], (D, latent_dims), D),
        "b_mu": unif(ks[7], (latent_dims,), D),
        "w_lv": unif(ks[8], (D, latent_dims), D),
        "b_lv": unif(ks[9], (latent_dims,), D),
    }


def _expand_conv_weight(w_hwio, g):
    """(3,3,Cin,Cout) HWIO -> (2, g*6*Cin, g*Cout) bf16 block-diag tap weights."""
    _, _, cin, cout = w_hwio.shape
    mats = []
    for dh in range(2):
        blocks = []
        for ph in range(2):
            for kw in range(3):
                kh = 2 * dh + ph
                blk = (w_hwio[kh, kw] if kh <= 2
                       else jnp.zeros((cin, cout), w_hwio.dtype))
                blocks.append(blk)
        w_dh = jnp.concatenate(blocks, axis=0)                       # (6*Cin, Cout)
        mats.append(jnp.kron(jnp.eye(g, dtype=w_hwio.dtype), w_dh))  # (K, N)
    return jnp.stack(mats, axis=0).astype(jnp.bfloat16)              # (2, K, N)


def prepare_kernel_params(p, latent_dims):
    kp = {}
    h = 128
    for idx, (_, cout) in enumerate(LAYERS, start=1):
        wo = h // 2
        g = _group_factor(wo, cout)
        kp[f"w{idx}"] = _expand_conv_weight(p[f"w{idx}"], g)
        kp[f"b{idx}"] = jnp.tile(p[f"b{idx}"], g)[None, :]
        h = wo

    # fc: permute rows NCHW-flatten -> NHWC-flatten, lane-stack [mu ; logvar]
    hf = wf = 16
    cf = 32

    def nhwc_rows(w):                      # (D, L) NCHW rows -> (D, L) NHWC rows
        return (w.reshape(cf, hf, wf, latent_dims)
                 .transpose(1, 2, 0, 3)
                 .reshape(hf * wf * cf, latent_dims))

    kp["w_fc"] = jnp.concatenate(
        [nhwc_rows(p["w_mu"]), nhwc_rows(p["w_lv"])], axis=1)        # (D, 2L)
    kp["b_fc"] = jnp.concatenate([p["b_mu"], p["b_lv"]])[None, :]    # (1, 2L)
    return kp


# ----------------------------------------------------------------------------
# Forward pass (matches VariationalEncoder.forward; KL returned as 2nd output)
# ----------------------------------------------------------------------------
@jax.jit
def variational_encoder_forward(x_nchw, kp, eps):
    x = jnp.transpose(x_nchw, (0, 2, 3, 1)).astype(jnp.bfloat16)     # NCHW->NHWC, bf16 once
    x = conv3x3_s2_relu(x, kp["w1"], kp["b1"])                        # (B, 64, 64, 16) bf16
    x = conv3x3_s2_relu(x, kp["w2"], kp["b2"])                        # (B, 32, 32, 32) bf16
    x = conv3x3_s2_relu(x, kp["w3"], kp["b3"], out_dtype=jnp.float32)  # (B, 16, 16, 32) f32
    feat = x.reshape(x.shape[0], -1)          # NHWC flatten (fc weights pre-permuted)
    return vae_head(feat, kp["w_fc"], kp["b_fc"], eps)


# Pure-JAX reference of the PyTorch module (numerical sanity check only).
def reference_forward(x_nchw, p, eps):
    x = jnp.transpose(x_nchw, (0, 2, 3, 1))
    for i in range(1, 4):
        x = lax.conv_general_dilated(
            x, p[f"w{i}"], window_strides=(2, 2), padding=((1, 1), (1, 1)),
            dimension_numbers=("NHWC", "HWIO", "NHWC"))
        x = jax.nn.relu(x + p[f"b{i}"])
    feat = jnp.transpose(x, (0, 3, 1, 2)).reshape(x.shape[0], -1)   # NCHW view(B,-1)
    mu = feat @ p["w_mu"] + p["b_mu"]
    logvar = feat @ p["w_lv"] + p["b_lv"]
    z = mu + jnp.exp(0.5 * logvar) * eps
    kl = 0.5 * jnp.sum(jnp.exp(logvar) + mu ** 2 - 1.0 - logvar)
    return z, kl


if __name__ == "__main__":
    latent_dims = LATENT_DIMS
    B = 2
    key = jax.random.PRNGKey(0)
    k_x, k_p, k_eps = jax.random.split(key, 3)

    # fc layers require 16*16*32 features => input spatial must be 128x128 (NCHW)
    x = jax.random.normal(k_x, (B, 3, 128, 128), jnp.float32)
    params = init_params(k_p, latent_dims)
    kparams = prepare_kernel_params(params, latent_dims)
    # N(0,1) reparameterization noise (PyTorch samples self.N on device).
    eps = jax.random.normal(k_eps, (B, latent_dims), jnp.float32)

    z, kl = variational_encoder_forward(x, kparams, eps)
    z = jax.block_until_ready(z)
    kl = jax.block_until_ready(kl)

    assert z.shape == (B, latent_dims) and z.dtype == jnp.float32
    assert kl.shape == () and bool(jnp.isfinite(kl))
    assert bool(jnp.all(jnp.isfinite(z)))

    # Numerical check vs. reference (bf16 activations/matmuls => loose tolerances).
    z_ref, kl_ref = reference_forward(x, params, eps)
    assert bool(jnp.allclose(z, z_ref, rtol=1e-1, atol=3e-2))
    assert bool(jnp.allclose(kl, kl_ref, rtol=1e-1, atol=1e-2))

    print("KERNEL_OK")
</pallas_src>

<mosaic_0001>
module attributes {stable_mosaic.version = 11 : i64} {
  func.func @_conv_kernel(%arg0: i32, %arg1: memref<1x520x144xbf16, #tpu.memory_space<vmem>>, %arg2: memref<2x144x128xbf16, #tpu.memory_space<vmem>>, %arg3: memref<1x128xf32, #tpu.memory_space<vmem>>, %arg4: memref<1x512x128xbf16, #tpu.memory_space<vmem>>) attributes {dimension_semantics = [#tpu.dimension_semantics<parallel>], iteration_bounds = array<i64: 2>, scalar_prefetch = 0 : i64, scratch_operands = 0 : i64, tpu.core_type = #tpu.core_type<tc>, window_params = [{transform_indices = @transform_0, window_bounds = array<i64: 1, 520, 144>}, {pipeline_mode = #tpu.pipeline_mode<synchronous>, transform_indices = @transform_1, window_bounds = array<i64: 2, 144, 128>}, {pipeline_mode = #tpu.pipeline_mode<synchronous>, transform_indices = @transform_2, window_bounds = array<i64: 1, 128>}, {transform_indices = @transform_3, window_bounds = array<i64: 1, 512, 128>}]} {
    %c0 = arith.constant 0 : index
    %c0_0 = arith.constant 0 : index
    %c0_1 = arith.constant 0 : index
    %0 = vector.load %arg1[%c0, %c0_0, %c0_1] : memref<1x520x144xbf16, #tpu.memory_space<vmem>>, vector<1x512x144xbf16>
    %1 = vector.shape_cast %0 : vector<1x512x144xbf16> to vector<512x144xbf16>
    %c0_2 = arith.constant 0 : index
    %c8 = arith.constant 8 : index
    %c0_3 = arith.constant 0 : index
    %2 = vector.load %arg1[%c0_2, %c8, %c0_3] : memref<1x520x144xbf16, #tpu.memory_space<vmem>>, vector<1x512x144xbf16>
    %3 = vector.shape_cast %2 : vector<1x512x144xbf16> to vector<512x144xbf16>
    %c0_4 = arith.constant 0 : index
    %c0_5 = arith.constant 0 : index
    %c0_6 = arith.constant 0 : index
    %4 = vector.load %arg2[%c0_4, %c0_5, %c0_6] : memref<2x144x128xbf16, #tpu.memory_space<vmem>>, vector<1x144x128xbf16>
    %5 = vector.shape_cast %4 : vector<1x144x128xbf16> to vector<144x128xbf16>
    %cst = arith.constant dense<0.000000e+00> : vector<512x128xf32>
    %6 = tpu.matmul %1, %5, %cst {dimension_numbers = #tpu.dot_dimension_numbers<[1], [0], [0], [1], [0, 0, 1, 1], [], []>} : vector<512x144xbf16>, vector<144x128xbf16>, vector<512x128xf32> -> vector<512x128xf32>
    %c1 = arith.constant 1 : index
    %c0_7 = arith.constant 0 : index
    %c0_8 = arith.constant 0 : index
    %7 = vector.load %arg2[%c1, %c0_7, %c0_8] : memref<2x144x128xbf16, #tpu.memory_space<vmem>>, vector<1x144x128xbf16>
    %8 = vector.shape_cast %7 : vector<1x144x128xbf16> to vector<144x128xbf16>
    %cst_9 = arith.constant dense<0.000000e+00> : vector<512x128xf32>
    %9 = tpu.matmul %3, %8, %cst_9 {dimension_numbers = #tpu.dot_dimension_numbers<[1], [0], [0], [1], [0, 0, 1, 1], [], []>} : vector<512x144xbf16>, vector<144x128xbf16>, vector<512x128xf32> -> vector<512x128xf32>
    %10 = arith.addf %6, %9 : vector<512x128xf32>
    %c0_10 = arith.constant 0 : index
    %c0_11 = arith.constant 0 : index
    %11 = vector.load %arg3[%c0_10, %c0_11] : memref<1x128xf32, #tpu.memory_space<vmem>>, vector<1x128xf32>
    %12 = vector.broadcast %11 : vector<1x128xf32> to vector<512x128xf32>
    %13 = arith.addf %10, %12 : vector<512x128xf32>
    %cst_12 = arith.constant 0.000000e+00 : f32
    %14 = vector.broadcast %cst_12 : f32 to vector<512x128xf32>
    %15 = arith.maximumf %13, %14 : vector<512x128xf32>
    %16 = arith.truncf %15 : vector<512x128xf32> to vector<512x128xbf16>
    %c0_13 = arith.constant 0 : index
    %c0_14 = arith.constant 0 : index
    %c0_15 = arith.constant 0 : index
    %17 = vector.load %arg4[%c0_13, %c0_14, %c0_15] : memref<1x512x128xbf16, #tpu.memory_space<vmem>>, vector<1x512x128xbf16>
    %18 = vector.shape_cast %17 : vector<1x512x128xbf16> to vector<512x128xbf16>
    %19 = vector.shape_cast %16 : vector<512x128xbf16> to vector<1x512x128xbf16>
    tpu.vector_store %arg4[%c0_13, %c0_14, %c0_15], %19 {strides = array<i32>} : memref<1x512x128xbf16, #tpu.memory_space<vmem>>, vector<1x512x128xbf16>,
    return
  }
  func.func @transform_0(%arg0: i32) -> (i32, i32, i32) {
    %c0_i32 = arith.constant 0 : i32
    %c0_i32_0 = arith.constant 0 : i32
    %c0_i32_1 = arith.constant 0 : i32
    return %arg0, %c0_i32, %c0_i32_0 : i32, i32, i32
  }
  func.func @transform_1(%arg0: i32) -> (i32, i32, i32) {
    %c0_i32 = arith.constant 0 : i32
    %c0_i32_0 = arith.constant 0 : i32
    %c0_i32_1 = arith.constant 0 : i32
    %c0_i32_2 = arith.constant 0 : i32
    return %c0_i32, %c0_i32_0, %c0_i32_1 : i32, i32, i32
  }
  func.func @transform_2(%arg0: i32) -> (i32, i32) {
    %c0_i32 = arith.constant 0 : i32
    %c0_i32_0 = arith.constant 0 : i32
    %c0_i32_1 = arith.constant 0 : i32
    return %c0_i32, %c0_i32_0 : i32, i32
  }
  func.func @transform_3(%arg0: i32) -> (i32, i32, i32) {
    %c0_i32 = arith.constant 0 : i32
    %c0_i32_0 = arith.constant 0 : i32
    %c0_i32_1 = arith.constant 0 : i32
    return %arg0, %c0_i32, %c0_i32_0 : i32, i32, i32
  }
}

module attributes {stable_mosaic.version = 11 : i64} {
  func.func @_conv_kernel(%arg0: i32, %arg1: memref<1x264x384xbf16, #tpu.memory_space<vmem>>, %arg2: memref<2x384x128xbf16, #tpu.memory_space<vmem>>, %arg3: memref<1x128xf32, #tpu.memory_space<vmem>>, %arg4: memref<1x256x128xbf16, #tpu.memory_space<vmem>>) attributes {dimension_semantics = [#tpu.dimension_semantics<parallel>], iteration_bounds = array<i64: 2>, scalar_prefetch = 0 : i64, scratch_operands = 0 : i64, tpu.core_type = #tpu.core_type<tc>, window_params = [{transform_indices = @transform_0, window_bounds = array<i64: 1, 264, 384>}, {pipeline_mode = #tpu.pipeline_mode<synchronous>, transform_indices = @transform_1, window_bounds = array<i64: 2, 384, 128>}, {pipeline_mode = #tpu.pipeline_mode<synchronous>, transform_indices = @transform_2, window_bounds = array<i64: 1, 128>}, {transform_indices = @transform_3, window_bounds = array<i64: 1, 256, 128>}]} {
    %c0 = arith.constant 0 : index
    %c0_0 = arith.constant 0 : index
    %c0_1 = arith.constant 0 : index
    %0 = vector.load %arg1[%c0, %c0_0, %c0_1] : memref<1x264x384xbf16, #tpu.memory_space<vmem>>, vector<1x256x384xbf16>
    %1 = vector.shape_cast %0 : vector<1x256x384xbf16> to vector<256x384xbf16>
    %c0_2 = arith.constant 0 : index
    %c8 = arith.constant 8 : index
    %c0_3 = arith.constant 0 : index
    %2 = vector.load %arg1[%c0_2, %c8, %c0_3] : memref<1x264x384xbf16, #tpu.memory_space<vmem>>, vector<1x256x384xbf16>
    %3 = vector.shape_cast %2 : vector<1x256x384xbf16> to vector<256x384xbf16>
    %c0_4 = arith.constant 0 : index
    %c0_5 = arith.constant 0 : index
    %c0_6 = arith.constant 0 : index
    %4 = vector.load %arg2[%c0_4, %c0_5, %c0_6] : memref<2x384x128xbf16, #tpu.memory_space<vmem>>, vector<1x384x128xbf16>
    %5 = vector.shape_cast %4 : vector<1x384x128xbf16> to vector<384x128xbf16>
    %cst = arith.constant dense<0.000000e+00> : vector<256x128xf32>
    %6 = tpu.matmul %1, %5, %cst {dimension_numbers = #tpu.dot_dimension_numbers<[1], [0], [0], [1], [0, 0, 1, 1], [], []>} : vector<256x384xbf16>, vector<384x128xbf16>, vector<256x128xf32> -> vector<256x128xf32>
    %c1 = arith.constant 1 : index
    %c0_7 = arith.constant 0 : index
    %c0_8 = arith.constant 0 : index
    %7 = vector.load %arg2[%c1, %c0_7, %c0_8] : memref<2x384x128xbf16, #tpu.memory_space<vmem>>, vector<1x384x128xbf16>
    %8 = vector.shape_cast %7 : vector<1x384x128xbf16> to vector<384x128xbf16>
    %cst_9 = arith.constant dense<0.000000e+00> : vector<256x128xf32>
    %9 = tpu.matmul %3, %8, %cst_9 {dimension_numbers = #tpu.dot_dimension_numbers<[1], [0], [0], [1], [0, 0, 1, 1], [], []>} : vector<256x384xbf16>, vector<384x128xbf16>, vector<256x128xf32> -> vector<256x128xf32>
    %10 = arith.addf %6, %9 : vector<256x128xf32>
    %c0_10 = arith.constant 0 : index
    %c0_11 = arith.constant 0 : index
    %11 = vector.load %arg3[%c0_10, %c0_11] : memref<1x128xf32, #tpu.memory_space<vmem>>, vector<1x128xf32>
    %12 = vector.broadcast %11 : vector<1x128xf32> to vector<256x128xf32>
    %13 = arith.addf %10, %12 : vector<256x128xf32>
    %cst_12 = arith.constant 0.000000e+00 : f32
    %14 = vector.broadcast %cst_12 : f32 to vector<256x128xf32>
    %15 = arith.maximumf %13, %14 : vector<256x128xf32>
    %16 = arith.truncf %15 : vector<256x128xf32> to vector<256x128xbf16>
    %c0_13 = arith.constant 0 : index
    %c0_14 = arith.constant 0 : index
    %c0_15 = arith.constant 0 : index
    %17 = vector.load %arg4[%c0_13, %c0_14, %c0_15] : memref<1x256x128xbf16, #tpu.memory_space<vmem>>, vector<1x256x128xbf16>
    %18 = vector.shape_cast %17 : vector<1x256x128xbf16> to vector<256x128xbf16>
    %19 = vector.shape_cast %16 : vector<256x128xbf16> to vector<1x256x128xbf16>
    tpu.vector_store %arg4[%c0_13, %c0_14, %c0_15], %19 {strides = array<i32>} : memref<1x256x128xbf16, #tpu.memory_space<vmem>>, vector<1x256x128xbf16>,
    return
  }
  func.func @transform_0(%arg0: i32) -> (i32, i32, i32) {
    %c0_i32 = arith.constant 0 : i32
    %c0_i32_0 = arith.constant 0 : i32
    %c0_i32_1 = arith.constant 0 : i32
    return %arg0, %c0_i32, %c0_i32_0 : i32, i32, i32
  }
  func.func @transform_1(%arg0: i32) -> (i32, i32, i32) {
    %c0_i32 = arith.constant 0 : i32
    %c0_i32_0 = arith.constant 0 : i32
    %c0_i32_1 = arith.constant 0 : i32
    %c0_i32_2 = arith.constant 0 : i32
    return %c0_i32, %c0_i32_0, %c0_i32_1 : i32, i32, i32
  }
  func.func @transform_2(%arg0: i32) -> (i32, i32) {
    %c0_i32 = arith.constant 0 : i32
    %c0_i32_0 = arith.constant 0 : i32
    %c0_i32_1 = arith.constant 0 : i32
    return %c0_i32, %c0_i32_0 : i32, i32
  }
  func.func @transform_3(%arg0: i32) -> (i32, i32, i32) {
    %c0_i32 = arith.constant 0 : i32
    %c0_i32_0 = arith.constant 0 : i32
    %c0_i32_1 = arith.constant 0 : i32
    return %arg0, %c0_i32, %c0_i32_0 : i32, i32, i32
  }
}

module attributes {stable_mosaic.version = 11 : i64} {
  func.func @_conv_kernel_stacked(%arg0: i32, %arg1: memref<1x2x64x768xbf16, #tpu.memory_space<vmem>>, %arg2: memref<2x768x128xbf16, #tpu.memory_space<vmem>>, %arg3: memref<1x128xf32, #tpu.memory_space<vmem>>, %arg4: memref<1x64x128xf32, #tpu.memory_space<vmem>>) attributes {dimension_semantics = [#tpu.dimension_semantics<parallel>], iteration_bounds = array<i64: 2>, scalar_prefetch = 0 : i64, scratch_operands = 0 : i64, tpu.core_type = #tpu.core_type<tc>, window_params = [{transform_indices = @transform_0, window_bounds = array<i64: 1, 2, 64, 768>}, {pipeline_mode = #tpu.pipeline_mode<synchronous>, transform_indices = @transform_1, window_bounds = array<i64: 2, 768, 128>}, {pipeline_mode = #tpu.pipeline_mode<synchronous>, transform_indices = @transform_2, window_bounds = array<i64: 1, 128>}, {transform_indices = @transform_3, window_bounds = array<i64: 1, 64, 128>}]} {
    %c0 = arith.constant 0 : index
    %c0_0 = arith.constant 0 : index
    %c0_1 = arith.constant 0 : index
    %c0_2 = arith.constant 0 : index
    %0 = vector.load %arg1[%c0, %c0_0, %c0_1, %c0_2] : memref<1x2x64x768xbf16, #tpu.memory_space<vmem>>, vector<1x1x64x768xbf16>
    %1 = vector.shape_cast %0 : vector<1x1x64x768xbf16> to vector<64x768xbf16>
    %c0_3 = arith.constant 0 : index
    %c0_4 = arith.constant 0 : index
    %c0_5 = arith.constant 0 : index
    %2 = vector.load %arg2[%c0_3, %c0_4, %c0_5] : memref<2x768x128xbf16, #tpu.memory_space<vmem>>, vector<1x768x128xbf16>
    %3 = vector.shape_cast %2 : vector<1x768x128xbf16> to vector<768x128xbf16>
    %cst = arith.constant dense<0.000000e+00> : vector<64x128xf32>
    %4 = tpu.matmul %1, %3, %cst {dimension_numbers = #tpu.dot_dimension_numbers<[1], [0], [0], [1], [0, 0, 1, 1], [], []>} : vector<64x768xbf16>, vector<768x128xbf16>, vector<64x128xf32> -> vector<64x128xf32>
    %c0_6 = arith.constant 0 : index
    %c1 = arith.constant 1 : index
    %c0_7 = arith.constant 0 : index
    %c0_8 = arith.constant 0 : index
    %5 = vector.load %arg1[%c0_6, %c1, %c0_7, %c0_8] : memref<1x2x64x768xbf16, #tpu.memory_space<vmem>>, vector<1x1x64x768xbf16>
    %6 = vector.shape_cast %5 : vector<1x1x64x768xbf16> to vector<64x768xbf16>
    %c1_9 = arith.constant 1 : index
    %c0_10 = arith.constant 0 : index
    %c0_11 = arith.constant 0 : index
    %7 = vector.load %arg2[%c1_9, %c0_10, %c0_11] : memref<2x768x128xbf16, #tpu.memory_space<vmem>>, vector<1x768x128xbf16>
    %8 = vector.shape_cast %7 : vector<1x768x128xbf16> to vector<768x128xbf16>
    %cst_12 = arith.constant dense<0.000000e+00> : vector<64x128xf32>
    %9 = tpu.matmul %6, %8, %cst_12 {dimension_numbers = #tpu.dot_dimension_numbers<[1], [0], [0], [1], [0, 0, 1, 1], [], []>} : vector<64x768xbf16>, vector<768x128xbf16>, vector<64x128xf32> -> vector<64x128xf32>
    %10 = arith.addf %4, %9 : vector<64x128xf32>
    %c0_13 = arith.constant 0 : index
    %c0_14 = arith.constant 0 : index
    %11 = vector.load %arg3[%c0_13, %c0_14] : memref<1x128xf32, #tpu.memory_space<vmem>>, vector<1x128xf32>
    %12 = vector.broadcast %11 : vector<1x128xf32> to vector<64x128xf32>
    %13 = arith.addf %10, %12 : vector<64x128xf32>
    %cst_15 = arith.constant 0.000000e+00 : f32
    %14 = vector.broadcast %cst_15 : f32 to vector<64x128xf32>
    %15 = arith.maximumf %13, %14 : vector<64x128xf32>
    %c0_16 = arith.constant 0 : index
    %c0_17 = arith.constant 0 : index
    %c0_18 = arith.constant 0 : index
    %16 = vector.load %arg4[%c0_16, %c0_17, %c0_18] : memref<1x64x128xf32, #tpu.memory_space<vmem>>, vector<1x64x128xf32>
    %17 = vector.shape_cast %16 : vector<1x64x128xf32> to vector<64x128xf32>
    %18 = vector.shape_cast %15 : vector<64x128xf32> to vector<1x64x128xf32>
    tpu.vector_store %arg4[%c0_16, %c0_17, %c0_18], %18 {strides = array<i32>} : memref<1x64x128xf32, #tpu.memory_space<vmem>>, vector<1x64x128xf32>,
    return
  }
  func.func @transform_0(%arg0: i32) -> (i32, i32, i32, i32) {
    %c0_i32 = arith.constant 0 : i32
    %c0_i32_0 = arith.constant 0 : i32
    %c0_i32_1 = arith.constant 0 : i32
    %c0_i32_2 = arith.constant 0 : i32
    return %arg0, %c0_i32, %c0_i32_0, %c0_i32_1 : i32, i32, i32, i32
  }
  func.func @transform_1(%arg0: i32) -> (i32, i32, i32) {
    %c0_i32 = arith.constant 0 : i32
    %c0_i32_0 = arith.constant 0 : i32
    %c0_i32_1 = arith.constant 0 : i32
    %c0_i32_2 = arith.constant 0 : i32
    return %c0_i32, %c0_i32_0, %c0_i32_1 : i32, i32, i32
  }
  func.func @transform_2(%arg0: i32) -> (i32, i32) {
    %c0_i32 = arith.constant 0 : i32
    %c0_i32_0 = arith.constant 0 : i32
    %c0_i32_1 = arith.constant 0 : i32
    return %c0_i32, %c0_i32_0 : i32, i32
  }
  func.func @transform_3(%arg0: i32) -> (i32, i32, i32) {
    %c0_i32 = arith.constant 0 : i32
    %c0_i32_0 = arith.constant 0 : i32
    %c0_i32_1 = arith.constant 0 : i32
    return %arg0, %c0_i32, %c0_i32_0 : i32, i32, i32
  }
}

module attributes {stable_mosaic.version = 11 : i64} {
  func.func @_head_kernel(%arg0: memref<2x8192xf32, #tpu.memory_space<vmem>>, %arg1: memref<8192x16xf32, #tpu.memory_space<vmem>>, %arg2: memref<1x16xf32, #tpu.memory_space<vmem>>, %arg3: memref<2x8xf32, #tpu.memory_space<vmem>>, %arg4: memref<2x8xf32, #tpu.memory_space<vmem>>, %arg5: memref<1x1xf32, #tpu.memory_space<vmem>>) attributes {dimension_semantics = [], scalar_prefetch = 0 : i64, scratch_operands = 0 : i64, tpu.core_type = #tpu.core_type<tc>} {
    %c0 = arith.constant 0 : index
    %c0_0 = arith.constant 0 : index
    %0 = vector.load %arg0[%c0, %c0_0] : memref<2x8192xf32, #tpu.memory_space<vmem>>, vector<2x8192xf32>
    %c0_1 = arith.constant 0 : index
    %c0_2 = arith.constant 0 : index
    %1 = vector.load %arg1[%c0_1, %c0_2] : memref<8192x16xf32, #tpu.memory_space<vmem>>, vector<8192x16xf32>
    %cst = arith.constant dense<0.000000e+00> : vector<2x16xf32>
    %2 = tpu.matmul %0, %1, %cst {dimension_numbers = #tpu.dot_dimension_numbers<[1], [0], [0], [1], [0, 0, 1, 1], [], []>} : vector<2x8192xf32>, vector<8192x16xf32>, vector<2x16xf32> -> vector<2x16xf32>
    %c0_3 = arith.constant 0 : index
    %c0_4 = arith.constant 0 : index
    %3 = vector.load %arg2[%c0_3, %c0_4] : memref<1x16xf32, #tpu.memory_space<vmem>>, vector<1x16xf32>
    %4 = vector.broadcast %3 : vector<1x16xf32> to vector<2x16xf32>
    %5 = arith.addf %2, %4 : vector<2x16xf32>
    %6 = vector.extract_strided_slice %5 {offsets = [0, 0], sizes = [2, 8], strides = [1, 1]} : vector<2x16xf32> to vector<2x8xf32>
    %7 = vector.extract_strided_slice %5 {offsets = [0, 8], sizes = [2, 8], strides = [1, 1]} : vector<2x16xf32> to vector<2x8xf32>
    %cst_5 = arith.constant 5.000000e-01 : f32
    %8 = vector.broadcast %cst_5 : f32 to vector<2x8xf32>
    %9 = arith.mulf %8, %7 : vector<2x8xf32>
    %10 = math.exp %9 : vector<2x8xf32>
    %c0_6 = arith.constant 0 : index
    %c0_7 = arith.constant 0 : index
    %11 = vector.load %arg3[%c0_6, %c0_7] : memref<2x8xf32, #tpu.memory_space<vmem>>, vector<2x8xf32>
    %12 = arith.mulf %10, %11 : vector<2x8xf32>
    %13 = arith.addf %6, %12 : vector<2x8xf32>
    %c0_8 = arith.constant 0 : index
    %c0_9 = arith.constant 0 : index
    %14 = vector.load %arg4[%c0_8, %c0_9] : memref<2x8xf32, #tpu.memory_space<vmem>>, vector<2x8xf32>
    tpu.vector_store %arg4[%c0_8, %c0_9], %13 {strides = array<i32>} : memref<2x8xf32, #tpu.memory_space<vmem>>, vector<2x8xf32>,
    %15 = math.exp %7 : vector<2x8xf32>
    %16 = arith.mulf %6, %6 : vector<2x8xf32>
    %17 = arith.addf %15, %16 : vector<2x8xf32>
    %cst_10 = arith.constant 1.000000e+00 : f32
    %18 = vector.broadcast %cst_10 : f32 to vector<2x8xf32>
    %19 = arith.subf %17, %18 : vector<2x8xf32>
    %20 = arith.subf %19, %7 : vector<2x8xf32>
    %21 = vector.shape_cast %20 : vector<2x8xf32> to vector<1x2x8xf32>
    %cst_11 = arith.constant dense<0.000000e+00> : vector<1xf32>
    %22 = vector.multi_reduction <add>, %21, %cst_11 [1, 2] : vector<1x2x8xf32> to vector<1xf32>
    %23 = vector.shape_cast %22 : vector<1xf32> to vector<1x1x1xf32>
    %24 = vector.extract %23[0, 0, 0] : f32 from vector<1x1x1xf32>
    %25 = vector.broadcast %24 : f32 to vector<1x1xf32>
    %cst_12 = arith.constant 5.000000e-01 : f32
    %26 = vector.broadcast %cst_12 : f32 to vector<1x1xf32>
    %27 = arith.mulf %26, %25 : vector<1x1xf32>
    %c0_13 = arith.constant 0 : index
    %c0_14 = arith.constant 0 : index
    %28 = vector.load %arg5[%c0_13, %c0_14] : memref<1x1xf32, #tpu.memory_space<vmem>>, vector<1x1xf32>
    tpu.vector_store %arg5[%c0_13, %c0_14], %27 {strides = array<i32>} : memref<1x1xf32, #tpu.memory_space<vmem>>, vector<1x1xf32>,
    return
  }
}

</mosaic_0001>

<llo_original>
// kernel: variational_encoder_forward.4
$region0: #{variational_encoder_forward.4}
  #allocation0 [shape = 'u32[]', space=smem, size = 0x4, offset = 0x4, fixed_abs, tag = 'smem constant byte address 0x4 - core index']
  #allocation1 [shape = 'u32[144,128]{1,0:T(1,128)}', space=vmem, size = 0x12000, scoped, tag = 'internal scratch']
  %s0 = inlined_call_operand.vmem [shape: bf16[2,520,144], index: 0, kind: input, shape index: {}]
  %s1 = inlined_call_operand.vmem [shape: bf16[2,144,128], index: 1, kind: input, shape index: {}]
  %s2 = inlined_call_operand.vmem [shape: f32[1,128], index: 2, kind: input, shape index: {}]
  %s3 = inlined_call_operand.vmem [shape: bf16[2,512,128], index: 3, kind: output, shape index: {}]
  %s4 = sld [smem:[#allocation0]]
  $region45: #{variational_encoder_forward.4} parent=0
    _
  %s6 = ssub.s32 1, %s4
  %s7 = scalar_select 0, %s6, %s4
  loop: start=0, step=1, limit=4
  $region2: #{variational_encoder_forward.4} parent=0 // loop_pre_header
    _
  $region3: #{variational_encoder_forward.4} parent=0 // loop_header
    %s9 = sphi 0, %s13
    %p10 = scmp.ge.s32.totalorder %s9, 4
    %s19 = sphi 0, %s21
    %s22 = sphi 0, %s19
    %s23 = sphi 0, %s22
    %s39 = sphi 0, %s23
    %s43 = sphi 0, %s43
    %s45 = sphi 0, %s43
    %s46 = sphi 0, %s45
    %s60 = sphi 0, %s46
    %s64 = sphi 0, %s64
    %s66 = sphi 0, %s64
    %s67 = sphi 0, %s66
    %s81 = sphi 0, %s67
    %s87 = sphi 0, %s89
    %s90 = sphi 0, %s87
    %s91 = sphi 0, %s90
    %s107 = sphi 0, %s91
  $region4: #{variational_encoder_forward.4} parent=0 // loop_header_branch
    %12 = sbr.rel (%p10) target = $region8
  $region5: #{variational_encoder_forward.4} parent=0 // loop_body
    %s14 = ssub.s32 %s9, 1
    %s15 = ssub.s32 %s9, 2
    %s16 = sadd.s32 %s9, 1
    %s17 = ssub.s32 %s9, %s16
    %p18 = scmp.eq.s32.totalorder %s17, 0
    %s20 = sadd.s32 %s19, 1
    %s21 = scalar_select %p18, %s19, %s20
    %p24 = pneg %p18
    %p25 = scmp.eq.s32.totalorder %s9, 1
    %p26 = por %p24, %p25
    %p27 = scmp.ne.s32.totalorder %s19, %s22
    %p28 = scmp.eq.s32.totalorder %s9, 0
    %p29 = por %p27, %p28
    %p30 = scmp.ne.s32.totalorder %s19, %s22
    %p31 = scmp.eq.s32.totalorder %s14, 1
    %p32 = por %p30, %p31
    %p33 = scmp.ne.s32.totalorder %s22, %s23
    %p34 = scmp.eq.s32.totalorder %s14, 0
    %p35 = por %p33, %p34
    %p36 = scmp.ne.s32.totalorder %s22, %s23
    %p37 = scmp.eq.s32.totalorder %s15, 1
    %p38 = por %p36, %p37
    %p40 = scmp.ne.s32.totalorder %s23, %s39
    %p41 = scmp.eq.s32.totalorder %s15, 0
    %p42 = por %p40, %p41
    %s44 = sadd.s32 %s43, 1
    %p47 = scmp.eq.s32.totalorder %s9, 1
    %p48 = scmp.ne.s32.totalorder %s43, %s45
    %p49 = scmp.eq.s32.totalorder %s9, 0
    %p50 = por %p48, %p49
    %p51 = scmp.ne.s32.totalorder %s43, %s45
    %p52 = scmp.eq.s32.totalorder %s14, 1
    %p53 = por %p51, %p52
    %p54 = scmp.ne.s32.totalorder %s45, %s46
    %p55 = scmp.eq.s32.totalorder %s14, 0
    %p56 = por %p54, %p55
    %p57 = scmp.ne.s32.totalorder %s45, %s46
    %p58 = scmp.eq.s32.totalorder %s15, 1
    %p59 = por %p57, %p58
    %p61 = scmp.ne.s32.totalorder %s46, %s60
    %p62 = scmp.eq.s32.totalorder %s15, 0
    %p63 = por %p61, %p62
    %s65 = sadd.s32 %s64, 1
    %p68 = scmp.eq.s32.totalorder %s9, 1
    %p69 = scmp.ne.s32.totalorder %s64, %s66
    %p70 = scmp.eq.s32.totalorder %s9, 0
    %p71 = por %p69, %p70
    %p72 = scmp.ne.s32.totalorder %s64, %s66
    %p73 = scmp.eq.s32.totalorder %s14, 1
    %p74 = por %p72, %p73
    %p75 = scmp.ne.s32.totalorder %s66, %s67
    %p76 = scmp.eq.s32.totalorder %s14, 0
    %p77 = por %p75, %p76
    %p78 = scmp.ne.s32.totalorder %s66, %s67
    %p79 = scmp.eq.s32.totalorder %s15, 1
    %p80 = por %p78, %p79
    %p82 = scmp.ne.s32.totalorder %s67, %s81
    %p83 = scmp.eq.s32.totalorder %s15, 0
    %p84 = por %p82, %p83
    %s85 = ssub.s32 %s9, %s16
    %p86 = scmp.eq.s32.totalorder %s85, 0
    %s88 = sadd.s32 %s87, 1
    %s89 = scalar_select %p86, %s87, %s88
    %p92 = pneg %p86
    %p93 = scmp.eq.s32.totalorder %s9, 1
    %p94 = por %p92, %p93
    %p95 = scmp.ne.s32.totalorder %s87, %s90
    %p96 = scmp.eq.s32.totalorder %s9, 0
    %p97 = por %p95, %p96
    %p98 = scmp.ne.s32.totalorder %s87, %s90
    %p99 = scmp.eq.s32.totalorder %s14, 1
    %p100 = por %p98, %p99
    %p101 = scmp.ne.s32.totalorder %s90, %s91
    %p102 = scmp.eq.s32.totalorder %s14, 0
    %p103 = por %p101, %p102
    %p104 = scmp.ne.s32.totalorder %s90, %s91
    %p105 = scmp.eq.s32.totalorder %s15, 1
    %p106 = por %p104, %p105
    %p108 = scmp.ne.s32.totalorder %s91, %s107
    %p109 = scmp.eq.s32.totalorder %s15, 0
    %p110 = por %p108, %p109
    %p111 = scmp.le.s32.totalorder 1, %s9
    %p112 = scmp.lt.s32.totalorder %s9, 3
    %p113 = pnand %p111, %p112
    %p114 = pneg %p113
    // Predicated region
    $region9: #{variational_encoder_forward.4} parent=5 // pred_check
      _
    $region10: #{variational_encoder_forward.4} parent=5 // pred_check_branch
      %116 = sbr.rel (%p113) target = $region12
    $region11: #{variational_encoder_forward.4} parent=5 // pred_region
      %s117 = ssub.s32 %s9, 1
      // Predicated region
      $region13: #{variational_encoder_forward.4} parent=11 // pred_check
        %p118 = pneg %p56
      $region14: #{variational_encoder_forward.4} parent=11 // pred_check_branch
        %120 = sbr.rel (%p118) target = $region16
      $region15: #{variational_encoder_forward.4} parent=11 // pred_region
        _
      $region16: #{variational_encoder_forward.4} parent=11 // pred_fallthru
        _
      // Predicated region
      $region17: #{variational_encoder_forward.4} parent=11 // pred_check
        %p121 = pneg %p77
      $region18: #{variational_encoder_forward.4} parent=11 // pred_check_branch
        %123 = sbr.rel (%p121) target = $region20
      $region19: #{variational_encoder_forward.4} parent=11 // pred_region
        _
      $region20: #{variational_encoder_forward.4} parent=11 // pred_fallthru
        _
    $region12: #{variational_encoder_forward.4} parent=5 // pred_fallthru
      _
    %p124 = scmp.lt.s32.totalorder %s9, 2
    // Predicated region
    $region21: #{variational_encoder_forward.4} parent=5 // pred_check
      %p125 = pneg %p124
    $region22: #{variational_encoder_forward.4} parent=5 // pred_check_branch
      %127 = sbr.rel (%p125) target = $region24
    $region23: #{variational_encoder_forward.4} parent=5 // pred_region
      // Predicated region
      $region25: #{variational_encoder_forward.4} parent=23 // pred_check
        %p128 = pneg %p29
      $region26: #{variational_encoder_forward.4} parent=23 // pred_check_branch
        %130 = sbr.rel (%p128) target = $region28
      $region27: #{variational_encoder_forward.4} parent=23 // pred_region
        %p131 = scmp.lt.s32.totalorder %s9, 1
        %s132 = scalar_select %p131, %s9, 1
        %s133 = smul.addr %s132, 130
        %s134 = smul.addr %s133, 4
        %s135 = scalar_lea.vmem %s0, %s134
      $region28: #{variational_encoder_forward.4} parent=23 // pred_fallthru
        _
    $region24: #{variational_encoder_forward.4} parent=5 // pred_fallthru
      _
    %p136 = scmp.le.s32.totalorder 1, %s9
    %p137 = scmp.lt.s32.totalorder %s9, 3
    %p138 = pnand %p136, %p137
    %p139 = pneg %p138
    // Predicated region
    $region29: #{variational_encoder_forward.4} parent=5 // pred_check
      _
    $region30: #{variational_encoder_forward.4} parent=5 // pred_check_branch
      %141 = sbr.rel (%p138) target = $region32
    $region31: #{variational_encoder_forward.4} parent=5 // pred_region
      %s142 = ssub.s32 %s9, 1
      %p143 = scmp.lt.s32.totalorder %s14, 1
      %s144 = scalar_select %p143, %s14, 1
      %s145 = smul.addr %s144, 130
      %s146 = smul.addr %s145, 4
      %s147 = scalar_lea.vmem %s0, %s146
      %p148 = pneg %p35
      %p149 = pneg %p32
      %p150 = pneg %p56
      %p151 = pneg %p53
      %p152 = pneg %p77
      %p153 = pneg %p74
      %p154 = pneg %p103
      %p155 = pneg %p100
      %p156 = scmp.lt.s32.totalorder %s14, 1
      %s157 = scalar_select %p156, %s14, 1
      %s158 = smul.addr %s157, 64
      %s159 = smul.addr %s158, 4
      %s160 = scalar_lea.vmem %s3, %s159
      %p161 = scmp.lt.s32.totalorder %s14, 1
      %s162 = scalar_select %p161, %s14, 1
      %s163 = smul.addr %s162, 130
      %s164 = smul.addr %s163, 4
      %s165 = scalar_lea.vmem %s0, %s164
      %p166 = scmp.lt.s32.totalorder %s14, 1
      %s167 = scalar_select %p166, %s14, 1
      %s168 = smul.addr %s167, 64
      %s169 = smul.addr %s168, 4
      %s170 = scalar_lea.vmem %s3, %s169
      %v172 = vld [vmem:[%s165] sm:$0xff]
      %v173 = vld [vmem:[%s165 + $0x8] sm:$0xff]
      %v174 = vld [vmem:[%s165 + $0x10] sm:$0xff]
      %v175 = vld [vmem:[%s165 + $0x18] sm:$0xff]
      %v176 = vld [vmem:[%s165 + $0x20] sm:$0xff]
      %v177 = vld [vmem:[%s165 + $0x28] sm:$0xff]
      %v178 = vld [vmem:[%s165 + $0x30] sm:$0xff]
      %v179 = vld [vmem:[%s165 + $0x38] sm:$0xff]
      %v180 = vld [vmem:[%s165 + $0x40] sm:$0xff]
      %v181 = vld [vmem:[%s165 + $0x48] sm:$0xff]
      %v182 = vld [vmem:[%s165 + $0x50] sm:$0xff]
      %v183 = vld [vmem:[%s165 + $0x58] sm:$0xff]
      %v184 = vld [vmem:[%s165 + $0x60] sm:$0xff]
      %v185 = vld [vmem:[%s165 + $0x68] sm:$0xff]
      %v186 = vld [vmem:[%s165 + $0x70] sm:$0xff]
      %v187 = vld [vmem:[%s165 + $0x78] sm:$0xff]
      %v188 = vld [vmem:[%s165 + $0x80] sm:$0xff]
      %v189 = vld [vmem:[%s165 + $0x88] sm:$0xff]
      %v190 = vld [vmem:[%s165 + $0x90] sm:$0xff]
      %v191 = vld [vmem:[%s165 + $0x98] sm:$0xff]
      %v192 = vld [vmem:[%s165 + $0xa0] sm:$0xff]
      %v193 = vld [vmem:[%s165 + $0xa8] sm:$0xff]
      %v194 = vld [vmem:[%s165 + $0xb0] sm:$0xff]
      %v195 = vld [vmem:[%s165 + $0xb8] sm:$0xff]
      %v196 = vld [vmem:[%s165 + $0xc0] sm:$0xff]
      %v197 = vld [vmem:[%s165 + $0xc8] sm:$0xff]
      %v198 = vld [vmem:[%s165 + $0xd0] sm:$0xff]
      %v199 = vld [vmem:[%s165 + $0xd8] sm:$0xff]
      %v200 = vld [vmem:[%s165 + $0xe0] sm:$0xff]
      %v201 = vld [vmem:[%s165 + $0xe8] sm:$0xff]
      %v202 = vld [vmem:[%s165 + $0xf0] sm:$0xff]
      %v203 = vld [vmem:[%s165 + $0xf8] sm:$0xff]
      %v204 = vld [vmem:[%s165 + $0x100] sm:$0xff]
      %v205 = vld [vmem:[%s165 + $0x108] sm:$0xff]
      %v206 = vld [vmem:[%s165 + $0x110] sm:$0xff]
      %v207 = vld [vmem:[%s165 + $0x118] sm:$0xff]
      %v208 = vld [vmem:[%s165 + $0x120] sm:$0xff]
      %v209 = vld [vmem:[%s165 + $0x128] sm:$0xff]
      %v210 = vld [vmem:[%s165 + $0x130] sm:$0xff]
      %v211 = vld [vmem:[%s165 + $0x138] sm:$0xff]
      %v212 = vld [vmem:[%s165 + $0x140] sm:$0xff]
      %v213 = vld [vmem:[%s165 + $0x148] sm:$0xff]
      %v214 = vld [vmem:[%s165 + $0x150] sm:$0xff]
      %v215 = vld [vmem:[%s165 + $0x158] sm:$0xff]
      %v216 = vld [vmem:[%s165 + $0x160] sm:$0xff]
      %v217 = vld [vmem:[%s165 + $0x168] sm:$0xff]
      %v218 = vld [vmem:[%s165 + $0x170] sm:$0xff]
      %v219 = vld [vmem:[%s165 + $0x178] sm:$0xff]
      %v220 = vld [vmem:[%s165 + $0x180] sm:$0xff]
      %v221 = vld [vmem:[%s165 + $0x188] sm:$0xff]
      %v222 = vld [vmem:[%s165 + $0x190] sm:$0xff]
      %v223 = vld [vmem:[%s165 + $0x198] sm:$0xff]
      %v224 = vld [vmem:[%s165 + $0x1a0] sm:$0xff]
      %v225 = vld [vmem:[%s165 + $0x1a8] sm:$0xff]
      %v226 = vld [vmem:[%s165 + $0x1b0] sm:$0xff]
      %v227 = vld [vmem:[%s165 + $0x1b8] sm:$0xff]
      %v228 = vld [vmem:[%s165 + $0x1c0] sm:$0xff]
      %v229 = vld [vmem:[%s165 + $0x1c8] sm:$0xff]
      %v230 = vld [vmem:[%s165 + $0x1d0] sm:$0xff]
      %v231 = vld [vmem:[%s165 + $0x1d8] sm:$0xff]
      %v232 = vld [vmem:[%s165 + $0x1e0] sm:$0xff]
      %v233 = vld [vmem:[%s165 + $0x1e8] sm:$0xff]
      %v234 = vld [vmem:[%s165 + $0x1f0] sm:$0xff]
      %v235 = vld [vmem:[%s165 + $0x1f8] sm:$0xff]
      %v236 = vld [vmem:[%s165 + $0x200] sm:$0xff]
      %v237 = vld [vmem:[%s1] sm:$0xf]
      %v238 = vld [vmem:[%s1 + $0x4] sm:$0xf]
      %v239 = vld [vmem:[%s1 + $0x8] sm:$0xf]
      %v240 = vld [vmem:[%s1 + $0xc] sm:$0xf]
      %v241 = vld [vmem:[%s1 + $0x10] sm:$0xf]
      %v242 = vld [vmem:[%s1 + $0x14] sm:$0xf]
      %v243 = vld [vmem:[%s1 + $0x18] sm:$0xf]
      %v244 = vld [vmem:[%s1 + $0x1c] sm:$0xf]
      %v245 = vld [vmem:[%s1 + $0x20] sm:$0xf]
      %v246 = vld [vmem:[%s1 + $0x24] sm:$0xf]
      %v247 = vld [vmem:[%s1 + $0x28] sm:$0xf]
      %v248 = vld [vmem:[%s1 + $0x2c] sm:$0xf]
      %v249 = vld [vmem:[%s1 + $0x30] sm:$0xf]
      %v250 = vld [vmem:[%s1 + $0x34] sm:$0xf]
      %v251 = vld [vmem:[%s1 + $0x38] sm:$0xf]
      %v252 = vld [vmem:[%s1 + $0x3c] sm:$0xf]
      %v253 = vld [vmem:[%s1 + $0x40] sm:$0xf]
      %v254 = vld [vmem:[%s1 + $0x44] sm:$0xf]
      %s255 = scalar_lea.vmem %s1, 72
      %v256 = vld [vmem:[%s255] sm:$0xf]
      %v257 = vld [vmem:[%s255 + $0x4] sm:$0xf]
      %v258 = vld [vmem:[%s255 + $0x8] sm:$0xf]
      %v259 = vld [vmem:[%s255 + $0xc] sm:$0xf]
      %v260 = vld [vmem:[%s255 + $0x10] sm:$0xf]
      %v261 = vld [vmem:[%s255 + $0x14] sm:$0xf]
      %v262 = vld [vmem:[%s255 + $0x18] sm:$0xf]
      %v263 = vld [vmem:[%s255 + $0x1c] sm:$0xf]
      %v264 = vld [vmem:[%s255 + $0x20] sm:$0xf]
      %v265 = vld [vmem:[%s255 + $0x24] sm:$0xf]
      %v266 = vld [vmem:[%s255 + $0x28] sm:$0xf]
      %v267 = vld [vmem:[%s255 + $0x2c] sm:$0xf]
      %v268 = vld [vmem:[%s255 + $0x30] sm:$0xf]
      %v269 = vld [vmem:[%s255 + $0x34] sm:$0xf]
      %v270 = vld [vmem:[%s255 + $0x38] sm:$0xf]
      %v271 = vld [vmem:[%s255 + $0x3c] sm:$0xf]
      %v272 = vld [vmem:[%s255 + $0x40] sm:$0xf]
      %v273 = vld [vmem:[%s255 + $0x44] sm:$0xf]
      %v338 = vunpack.c.l.b16 %v173
      %v339 = vunpack.c.h.b16 %v173
      %v340 = vunpack.c.l.b16 %v174
      %v341 = vunpack.c.h.b16 %v174
      %v342 = vunpack.c.l.b16 %v175
      %v343 = vunpack.c.h.b16 %v175
      %v344 = vunpack.c.l.b16 %v176
      %v345 = vunpack.c.h.b16 %v176
      %v346 = vunpack.c.l.b16 %v177
      %v347 = vunpack.c.h.b16 %v177
      %v348 = vunpack.c.l.b16 %v178
      %v349 = vunpack.c.h.b16 %v178
      %v350 = vunpack.c.l.b16 %v179
      %v351 = vunpack.c.h.b16 %v179
      %v352 = vunpack.c.l.b16 %v180
      %v353 = vunpack.c.h.b16 %v180
      %v354 = vunpack.c.l.b16 %v181
      %v355 = vunpack.c.h.b16 %v181
      %v356 = vunpack.c.l.b16 %v182
      %v357 = vunpack.c.h.b16 %v182
      %v358 = vunpack.c.l.b16 %v183
      %v359 = vunpack.c.h.b16 %v183
      %v360 = vunpack.c.l.b16 %v184
      %v361 = vunpack.c.h.b16 %v184
      %v362 = vunpack.c.l.b16 %v185
      %v363 = vunpack.c.h.b16 %v185
      %v364 = vunpack.c.l.b16 %v186
      %v365 = vunpack.c.h.b16 %v186
      %v366 = vunpack.c.l.b16 %v187
      %v367 = vunpack.c.h.b16 %v187
      %v368 = vunpack.c.l.b16 %v188
      %v369 = vunpack.c.h.b16 %v188
      %v370 = vunpack.c.l.b16 %v189
      %v371 = vunpack.c.h.b16 %v189
      %v372 = vunpack.c.l.b16 %v190
      %v373 = vunpack.c.h.b16 %v190
      %v374 = vunpack.c.l.b16 %v191
      %v375 = vunpack.c.h.b16 %v191
      %v376 = vunpack.c.l.b16 %v192
      %v377 = vunpack.c.h.b16 %v192
      %v378 = vunpack.c.l.b16 %v193
      %v379 = vunpack.c.h.b16 %v193
      %v380 = vunpack.c.l.b16 %v194
      %v381 = vunpack.c.h.b16 %v194
      %v382 = vunpack.c.l.b16 %v195
      %v383 = vunpack.c.h.b16 %v195
      %v384 = vunpack.c.l.b16 %v196
      %v385 = vunpack.c.h.b16 %v196
      %v386 = vunpack.c.l.b16 %v197
      %v387 = vunpack.c.h.b16 %v197
      %v388 = vunpack.c.l.b16 %v198
      %v389 = vunpack.c.h.b16 %v198
      %v390 = vunpack.c.l.b16 %v199
      %v391 = vunpack.c.h.b16 %v199
      %v392 = vunpack.c.l.b16 %v200
      %v393 = vunpack.c.h.b16 %v200
      %v394 = vunpack.c.l.b16 %v201
      %v395 = vunpack.c.h.b16 %v201
      %v396 = vunpack.c.l.b16 %v202
      %v397 = vunpack.c.h.b16 %v202
      %v398 = vunpack.c.l.b16 %v203
      %v399 = vunpack.c.h.b16 %v203
      %v400 = vunpack.c.l.b16 %v204
      %v401 = vunpack.c.h.b16 %v204
      %v402 = vunpack.c.l.b16 %v205
      %v403 = vunpack.c.h.b16 %v205
      %v404 = vunpack.c.l.b16 %v206
      %v405 = vunpack.c.h.b16 %v206
      %v406 = vunpack.c.l.b16 %v207
      %v407 = vunpack.c.h.b16 %v207
      %v408 = vunpack.c.l.b16 %v208
      %v409 = vunpack.c.h.b16 %v208
      %v410 = vunpack.c.l.b16 %v209
      %v411 = vunpack.c.h.b16 %v209
      %v412 = vunpack.c.l.b16 %v210
      %v413 = vunpack.c.h.b16 %v210
      %v414 = vunpack.c.l.b16 %v211
      %v415 = vunpack.c.h.b16 %v211
      %v416 = vunpack.c.l.b16 %v212
      %v417 = vunpack.c.h.b16 %v212
      %v418 = vunpack.c.l.b16 %v213
      %v419 = vunpack.c.h.b16 %v213
      %v420 = vunpack.c.l.b16 %v214
      %v421 = vunpack.c.h.b16 %v214
      %v422 = vunpack.c.l.b16 %v215
      %v423 = vunpack.c.h.b16 %v215
      %v424 = vunpack.c.l.b16 %v216
      %v425 = vunpack.c.h.b16 %v216
      %v426 = vunpack.c.l.b16 %v217
      %v427 = vunpack.c.h.b16 %v217
      %v428 = vunpack.c.l.b16 %v218
      %v429 = vunpack.c.h.b16 %v218
      %v430 = vunpack.c.l.b16 %v219
      %v431 = vunpack.c.h.b16 %v219
      %v432 = vunpack.c.l.b16 %v220
      %v433 = vunpack.c.h.b16 %v220
      %v434 = vunpack.c.l.b16 %v221
      %v435 = vunpack.c.h.b16 %v221
      %v436 = vunpack.c.l.b16 %v222
      %v437 = vunpack.c.h.b16 %v222
      %v438 = vunpack.c.l.b16 %v223
      %v439 = vunpack.c.h.b16 %v223
      %v440 = vunpack.c.l.b16 %v224
      %v441 = vunpack.c.h.b16 %v224
      %v442 = vunpack.c.l.b16 %v225
      %v443 = vunpack.c.h.b16 %v225
      %v444 = vunpack.c.l.b16 %v226
      %v445 = vunpack.c.h.b16 %v226
      %v446 = vunpack.c.l.b16 %v227
      %v447 = vunpack.c.h.b16 %v227
      %v448 = vunpack.c.l.b16 %v228
      %v449 = vunpack.c.h.b16 %v228
      %v450 = vunpack.c.l.b16 %v229
      %v451 = vunpack.c.h.b16 %v229
      %v452 = vunpack.c.l.b16 %v230
      %v453 = vunpack.c.h.b16 %v230
      %v454 = vunpack.c.l.b16 %v231
      %v455 = vunpack.c.h.b16 %v231
      %v456 = vunpack.c.l.b16 %v232
      %v457 = vunpack.c.h.b16 %v232
      %v458 = vunpack.c.l.b16 %v233
      %v459 = vunpack.c.h.b16 %v233
      %v460 = vunpack.c.l.b16 %v234
      %v461 = vunpack.c.h.b16 %v234
      %v462 = vunpack.c.l.b16 %v235
      %v463 = vunpack.c.h.b16 %v235
      %v464 = vunpack.c.l.b16 %v236
      %v465 = vunpack.c.h.b16 %v236
      %v466 = vpack.c.b16 %v340, %v338
      %v467 = vpack.c.b16 %v341, %v339
      %v468 = vpack.c.b16 %v344, %v342
      %v469 = vpack.c.b16 %v345, %v343
      %v470 = vpack.c.b16 %v348, %v346
      %v471 = vpack.c.b16 %v349, %v347
      %v472 = vpack.c.b16 %v352, %v350
      %v473 = vpack.c.b16 %v353, %v351
      %v474 = vpack.c.b16 %v356, %v354
      %v475 = vpack.c.b16 %v357, %v355
      %v476 = vpack.c.b16 %v360, %v358
      %v477 = vpack.c.b16 %v361, %v359
      %v478 = vpack.c.b16 %v364, %v362
      %v479 = vpack.c.b16 %v365, %v363
      %v480 = vpack.c.b16 %v368, %v366
      %v481 = vpack.c.b16 %v369, %v367
      %v482 = vpack.c.b16 %v372, %v370
      %v483 = vpack.c.b16 %v373, %v371
      %v484 = vpack.c.b16 %v376, %v374
      %v485 = vpack.c.b16 %v377, %v375
      %v486 = vpack.c.b16 %v380, %v378
      %v487 = vpack.c.b16 %v381, %v379
      %v488 = vpack.c.b16 %v384, %v382
      %v489 = vpack.c.b16 %v385, %v383
      %v490 = vpack.c.b16 %v388, %v386
      %v491 = vpack.c.b16 %v389, %v387
      %v492 = vpack.c.b16 %v392, %v390
      %v493 = vpack.c.b16 %v393, %v391
      %v494 = vpack.c.b16 %v396, %v394
      %v495 = vpack.c.b16 %v397, %v395
      %v496 = vpack.c.b16 %v400, %v398
      %v497 = vpack.c.b16 %v401, %v399
      %v498 = vpack.c.b16 %v404, %v402
      %v499 = vpack.c.b16 %v405, %v403
      %v500 = vpack.c.b16 %v408, %v406
      %v501 = vpack.c.b16 %v409, %v407
      %v502 = vpack.c.b16 %v412, %v410
      %v503 = vpack.c.b16 %v413, %v411
      %v504 = vpack.c.b16 %v416, %v414
      %v505 = vpack.c.b16 %v417, %v415
      %v506 = vpack.c.b16 %v420, %v418
      %v507 = vpack.c.b16 %v421, %v419
      %v508 = vpack.c.b16 %v424, %v422
      %v509 = vpack.c.b16 %v425, %v423
      %v510 = vpack.c.b16 %v428, %v426
      %v511 = vpack.c.b16 %v429, %v427
      %v512 = vpack.c.b16 %v432, %v430
      %v513 = vpack.c.b16 %v433, %v431
      %v514 = vpack.c.b16 %v436, %v434
      %v515 = vpack.c.b16 %v437, %v435
      %v516 = vpack.c.b16 %v440, %v438
      %v517 = vpack.c.b16 %v441, %v439
      %v518 = vpack.c.b16 %v444, %v442
      %v519 = vpack.c.b16 %v445, %v443
      %v520 = vpack.c.b16 %v448, %v446
      %v521 = vpack.c.b16 %v449, %v447
      %v522 = vpack.c.b16 %v452, %v450
      %v523 = vpack.c.b16 %v453, %v451
      %v524 = vpack.c.b16 %v456, %v454
      %v525 = vpack.c.b16 %v457, %v455
      %v526 = vpack.c.b16 %v460, %v458
      %v527 = vpack.c.b16 %v461, %v459
      %v528 = vpack.c.b16 %v464, %v462
      %v529 = vpack.c.b16 %v465, %v463
      %v580 = vunpack.c.l.b16 %v256
      %v581 = vunpack.c.l.b16 %v257
      %v582 = vunpack.c.l.b16 %v258
      %v583 = vunpack.c.l.b16 %v259
      %v584 = vunpack.c.l.b16 %v260
      %v585 = vunpack.c.l.b16 %v261
      %v586 = vunpack.c.l.b16 %v262
      %v587 = vunpack.c.l.b16 %v263
      %v588 = vunpack.c.l.b16 %v264
      %v589 = vunpack.c.l.b16 %v265
      %v590 = vunpack.c.l.b16 %v266
      %v591 = vunpack.c.l.b16 %v267
      %v592 = vunpack.c.l.b16 %v268
      %v593 = vunpack.c.l.b16 %v269
      %v594 = vunpack.c.l.b16 %v270
      %v595 = vunpack.c.l.b16 %v271
      %v596 = vunpack.c.l.b16 %v272
      %v597 = vunpack.c.l.b16 %v273
      %v598 = vpack.c.b16 %v581, %v580
      %v599 = vpack.c.b16 %v583, %v582
      %v600 = vpack.c.b16 %v585, %v584
      %v601 = vpack.c.b16 %v587, %v586
      %v602 = vpack.c.b16 %v589, %v588
      %v603 = vpack.c.b16 %v591, %v590
      %v604 = vpack.c.b16 %v593, %v592
      %v605 = vpack.c.b16 %v595, %v594
      %v606 = vpack.c.b16 %v597, %v596
      %vm616 = vcmask 130048
      %v618 = vsel %vm616, %v467, 0
      %v621 = vsel %vm616, %v469, 0
      %v624 = vsel %vm616, %v471, 0
      %v627 = vsel %vm616, %v473, 0
      %v630 = vsel %vm616, %v475, 0
      %v633 = vsel %vm616, %v477, 0
      %v636 = vsel %vm616, %v479, 0
      %v639 = vsel %vm616, %v481, 0
      %v642 = vsel %vm616, %v483, 0
      %v645 = vsel %vm616, %v485, 0
      %v648 = vsel %vm616, %v487, 0
      %v651 = vsel %vm616, %v489, 0
      %v654 = vsel %vm616, %v491, 0
      %v657 = vsel %vm616, %v493, 0
      %v660 = vsel %vm616, %v495, 0
      %v663 = vsel %vm616, %v497, 0
      %v666 = vsel %vm616, %v499, 0
      %v669 = vsel %vm616, %v501, 0
      %v672 = vsel %vm616, %v503, 0
      %v675 = vsel %vm616, %v505, 0
      %v678 = vsel %vm616, %v507, 0
      %v681 = vsel %vm616, %v509, 0
      %v684 = vsel %vm616, %v511, 0
      %v687 = vsel %vm616, %v513, 0
      %v690 = vsel %vm616, %v515, 0
      %v693 = vsel %vm616, %v517, 0
      %v696 = vsel %vm616, %v519, 0
      %v699 = vsel %vm616, %v521, 0
      %v702 = vsel %vm616, %v523, 0
      %v705 = vsel %vm616, %v525, 0
      %v708 = vsel %vm616, %v527, 0
      %v711 = vsel %vm616, %v529, 0
      %713 = vmatprep.subr.bf16.mxu0 0
      %714 = vmatpush1.bf16.msra.mxu0 %v598
      %715 = vmatprep.subr.bf16.mxu0 0
      %716 = vmatpush1.bf16.msra.mxu0 %v599
      %717 = vmatprep.subr.bf16.mxu0 0
      %718 = vmatpush1.bf16.msra.mxu0 %v600
      %719 = vmatprep.subr.bf16.mxu0 0
      %720 = vmatpush1.bf16.msra.mxu0 %v601
      %721 = vmatprep.subr.bf16.mxu0 0
      %722 = vmatpush1.bf16.msra.mxu0 %v602
      %723 = vmatprep.subr.bf16.mxu0 0
      %724 = vmatpush1.bf16.msra.mxu0 %v603
      %725 = vmatprep.subr.bf16.mxu0 0
      %726 = vmatpush1.bf16.msra.mxu0 %v604
      %727 = vmatprep.subr.bf16.mxu0 0
      %728 = vmatpush1.bf16.msra.mxu0 %v605
      %729 = vmatprep.subr.bf16.mxu0 0
      %730 = vmatpush1.bf16.msra.mxu0 %v606
      %731 = vmatprep.subr.bf16.mxu0 0
      %732 = vmatpush1.bf16.msra.mxu0 0
      %733 = vmatprep.subr.bf16.mxu0 0
      %734 = vmatpush1.bf16.msra.mxu0 0
      %735 = vmatprep.subr.bf16.mxu0 0
      %736 = vmatpush1.bf16.msra.mxu0 0
      %737 = vmatprep.subr.bf16.mxu0 0
      %738 = vmatpush1.bf16.msra.mxu0 0
      %739 = vmatprep.subr.bf16.mxu0 0
      %740 = vmatpush1.bf16.msra.mxu0 0
      %741 = vmatprep.subr.bf16.mxu0 0
      %742 = vmatpush1.bf16.msra.mxu0 0
      %743 = vmatprep.subr.bf16.mxu0 0
      %744 = vmatpush1.bf16.msra.mxu0 0
      %745 = vmatprep.mubr.bf16.mxu0 %v618
      %746 = vmatmul.mubr.bf16.gmra.mrb[0].mxu0 %v466
      %v747 = vpop.f32.mrb[0].mxu0
      %v748 = vadd.f32 0.0, %v747
      %v749 = vpop.f32.mrb[0].mxu0
      %v750 = vpop.f32.mrb[0].mxu0
      %v751 = vadd.f32 0.0, %v750
      %v752 = vpop.f32.mrb[0].mxu0
      %753 = vmatprep.mubr.bf16.mxu0 %v621
      %754 = vmatmul.mubr.bf16.gmra.mrb[0].mxu0 %v468
      %v755 = vpop.f32.mrb[0].mxu0
      %v756 = vadd.f32 0.0, %v755
      %v757 = vpop.f32.mrb[0].mxu0
      %v758 = vpop.f32.mrb[0].mxu0
      %v759 = vadd.f32 0.0, %v758
      %v760 = vpop.f32.mrb[0].mxu0
      %761 = vmatprep.mubr.bf16.mxu0 %v624
      %762 = vmatmul.mubr.bf16.gmra.mrb[0].mxu0 %v470
      %v763 = vpop.f32.mrb[0].mxu0
      %v764 = vadd.f32 0.0, %v763
      %v765 = vpop.f32.mrb[0].mxu0
      %v766 = vpop.f32.mrb[0].mxu0
      %v767 = vadd.f32 0.0, %v766
      %v768 = vpop.f32.mrb[0].mxu0
      %769 = vmatprep.mubr.bf16.mxu0 %v627
      %770 = vmatmul.mubr.bf16.gmra.mrb[0].mxu0 %v472
      %v771 = vpop.f32.mrb[0].mxu0
      %v772 = vadd.f32 0.0, %v771
      %v773 = vpop.f32.mrb[0].mxu0
      %v774 = vpop.f32.mrb[0].mxu0
      %v775 = vadd.f32 0.0, %v774
      %v776 = vpop.f32.mrb[0].mxu0
      %777 = vmatprep.mubr.bf16.mxu0 %v630
      %778 = vmatmul.mubr.bf16.gmra.mrb[0].mxu0 %v474
      %v779 = vpop.f32.mrb[0].mxu0
      %v780 = vadd.f32 0.0, %v779
      %v781 = vpop.f32.mrb[0].mxu0
      %v782 = vpop.f32.mrb[0].mxu0
      %v783 = vadd.f32 0.0, %v782
      %v784 = vpop.f32.mrb[0].mxu0
      %785 = vmatprep.mubr.bf16.mxu0 %v633
      %786 = vmatmul.mubr.bf16.gmra.mrb[0].mxu0 %v476
      %v787 = vpop.f32.mrb[0].mxu0
      %v788 = vadd.f32 0.0, %v787
      %v789 = vpop.f32.mrb[0].mxu0
      %v790 = vpop.f32.mrb[0].mxu0
      %v791 = vadd.f32 0.0, %v790
      %v792 = vpop.f32.mrb[0].mxu0
      %793 = vmatprep.mubr.bf16.mxu0 %v636
      %794 = vmatmul.mubr.bf16.gmra.mrb[0].mxu0 %v478
      %v795 = vpop.f32.mrb[0].mxu0
      %v796 = vadd.f32 0.0, %v795
      %v797 = vpop.f32.mrb[0].mxu0
      %v798 = vpop.f32.mrb[0].mxu0
      %v799 = vadd.f32 0.0, %v798
      %v800 = vpop.f32.mrb[0].mxu0
      %801 = vmatprep.mubr.bf16.mxu0 %v639
      %802 = vmatmul.mubr.bf16.gmra.mrb[0].mxu0 %v480
      %v803 = vpop.f32.mrb[0].mxu0
      %v804 = vadd.f32 0.0, %v803
      %v805 = vpop.f32.mrb[0].mxu0
      %v806 = vpop.f32.mrb[0].mxu0
      %v807 = vadd.f32 0.0, %v806
      %v808 = vpop.f32.mrb[0].mxu0
      %809 = vmatprep.mubr.bf16.mxu0 %v642
      %810 = vmatmul.mubr.bf16.gmra.mrb[0].mxu0 %v482
      %v811 = vpop.f32.mrb[0].mxu0
      %v812 = vadd.f32 0.0, %v811
      %v813 = vpop.f32.mrb[0].mxu0
      %v814 = vpop.f32.mrb[0].mxu0
      %v815 = vadd.f32 0.0, %v814
      %v816 = vpop.f32.mrb[0].mxu0
      %817 = vmatprep.mubr.bf16.mxu0 %v645
      %818 = vmatmul.mubr.bf16.gmra.mrb[0].mxu0 %v484
      %v819 = vpop.f32.mrb[0].mxu0
      %v820 = vadd.f32 0.0, %v819
      %v821 = vpop.f32.mrb[0].mxu0
      %v822 = vpop.f32.mrb[0].mxu0
      %v823 = vadd.f32 0.0, %v822
      %v824 = vpop.f32.mrb[0].mxu0
      %825 = vmatprep.mubr.bf16.mxu0 %v648
      %826 = vmatmul.mubr.bf16.gmra.mrb[0].mxu0 %v486
      %v827 = vpop.f32.mrb[0].mxu0
      %v828 = vadd.f32 0.0, %v827
      %v829 = vpop.f32.mrb[0].mxu0
      %v830 = vpop.f32.mrb[0].mxu0
      %v831 = vadd.f32 0.0, %v830
      %v832 = vpop.f32.mrb[0].mxu0
      %833 = vmatprep.mubr.bf16.mxu0 %v651
      %834 = vmatmul.mubr.bf16.gmra.mrb[0].mxu0 %v488
      %v835 = vpop.f32.mrb[0].mxu0
      %v836 = vadd.f32 0.0, %v835
      %v837 = vpop.f32.mrb[0].mxu0
      %v838 = vpop.f32.mrb[0].mxu0
      %v839 = vadd.f32 0.0, %v838
      %v840 = vpop.f32.mrb[0].mxu0
      %841 = vmatprep.mubr.bf16.mxu0 %v654
      %842 = vmatmul.mubr.bf16.gmra.mrb[0].mxu0 %v490
      %v843 = vpop.f32.mrb[0].mxu0
      %v844 = vadd.f32 0.0, %v843
      %v845 = vpop.f32.mrb[0].mxu0
      %v846 = vpop.f32.mrb[0].mxu0
      %v847 = vadd.f32 0.0, %v846
      %v848 = vpop.f32.mrb[0].mxu0
      %849 = vmatprep.mubr.bf16.mxu0 %v657
      %850 = vmatmul.mubr.bf16.gmra.mrb[0].mxu0 %v492
      %v851 = vpop.f32.mrb[0].mxu0
      %v852 = vadd.f32 0.0, %v851
      %v853 = vpop.f32.mrb[0].mxu0
      %v854 = vpop.f32.mrb[0].mxu0
      %v855 = vadd.f32 0.0, %v854
      %v856 = vpop.f32.mrb[0].mxu0
      %857 = vmatprep.mubr.bf16.mxu0 %v660
      %858 = vmatmul.mubr.bf16.gmra.mrb[0].mxu0 %v494
      %v859 = vpop.f32.mrb[0].mxu0
      %v860 = vadd.f32 0.0, %v859
      %v861 = vpop.f32.mrb[0].mxu0
      %v862 = vpop.f32.mrb[0].mxu0
      %v863 = vadd.f32 0.0, %v862
      %v864 = vpop.f32.mrb[0].mxu0
      %865 = vmatprep.mubr.bf16.mxu0 %v663
      %866 = vmatmul.mubr.bf16.gmra.mrb[0].mxu0 %v496
      %v867 = vpop.f32.mrb[0].mxu0
      %v868 = vadd.f32 0.0, %v867
      %v869 = vpop.f32.mrb[0].mxu0
      %v870 = vpop.f32.mrb[0].mxu0
      %v871 = vadd.f32 0.0, %v870
      %v872 = vpop.f32.mrb[0].mxu0
      %873 = vmatprep.mubr.bf16.mxu0 %v666
      %874 = vmatmul.mubr.bf16.gmra.mrb[0].mxu0 %v498
      %v875 = vpop.f32.mrb[0].mxu0
      %v876 = vadd.f32 0.0, %v875
      %v877 = vpop.f32.mrb[0].mxu0
      %v878 = vpop.f32.mrb[0].mxu0
      %v879 = vadd.f32 0.0, %v878
      %v880 = vpop.f32.mrb[0].mxu0
      %881 = vmatprep.mubr.bf16.mxu0 %v669
      %882 = vmatmul.mubr.bf16.gmra.mrb[0].mxu0 %v500
      %v883 = vpop.f32.mrb[0].mxu0
      %v884 = vadd.f32 0.0, %v883
      %v885 = vpop.f32.mrb[0].mxu0
      %v886 = vpop.f32.mrb[0].mxu0
      %v887 = vadd.f32 0.0, %v886
      %v888 = vpop.f32.mrb[0].mxu0
      %889 = vmatprep.mubr.bf16.mxu0 %v672
      %890 = vmatmul.mubr.bf16.gmra.mrb[0].mxu0 %v502
      %v891 = vpop.f32.mrb[0].mxu0
      %v892 = vadd.f32 0.0, %v891
      %v893 = vpop.f32.mrb[0].mxu0
      %v894 = vpop.f32.mrb[0].mxu0
      %v895 = vadd.f32 0.0, %v894
      %v896 = vpop.f32.mrb[0].mxu0
      %897 = vmatprep.mubr.bf16.mxu0 %v675
      %898 = vmatmul.mubr.bf16.gmra.mrb[0].mxu0 %v504
      %v899 = vpop.f32.mrb[0].mxu0
      %v900 = vadd.f32 0.0, %v899
      %v901 = vpop.f32.mrb[0].mxu0
      %v902 = vpop.f32.mrb[0].mxu0
      %v903 = vadd.f32 0.0, %v902
      %v904 = vpop.f32.mrb[0].mxu0
      %905 = vmatprep.mubr.bf16.mxu0 %v678
      %906 = vmatmul.mubr.bf16.gmra.mrb[0].mxu0 %v506
      %v907 = vpop.f32.mrb[0].mxu0
      %v908 = vadd.f32 0.0, %v907
      %v909 = vpop.f32.mrb[0].mxu0
      %v910 = vpop.f32.mrb[0].mxu0
      %v911 = vadd.f32 0.0, %v910
      %v912 = vpop.f32.mrb[0].mxu0
      %913 = vmatprep.mubr.bf16.mxu0 %v681
      %914 = vmatmul.mubr.bf16.gmra.mrb[0].mxu0 %v508
      %v915 = vpop.f32.mrb[0].mxu0
      %v916 = vadd.f32 0.0, %v915
      %v917 = vpop.f32.mrb[0].mxu0
      %v918 = vpop.f32.mrb[0].mxu0
      %v919 = vadd.f32 0.0, %v918
      %v920 = vpop.f32.mrb[0].mxu0
      %921 = vmatprep.mubr.bf16.mxu0 %v684
      %922 = vmatmul.mubr.bf16.gmra.mrb[0].mxu0 %v510
      %v923 = vpop.f32.mrb[0].mxu0
      %v924 = vadd.f32 0.0, %v923
      %v925 = vpop.f32.mrb[0].mxu0
      %v926 = vpop.f32.mrb[0].mxu0
      %v927 = vadd.f32 0.0, %v926
      %v928 = vpop.f32.mrb[0].mxu0
      %929 = vmatprep.mubr.bf16.mxu0 %v687
      %930 = vmatmul.mubr.bf16.gmra.mrb[0].mxu0 %v512
      %v931 = vpop.f32.mrb[0].mxu0
      %v932 = vadd.f32 0.0, %v931
      %v933 = vpop.f32.mrb[0].mxu0
      %v934 = vpop.f32.mrb[0].mxu0
      %v935 = vadd.f32 0.0, %v934
      %v936 = vpop.f32.mrb[0].mxu0
      %937 = vmatprep.mubr.bf16.mxu0 %v690
      %938 = vmatmul.mubr.bf16.gmra.mrb[0].mxu0 %v514
      %v939 = vpop.f32.mrb[0].mxu0
      %v940 = vadd.f32 0.0, %v939
      %v941 = vpop.f32.mrb[0].mxu0
      %v942 = vpop.f32.mrb[0].mxu0
      %v943 = vadd.f32 0.0, %v942
      %v944 = vpop.f32.mrb[0].mxu0
      %945 = vmatprep.mubr.bf16.mxu0 %v693
      %946 = vmatmul.mubr.bf16.gmra.mrb[0].mxu0 %v516
      %v947 = vpop.f32.mrb[0].mxu0
      %v948 = vadd.f32 0.0, %v947
      %v949 = vpop.f32.mrb[0].mxu0
      %v950 = vpop.f32.mrb[0].mxu0
      %v951 = vadd.f32 0.0, %v950
      %v952 = vpop.f32.mrb[0].mxu0
      %953 = vmatprep.mubr.bf16.mxu0 %v696
      %954 = vmatmul.mubr.bf16.gmra.mrb[0].mxu0 %v518
      %v955 = vpop.f32.mrb[0].mxu0
      %v956 = vadd.f32 0.0, %v955
      %v957 = vpop.f32.mrb[0].mxu0
      %v958 = vpop.f32.mrb[0].mxu0
      %v959 = vadd.f32 0.0, %v958
      %v960 = vpop.f32.mrb[0].mxu0
      %961 = vmatprep.mubr.bf16.mxu0 %v699
      %962 = vmatmul.mubr.bf16.gmra.mrb[0].mxu0 %v520
      %v963 = vpop.f32.mrb[0].mxu0
      %v964 = vadd.f32 0.0, %v963
      %v965 = vpop.f32.mrb[0].mxu0
      %v966 = vpop.f32.mrb[0].mxu0
      %v967 = vadd.f32 0.0, %v966
      %v968 = vpop.f32.mrb[0].mxu0
      %969 = vmatprep.mubr.bf16.mxu0 %v702
      %970 = vmatmul.mubr.bf16.gmra.mrb[0].mxu0 %v522
      %v971 = vpop.f32.mrb[0].mxu0
      %v972 = vadd.f32 0.0, %v971
      %v973 = vpop.f32.mrb[0].mxu0
      %v974 = vpop.f32.mrb[0].mxu0
      %v975 = vadd.f32 0.0, %v974
      %v976 = vpop.f32.mrb[0].mxu0
      %977 = vmatprep.mubr.bf16.mxu0 %v705
      %978 = vmatmul.mubr.bf16.gmra.mrb[0].mxu0 %v524
      %v979 = vpop.f32.mrb[0].mxu0
      %v980 = vadd.f32 0.0, %v979
      %v981 = vpop.f32.mrb[0].mxu0
      %v982 = vpop.f32.mrb[0].mxu0
      %v983 = vadd.f32 0.0, %v982
      %v984 = vpop.f32.mrb[0].mxu0
      %985 = vmatprep.mubr.bf16.mxu0 %v708
      %986 = vmatmul.mubr.bf16.gmra.mrb[0].mxu0 %v526
      %v987 = vpop.f32.mrb[0].mxu0
      %v988 = vadd.f32 0.0, %v987
      %v989 = vpop.f32.mrb[0].mxu0
      %v990 = vpop.f32.mrb[0].mxu0
      %v991 = vadd.f32 0.0, %v990
      %v992 = vpop.f32.mrb[0].mxu0
      %993 = vmatprep.mubr.bf16.mxu0 %v711
      %994 = vmatmul.mubr.bf16.gmra.mrb[0].mxu0 %v528
      %v995 = vpop.f32.mrb[0].mxu0
      %v996 = vadd.f32 0.0, %v995
      %v997 = vpop.f32.mrb[0].mxu0
      %v998 = vpop.f32.mrb[0].mxu0
      %v999 = vadd.f32 0.0, %v998
      %v1000 = vpop.f32.mrb[0].mxu0
      %1001 = vdwg.mxu0
      %v1003 = vunpack.c.l.b16 %v172
      %v1004 = vunpack.c.h.b16 %v172
      %v1005 = vpack.c.b16 %v338, %v1003
      %v1006 = vpack.c.b16 %v339, %v1004
      %v1007 = vpack.c.b16 %v342, %v340
      %v1008 = vpack.c.b16 %v343, %v341
      %v1009 = vpack.c.b16 %v346, %v344
      %v1010 = vpack.c.b16 %v347, %v345
      %v1011 = vpack.c.b16 %v350, %v348
      %v1012 = vpack.c.b16 %v351, %v349
      %v1013 = vpack.c.b16 %v354, %v352
      %v1014 = vpack.c.b16 %v355, %v353
      %v1015 = vpack.c.b16 %v358, %v356
      %v1016 = vpack.c.b16 %v359, %v357
      %v1017 = vpack.c.b16 %v362, %v360
      %v1018 = vpack.c.b16 %v363, %v361
      %v1019 = vpack.c.b16 %v366, %v364
      %v1020 = vpack.c.b16 %v367, %v365
      %v1021 = vpack.c.b16 %v370, %v368
      %v1022 = vpack.c.b16 %v371, %v369
      %v1023 = vpack.c.b16 %v374, %v372
      %v1024 = vpack.c.b16 %v375, %v373
      %v1025 = vpack.c.b16 %v378, %v376
      %v1026 = vpack.c.b16 %v379, %v377
      %v1027 = vpack.c.b16 %v382, %v380
      %v1028 = vpack.c.b16 %v383, %v381
      %v1029 = vpack.c.b16 %v386, %v384
      %v1030 = vpack.c.b16 %v387, %v385
      %v1031 = vpack.c.b16 %v390, %v388
      %v1032 = vpack.c.b16 %v391, %v389
      %v1033 = vpack.c.b16 %v394, %v392
      %v1034 = vpack.c.b16 %v395, %v393
      %v1035 = vpack.c.b16 %v398, %v396
      %v1036 = vpack.c.b16 %v399, %v397
      %v1037 = vpack.c.b16 %v402, %v400
      %v1038 = vpack.c.b16 %v403, %v401
      %v1039 = vpack.c.b16 %v406, %v404
      %v1040 = vpack.c.b16 %v407, %v405
      %v1041 = vpack.c.b16 %v410, %v408
      %v1042 = vpack.c.b16 %v411, %v409
      %v1043 = vpack.c.b16 %v414, %v412
      %v1044 = vpack.c.b16 %v415, %v413
      %v1045 = vpack.c.b16 %v418, %v416
      %v1046 = vpack.c.b16 %v419, %v417
      %v1047 = vpack.c.b16 %v422, %v420
      %v1048 = vpack.c.b16 %v423, %v421
      %v1049 = vpack.c.b16 %v426, %v424
      %v1050 = vpack.c.b16 %v427, %v425
      %v1051 = vpack.c.b16 %v430, %v428
      %v1052 = vpack.c.b16 %v431, %v429
      %v1053 = vpack.c.b16 %v434, %v432
      %v1054 = vpack.c.b16 %v435, %v433
      %v1055 = vpack.c.b16 %v438, %v436
      %v1056 = vpack.c.b16 %v439, %v437
      %v1057 = vpack.c.b16 %v442, %v440
      %v1058 = vpack.c.b16 %v443, %v441
      %v1059 = vpack.c.b16 %v446, %v444
      %v1060 = vpack.c.b16 %v447, %v445
      %v1061 = vpack.c.b16 %v450, %v448
      %v1062 = vpack.c.b16 %v451, %v449
      %v1063 = vpack.c.b16 %v454, %v452
      %v1064 = vpack.c.b16 %v455, %v453
      %v1065 = vpack.c.b16 %v458, %v456
      %v1066 = vpack.c.b16 %v459, %v457
      %v1067 = vpack.c.b16 %v462, %v460
      %v1068 = vpack.c.b16 %v463, %v461
      %v1119 = vunpack.c.l.b16 %v237
      %v1120 = vunpack.c.l.b16 %v238
      %v1121 = vunpack.c.l.b16 %v239
      %v1122 = vunpack.c.l.b16 %v240
      %v1123 = vunpack.c.l.b16 %v241
      %v1124 = vunpack.c.l.b16 %v242
      %v1125 = vunpack.c.l.b16 %v243
      %v1126 = vunpack.c.l.b16 %v244
      %v1127 = vunpack.c.l.b16 %v245
      %v1128 = vunpack.c.l.b16 %v246
      %v1129 = vunpack.c.l.b16 %v247
      %v1130 = vunpack.c.l.b16 %v248
      %v1131 = vunpack.c.l.b16 %v249
      %v1132 = vunpack.c.l.b16 %v250
      %v1133 = vunpack.c.l.b16 %v251
      %v1134 = vunpack.c.l.b16 %v252
      %v1135 = vunpack.c.l.b16 %v253
      %v1136 = vunpack.c.l.b16 %v254
      %v1137 = vpack.c.b16 %v1120, %v1119
      %v1138 = vpack.c.b16 %v1122, %v1121
      %v1139 = vpack.c.b16 %v1124, %v1123
      %v1140 = vpack.c.b16 %v1126, %v1125
      %v1141 = vpack.c.b16 %v1128, %v1127
      %v1142 = vpack.c.b16 %v1130, %v1129
      %v1143 = vpack.c.b16 %v1132, %v1131
      %v1144 = vpack.c.b16 %v1134, %v1133
      %v1145 = vpack.c.b16 %v1136, %v1135
      %v1156 = vsel %vm616, %v1006, 0
      %v1159 = vsel %vm616, %v1008, 0
      %v1162 = vsel %vm616, %v1010, 0
      %v1165 = vsel %vm616, %v1012, 0
      %v1168 = vsel %vm616, %v1014, 0
      %v1171 = vsel %vm616, %v1016, 0
      %v1174 = vsel %vm616, %v1018, 0
      %v1177 = vsel %vm616, %v1020, 0
      %v1180 = vsel %vm616, %v1022, 0
      %v1183 = vsel %vm616, %v1024, 0
      %v1186 = vsel %vm616, %v1026, 0
      %v1189 = vsel %vm616, %v1028, 0
      %v1192 = vsel %vm616, %v1030, 0
      %v1195 = vsel %vm616, %v1032, 0
      %v1198 = vsel %vm616, %v1034, 0
      %v1201 = vsel %vm616, %v1036, 0
      %v1204 = vsel %vm616, %v1038, 0
      %v1207 = vsel %vm616, %v1040, 0
      %v1210 = vsel %vm616, %v1042, 0
      %v1213 = vsel %vm616, %v1044, 0
      %v1216 = vsel %vm616, %v1046, 0
      %v1219 = vsel %vm616, %v1048, 0
      %v1222 = vsel %vm616, %v1050, 0
      %v1225 = vsel %vm616, %v1052, 0
      %v1228 = vsel %vm616, %v1054, 0
      %v1231 = vsel %vm616, %v1056, 0
      %v1234 = vsel %vm616, %v1058, 0
      %v1237 = vsel %vm616, %v1060, 0
      %v1240 = vsel %vm616, %v1062, 0
      %v1243 = vsel %vm616, %v1064, 0
      %v1246 = vsel %vm616, %v1066, 0
      %v1249 = vsel %vm616, %v1068, 0
      %1251 = vmatprep.subr.bf16.mxu0 0
      %1252 = vmatpush1.bf16.msra.mxu0 %v1137
      %1253 = vmatprep.subr.bf16.mxu0 0
      %1254 = vmatpush1.bf16.msra.mxu0 %v1138
      %1255 = vmatprep.subr.bf16.mxu0 0
      %1256 = vmatpush1.bf16.msra.mxu0 %v1139
      %1257 = vmatprep.subr.bf16.mxu0 0
      %1258 = vmatpush1.bf16.msra.mxu0 %v1140
      %1259 = vmatprep.subr.bf16.mxu0 0
      %1260 = vmatpush1.bf16.msra.mxu0 %v1141
      %1261 = vmatprep.subr.bf16.mxu0 0
      %1262 = vmatpush1.bf16.msra.mxu0 %v1142
      %1263 = vmatprep.subr.bf16.mxu0 0
      %1264 = vmatpush1.bf16.msra.mxu0 %v1143
      %1265 = vmatprep.subr.bf16.mxu0 0
      %1266 = vmatpush1.bf16.msra.mxu0 %v1144
      %1267 = vmatprep.subr.bf16.mxu0 0
      %1268 = vmatpush1.bf16.msra.mxu0 %v1145
      %1269 = vmatprep.subr.bf16.mxu0 0
      %1270 = vmatpush1.bf16.msra.mxu0 0
      %1271 = vmatprep.subr.bf16.mxu0 0
      %1272 = vmatpush1.bf16.msra.mxu0 0
      %1273 = vmatprep.subr.bf16.mxu0 0
      %1274 = vmatpush1.bf16.msra.mxu0 0
      %1275 = vmatprep.subr.bf16.mxu0 0
      %1276 = vmatpush1.bf16.msra.mxu0 0
      %1277 = vmatprep.subr.bf16.mxu0 0
      %1278 = vmatpush1.bf16.msra.mxu0 0
      %1279 = vmatprep.subr.bf16.mxu0 0
      %1280 = vmatpush1.bf16.msra.mxu0 0
      %1281 = vmatprep.subr.bf16.mxu0 0
      %1282 = vmatpush1.bf16.msra.mxu0 0
      %1283 = vmatprep.mubr.bf16.mxu0 %v1156
      %1284 = vmatmul.mubr.bf16.gmra.mrb[0].mxu0 %v1005
      %v1285 = vpop.f32.mrb[0].mxu0
      %v1286 = vadd.f32 %v748, %v1285
      %v1287 = vpop.f32.mrb[0].mxu0
      %v1288 = vpop.f32.mrb[0].mxu0
      %v1289 = vadd.f32 %v751, %v1288
      %v1290 = vpop.f32.mrb[0].mxu0
      %1291 = vmatprep.mubr.bf16.mxu0 %v1159
      %1292 = vmatmul.mubr.bf16.gmra.mrb[0].mxu0 %v1007
      %v1293 = vpop.f32.mrb[0].mxu0
      %v1294 = vadd.f32 %v756, %v1293
      %v1295 = vpop.f32.mrb[0].mxu0
      %v1296 = vpop.f32.mrb[0].mxu0
      %v1297 = vadd.f32 %v759, %v1296
      %v1298 = vpop.f32.mrb[0].mxu0
      %1299 = vmatprep.mubr.bf16.mxu0 %v1162
      %1300 = vmatmul.mubr.bf16.gmra.mrb[0].mxu0 %v1009
      %v1301 = vpop.f32.mrb[0].mxu0
      %v1302 = vadd.f32 %v764, %v1301
      %v1303 = vpop.f32.mrb[0].mxu0
      %v1304 = vpop.f32.mrb[0].mxu0
      %v1305 = vadd.f32 %v767, %v1304
      %v1306 = vpop.f32.mrb[0].mxu0
      %1307 = vmatprep.mubr.bf16.mxu0 %v1165
      %1308 = vmatmul.mubr.bf16.gmra.mrb[0].mxu0 %v1011
      %v1309 = vpop.f32.mrb[0].mxu0
      %v1310 = vadd.f32 %v772, %v1309
      %v1311 = vpop.f32.mrb[0].mxu0
      %v1312 = vpop.f32.mrb[0].mxu0
      %v1313 = vadd.f32 %v775, %v1312
      %v1314 = vpop.f32.mrb[0].mxu0
      %1315 = vmatprep.mubr.bf16.mxu0 %v1168
      %1316 = vmatmul.mubr.bf16.gmra.mrb[0].mxu0 %v1013
      %v1317 = vpop.f32.mrb[0].mxu0
      %v1318 = vadd.f32 %v780, %v1317
      %v1319 = vpop.f32.mrb[0].mxu0
      %v1320 = vpop.f32.mrb[0].mxu0
      %v1321 = vadd.f32 %v783, %v1320
      %v1322 = vpop.f32.mrb[0].mxu0
      %1323 = vmatprep.mubr.bf16.mxu0 %v1171
      %1324 = vmatmul.mubr.bf16.gmra.mrb[0].mxu0 %v1015
      %v1325 = vpop.f32.mrb[0].mxu0
      %v1326 = vadd.f32 %v788, %v1325
      %v1327 = vpop.f32.mrb[0].mxu0
      %v1328 = vpop.f32.mrb[0].mxu0
      %v1329 = vadd.f32 %v791, %v1328
      %v1330 = vpop.f32.mrb[0].mxu0
      %1331 = vmatprep.mubr.bf16.mxu0 %v1174
      %1332 = vmatmul.mubr.bf16.gmra.mrb[0].mxu0 %v1017
      %v1333 = vpop.f32.mrb[0].mxu0
      %v1334 = vadd.f32 %v796, %v1333
      %v1335 = vpop.f32.mrb[0].mxu0
      %v1336 = vpop.f32.mrb[0].mxu0
      %v1337 = vadd.f32 %v799, %v1336
      %v1338 = vpop.f32.mrb[0].mxu0
      %1339 = vmatprep.mubr.bf16.mxu0 %v1177
      %1340 = vmatmul.mubr.bf16.gmra.mrb[0].mxu0 %v1019
      %v1341 = vpop.f32.mrb[0].mxu0
      %v1342 = vadd.f32 %v804, %v1341
      %v1343 = vpop.f32.mrb[0].mxu0
      %v1344 = vpop.f32.mrb[0].mxu0
      %v1345 = vadd.f32 %v807, %v1344
      %v1346 = vpop.f32.mrb[0].mxu0
      %1347 = vmatprep.mubr.bf16.mxu0 %v1180
      %1348 = vmatmul.mubr.bf16.gmra.mrb[0].mxu0 %v1021
      %v1349 = vpop.f32.mrb[0].mxu0
      %v1350 = vadd.f32 %v812, %v1349
      %v1351 = vpop.f32.mrb[0].mxu0
      %v1352 = vpop.f32.mrb[0].mxu0
      %v1353 = vadd.f32 %v815, %v1352
      %v1354 = vpop.f32.mrb[0].mxu0
      %1355 = vmatprep.mubr.bf16.mxu0 %v1183
      %1356 = vmatmul.mubr.bf16.gmra.mrb[0].mxu0 %v1023
      %v1357 = vpop.f32.mrb[0].mxu0
      %v1358 = vadd.f32 %v820, %v1357
      %v1359 = vpop.f32.mrb[0].mxu0
      %v1360 = vpop.f32.mrb[0].mxu0
      %v1361 = vadd.f32 %v823, %v1360
      %v1362 = vpop.f32.mrb[0].mxu0
      %1363 = vmatprep.mubr.bf16.mxu0 %v1186
      %1364 = vmatmul.mubr.bf16.gmra.mrb[0].mxu0 %v1025
      %v1365 = vpop.f32.mrb[0].mxu0
      %v1366 = vadd.f32 %v828, %v1365
      %v1367 = vpop.f32.mrb[0].mxu0
      %v1368 = vpop.f32.mrb[0].mxu0
      %v1369 = vadd.f32 %v831, %v1368
      %v1370 = vpop.f32.mrb[0].mxu0
      %1371 = vmatprep.mubr.bf16.mxu0 %v1189
      %1372 = vmatmul.mubr.bf16.gmra.mrb[0].mxu0 %v1027
      %v1373 = vpop.f32.mrb[0].mxu0
      %v1374 = vadd.f32 %v836, %v1373
      %v1375 = vpop.f32.mrb[0].mxu0
      %v1376 = vpop.f32.mrb[0].mxu0
      %v1377 = vadd.f32 %v839, %v1376
      %v1378 = vpop.f32.mrb[0].mxu0
      %1379 = vmatprep.mubr.bf16.mxu0 %v1192
      %1380 = vmatmul.mubr.bf16.gmra.mrb[0].mxu0 %v1029
      %v1381 = vpop.f32.mrb[0].mxu0
      %v1382 = vadd.f32 %v844, %v1381
      %v1383 = vpop.f32.mrb[0].mxu0
      %v1384 = vpop.f32.mrb[0].mxu0
      %v1385 = vadd.f32 %v847, %v1384
      %v1386 = vpop.f32.mrb[0].mxu0
      %1387 = vmatprep.mubr.bf16.mxu0 %v1195
      %1388 = vmatmul.mubr.bf16.gmra.mrb[0].mxu0 %v1031
      %v1389 = vpop.f32.mrb[0].mxu0
      %v1390 = vadd.f32 %v852, %v1389
      %v1391 = vpop.f32.mrb[0].mxu0
      %v1392 = vpop.f32.mrb[0].mxu0
      %v1393 = vadd.f32 %v855, %v1392
      %v1394 = vpop.f32.mrb[0].mxu0
      %1395 = vmatprep.mubr.bf16.mxu0 %v1198
      %1396 = vmatmul.mubr.bf16.gmra.mrb[0].mxu0 %v1033
      %v1397 = vpop.f32.mrb[0].mxu0
      %v1398 = vadd.f32 %v860, %v1397
      %v1399 = vpop.f32.mrb[0].mxu0
      %v1400 = vpop.f32.mrb[0].mxu0
      %v1401 = vadd.f32 %v863, %v1400
      %v1402 = vpop.f32.mrb[0].mxu0
      %1403 = vmatprep.mubr.bf16.mxu0 %v1201
      %1404 = vmatmul.mubr.bf16.gmra.mrb[0].mxu0 %v1035
      %v1405 = vpop.f32.mrb[0].mxu0
      %v1406 = vadd.f32 %v868, %v1405
      %v1407 = vpop.f32.mrb[0].mxu0
      %v1408 = vpop.f32.mrb[0].mxu0
      %v1409 = vadd.f32 %v871, %v1408
      %v1410 = vpop.f32.mrb[0].mxu0
      %1411 = vmatprep.mubr.bf16.mxu0 %v1204
      %1412 = vmatmul.mubr.bf16.gmra.mrb[0].mxu0 %v1037
      %v1413 = vpop.f32.mrb[0].mxu0
      %v1414 = vadd.f32 %v876, %v1413
      %v1415 = vpop.f32.mrb[0].mxu0
      %v1416 = vpop.f32.mrb[0].mxu0
      %v1417 = vadd.f32 %v879, %v1416
      %v1418 = vpop.f32.mrb[0].mxu0
      %1419 = vmatprep.mubr.bf16.mxu0 %v1207
      %1420 = vmatmul.mubr.bf16.gmra.mrb[0].mxu0 %v1039
      %v1421 = vpop.f32.mrb[0].mxu0
      %v1422 = vadd.f32 %v884, %v1421
      %v1423 = vpop.f32.mrb[0].mxu0
      %v1424 = vpop.f32.mrb[0].mxu0
      %v1425 = vadd.f32 %v887, %v1424
      %v1426 = vpop.f32.mrb[0].mxu0
      %1427 = vmatprep.mubr.bf16.mxu0 %v1210
      %1428 = vmatmul.mubr.bf16.gmra.mrb[0].mxu0 %v1041
      %v1429 = vpop.f32.mrb[0].mxu0
      %v1430 = vadd.f32 %v892, %v1429
      %v1431 = vpop.f32.mrb[0].mxu0
      %v1432 = vpop.f32.mrb[0].mxu0
      %v1433 = vadd.f32 %v895, %v1432
      %v1434 = vpop.f32.mrb[0].mxu0
      %1435 = vmatprep.mubr.bf16.mxu0 %v1213
      %1436 = vmatmul.mubr.bf16.gmra.mrb[0].mxu0 %v1043
      %v1437 = vpop.f32.mrb[0].mxu0
      %v1438 = vadd.f32 %v900, %v1437
      %v1439 = vpop.f32.mrb[0].mxu0
      %v1440 = vpop.f32.mrb[0].mxu0
      %v1441 = vadd.f32 %v903, %v1440
      %v1442 = vpop.f32.mrb[0].mxu0
      %1443 = vmatprep.mubr.bf16.mxu0 %v1216
      %1444 = vmatmul.mubr.bf16.gmra.mrb[0].mxu0 %v1045
      %v1445 = vpop.f32.mrb[0].mxu0
      %v1446 = vadd.f32 %v908, %v1445
      %v1447 = vpop.f32.mrb[0].mxu0
      %v1448 = vpop.f32.mrb[0].mxu0
      %v1449 = vadd.f32 %v911, %v1448
      %v1450 = vpop.f32.mrb[0].mxu0
      %1451 = vmatprep.mubr.bf16.mxu0 %v1219
      %1452 = vmatmul.mubr.bf16.gmra.mrb[0].mxu0 %v1047
      %v1453 = vpop.f32.mrb[0].mxu0
      %v1454 = vadd.f32 %v916, %v1453
      %v1455 = vpop.f32.mrb[0].mxu0
      %v1456 = vpop.f32.mrb[0].mxu0
      %v1457 = vadd.f32 %v919, %v1456
      %v1458 = vpop.f32.mrb[0].mxu0
      %1459 = vmatprep.mubr.bf16.mxu0 %v1222
      %1460 = vmatmul.mubr.bf16.gmra.mrb[0].mxu0 %v1049
      %v1461 = vpop.f32.mrb[0].mxu0
      %v1462 = vadd.f32 %v924, %v1461
      %v1463 = vpop.f32.mrb[0].mxu0
      %v1464 = vpop.f32.mrb[0].mxu0
      %v1465 = vadd.f32 %v927, %v1464
      %v1466 = vpop.f32.mrb[0].mxu0
      %1467 = vmatprep.mubr.bf16.mxu0 %v1225
      %1468 = vmatmul.mubr.bf16.gmra.mrb[0].mxu0 %v1051
      %v1469 = vpop.f32.mrb[0].mxu0
      %v1470 = vadd.f32 %v932, %v1469
      %v1471 = vpop.f32.mrb[0].mxu0
      %v1472 = vpop.f32.mrb[0].mxu0
      %v1473 = vadd.f32 %v935, %v1472
      %v1474 = vpop.f32.mrb[0].mxu0
      %1475 = vmatprep.mubr.bf16.mxu0 %v1228
      %1476 = vmatmul.mubr.bf16.gmra.mrb[0].mxu0 %v1053
      %v1477 = vpop.f32.mrb[0].mxu0
      %v1478 = vadd.f32 %v940, %v1477
      %v1479 = vpop.f32.mrb[0].mxu0
      %v1480 = vpop.f32.mrb[0].mxu0
      %v1481 = vadd.f32 %v943, %v1480
      %v1482 = vpop.f32.mrb[0].mxu0
      %1483 = vmatprep.mubr.bf16.mxu0 %v1231
      %1484 = vmatmul.mubr.bf16.gmra.mrb[0].mxu0 %v1055
      %v1485 = vpop.f32.mrb[0].mxu0
      %v1486 = vadd.f32 %v948, %v1485
      %v1487 = vpop.f32.mrb[0].mxu0
      %v1488 = vpop.f32.mrb[0].mxu0
      %v1489 = vadd.f32 %v951, %v1488
      %v1490 = vpop.f32.mrb[0].mxu0
      %1491 = vmatprep.mubr.bf16.mxu0 %v1234
      %1492 = vmatmul.mubr.bf16.gmra.mrb[0].mxu0 %v1057
      %v1493 = vpop.f32.mrb[0].mxu0
      %v1494 = vadd.f32 %v956, %v1493
      %v1495 = vpop.f32.mrb[0].mxu0
      %v1496 = vpop.f32.mrb[0].mxu0
      %v1497 = vadd.f32 %v959, %v1496
      %v1498 = vpop.f32.mrb[0].mxu0
      %1499 = vmatprep.mubr.bf16.mxu0 %v1237
      %1500 = vmatmul.mubr.bf16.gmra.mrb[0].mxu0 %v1059
      %v1501 = vpop.f32.mrb[0].mxu0
      %v1502 = vadd.f32 %v964, %v1501
      %v1503 = vpop.f32.mrb[0].mxu0
      %v1504 = vpop.f32.mrb[0].mxu0
      %v1505 = vadd.f32 %v967, %v1504
      %v1506 = vpop.f32.mrb[0].mxu0
      %1507 = vmatprep.mubr.bf16.mxu0 %v1240
      %1508 = vmatmul.mubr.bf16.gmra.mrb[0].mxu0 %v1061
      %v1509 = vpop.f32.mrb[0].mxu0
      %v1510 = vadd.f32 %v972, %v1509
      %v1511 = vpop.f32.mrb[0].mxu0
      %v1512 = vpop.f32.mrb[0].mxu0
      %v1513 = vadd.f32 %v975, %v1512
      %v1514 = vpop.f32.mrb[0].mxu0
      %1515 = vmatprep.mubr.bf16.mxu0 %v1243
      %1516 = vmatmul.mubr.bf16.gmra.mrb[0].mxu0 %v1063
      %v1517 = vpop.f32.mrb[0].mxu0
      %v1518 = vadd.f32 %v980, %v1517
      %v1519 = vpop.f32.mrb[0].mxu0
      %v1520 = vpop.f32.mrb[0].mxu0
      %v1521 = vadd.f32 %v983, %v1520
      %v1522 = vpop.f32.mrb[0].mxu0
      %1523 = vmatprep.mubr.bf16.mxu0 %v1246
      %1524 = vmatmul.mubr.bf16.gmra.mrb[0].mxu0 %v1065
      %v1525 = vpop.f32.mrb[0].mxu0
      %v1526 = vadd.f32 %v988, %v1525
      %v1527 = vpop.f32.mrb[0].mxu0
      %v1528 = vpop.f32.mrb[0].mxu0
      %v1529 = vadd.f32 %v991, %v1528
      %v1530 = vpop.f32.mrb[0].mxu0
      %1531 = vmatprep.mubr.bf16.mxu0 %v1249
      %1532 = vmatmul.mubr.bf16.gmra.mrb[0].mxu0 %v1067
      %v1533 = vpop.f32.mrb[0].mxu0
      %v1534 = vadd.f32 %v996, %v1533
      %v1535 = vpop.f32.mrb[0].mxu0
      %v1536 = vpop.f32.mrb[0].mxu0
      %v1537 = vadd.f32 %v999, %v1536
      %v1538 = vpop.f32.mrb[0].mxu0
      %1539 = vdwg.mxu0
      %v1540 = vld [vmem:[%s2] sm:$0x1]
      %v1542 = vlaneseq
      %v1543 = vshrl.u32 %v1542, 7
      %v1544 = vsub.s32 0, %v1543
      %v1545 = vrot.slane %v1540, %v1544
      %v1547 = vadd.f32 %v1286, %v1545
      %v1548 = vadd.f32 %v1289, %v1545
      %v1549 = vadd.f32 %v1294, %v1545
      %v1550 = vadd.f32 %v1297, %v1545
      %v1551 = vadd.f32 %v1302, %v1545
      %v1552 = vadd.f32 %v1305, %v1545
      %v1553 = vadd.f32 %v1310, %v1545
      %v1554 = vadd.f32 %v1313, %v1545
      %v1555 = vadd.f32 %v1318, %v1545
      %v1556 = vadd.f32 %v1321, %v1545
      %v1557 = vadd.f32 %v1326, %v1545
      %v1558 = vadd.f32 %v1329, %v1545
      %v1559 = vadd.f32 %v1334, %v1545
      %v1560 = vadd.f32 %v1337, %v1545
      %v1561 = vadd.f32 %v1342, %v1545
      %v1562 = vadd.f32 %v1345, %v1545
      %v1563 = vadd.f32 %v1350, %v1545
      %v1564 = vadd.f32 %v1353, %v1545
      %v1565 = vadd.f32 %v1358, %v1545
      %v1566 = vadd.f32 %v1361, %v1545
      %v1567 = vadd.f32 %v1366, %v1545
      %v1568 = vadd.f32 %v1369, %v1545
      %v1569 = vadd.f32 %v1374, %v1545
      %v1570 = vadd.f32 %v1377, %v1545
      %v1571 = vadd.f32 %v1382, %v1545
      %v1572 = vadd.f32 %v1385, %v1545
      %v1573 = vadd.f32 %v1390, %v1545
      %v1574 = vadd.f32 %v1393, %v1545
      %v1575 = vadd.f32 %v1398, %v1545
      %v1576 = vadd.f32 %v1401, %v1545
      %v1577 = vadd.f32 %v1406, %v1545
      %v1578 = vadd.f32 %v1409, %v1545
      %v1579 = vadd.f32 %v1414, %v1545
      %v1580 = vadd.f32 %v1417, %v1545
      %v1581 = vadd.f32 %v1422, %v1545
      %v1582 = vadd.f32 %v1425, %v1545
      %v1583 = vadd.f32 %v1430, %v1545
      %v1584 = vadd.f32 %v1433, %v1545
      %v1585 = vadd.f32 %v1438, %v1545
      %v1586 = vadd.f32 %v1441, %v1545
      %v1587 = vadd.f32 %v1446, %v1545
      %v1588 = vadd.f32 %v1449, %v1545
      %v1589 = vadd.f32 %v1454, %v1545
      %v1590 = vadd.f32 %v1457, %v1545
      %v1591 = vadd.f32 %v1462, %v1545
      %v1592 = vadd.f32 %v1465, %v1545
      %v1593 = vadd.f32 %v1470, %v1545
      %v1594 = vadd.f32 %v1473, %v1545
      %v1595 = vadd.f32 %v1478, %v1545
      %v1596 = vadd.f32 %v1481, %v1545
      %v1597 = vadd.f32 %v1486, %v1545
      %v1598 = vadd.f32 %v1489, %v1545
      %v1599 = vadd.f32 %v1494, %v1545
      %v1600 = vadd.f32 %v1497, %v1545
      %v1601 = vadd.f32 %v1502, %v1545
      %v1602 = vadd.f32 %v1505, %v1545
      %v1603 = vadd.f32 %v1510, %v1545
      %v1604 = vadd.f32 %v1513, %v1545
      %v1605 = vadd.f32 %v1518, %v1545
      %v1606 = vadd.f32 %v1521, %v1545
      %v1607 = vadd.f32 %v1526, %v1545
      %v1608 = vadd.f32 %v1529, %v1545
      %v1609 = vadd.f32 %v1534, %v1545
      %v1610 = vadd.f32 %v1537, %v1545
      %v1611 = vmax.f32 %v1547, 0.0
      %v1612 = vmax.f32 %v1548, 0.0
      %v1613 = vmax.f32 %v1549, 0.0
      %v1614 = vmax.f32 %v1550, 0.0
      %v1615 = vmax.f32 %v1551, 0.0
      %v1616 = vmax.f32 %v1552, 0.0
      %v1617 = vmax.f32 %v1553, 0.0
      %v1618 = vmax.f32 %v1554, 0.0
      %v1619 = vmax.f32 %v1555, 0.0
      %v1620 = vmax.f32 %v1556, 0.0
      %v1621 = vmax.f32 %v1557, 0.0
      %v1622 = vmax.f32 %v1558, 0.0
      %v1623 = vmax.f32 %v1559, 0.0
      %v1624 = vmax.f32 %v1560, 0.0
      %v1625 = vmax.f32 %v1561, 0.0
      %v1626 = vmax.f32 %v1562, 0.0
      %v1627 = vmax.f32 %v1563, 0.0
      %v1628 = vmax.f32 %v1564, 0.0
      %v1629 = vmax.f32 %v1565, 0.0
      %v1630 = vmax.f32 %v1566, 0.0
      %v1631 = vmax.f32 %v1567, 0.0
      %v1632 = vmax.f32 %v1568, 0.0
      %v1633 = vmax.f32 %v1569, 0.0
      %v1634 = vmax.f32 %v1570, 0.0
      %v1635 = vmax.f32 %v1571, 0.0
      %v1636 = vmax.f32 %v1572, 0.0
      %v1637 = vmax.f32 %v1573, 0.0
      %v1638 = vmax.f32 %v1574, 0.0
      %v1639 = vmax.f32 %v1575, 0.0
      %v1640 = vmax.f32 %v1576, 0.0
      %v1641 = vmax.f32 %v1577, 0.0
      %v1642 = vmax.f32 %v1578, 0.0
      %v1643 = vmax.f32 %v1579, 0.0
      %v1644 = vmax.f32 %v1580, 0.0
      %v1645 = vmax.f32 %v1581, 0.0
      %v1646 = vmax.f32 %v1582, 0.0
      %v1647 = vmax.f32 %v1583, 0.0
      %v1648 = vmax.f32 %v1584, 0.0
      %v1649 = vmax.f32 %v1585, 0.0
      %v1650 = vmax.f32 %v1586, 0.0
      %v1651 = vmax.f32 %v1587, 0.0
      %v1652 = vmax.f32 %v1588, 0.0
      %v1653 = vmax.f32 %v1589, 0.0
      %v1654 = vmax.f32 %v1590, 0.0
      %v1655 = vmax.f32 %v1591, 0.0
      %v1656 = vmax.f32 %v1592, 0.0
      %v1657 = vmax.f32 %v1593, 0.0
      %v1658 = vmax.f32 %v1594, 0.0
      %v1659 = vmax.f32 %v1595, 0.0
      %v1660 = vmax.f32 %v1596, 0.0
      %v1661 = vmax.f32 %v1597, 0.0
      %v1662 = vmax.f32 %v1598, 0.0
      %v1663 = vmax.f32 %v1599, 0.0
      %v1664 = vmax.f32 %v1600, 0.0
      %v1665 = vmax.f32 %v1601, 0.0
      %v1666 = vmax.f32 %v1602, 0.0
      %v1667 = vmax.f32 %v1603, 0.0
      %v1668 = vmax.f32 %v1604, 0.0
      %v1669 = vmax.f32 %v1605, 0.0
      %v1670 = vmax.f32 %v1606, 0.0
      %v1671 = vmax.f32 %v1607, 0.0
      %v1672 = vmax.f32 %v1608, 0.0
      %v1673 = vmax.f32 %v1609, 0.0
      %v1674 = vmax.f32 %v1610, 0.0
      %v1675 = vpack.c.bf16 %v1612, %v1611
      %v1676 = vpack.c.bf16 %v1614, %v1613
      %v1677 = vpack.c.bf16 %v1616, %v1615
      %v1678 = vpack.c.bf16 %v1618, %v1617
      %v1679 = vpack.c.bf16 %v1620, %v1619
      %v1680 = vpack.c.bf16 %v1622, %v1621
      %v1681 = vpack.c.bf16 %v1624, %v1623
      %v1682 = vpack.c.bf16 %v1626, %v1625
      %v1683 = vpack.c.bf16 %v1628, %v1627
      %v1684 = vpack.c.bf16 %v1630, %v1629
      %v1685 = vpack.c.bf16 %v1632, %v1631
      %v1686 = vpack.c.bf16 %v1634, %v1633
      %v1687 = vpack.c.bf16 %v1636, %v1635
      %v1688 = vpack.c.bf16 %v1638, %v1637
      %v1689 = vpack.c.bf16 %v1640, %v1639
      %v1690 = vpack.c.bf16 %v1642, %v1641
      %v1691 = vpack.c.bf16 %v1644, %v1643
      %v1692 = vpack.c.bf16 %v1646, %v1645
      %v1693 = vpack.c.bf16 %v1648, %v1647
      %v1694 = vpack.c.bf16 %v1650, %v1649
      %v1695 = vpack.c.bf16 %v1652, %v1651
      %v1696 = vpack.c.bf16 %v1654, %v1653
      %v1697 = vpack.c.bf16 %v1656, %v1655
      %v1698 = vpack.c.bf16 %v1658, %v1657
      %v1699 = vpack.c.bf16 %v1660, %v1659
      %v1700 = vpack.c.bf16 %v1662, %v1661
      %v1701 = vpack.c.bf16 %v1664, %v1663
      %v1702 = vpack.c.bf16 %v1666, %v1665
      %v1703 = vpack.c.bf16 %v1668, %v1667
      %v1704 = vpack.c.bf16 %v1670, %v1669
      %v1705 = vpack.c.bf16 %v1672, %v1671
      %v1706 = vpack.c.bf16 %v1674, %v1673
      %v1739 = vunpack.c.l.b16 %v1675
      %v1740 = vunpack.c.h.b16 %v1675
      %v1741 = vunpack.c.l.b16 %v1676
      %v1742 = vunpack.c.h.b16 %v1676
      %v1743 = vunpack.c.l.b16 %v1677
      %v1744 = vunpack.c.h.b16 %v1677
      %v1745 = vunpack.c.l.b16 %v1678
      %v1746 = vunpack.c.h.b16 %v1678
      %v1747 = vunpack.c.l.b16 %v1679
      %v1748 = vunpack.c.h.b16 %v1679
      %v1749 = vunpack.c.l.b16 %v1680
      %v1750 = vunpack.c.h.b16 %v1680
      %v1751 = vunpack.c.l.b16 %v1681
      %v1752 = vunpack.c.h.b16 %v1681
      %v1753 = vunpack.c.l.b16 %v1682
      %v1754 = vunpack.c.h.b16 %v1682
      %v1755 = vunpack.c.l.b16 %v1683
      %v1756 = vunpack.c.h.b16 %v1683
      %v1757 = vunpack.c.l.b16 %v1684
      %v1758 = vunpack.c.h.b16 %v1684
      %v1759 = vunpack.c.l.b16 %v1685
      %v1760 = vunpack.c.h.b16 %v1685
      %v1761 = vunpack.c.l.b16 %v1686
      %v1762 = vunpack.c.h.b16 %v1686
      %v1763 = vunpack.c.l.b16 %v1687
      %v1764 = vunpack.c.h.b16 %v1687
      %v1765 = vunpack.c.l.b16 %v1688
      %v1766 = vunpack.c.h.b16 %v1688
      %v1767 = vunpack.c.l.b16 %v1689
      %v1768 = vunpack.c.h.b16 %v1689
      %v1769 = vunpack.c.l.b16 %v1690
      %v1770 = vunpack.c.h.b16 %v1690
      %v1771 = vunpack.c.l.b16 %v1691
      %v1772 = vunpack.c.h.b16 %v1691
      %v1773 = vunpack.c.l.b16 %v1692
      %v1774 = vunpack.c.h.b16 %v1692
      %v1775 = vunpack.c.l.b16 %v1693
      %v1776 = vunpack.c.h.b16 %v1693
      %v1777 = vunpack.c.l.b16 %v1694
      %v1778 = vunpack.c.h.b16 %v1694
      %v1779 = vunpack.c.l.b16 %v1695
      %v1780 = vunpack.c.h.b16 %v1695
      %v1781 = vunpack.c.l.b16 %v1696
      %v1782 = vunpack.c.h.b16 %v1696
      %v1783 = vunpack.c.l.b16 %v1697
      %v1784 = vunpack.c.h.b16 %v1697
      %v1785 = vunpack.c.l.b16 %v1698
      %v1786 = vunpack.c.h.b16 %v1698
      %v1787 = vunpack.c.l.b16 %v1699
      %v1788 = vunpack.c.h.b16 %v1699
      %v1789 = vunpack.c.l.b16 %v1700
      %v1790 = vunpack.c.h.b16 %v1700
      %v1791 = vunpack.c.l.b16 %v1701
      %v1792 = vunpack.c.h.b16 %v1701
      %v1793 = vunpack.c.l.b16 %v1702
      %v1794 = vunpack.c.h.b16 %v1702
      %v1795 = vunpack.c.l.b16 %v1703
      %v1796 = vunpack.c.h.b16 %v1703
      %v1797 = vunpack.c.l.b16 %v1704
      %v1798 = vunpack.c.h.b16 %v1704
      %v1799 = vunpack.c.l.b16 %v1705
      %v1800 = vunpack.c.h.b16 %v1705
      %v1801 = vunpack.c.l.b16 %v1706
      %v1802 = vunpack.c.h.b16 %v1706
      %v1803 = vpack.c.b16 %v1739, %v1739
      %v1804 = vpack.c.b16 %v1740, %v1740
      %v1805 = vpack.c.b16 %v1741, %v1741
      %v1806 = vpack.c.b16 %v1742, %v1742
      %v1807 = vpack.c.b16 %v1743, %v1743
      %v1808 = vpack.c.b16 %v1744, %v1744
      %v1809 = vpack.c.b16 %v1745, %v1745
      %v1810 = vpack.c.b16 %v1746, %v1746
      %v1811 = vpack.c.b16 %v1747, %v1747
      %v1812 = vpack.c.b16 %v1748, %v1748
      %v1813 = vpack.c.b16 %v1749, %v1749
      %v1814 = vpack.c.b16 %v1750, %v1750
      %v1815 = vpack.c.b16 %v1751, %v1751
      %v1816 = vpack.c.b16 %v1752, %v1752
      %v1817 = vpack.c.b16 %v1753, %v1753
      %v1818 = vpack.c.b16 %v1754, %v1754
      %v1819 = vpack.c.b16 %v1755, %v1755
      %v1820 = vpack.c.b16 %v1756, %v1756
      %v1821 = vpack.c.b16 %v1757, %v1757
      %v1822 = vpack.c.b16 %v1758, %v1758
      %v1823 = vpack.c.b16 %v1759, %v1759
      %v1824 = vpack.c.b16 %v1760, %v1760
      %v1825 = vpack.c.b16 %v1761, %v1761
      %v1826 = vpack.c.b16 %v1762, %v1762
      %v1827 = vpack.c.b16 %v1763, %v1763
      %v1828 = vpack.c.b16 %v1764, %v1764
      %v1829 = vpack.c.b16 %v1765, %v1765
      %v1830 = vpack.c.b16 %v1766, %v1766
      %v1831 = vpack.c.b16 %v1767, %v1767
      %v1832 = vpack.c.b16 %v1768, %v1768
      %v1833 = vpack.c.b16 %v1769, %v1769
      %v1834 = vpack.c.b16 %v1770, %v1770
      %v1835 = vpack.c.b16 %v1771, %v1771
      %v1836 = vpack.c.b16 %v1772, %v1772
      %v1837 = vpack.c.b16 %v1773, %v1773
      %v1838 = vpack.c.b16 %v1774, %v1774
      %v1839 = vpack.c.b16 %v1775, %v1775
      %v1840 = vpack.c.b16 %v1776, %v1776
      %v1841 = vpack.c.b16 %v1777, %v1777
      %v1842 = vpack.c.b16 %v1778, %v1778
      %v1843 = vpack.c.b16 %v1779, %v1779
      %v1844 = vpack.c.b16 %v1780, %v1780
      %v1845 = vpack.c.b16 %v1781, %v1781
      %v1846 = vpack.c.b16 %v1782, %v1782
      %v1847 = vpack.c.b16 %v1783, %v1783
      %v1848 = vpack.c.b16 %v1784, %v1784
      %v1849 = vpack.c.b16 %v1785, %v1785
      %v1850 = vpack.c.b16 %v1786, %v1786
      %v1851 = vpack.c.b16 %v1787, %v1787
      %v1852 = vpack.c.b16 %v1788, %v1788
      %v1853 = vpack.c.b16 %v1789, %v1789
      %v1854 = vpack.c.b16 %v1790, %v1790
      %v1855 = vpack.c.b16 %v1791, %v1791
      %v1856 = vpack.c.b16 %v1792, %v1792
      %v1857 = vpack.c.b16 %v1793, %v1793
      %v1858 = vpack.c.b16 %v1794, %v1794
      %v1859 = vpack.c.b16 %v1795, %v1795
      %v1860 = vpack.c.b16 %v1796, %v1796
      %v1861 = vpack.c.b16 %v1797, %v1797
      %v1862 = vpack.c.b16 %v1798, %v1798
      %v1863 = vpack.c.b16 %v1799, %v1799
      %v1864 = vpack.c.b16 %v1800, %v1800
      %v1865 = vpack.c.b16 %v1801, %v1801
      %v1866 = vpack.c.b16 %v1802, %v1802
      %1931 = vst [vmem:[%s170] sm:$0xf] %v1803
      %1932 = vst [vmem:[%s170 + $0x4] sm:$0xf] %v1804
      %1933 = vst [vmem:[%s170 + $0x8] sm:$0xf] %v1805
      %1934 = vst [vmem:[%s170 + $0xc] sm:$0xf] %v1806
      %1935 = vst [vmem:[%s170 + $0x10] sm:$0xf] %v1807
      %1936 = vst [vmem:[%s170 + $0x14] sm:$0xf] %v1808
      %1937 = vst [vmem:[%s170 + $0x18] sm:$0xf] %v1809
      %1938 = vst [vmem:[%s170 + $0x1c] sm:$0xf] %v1810
      %1939 = vst [vmem:[%s170 + $0x20] sm:$0xf] %v1811
      %1940 = vst [vmem:[%s170 + $0x24] sm:$0xf] %v1812
      %1941 = vst [vmem:[%s170 + $0x28] sm:$0xf] %v1813
      %1942 = vst [vmem:[%s170 + $0x2c] sm:$0xf] %v1814
      %1943 = vst [vmem:[%s170 + $0x30] sm:$0xf] %v1815
      %1944 = vst [vmem:[%s170 + $0x34] sm:$0xf] %v1816
      %1945 = vst [vmem:[%s170 + $0x38] sm:$0xf] %v1817
      %1946 = vst [vmem:[%s170 + $0x3c] sm:$0xf] %v1818
      %1947 = vst [vmem:[%s170 + $0x40] sm:$0xf] %v1819
      %1948 = vst [vmem:[%s170 + $0x44] sm:$0xf] %v1820
      %1949 = vst [vmem:[%s170 + $0x48] sm:$0xf] %v1821
      %1950 = vst [vmem:[%s170 + $0x4c] sm:$0xf] %v1822
      %1951 = vst [vmem:[%s170 + $0x50] sm:$0xf] %v1823
      %1952 = vst [vmem:[%s170 + $0x54] sm:$0xf] %v1824
      %1953 = vst [vmem:[%s170 + $0x58] sm:$0xf] %v1825
      %1954 = vst [vmem:[%s170 + $0x5c] sm:$0xf] %v1826
      %1955 = vst [vmem:[%s170 + $0x60] sm:$0xf] %v1827
      %1956 = vst [vmem:[%s170 + $0x64] sm:$0xf] %v1828
      %1957 = vst [vmem:[%s170 + $0x68] sm:$0xf] %v1829
      %1958 = vst [vmem:[%s170 + $0x6c] sm:$0xf] %v1830
      %1959 = vst [vmem:[%s170 + $0x70] sm:$0xf] %v1831
      %1960 = vst [vmem:[%s170 + $0x74] sm:$0xf] %v1832
      %1961 = vst [vmem:[%s170 + $0x78] sm:$0xf] %v1833
      %1962 = vst [vmem:[%s170 + $0x7c] sm:$0xf] %v1834
      %1963 = vst [vmem:[%s170 + $0x80] sm:$0xf] %v1835
      %1964 = vst [vmem:[%s170 + $0x84] sm:$0xf] %v1836
      %1965 = vst [vmem:[%s170 + $0x88] sm:$0xf] %v1837
      %1966 = vst [vmem:[%s170 + $0x8c] sm:$0xf] %v1838
      %1967 = vst [vmem:[%s170 + $0x90] sm:$0xf] %v1839
      %1968 = vst [vmem:[%s170 + $0x94] sm:$0xf] %v1840
      %1969 = vst [vmem:[%s170 + $0x98] sm:$0xf] %v1841
      %1970 = vst [vmem:[%s170 + $0x9c] sm:$0xf] %v1842
      %1971 = vst [vmem:[%s170 + $0xa0] sm:$0xf] %v1843
      %1972 = vst [vmem:[%s170 + $0xa4] sm:$0xf] %v1844
      %1973 = vst [vmem:[%s170 + $0xa8] sm:$0xf] %v1845
      %1974 = vst [vmem:[%s170 + $0xac] sm:$0xf] %v1846
      %1975 = vst [vmem:[%s170 + $0xb0] sm:$0xf] %v1847
      %1976 = vst [vmem:[%s170 + $0xb4] sm:$0xf] %v1848
      %1977 = vst [vmem:[%s170 + $0xb8] sm:$0xf] %v1849
      %1978 = vst [vmem:[%s170 + $0xbc] sm:$0xf] %v1850
      %1979 = vst [vmem:[%s170 + $0xc0] sm:$0xf] %v1851
      %1980 = vst [vmem:[%s170 + $0xc4] sm:$0xf] %v1852
      %1981 = vst [vmem:[%s170 + $0xc8] sm:$0xf] %v1853
      %1982 = vst [vmem:[%s170 + $0xcc] sm:$0xf] %v1854
      %1983 = vst [vmem:[%s170 + $0xd0] sm:$0xf] %v1855
      %1984 = vst [vmem:[%s170 + $0xd4] sm:$0xf] %v1856
      %1985 = vst [vmem:[%s170 + $0xd8] sm:$0xf] %v1857
      %1986 = vst [vmem:[%s170 + $0xdc] sm:$0xf] %v1858
      %1987 = vst [vmem:[%s170 + $0xe0] sm:$0xf] %v1859
      %1988 = vst [vmem:[%s170 + $0xe4] sm:$0xf] %v1860
      %1989 = vst [vmem:[%s170 + $0xe8] sm:$0xf] %v1861
      %1990 = vst [vmem:[%s170 + $0xec] sm:$0xf] %v1862
      %1991 = vst [vmem:[%s170 + $0xf0] sm:$0xf] %v1863
      %1992 = vst [vmem:[%s170 + $0xf4] sm:$0xf] %v1864
      %1993 = vst [vmem:[%s170 + $0xf8] sm:$0xf] %v1865
      %1994 = vst [vmem:[%s170 + $0xfc] sm:$0xf] %v1866
      %p1995 = scmp.lt.s32.totalorder %s14, 1
      %s1996 = scalar_select %p1995, %s14, 1
      %s1997 = smul.addr %s1996, 64
      %s1998 = smul.addr %s1997, 4
      %s1999 = scalar_lea.vmem %s3, %s1998
      // Predicated region
      $region33: #{variational_encoder_forward.4} parent=31 // pred_check
        %p2000 = pneg %p100
      $region34: #{variational_encoder_forward.4} parent=31 // pred_check_branch
        %2002 = sbr.rel (%p2000) target = $region36
      $region35: #{variational_encoder_forward.4} parent=31 // pred_region
        _
      $region36: #{variational_encoder_forward.4} parent=31 // pred_fallthru
        _
    $region32: #{variational_encoder_forward.4} parent=5 // pred_fallthru
      _
    %p2003 = scmp.le.s32.totalorder 2, %s9
    // Predicated region
    $region37: #{variational_encoder_forward.4} parent=5 // pred_check
      %p2004 = pneg %p2003
    $region38: #{variational_encoder_forward.4} parent=5 // pred_check_branch
      %2006 = sbr.rel (%p2004) target = $region40
    $region39: #{variational_encoder_forward.4} parent=5 // pred_region
      %s2007 = ssub.s32 %s9, 2
      // Predicated region
      $region41: #{variational_encoder_forward.4} parent=39 // pred_check
        %p2008 = pneg %p106
      $region42: #{variational_encoder_forward.4} parent=39 // pred_check_branch
        %2010 = sbr.rel (%p2008) target = $region44
      $region43: #{variational_encoder_forward.4} parent=39 // pred_region
        %p2011 = scmp.lt.s32.totalorder %s15, 1
        %s2012 = scalar_select %p2011, %s15, 1
        %s2013 = smul.addr %s2012, 64
        %s2014 = smul.addr %s2013, 4
        %s2015 = scalar_lea.vmem %s3, %s2014
      $region44: #{variational_encoder_forward.4} parent=39 // pred_fallthru
        _
    $region40: #{variational_encoder_forward.4} parent=5 // pred_fallthru
      _
  $region6: #{variational_encoder_forward.4} parent=0 // loop_footer
    %s13 = sadd.s32 1, %s9
  $region7: #{variational_encoder_forward.4} parent=0 // loop_footer_branch
    %8 = sbr.rel target = $region3
  $region8: #{variational_encoder_forward.4} parent=0 // loop_exit
    _

// kernel: variational_encoder_forward.5
$region0: #{variational_encoder_forward.5}
  #allocation0 [shape = 'u32[]', space=smem, size = 0x4, offset = 0x4, fixed_abs, tag = 'smem constant byte address 0x4 - core index']
  #allocation1 [shape = 'u32[144,128]{1,0:T(1,128)}', space=vmem, size = 0x12000, scoped, tag = 'internal scratch']
  %s0 = inlined_call_operand.vmem [shape: bf16[2,264,384], index: 0, kind: input, shape index: {}]
  %s1 = inlined_call_operand.vmem [shape: bf16[2,384,128], index: 1, kind: input, shape index: {}]
  %s2 = inlined_call_operand.vmem [shape: f32[1,128], index: 2, kind: input, shape index: {}]
  %s3 = inlined_call_operand.vmem [shape: bf16[2,256,128], index: 3, kind: output, shape index: {}]
  %s4 = sld [smem:[#allocation0]]
  $region45: #{variational_encoder_forward.5} parent=0
    _
  %s6 = ssub.s32 1, %s4
  %s7 = scalar_select 0, %s6, %s4
  loop: start=0, step=1, limit=4
  $region2: #{variational_encoder_forward.5} parent=0 // loop_pre_header
    _
  $region3: #{variational_encoder_forward.5} parent=0 // loop_header
    %s9 = sphi 0, %s13
    %p10 = scmp.ge.s32.totalorder %s9, 4
    %s19 = sphi 0, %s21
    %s22 = sphi 0, %s19
    %s23 = sphi 0, %s22
    %s39 = sphi 0, %s23
    %s43 = sphi 0, %s43
    %s45 = sphi 0, %s43
    %s46 = sphi 0, %s45
    %s60 = sphi 0, %s46
    %s64 = sphi 0, %s64
    %s66 = sphi 0, %s64
    %s67 = sphi 0, %s66
    %s81 = sphi 0, %s67
    %s87 = sphi 0, %s89
    %s90 = sphi 0, %s87
    %s91 = sphi 0, %s90
    %s107 = sphi 0, %s91
  $region4: #{variational_encoder_forward.5} parent=0 // loop_header_branch
    %12 = sbr.rel (%p10) target = $region8
  $region5: #{variational_encoder_forward.5} parent=0 // loop_body
    %s14 = ssub.s32 %s9, 1
    %s15 = ssub.s32 %s9, 2
    %s16 = sadd.s32 %s9, 1
    %s17 = ssub.s32 %s9, %s16
    %p18 = scmp.eq.s32.totalorder %s17, 0
    %s20 = sadd.s32 %s19, 1
    %s21 = scalar_select %p18, %s19, %s20
    %p24 = pneg %p18
    %p25 = scmp.eq.s32.totalorder %s9, 1
    %p26 = por %p24, %p25
    %p27 = scmp.ne.s32.totalorder %s19, %s22
    %p28 = scmp.eq.s32.totalorder %s9, 0
    %p29 = por %p27, %p28
    %p30 = scmp.ne.s32.totalorder %s19, %s22
    %p31 = scmp.eq.s32.totalorder %s14, 1
    %p32 = por %p30, %p31
    %p33 = scmp.ne.s32.totalorder %s22, %s23
    %p34 = scmp.eq.s32.totalorder %s14, 0
    %p35 = por %p33, %p34
    %p36 = scmp.ne.s32.totalorder %s22, %s23
    %p37 = scmp.eq.s32.totalorder %s15, 1
    %p38 = por %p36, %p37
    %p40 = scmp.ne.s32.totalorder %s23, %s39
    %p41 = scmp.eq.s32.totalorder %s15, 0
    %p42 = por %p40, %p41
    %s44 = sadd.s32 %s43, 1
    %p47 = scmp.eq.s32.totalorder %s9, 1
    %p48 = scmp.ne.s32.totalorder %s43, %s45
    %p49 = scmp.eq.s32.totalorder %s9, 0
    %p50 = por %p48, %p49
    %p51 = scmp.ne.s32.totalorder %s43, %s45
    %p52 = scmp.eq.s32.totalorder %s14, 1
    %p53 = por %p51, %p52
    %p54 = scmp.ne.s32.totalorder %s45, %s46
    %p55 = scmp.eq.s32.totalorder %s14, 0
    %p56 = por %p54, %p55
    %p57 = scmp.ne.s32.totalorder %s45, %s46
    %p58 = scmp.eq.s32.totalorder %s15, 1
    %p59 = por %p57, %p58
    %p61 = scmp.ne.s32.totalorder %s46, %s60
    %p62 = scmp.eq.s32.totalorder %s15, 0
    %p63 = por %p61, %p62
    %s65 = sadd.s32 %s64, 1
    %p68 = scmp.eq.s32.totalorder %s9, 1
    %p69 = scmp.ne.s32.totalorder %s64, %s66
    %p70 = scmp.eq.s32.totalorder %s9, 0
    %p71 = por %p69, %p70
    %p72 = scmp.ne.s32.totalorder %s64, %s66
    %p73 = scmp.eq.s32.totalorder %s14, 1
    %p74 = por %p72, %p73
    %p75 = scmp.ne.s32.totalorder %s66, %s67
    %p76 = scmp.eq.s32.totalorder %s14, 0
    %p77 = por %p75, %p76
    %p78 = scmp.ne.s32.totalorder %s66, %s67
    %p79 = scmp.eq.s32.totalorder %s15, 1
    %p80 = por %p78, %p79
    %p82 = scmp.ne.s32.totalorder %s67, %s81
    %p83 = scmp.eq.s32.totalorder %s15, 0
    %p84 = por %p82, %p83
    %s85 = ssub.s32 %s9, %s16
    %p86 = scmp.eq.s32.totalorder %s85, 0
    %s88 = sadd.s32 %s87, 1
    %s89 = scalar_select %p86, %s87, %s88
    %p92 = pneg %p86
    %p93 = scmp.eq.s32.totalorder %s9, 1
    %p94 = por %p92, %p93
    %p95 = scmp.ne.s32.totalorder %s87, %s90
    %p96 = scmp.eq.s32.totalorder %s9, 0
    %p97 = por %p95, %p96
    %p98 = scmp.ne.s32.totalorder %s87, %s90
    %p99 = scmp.eq.s32.totalorder %s14, 1
    %p100 = por %p98, %p99
    %p101 = scmp.ne.s32.totalorder %s90, %s91
    %p102 = scmp.eq.s32.totalorder %s14, 0
    %p103 = por %p101, %p102
    %p104 = scmp.ne.s32.totalorder %s90, %s91
    %p105 = scmp.eq.s32.totalorder %s15, 1
    %p106 = por %p104, %p105
    %p108 = scmp.ne.s32.totalorder %s91, %s107
    %p109 = scmp.eq.s32.totalorder %s15, 0
    %p110 = por %p108, %p109
    %p111 = scmp.le.s32.totalorder 1, %s9
    %p112 = scmp.lt.s32.totalorder %s9, 3
    %p113 = pnand %p111, %p112
    %p114 = pneg %p113
    // Predicated region
    $region9: #{variational_encoder_forward.5} parent=5 // pred_check
      _
    $region10: #{variational_encoder_forward.5} parent=5 // pred_check_branch
      %116 = sbr.rel (%p113) target = $region12
    $region11: #{variational_encoder_forward.5} parent=5 // pred_region
      %s117 = ssub.s32 %s9, 1
      // Predicated region
      $region13: #{variational_encoder_forward.5} parent=11 // pred_check
        %p118 = pneg %p56
      $region14: #{variational_encoder_forward.5} parent=11 // pred_check_branch
        %120 = sbr.rel (%p118) target = $region16
      $region15: #{variational_encoder_forward.5} parent=11 // pred_region
        _
      $region16: #{variational_encoder_forward.5} parent=11 // pred_fallthru
        _
      // Predicated region
      $region17: #{variational_encoder_forward.5} parent=11 // pred_check
        %p121 = pneg %p77
      $region18: #{variational_encoder_forward.5} parent=11 // pred_check_branch
        %123 = sbr.rel (%p121) target = $region20
      $region19: #{variational_encoder_forward.5} parent=11 // pred_region
        _
      $region20: #{variational_encoder_forward.5} parent=11 // pred_fallthru
        _
    $region12: #{variational_encoder_forward.5} parent=5 // pred_fallthru
      _
    %p124 = scmp.lt.s32.totalorder %s9, 2
    // Predicated region
    $region21: #{variational_encoder_forward.5} parent=5 // pred_check
      %p125 = pneg %p124
    $region22: #{variational_encoder_forward.5} parent=5 // pred_check_branch
      %127 = sbr.rel (%p125) target = $region24
    $region23: #{variational_encoder_forward.5} parent=5 // pred_region
      // Predicated region
      $region25: #{variational_encoder_forward.5} parent=23 // pred_check
        %p128 = pneg %p29
      $region26: #{variational_encoder_forward.5} parent=23 // pred_check_branch
        %130 = sbr.rel (%p128) target = $region28
      $region27: #{variational_encoder_forward.5} parent=23 // pred_region
        %p131 = scmp.lt.s32.totalorder %s9, 1
        %s132 = scalar_select %p131, %s9, 1
        %s133 = smul.addr %s132, 99
        %s134 = smul.addr %s133, 4
        %s135 = scalar_lea.vmem %s0, %s134
      $region28: #{variational_encoder_forward.5} parent=23 // pred_fallthru
        _
    $region24: #{variational_encoder_forward.5} parent=5 // pred_fallthru
      _
    %p136 = scmp.le.s32.totalorder 1, %s9
    %p137 = scmp.lt.s32.totalorder %s9, 3
    %p138 = pnand %p136, %p137
    %p139 = pneg %p138
    // Predicated region
    $region29: #{variational_encoder_forward.5} parent=5 // pred_check
      _
    $region30: #{variational_encoder_forward.5} parent=5 // pred_check_branch
      %141 = sbr.rel (%p138) target = $region32
    $region31: #{variational_encoder_forward.5} parent=5 // pred_region
      %s142 = ssub.s32 %s9, 1
      %p143 = scmp.lt.s32.totalorder %s14, 1
      %s144 = scalar_select %p143, %s14, 1
      %s145 = smul.addr %s144, 99
      %s146 = smul.addr %s145, 4
      %s147 = scalar_lea.vmem %s0, %s146
      %p148 = pneg %p35
      %p149 = pneg %p32
      %p150 = pneg %p56
      %p151 = pneg %p53
      %p152 = pneg %p77
      %p153 = pneg %p74
      %p154 = pneg %p103
      %p155 = pneg %p100
      %p156 = scmp.lt.s32.totalorder %s14, 1
      %s157 = scalar_select %p156, %s14, 1
      %s158 = smul.addr %s157, 32
      %s159 = smul.addr %s158, 4
      %s160 = scalar_lea.vmem %s3, %s159
      %p161 = scmp.lt.s32.totalorder %s14, 1
      %s162 = scalar_select %p161, %s14, 1
      %s163 = smul.addr %s162, 99
      %s164 = smul.addr %s163, 4
      %s165 = scalar_lea.vmem %s0, %s164
      %p166 = scmp.lt.s32.totalorder %s14, 1
      %s167 = scalar_select %p166, %s14, 1
      %s168 = smul.addr %s167, 32
      %s169 = smul.addr %s168, 4
      %s170 = scalar_lea.vmem %s3, %s169
      %v172 = vld [vmem:[%s165] sm:$0xff]
      %v173 = vld [vmem:[%s165 + $0x8] sm:$0xf]
      %v174 = vld [vmem:[%s165 + $0xc] sm:$0xff]
      %v175 = vld [vmem:[%s165 + $0x14] sm:$0xf]
      %v176 = vld [vmem:[%s165 + $0x18] sm:$0xff]
      %v177 = vld [vmem:[%s165 + $0x20] sm:$0xf]
      %v178 = vld [vmem:[%s165 + $0x24] sm:$0xff]
      %v179 = vld [vmem:[%s165 + $0x2c] sm:$0xf]
      %v180 = vld [vmem:[%s165 + $0x30] sm:$0xff]
      %v181 = vld [vmem:[%s165 + $0x38] sm:$0xf]
      %v182 = vld [vmem:[%s165 + $0x3c] sm:$0xff]
      %v183 = vld [vmem:[%s165 + $0x44] sm:$0xf]
      %v184 = vld [vmem:[%s165 + $0x48] sm:$0xff]
      %v185 = vld [vmem:[%s165 + $0x50] sm:$0xf]
      %v186 = vld [vmem:[%s165 + $0x54] sm:$0xff]
      %v187 = vld [vmem:[%s165 + $0x5c] sm:$0xf]
      %v188 = vld [vmem:[%s165 + $0x60] sm:$0xff]
      %v189 = vld [vmem:[%s165 + $0x68] sm:$0xf]
      %v190 = vld [vmem:[%s165 + $0x6c] sm:$0xff]
      %v191 = vld [vmem:[%s165 + $0x74] sm:$0xf]
      %v192 = vld [vmem:[%s165 + $0x78] sm:$0xff]
      %v193 = vld [vmem:[%s165 + $0x80] sm:$0xf]
      %v194 = vld [vmem:[%s165 + $0x84] sm:$0xff]
      %v195 = vld [vmem:[%s165 + $0x8c] sm:$0xf]
      %v196 = vld [vmem:[%s165 + $0x90] sm:$0xff]
      %v197 = vld [vmem:[%s165 + $0x98] sm:$0xf]
      %v198 = vld [vmem:[%s165 + $0x9c] sm:$0xff]
      %v199 = vld [vmem:[%s165 + $0xa4] sm:$0xf]
      %v200 = vld [vmem:[%s165 + $0xa8] sm:$0xff]
      %v201 = vld [vmem:[%s165 + $0xb0] sm:$0xf]
      %v202 = vld [vmem:[%s165 + $0xb4] sm:$0xff]
      %v203 = vld [vmem:[%s165 + $0xbc] sm:$0xf]
      %v204 = vld [vmem:[%s165 + $0xc0] sm:$0xff]
      %v205 = vld [vmem:[%s165 + $0xc8] sm:$0xf]
      %v206 = vld [vmem:[%s165 + $0xcc] sm:$0xff]
      %v207 = vld [vmem:[%s165 + $0xd4] sm:$0xf]
      %v208 = vld [vmem:[%s165 + $0xd8] sm:$0xff]
      %v209 = vld [vmem:[%s165 + $0xe0] sm:$0xf]
      %v210 = vld [vmem:[%s165 + $0xe4] sm:$0xff]
      %v211 = vld [vmem:[%s165 + $0xec] sm:$0xf]
      %v212 = vld [vmem:[%s165 + $0xf0] sm:$0xff]
      %v213 = vld [vmem:[%s165 + $0xf8] sm:$0xf]
      %v214 = vld [vmem:[%s165 + $0xfc] sm:$0xff]
      %v215 = vld [vmem:[%s165 + $0x104] sm:$0xf]
      %v216 = vld [vmem:[%s165 + $0x108] sm:$0xff]
      %v217 = vld [vmem:[%s165 + $0x110] sm:$0xf]
      %v218 = vld [vmem:[%s165 + $0x114] sm:$0xff]
      %v219 = vld [vmem:[%s165 + $0x11c] sm:$0xf]
      %v220 = vld [vmem:[%s165 + $0x120] sm:$0xff]
      %v221 = vld [vmem:[%s165 + $0x128] sm:$0xf]
      %v222 = vld [vmem:[%s165 + $0x12c] sm:$0xff]
      %v223 = vld [vmem:[%s165 + $0x134] sm:$0xf]
      %v224 = vld [vmem:[%s165 + $0x138] sm:$0xff]
      %v225 = vld [vmem:[%s165 + $0x140] sm:$0xf]
      %v226 = vld [vmem:[%s165 + $0x144] sm:$0xff]
      %v227 = vld [vmem:[%s165 + $0x14c] sm:$0xf]
      %v228 = vld [vmem:[%s165 + $0x150] sm:$0xff]
      %v229 = vld [vmem:[%s165 + $0x158] sm:$0xf]
      %v230 = vld [vmem:[%s165 + $0x15c] sm:$0xff]
      %v231 = vld [vmem:[%s165 + $0x164] sm:$0xf]
      %v232 = vld [vmem:[%s165 + $0x168] sm:$0xff]
      %v233 = vld [vmem:[%s165 + $0x170] sm:$0xf]
      %v234 = vld [vmem:[%s165 + $0x174] sm:$0xff]
      %v235 = vld [vmem:[%s165 + $0x17c] sm:$0xf]
      %v236 = vld [vmem:[%s165 + $0xc] sm:$0xff]
      %v237 = vld [vmem:[%s165 + $0x14] sm:$0xf]
      %v238 = vld [vmem:[%s165 + $0x18] sm:$0xff]
      %v239 = vld [vmem:[%s165 + $0x20] sm:$0xf]
      %v240 = vld [vmem:[%s165 + $0x24] sm:$0xff]
      %v241 = vld [vmem:[%s165 + $0x2c] sm:$0xf]
      %v242 = vld [vmem:[%s165 + $0x30] sm:$0xff]
      %v243 = vld [vmem:[%s165 + $0x38] sm:$0xf]
      %v244 = vld [vmem:[%s165 + $0x3c] sm:$0xff]
      %v245 = vld [vmem:[%s165 + $0x44] sm:$0xf]
      %v246 = vld [vmem:[%s165 + $0x48] sm:$0xff]
      %v247 = vld [vmem:[%s165 + $0x50] sm:$0xf]
      %v248 = vld [vmem:[%s165 + $0x54] sm:$0xff]
      %v249 = vld [vmem:[%s165 + $0x5c] sm:$0xf]
      %v250 = vld [vmem:[%s165 + $0x60] sm:$0xff]
      %v251 = vld [vmem:[%s165 + $0x68] sm:$0xf]
      %v252 = vld [vmem:[%s165 + $0x6c] sm:$0xff]
      %v253 = vld [vmem:[%s165 + $0x74] sm:$0xf]
      %v254 = vld [vmem:[%s165 + $0x78] sm:$0xff]
      %v255 = vld [vmem:[%s165 + $0x80] sm:$0xf]
      %v256 = vld [vmem:[%s165 + $0x84] sm:$0xff]
      %v257 = vld [vmem:[%s165 + $0x8c] sm:$0xf]
      %v258 = vld [vmem:[%s165 + $0x90] sm:$0xff]
      %v259 = vld [vmem:[%s165 + $0x98] sm:$0xf]
      %v260 = vld [vmem:[%s165 + $0x9c] sm:$0xff]
      %v261 = vld [vmem:[%s165 + $0xa4] sm:$0xf]
      %v262 = vld [vmem:[%s165 + $0xa8] sm:$0xff]
      %v263 = vld [vmem:[%s165 + $0xb0] sm:$0xf]
      %v264 = vld [vmem:[%s165 + $0xb4] sm:$0xff]
      %v265 = vld [vmem:[%s165 + $0xbc] sm:$0xf]
      %v266 = vld [vmem:[%s165 + $0xc0] sm:$0xff]
      %v267 = vld [vmem:[%s165 + $0xc8] sm:$0xf]
      %v268 = vld [vmem:[%s165 + $0xcc] sm:$0xff]
      %v269 = vld [vmem:[%s165 + $0xd4] sm:$0xf]
      %v270 = vld [vmem:[%s165 + $0xd8] sm:$0xff]
      %v271 = vld [vmem:[%s165 + $0xe0] sm:$0xf]
      %v272 = vld [vmem:[%s165 + $0xe4] sm:$0xff]
      %v273 = vld [vmem:[%s165 + $0xec] sm:$0xf]
      %v274 = vld [vmem:[%s165 + $0xf0] sm:$0xff]
      %v275 = vld [vmem:[%s165 + $0xf8] sm:$0xf]
      %v276 = vld [vmem:[%s165 + $0xfc] sm:$0xff]
      %v277 = vld [vmem:[%s165 + $0x104] sm:$0xf]
      %v278 = vld [vmem:[%s165 + $0x108] sm:$0xff]
      %v279 = vld [vmem:[%s165 + $0x110] sm:$0xf]
      %v280 = vld [vmem:[%s165 + $0x114] sm:$0xff]
      %v281 = vld [vmem:[%s165 + $0x11c] sm:$0xf]
      %v282 = vld [vmem:[%s165 + $0x120] sm:$0xff]
      %v283 = vld [vmem:[%s165 + $0x128] sm:$0xf]
      %v284 = vld [vmem:[%s165 + $0x12c] sm:$0xff]
      %v285 = vld [vmem:[%s165 + $0x134] sm:$0xf]
      %v286 = vld [vmem:[%s165 + $0x138] sm:$0xff]
      %v287 = vld [vmem:[%s165 + $0x140] sm:$0xf]
      %v288 = vld [vmem:[%s165 + $0x144] sm:$0xff]
      %v289 = vld [vmem:[%s165 + $0x14c] sm:$0xf]
      %v290 = vld [vmem:[%s165 + $0x150] sm:$0xff]
      %v291 = vld [vmem:[%s165 + $0x158] sm:$0xf]
      %v292 = vld [vmem:[%s165 + $0x15c] sm:$0xff]
      %v293 = vld [vmem:[%s165 + $0x164] sm:$0xf]
      %v294 = vld [vmem:[%s165 + $0x168] sm:$0xff]
      %v295 = vld [vmem:[%s165 + $0x170] sm:$0xf]
      %v296 = vld [vmem:[%s165 + $0x174] sm:$0xff]
      %v297 = vld [vmem:[%s165 + $0x17c] sm:$0xf]
      %v298 = vld [vmem:[%s165 + $0x180] sm:$0xff]
      %v299 = vld [vmem:[%s165 + $0x188] sm:$0xf]
      %v300 = vld [vmem:[%s1] sm:$0xf]
      %v301 = vld [vmem:[%s1 + $0x4] sm:$0xf]
      %v302 = vld [vmem:[%s1 + $0x8] sm:$0xf]
      %v303 = vld [vmem:[%s1 + $0xc] sm:$0xf]
      %v304 = vld [vmem:[%s1 + $0x10] sm:$0xf]
      %v305 = vld [vmem:[%s1 + $0x14] sm:$0xf]
      %v306 = vld [vmem:[%s1 + $0x18] sm:$0xf]
      %v307 = vld [vmem:[%s1 + $0x1c] sm:$0xf]
      %v308 = vld [vmem:[%s1 + $0x20] sm:$0xf]
      %v309 = vld [vmem:[%s1 + $0x24] sm:$0xf]
      %v310 = vld [vmem:[%s1 + $0x28] sm:$0xf]
      %v311 = vld [vmem:[%s1 + $0x2c] sm:$0xf]
      %v312 = vld [vmem:[%s1 + $0x30] sm:$0xf]
      %v313 = vld [vmem:[%s1 + $0x34] sm:$0xf]
      %v314 = vld [vmem:[%s1 + $0x38] sm:$0xf]
      %v315 = vld [vmem:[%s1 + $0x3c] sm:$0xf]
      %v316 = vld [vmem:[%s1 + $0x40] sm:$0xf]
      %v317 = vld [vmem:[%s1 + $0x44] sm:$0xf]
      %v318 = vld [vmem:[%s1 + $0x48] sm:$0xf]
      %v319 = vld [vmem:[%s1 + $0x4c] sm:$0xf]
      %v320 = vld [vmem:[%s1 + $0x50] sm:$0xf]
      %v321 = vld [vmem:[%s1 + $0x54] sm:$0xf]
      %v322 = vld [vmem:[%s1 + $0x58] sm:$0xf]
      %v323 = vld [vmem:[%s1 + $0x5c] sm:$0xf]
      %v324 = vld [vmem:[%s1 + $0x60] sm:$0xf]
      %v325 = vld [vmem:[%s1 + $0x64] sm:$0xf]
      %v326 = vld [vmem:[%s1 + $0x68] sm:$0xf]
      %v327 = vld [vmem:[%s1 + $0x6c] sm:$0xf]
      %v328 = vld [vmem:[%s1 + $0x70] sm:$0xf]
      %v329 = vld [vmem:[%s1 + $0x74] sm:$0xf]
      %v330 = vld [vmem:[%s1 + $0x78] sm:$0xf]
      %v331 = vld [vmem:[%s1 + $0x7c] sm:$0xf]
      %v332 = vld [vmem:[%s1 + $0x80] sm:$0xf]
      %v333 = vld [vmem:[%s1 + $0x84] sm:$0xf]
      %v334 = vld [vmem:[%s1 + $0x88] sm:$0xf]
      %v335 = vld [vmem:[%s1 + $0x8c] sm:$0xf]
      %v336 = vld [vmem:[%s1 + $0x90] sm:$0xf]
      %v337 = vld [vmem:[%s1 + $0x94] sm:$0xf]
      %v338 = vld [vmem:[%s1 + $0x98] sm:$0xf]
      %v339 = vld [vmem:[%s1 + $0x9c] sm:$0xf]
      %v340 = vld [vmem:[%s1 + $0xa0] sm:$0xf]
      %v341 = vld [vmem:[%s1 + $0xa4] sm:$0xf]
      %v342 = vld [vmem:[%s1 + $0xa8] sm:$0xf]
      %v343 = vld [vmem:[%s1 + $0xac] sm:$0xf]
      %v344 = vld [vmem:[%s1 + $0xb0] sm:$0xf]
      %v345 = vld [vmem:[%s1 + $0xb4] sm:$0xf]
      %v346 = vld [vmem:[%s1 + $0xb8] sm:$0xf]
      %v347 = vld [vmem:[%s1 + $0xbc] sm:$0xf]
      %s348 = scalar_lea.vmem %s1, 192
      %v349 = vld [vmem:[%s348] sm:$0xf]
      %v350 = vld [vmem:[%s348 + $0x4] sm:$0xf]
      %v351 = vld [vmem:[%s348 + $0x8] sm:$0xf]
      %v352 = vld [vmem:[%s348 + $0xc] sm:$0xf]
      %v353 = vld [vmem:[%s348 + $0x10] sm:$0xf]
      %v354 = vld [vmem:[%s348 + $0x14] sm:$0xf]
      %v355 = vld [vmem:[%s348 + $0x18] sm:$0xf]
      %v356 = vld [vmem:[%s348 + $0x1c] sm:$0xf]
      %v357 = vld [vmem:[%s348 + $0x20] sm:$0xf]
      %v358 = vld [vmem:[%s348 + $0x24] sm:$0xf]
      %v359 = vld [vmem:[%s348 + $0x28] sm:$0xf]
      %v360 = vld [vmem:[%s348 + $0x2c] sm:$0xf]
      %v361 = vld [vmem:[%s348 + $0x30] sm:$0xf]
      %v362 = vld [vmem:[%s348 + $0x34] sm:$0xf]
      %v363 = vld [vmem:[%s348 + $0x38] sm:$0xf]
      %v364 = vld [vmem:[%s348 + $0x3c] sm:$0xf]
      %v365 = vld [vmem:[%s348 + $0x40] sm:$0xf]
      %v366 = vld [vmem:[%s348 + $0x44] sm:$0xf]
      %v367 = vld [vmem:[%s348 + $0x48] sm:$0xf]
      %v368 = vld [vmem:[%s348 + $0x4c] sm:$0xf]
      %v369 = vld [vmem:[%s348 + $0x50] sm:$0xf]
      %v370 = vld [vmem:[%s348 + $0x54] sm:$0xf]
      %v371 = vld [vmem:[%s348 + $0x58] sm:$0xf]
      %v372 = vld [vmem:[%s348 + $0x5c] sm:$0xf]
      %v373 = vld [vmem:[%s348 + $0x60] sm:$0xf]
      %v374 = vld [vmem:[%s348 + $0x64] sm:$0xf]
      %v375 = vld [vmem:[%s348 + $0x68] sm:$0xf]
      %v376 = vld [vmem:[%s348 + $0x6c] sm:$0xf]
      %v377 = vld [vmem:[%s348 + $0x70] sm:$0xf]
      %v378 = vld [vmem:[%s348 + $0x74] sm:$0xf]
      %v379 = vld [vmem:[%s348 + $0x78] sm:$0xf]
      %v380 = vld [vmem:[%s348 + $0x7c] sm:$0xf]
      %v381 = vld [vmem:[%s348 + $0x80] sm:$0xf]
      %v382 = vld [vmem:[%s348 + $0x84] sm:$0xf]
      %v383 = vld [vmem:[%s348 + $0x88] sm:$0xf]
      %v384 = vld [vmem:[%s348 + $0x8c] sm:$0xf]
      %v385 = vld [vmem:[%s348 + $0x90] sm:$0xf]
      %v386 = vld [vmem:[%s348 + $0x94] sm:$0xf]
      %v387 = vld [vmem:[%s348 + $0x98] sm:$0xf]
      %v388 = vld [vmem:[%s348 + $0x9c] sm:$0xf]
      %v389 = vld [vmem:[%s348 + $0xa0] sm:$0xf]
      %v390 = vld [vmem:[%s348 + $0xa4] sm:$0xf]
      %v391 = vld [vmem:[%s348 + $0xa8] sm:$0xf]
      %v392 = vld [vmem:[%s348 + $0xac] sm:$0xf]
      %v393 = vld [vmem:[%s348 + $0xb0] sm:$0xf]
      %v394 = vld [vmem:[%s348 + $0xb4] sm:$0xf]
      %v395 = vld [vmem:[%s348 + $0xb8] sm:$0xf]
      %v396 = vld [vmem:[%s348 + $0xbc] sm:$0xf]
      %v461 = vunpack.c.l.b16 %v236
      %v462 = vunpack.c.h.b16 %v236
      %v463 = vunpack.c.l.b16 %v237
      %v464 = vunpack.c.l.b16 %v238
      %v465 = vunpack.c.h.b16 %v238
      %v466 = vunpack.c.l.b16 %v239
      %v467 = vunpack.c.l.b16 %v240
      %v468 = vunpack.c.h.b16 %v240
      %v469 = vunpack.c.l.b16 %v241
      %v470 = vunpack.c.l.b16 %v242
      %v471 = vunpack.c.h.b16 %v242
      %v472 = vunpack.c.l.b16 %v243
      %v473 = vunpack.c.l.b16 %v244
      %v474 = vunpack.c.h.b16 %v244
      %v475 = vunpack.c.l.b16 %v245
      %v476 = vunpack.c.l.b16 %v246
      %v477 = vunpack.c.h.b16 %v246
      %v478 = vunpack.c.l.b16 %v247
      %v479 = vunpack.c.l.b16 %v248
      %v480 = vunpack.c.h.b16 %v248
      %v481 = vunpack.c.l.b16 %v249
      %v482 = vunpack.c.l.b16 %v250
      %v483 = vunpack.c.h.b16 %v250
      %v484 = vunpack.c.l.b16 %v251
      %v485 = vunpack.c.l.b16 %v252
      %v486 = vunpack.c.h.b16 %v252
      %v487 = vunpack.c.l.b16 %v253
      %v488 = vunpack.c.l.b16 %v254
      %v489 = vunpack.c.h.b16 %v254
      %v490 = vunpack.c.l.b16 %v255
      %v491 = vunpack.c.l.b16 %v256
      %v492 = vunpack.c.h.b16 %v256
      %v493 = vunpack.c.l.b16 %v257
      %v494 = vunpack.c.l.b16 %v258
      %v495 = vunpack.c.h.b16 %v258
      %v496 = vunpack.c.l.b16 %v259
      %v497 = vunpack.c.l.b16 %v260
      %v498 = vunpack.c.h.b16 %v260
      %v499 = vunpack.c.l.b16 %v261
      %v500 = vunpack.c.l.b16 %v262
      %v501 = vunpack.c.h.b16 %v262
      %v502 = vunpack.c.l.b16 %v263
      %v503 = vunpack.c.l.b16 %v264
      %v504 = vunpack.c.h.b16 %v264
      %v505 = vunpack.c.l.b16 %v265
      %v506 = vunpack.c.l.b16 %v266
      %v507 = vunpack.c.h.b16 %v266
      %v508 = vunpack.c.l.b16 %v267
      %v509 = vunpack.c.l.b16 %v268
      %v510 = vunpack.c.h.b16 %v268
      %v511 = vunpack.c.l.b16 %v269
      %v512 = vunpack.c.l.b16 %v270
      %v513 = vunpack.c.h.b16 %v270
      %v514 = vunpack.c.l.b16 %v271
      %v515 = vunpack.c.l.b16 %v272
      %v516 = vunpack.c.h.b16 %v272
      %v517 = vunpack.c.l.b16 %v273
      %v518 = vunpack.c.l.b16 %v274
      %v519 = vunpack.c.h.b16 %v274
      %v520 = vunpack.c.l.b16 %v275
      %v521 = vunpack.c.l.b16 %v276
      %v522 = vunpack.c.h.b16 %v276
      %v523 = vunpack.c.l.b16 %v277
      %v524 = vunpack.c.l.b16 %v278
      %v525 = vunpack.c.h.b16 %v278
      %v526 = vunpack.c.l.b16 %v279
      %v527 = vunpack.c.l.b16 %v280
      %v528 = vunpack.c.h.b16 %v280
      %v529 = vunpack.c.l.b16 %v281
      %v530 = vunpack.c.l.b16 %v282
      %v531 = vunpack.c.h.b16 %v282
      %v532 = vunpack.c.l.b16 %v283
      %v533 = vunpack.c.l.b16 %v284
      %v534 = vunpack.c.h.b16 %v284
      %v535 = vunpack.c.l.b16 %v285
      %v536 = vunpack.c.l.b16 %v286
      %v537 = vunpack.c.h.b16 %v286
      %v538 = vunpack.c.l.b16 %v287
      %v539 = vunpack.c.l.b16 %v288
      %v540 = vunpack.c.h.b16 %v288
      %v541 = vunpack.c.l.b16 %v289
      %v542 = vunpack.c.l.b16 %v290
      %v543 = vunpack.c.h.b16 %v290
      %v544 = vunpack.c.l.b16 %v291
      %v545 = vunpack.c.l.b16 %v292
      %v546 = vunpack.c.h.b16 %v292
      %v547 = vunpack.c.l.b16 %v293
      %v548 = vunpack.c.l.b16 %v294
      %v549 = vunpack.c.h.b16 %v294
      %v550 = vunpack.c.l.b16 %v295
      %v551 = vunpack.c.l.b16 %v296
      %v552 = vunpack.c.h.b16 %v296
      %v553 = vunpack.c.l.b16 %v297
      %v554 = vunpack.c.l.b16 %v298
      %v555 = vunpack.c.h.b16 %v298
      %v556 = vunpack.c.l.b16 %v299
      %v557 = vpack.c.b16 %v464, %v461
      %v558 = vpack.c.b16 %v465, %v462
      %v559 = vpack.c.b16 %v466, %v463
      %v560 = vpack.c.b16 %v470, %v467
      %v561 = vpack.c.b16 %v471, %v468
      %v562 = vpack.c.b16 %v472, %v469
      %v563 = vpack.c.b16 %v476, %v473
      %v564 = vpack.c.b16 %v477, %v474
      %v565 = vpack.c.b16 %v478, %v475
      %v566 = vpack.c.b16 %v482, %v479
      %v567 = vpack.c.b16 %v483, %v480
      %v568 = vpack.c.b16 %v484, %v481
      %v569 = vpack.c.b16 %v488, %v485
      %v570 = vpack.c.b16 %v489, %v486
      %v571 = vpack.c.b16 %v490, %v487
      %v572 = vpack.c.b16 %v494, %v491
      %v573 = vpack.c.b16 %v495, %v492
      %v574 = vpack.c.b16 %v496, %v493
      %v575 = vpack.c.b16 %v500, %v497
      %v576 = vpack.c.b16 %v501, %v498
      %v577 = vpack.c.b16 %v502, %v499
      %v578 = vpack.c.b16 %v506, %v503
      %v579 = vpack.c.b16 %v507, %v504
      %v580 = vpack.c.b16 %v508, %v505
      %v581 = vpack.c.b16 %v512, %v509
      %v582 = vpack.c.b16 %v513, %v510
      %v583 = vpack.c.b16 %v514, %v511
      %v584 = vpack.c.b16 %v518, %v515
      %v585 = vpack.c.b16 %v519, %v516
      %v586 = vpack.c.b16 %v520, %v517
      %v587 = vpack.c.b16 %v524, %v521
      %v588 = vpack.c.b16 %v525, %v522
      %v589 = vpack.c.b16 %v526, %v523
      %v590 = vpack.c.b16 %v530, %v527
      %v591 = vpack.c.b16 %v531, %v528
      %v592 = vpack.c.b16 %v532, %v529
      %v593 = vpack.c.b16 %v536, %v533
      %v594 = vpack.c.b16 %v537, %v534
      %v595 = vpack.c.b16 %v538, %v535
      %v596 = vpack.c.b16 %v542, %v539
      %v597 = vpack.c.b16 %v543, %v540
      %v598 = vpack.c.b16 %v544, %v541
      %v599 = vpack.c.b16 %v548, %v545
      %v600 = vpack.c.b16 %v549, %v546
      %v601 = vpack.c.b16 %v550, %v547
      %v602 = vpack.c.b16 %v554, %v551
      %v603 = vpack.c.b16 %v555, %v552
      %v604 = vpack.c.b16 %v556, %v553
      %v701 = vunpack.c.l.b16 %v349
      %v702 = vunpack.c.l.b16 %v350
      %v703 = vunpack.c.l.b16 %v351
      %v704 = vunpack.c.l.b16 %v352
      %v705 = vunpack.c.l.b16 %v353
      %v706 = vunpack.c.l.b16 %v354
      %v707 = vunpack.c.l.b16 %v355
      %v708 = vunpack.c.l.b16 %v356
      %v709 = vunpack.c.l.b16 %v357
      %v710 = vunpack.c.l.b16 %v358
      %v711 = vunpack.c.l.b16 %v359
      %v712 = vunpack.c.l.b16 %v360
      %v713 = vunpack.c.l.b16 %v361
      %v714 = vunpack.c.l.b16 %v362
      %v715 = vunpack.c.l.b16 %v363
      %v716 = vunpack.c.l.b16 %v364
      %v717 = vunpack.c.l.b16 %v365
      %v718 = vunpack.c.l.b16 %v366
      %v719 = vunpack.c.l.b16 %v367
      %v720 = vunpack.c.l.b16 %v368
      %v721 = vunpack.c.l.b16 %v369
      %v722 = vunpack.c.l.b16 %v370
      %v723 = vunpack.c.l.b16 %v371
      %v724 = vunpack.c.l.b16 %v372
      %v725 = vunpack.c.l.b16 %v373
      %v726 = vunpack.c.l.b16 %v374
      %v727 = vunpack.c.l.b16 %v375
      %v728 = vunpack.c.l.b16 %v376
      %v729 = vunpack.c.l.b16 %v377
      %v730 = vunpack.c.l.b16 %v378
      %v731 = vunpack.c.l.b16 %v379
      %v732 = vunpack.c.l.b16 %v380
      %v733 = vunpack.c.l.b16 %v381
      %v734 = vunpack.c.l.b16 %v382
      %v735 = vunpack.c.l.b16 %v383
      %v736 = vunpack.c.l.b16 %v384
      %v737 = vunpack.c.l.b16 %v385
      %v738 = vunpack.c.l.b16 %v386
      %v739 = vunpack.c.l.b16 %v387
      %v740 = vunpack.c.l.b16 %v388
      %v741 = vunpack.c.l.b16 %v389
      %v742 = vunpack.c.l.b16 %v390
      %v743 = vunpack.c.l.b16 %v391
      %v744 = vunpack.c.l.b16 %v392
      %v745 = vunpack.c.l.b16 %v393
      %v746 = vunpack.c.l.b16 %v394
      %v747 = vunpack.c.l.b16 %v395
      %v748 = vunpack.c.l.b16 %v396
      %v749 = vpack.c.b16 %v702, %v701
      %v750 = vpack.c.b16 %v704, %v703
      %v751 = vpack.c.b16 %v706, %v705
      %v752 = vpack.c.b16 %v708, %v707
      %v753 = vpack.c.b16 %v710, %v709
      %v754 = vpack.c.b16 %v712, %v711
      %v755 = vpack.c.b16 %v714, %v713
      %v756 = vpack.c.b16 %v716, %v715
      %v757 = vpack.c.b16 %v718, %v717
      %v758 = vpack.c.b16 %v720, %v719
      %v759 = vpack.c.b16 %v722, %v721
      %v760 = vpack.c.b16 %v724, %v723
      %v761 = vpack.c.b16 %v726, %v725
      %v762 = vpack.c.b16 %v728, %v727
      %v763 = vpack.c.b16 %v730, %v729
      %v764 = vpack.c.b16 %v732, %v731
      %v765 = vpack.c.b16 %v734, %v733
      %v766 = vpack.c.b16 %v736, %v735
      %v767 = vpack.c.b16 %v738, %v737
      %v768 = vpack.c.b16 %v740, %v739
      %v769 = vpack.c.b16 %v742, %v741
      %v770 = vpack.c.b16 %v744, %v743
      %v771 = vpack.c.b16 %v746, %v745
      %v772 = vpack.c.b16 %v748, %v747
      %797 = vmatprep.subr.bf16.mxu0 0
      %798 = vmatpush1.bf16.msra.mxu0 %v749
      %799 = vmatprep.subr.bf16.mxu0 0
      %800 = vmatpush1.bf16.msra.mxu0 %v750
      %801 = vmatprep.subr.bf16.mxu0 0
      %802 = vmatpush1.bf16.msra.mxu0 %v751
      %803 = vmatprep.subr.bf16.mxu0 0
      %804 = vmatpush1.bf16.msra.mxu0 %v752
      %805 = vmatprep.subr.bf16.mxu0 0
      %806 = vmatpush1.bf16.msra.mxu0 %v753
      %807 = vmatprep.subr.bf16.mxu0 0
      %808 = vmatpush1.bf16.msra.mxu0 %v754
      %809 = vmatprep.subr.bf16.mxu0 0
      %810 = vmatpush1.bf16.msra.mxu0 %v755
      %811 = vmatprep.subr.bf16.mxu0 0
      %812 = vmatpush1.bf16.msra.mxu0 %v756
      %813 = vmatprep.subr.bf16.mxu0 0
      %814 = vmatpush1.bf16.msra.mxu0 %v757
      %815 = vmatprep.subr.bf16.mxu0 0
      %816 = vmatpush1.bf16.msra.mxu0 %v758
      %817 = vmatprep.subr.bf16.mxu0 0
      %818 = vmatpush1.bf16.msra.mxu0 %v759
      %819 = vmatprep.subr.bf16.mxu0 0
      %820 = vmatpush1.bf16.msra.mxu0 %v760
      %821 = vmatprep.subr.bf16.mxu0 0
      %822 = vmatpush1.bf16.msra.mxu0 %v761
      %823 = vmatprep.subr.bf16.mxu0 0
      %824 = vmatpush1.bf16.msra.mxu0 %v762
      %825 = vmatprep.subr.bf16.mxu0 0
      %826 = vmatpush1.bf16.msra.mxu0 %v763
      %827 = vmatprep.subr.bf16.mxu0 0
      %828 = vmatpush1.bf16.msra.mxu0 %v764
      %829 = vmatprep.mubr.bf16.mxu0 %v558
      %830 = vmatmul.mubr.bf16.gmra.mrb[0].mxu0 %v557
      %v831 = vpop.f32.mrb[0].mxu0
      %v832 = vadd.f32 0.0, %v831
      %v833 = vpop.f32.mrb[0].mxu0
      %v834 = vpop.f32.mrb[0].mxu0
      %v835 = vadd.f32 0.0, %v834
      %v836 = vpop.f32.mrb[0].mxu0
      %837 = vmatprep.mubr.bf16.mxu0 %v561
      %838 = vmatmul.mubr.bf16.gmra.mrb[0].mxu0 %v560
      %v839 = vpop.f32.mrb[0].mxu0
      %v840 = vadd.f32 0.0, %v839
      %v841 = vpop.f32.mrb[0].mxu0
      %v842 = vpop.f32.mrb[0].mxu0
      %v843 = vadd.f32 0.0, %v842
      %v844 = vpop.f32.mrb[0].mxu0
      %845 = vmatprep.mubr.bf16.mxu0 %v564
      %846 = vmatmul.mubr.bf16.gmra.mrb[0].mxu0 %v563
      %v847 = vpop.f32.mrb[0].mxu0
      %v848 = vadd.f32 0.0, %v847
      %v849 = vpop.f32.mrb[0].mxu0
      %v850 = vpop.f32.mrb[0].mxu0
      %v851 = vadd.f32 0.0, %v850
      %v852 = vpop.f32.mrb[0].mxu0
      %853 = vmatprep.mubr.bf16.mxu0 %v567
      %854 = vmatmul.mubr.bf16.gmra.mrb[0].mxu0 %v566
      %v855 = vpop.f32.mrb[0].mxu0
      %v856 = vadd.f32 0.0, %v855
      %v857 = vpop.f32.mrb[0].mxu0
      %v858 = vpop.f32.mrb[0].mxu0
      %v859 = vadd.f32 0.0, %v858
      %v860 = vpop.f32.mrb[0].mxu0
      %861 = vmatprep.mubr.bf16.mxu0 %v570
      %862 = vmatmul.mubr.bf16.gmra.mrb[0].mxu0 %v569
      %v863 = vpop.f32.mrb[0].mxu0
      %v864 = vadd.f32 0.0, %v863
      %v865 = vpop.f32.mrb[0].mxu0
      %v866 = vpop.f32.mrb[0].mxu0
      %v867 = vadd.f32 0.0, %v866
      %v868 = vpop.f32.mrb[0].mxu0
      %869 = vmatprep.mubr.bf16.mxu0 %v573
      %870 = vmatmul.mubr.bf16.gmra.mrb[0].mxu0 %v572
      %v871 = vpop.f32.mrb[0].mxu0
      %v872 = vadd.f32 0.0, %v871
      %v873 = vpop.f32.mrb[0].mxu0
      %v874 = vpop.f32.mrb[0].mxu0
      %v875 = vadd.f32 0.0, %v874
      %v876 = vpop.f32.mrb[0].mxu0
      %877 = vmatprep.mubr.bf16.mxu0 %v576
      %878 = vmatmul.mubr.bf16.gmra.mrb[0].mxu0 %v575
      %v879 = vpop.f32.mrb[0].mxu0
      %v880 = vadd.f32 0.0, %v879
      %v881 = vpop.f32.mrb[0].mxu0
      %v882 = vpop.f32.mrb[0].mxu0
      %v883 = vadd.f32 0.0, %v882
      %v884 = vpop.f32.mrb[0].mxu0
      %885 = vmatprep.mubr.bf16.mxu0 %v579
      %886 = vmatmul.mubr.bf16.gmra.mrb[0].mxu0 %v578
      %v887 = vpop.f32.mrb[0].mxu0
      %v888 = vadd.f32 0.0, %v887
      %v889 = vpop.f32.mrb[0].mxu0
      %v890 = vpop.f32.mrb[0].mxu0
      %v891 = vadd.f32 0.0, %v890
      %v892 = vpop.f32.mrb[0].mxu0
      %893 = vmatprep.mubr.bf16.mxu0 %v582
      %894 = vmatmul.mubr.bf16.gmra.mrb[0].mxu0 %v581
      %v895 = vpop.f32.mrb[0].mxu0
      %v896 = vadd.f32 0.0, %v895
      %v897 = vpop.f32.mrb[0].mxu0
      %v898 = vpop.f32.mrb[0].mxu0
      %v899 = vadd.f32 0.0, %v898
      %v900 = vpop.f32.mrb[0].mxu0
      %901 = vmatprep.mubr.bf16.mxu0 %v585
      %902 = vmatmul.mubr.bf16.gmra.mrb[0].mxu0 %v584
      %v903 = vpop.f32.mrb[0].mxu0
      %v904 = vadd.f32 0.0, %v903
      %v905 = vpop.f32.mrb[0].mxu0
      %v906 = vpop.f32.mrb[0].mxu0
      %v907 = vadd.f32 0.0, %v906
      %v908 = vpop.f32.mrb[0].mxu0
      %909 = vmatprep.mubr.bf16.mxu0 %v588
      %910 = vmatmul.mubr.bf16.gmra.mrb[0].mxu0 %v587
      %v911 = vpop.f32.mrb[0].mxu0
      %v912 = vadd.f32 0.0, %v911
      %v913 = vpop.f32.mrb[0].mxu0
      %v914 = vpop.f32.mrb[0].mxu0
      %v915 = vadd.f32 0.0, %v914
      %v916 = vpop.f32.mrb[0].mxu0
      %917 = vmatprep.mubr.bf16.mxu0 %v591
      %918 = vmatmul.mubr.bf16.gmra.mrb[0].mxu0 %v590
      %v919 = vpop.f32.mrb[0].mxu0
      %v920 = vadd.f32 0.0, %v919
      %v921 = vpop.f32.mrb[0].mxu0
      %v922 = vpop.f32.mrb[0].mxu0
      %v923 = vadd.f32 0.0, %v922
      %v924 = vpop.f32.mrb[0].mxu0
      %925 = vmatprep.mubr.bf16.mxu0 %v594
      %926 = vmatmul.mubr.bf16.gmra.mrb[0].mxu0 %v593
      %v927 = vpop.f32.mrb[0].mxu0
      %v928 = vadd.f32 0.0, %v927
      %v929 = vpop.f32.mrb[0].mxu0
      %v930 = vpop.f32.mrb[0].mxu0
      %v931 = vadd.f32 0.0, %v930
      %v932 = vpop.f32.mrb[0].mxu0
      %933 = vmatprep.mubr.bf16.mxu0 %v597
      %934 = vmatmul.mubr.bf16.gmra.mrb[0].mxu0 %v596
      %v935 = vpop.f32.mrb[0].mxu0
      %v936 = vadd.f32 0.0, %v935
      %v937 = vpop.f32.mrb[0].mxu0
      %v938 = vpop.f32.mrb[0].mxu0
      %v939 = vadd.f32 0.0, %v938
      %v940 = vpop.f32.mrb[0].mxu0
      %941 = vmatprep.mubr.bf16.mxu0 %v600
      %942 = vmatmul.mubr.bf16.gmra.mrb[0].mxu0 %v599
      %v943 = vpop.f32.mrb[0].mxu0
      %v944 = vadd.f32 0.0, %v943
      %v945 = vpop.f32.mrb[0].mxu0
      %v946 = vpop.f32.mrb[0].mxu0
      %v947 = vadd.f32 0.0, %v946
      %v948 = vpop.f32.mrb[0].mxu0
      %949 = vmatprep.mubr.bf16.mxu0 %v603
      %950 = vmatmul.mubr.bf16.gmra.mrb[0].mxu0 %v602
      %v951 = vpop.f32.mrb[0].mxu0
      %v952 = vadd.f32 0.0, %v951
      %v953 = vpop.f32.mrb[0].mxu0
      %v954 = vpop.f32.mrb[0].mxu0
      %v955 = vadd.f32 0.0, %v954
      %v956 = vpop.f32.mrb[0].mxu0
      %957 = vdwg.mxu0
      %958 = vmatprep.subr.bf16.mxu0 0
      %959 = vmatpush1.bf16.msra.mxu0 %v765
      %960 = vmatprep.subr.bf16.mxu0 0
      %961 = vmatpush1.bf16.msra.mxu0 %v766
      %962 = vmatprep.subr.bf16.mxu0 0
      %963 = vmatpush1.bf16.msra.mxu0 %v767
      %964 = vmatprep.subr.bf16.mxu0 0
      %965 = vmatpush1.bf16.msra.mxu0 %v768
      %966 = vmatprep.subr.bf16.mxu0 0
      %967 = vmatpush1.bf16.msra.mxu0 %v769
      %968 = vmatprep.subr.bf16.mxu0 0
      %969 = vmatpush1.bf16.msra.mxu0 %v770
      %970 = vmatprep.subr.bf16.mxu0 0
      %971 = vmatpush1.bf16.msra.mxu0 %v771
      %972 = vmatprep.subr.bf16.mxu0 0
      %973 = vmatpush1.bf16.msra.mxu0 %v772
      %974 = vmatprep.subr.bf16.mxu0 0
      %975 = vmatpush1.bf16.msra.mxu0 0
      %976 = vmatprep.subr.bf16.mxu0 0
      %977 = vmatpush1.bf16.msra.mxu0 0
      %978 = vmatprep.subr.bf16.mxu0 0
      %979 = vmatpush1.bf16.msra.mxu0 0
      %980 = vmatprep.subr.bf16.mxu0 0
      %981 = vmatpush1.bf16.msra.mxu0 0
      %982 = vmatprep.subr.bf16.mxu0 0
      %983 = vmatpush1.bf16.msra.mxu0 0
      %984 = vmatprep.subr.bf16.mxu0 0
      %985 = vmatpush1.bf16.msra.mxu0 0
      %986 = vmatprep.subr.bf16.mxu0 0
      %987 = vmatpush1.bf16.msra.mxu0 0
      %988 = vmatprep.subr.bf16.mxu0 0
      %989 = vmatpush1.bf16.msra.mxu0 0
      %990 = vmatprep.mubr.bf16.mxu0 0
      %991 = vmatmul.mubr.bf16.gmra.mrb[0].mxu0 %v559
      %v992 = vpop.f32.mrb[0].mxu0
      %v993 = vadd.f32 %v832, %v992
      %v994 = vpop.f32.mrb[0].mxu0
      %v995 = vpop.f32.mrb[0].mxu0
      %v996 = vadd.f32 %v835, %v995
      %v997 = vpop.f32.mrb[0].mxu0
      %998 = vmatprep.mubr.bf16.mxu0 0
      %999 = vmatmul.mubr.bf16.gmra.mrb[0].mxu0 %v562
      %v1000 = vpop.f32.mrb[0].mxu0
      %v1001 = vadd.f32 %v840, %v1000
      %v1002 = vpop.f32.mrb[0].mxu0
      %v1003 = vpop.f32.mrb[0].mxu0
      %v1004 = vadd.f32 %v843, %v1003
      %v1005 = vpop.f32.mrb[0].mxu0
      %1006 = vmatprep.mubr.bf16.mxu0 0
      %1007 = vmatmul.mubr.bf16.gmra.mrb[0].mxu0 %v565
      %v1008 = vpop.f32.mrb[0].mxu0
      %v1009 = vadd.f32 %v848, %v1008
      %v1010 = vpop.f32.mrb[0].mxu0
      %v1011 = vpop.f32.mrb[0].mxu0
      %v1012 = vadd.f32 %v851, %v1011
      %v1013 = vpop.f32.mrb[0].mxu0
      %1014 = vmatprep.mubr.bf16.mxu0 0
      %1015 = vmatmul.mubr.bf16.gmra.mrb[0].mxu0 %v568
      %v1016 = vpop.f32.mrb[0].mxu0
      %v1017 = vadd.f32 %v856, %v1016
      %v1018 = vpop.f32.mrb[0].mxu0
      %v1019 = vpop.f32.mrb[0].mxu0
      %v1020 = vadd.f32 %v859, %v1019
      %v1021 = vpop.f32.mrb[0].mxu0
      %1022 = vmatprep.mubr.bf16.mxu0 0
      %1023 = vmatmul.mubr.bf16.gmra.mrb[0].mxu0 %v571
      %v1024 = vpop.f32.mrb[0].mxu0
      %v1025 = vadd.f32 %v864, %v1024
      %v1026 = vpop.f32.mrb[0].mxu0
      %v1027 = vpop.f32.mrb[0].mxu0
      %v1028 = vadd.f32 %v867, %v1027
      %v1029 = vpop.f32.mrb[0].mxu0
      %1030 = vmatprep.mubr.bf16.mxu0 0
      %1031 = vmatmul.mubr.bf16.gmra.mrb[0].mxu0 %v574
      %v1032 = vpop.f32.mrb[0].mxu0
      %v1033 = vadd.f32 %v872, %v1032
      %v1034 = vpop.f32.mrb[0].mxu0
      %v1035 = vpop.f32.mrb[0].mxu0
      %v1036 = vadd.f32 %v875, %v1035
      %v1037 = vpop.f32.mrb[0].mxu0
      %1038 = vmatprep.mubr.bf16.mxu0 0
      %1039 = vmatmul.mubr.bf16.gmra.mrb[0].mxu0 %v577
      %v1040 = vpop.f32.mrb[0].mxu0
      %v1041 = vadd.f32 %v880, %v1040
      %v1042 = vpop.f32.mrb[0].mxu0
      %v1043 = vpop.f32.mrb[0].mxu0
      %v1044 = vadd.f32 %v883, %v1043
      %v1045 = vpop.f32.mrb[0].mxu0
      %1046 = vmatprep.mubr.bf16.mxu0 0
      %1047 = vmatmul.mubr.bf16.gmra.mrb[0].mxu0 %v580
      %v1048 = vpop.f32.mrb[0].mxu0
      %v1049 = vadd.f32 %v888, %v1048
      %v1050 = vpop.f32.mrb[0].mxu0
      %v1051 = vpop.f32.mrb[0].mxu0
      %v1052 = vadd.f32 %v891, %v1051
      %v1053 = vpop.f32.mrb[0].mxu0
      %1054 = vmatprep.mubr.bf16.mxu0 0
      %1055 = vmatmul.mubr.bf16.gmra.mrb[0].mxu0 %v583
      %v1056 = vpop.f32.mrb[0].mxu0
      %v1057 = vadd.f32 %v896, %v1056
      %v1058 = vpop.f32.mrb[0].mxu0
      %v1059 = vpop.f32.mrb[0].mxu0
      %v1060 = vadd.f32 %v899, %v1059
      %v1061 = vpop.f32.mrb[0].mxu0
      %1062 = vmatprep.mubr.bf16.mxu0 0
      %1063 = vmatmul.mubr.bf16.gmra.mrb[0].mxu0 %v586
      %v1064 = vpop.f32.mrb[0].mxu0
      %v1065 = vadd.f32 %v904, %v1064
      %v1066 = vpop.f32.mrb[0].mxu0
      %v1067 = vpop.f32.mrb[0].mxu0
      %v1068 = vadd.f32 %v907, %v1067
      %v1069 = vpop.f32.mrb[0].mxu0
      %1070 = vmatprep.mubr.bf16.mxu0 0
      %1071 = vmatmul.mubr.bf16.gmra.mrb[0].mxu0 %v589
      %v1072 = vpop.f32.mrb[0].mxu0
      %v1073 = vadd.f32 %v912, %v1072
      %v1074 = vpop.f32.mrb[0].mxu0
      %v1075 = vpop.f32.mrb[0].mxu0
      %v1076 = vadd.f32 %v915, %v1075
      %v1077 = vpop.f32.mrb[0].mxu0
      %1078 = vmatprep.mubr.bf16.mxu0 0
      %1079 = vmatmul.mubr.bf16.gmra.mrb[0].mxu0 %v592
      %v1080 = vpop.f32.mrb[0].mxu0
      %v1081 = vadd.f32 %v920, %v1080
      %v1082 = vpop.f32.mrb[0].mxu0
      %v1083 = vpop.f32.mrb[0].mxu0
      %v1084 = vadd.f32 %v923, %v1083
      %v1085 = vpop.f32.mrb[0].mxu0
      %1086 = vmatprep.mubr.bf16.mxu0 0
      %1087 = vmatmul.mubr.bf16.gmra.mrb[0].mxu0 %v595
      %v1088 = vpop.f32.mrb[0].mxu0
      %v1089 = vadd.f32 %v928, %v1088
      %v1090 = vpop.f32.mrb[0].mxu0
      %v1091 = vpop.f32.mrb[0].mxu0
      %v1092 = vadd.f32 %v931, %v1091
      %v1093 = vpop.f32.mrb[0].mxu0
      %1094 = vmatprep.mubr.bf16.mxu0 0
      %1095 = vmatmul.mubr.bf16.gmra.mrb[0].mxu0 %v598
      %v1096 = vpop.f32.mrb[0].mxu0
      %v1097 = vadd.f32 %v936, %v1096
      %v1098 = vpop.f32.mrb[0].mxu0
      %v1099 = vpop.f32.mrb[0].mxu0
      %v1100 = vadd.f32 %v939, %v1099
      %v1101 = vpop.f32.mrb[0].mxu0
      %1102 = vmatprep.mubr.bf16.mxu0 0
      %1103 = vmatmul.mubr.bf16.gmra.mrb[0].mxu0 %v601
      %v1104 = vpop.f32.mrb[0].mxu0
      %v1105 = vadd.f32 %v944, %v1104
      %v1106 = vpop.f32.mrb[0].mxu0
      %v1107 = vpop.f32.mrb[0].mxu0
      %v1108 = vadd.f32 %v947, %v1107
      %v1109 = vpop.f32.mrb[0].mxu0
      %1110 = vmatprep.mubr.bf16.mxu0 0
      %1111 = vmatmul.mubr.bf16.gmra.mrb[0].mxu0 %v604
      %v1112 = vpop.f32.mrb[0].mxu0
      %v1113 = vadd.f32 %v952, %v1112
      %v1114 = vpop.f32.mrb[0].mxu0
      %v1115 = vpop.f32.mrb[0].mxu0
      %v1116 = vadd.f32 %v955, %v1115
      %v1117 = vpop.f32.mrb[0].mxu0
      %1118 = vdwg.mxu0
      %v1183 = vunpack.c.l.b16 %v172
      %v1184 = vunpack.c.h.b16 %v172
      %v1185 = vunpack.c.l.b16 %v173
      %v1186 = vunpack.c.l.b16 %v174
      %v1187 = vunpack.c.h.b16 %v174
      %v1188 = vunpack.c.l.b16 %v175
      %v1189 = vunpack.c.l.b16 %v176
      %v1190 = vunpack.c.h.b16 %v176
      %v1191 = vunpack.c.l.b16 %v177
      %v1192 = vunpack.c.l.b16 %v178
      %v1193 = vunpack.c.h.b16 %v178
      %v1194 = vunpack.c.l.b16 %v179
      %v1195 = vunpack.c.l.b16 %v180
      %v1196 = vunpack.c.h.b16 %v180
      %v1197 = vunpack.c.l.b16 %v181
      %v1198 = vunpack.c.l.b16 %v182
      %v1199 = vunpack.c.h.b16 %v182
      %v1200 = vunpack.c.l.b16 %v183
      %v1201 = vunpack.c.l.b16 %v184
      %v1202 = vunpack.c.h.b16 %v184
      %v1203 = vunpack.c.l.b16 %v185
      %v1204 = vunpack.c.l.b16 %v186
      %v1205 = vunpack.c.h.b16 %v186
      %v1206 = vunpack.c.l.b16 %v187
      %v1207 = vunpack.c.l.b16 %v188
      %v1208 = vunpack.c.h.b16 %v188
      %v1209 = vunpack.c.l.b16 %v189
      %v1210 = vunpack.c.l.b16 %v190
      %v1211 = vunpack.c.h.b16 %v190
      %v1212 = vunpack.c.l.b16 %v191
      %v1213 = vunpack.c.l.b16 %v192
      %v1214 = vunpack.c.h.b16 %v192
      %v1215 = vunpack.c.l.b16 %v193
      %v1216 = vunpack.c.l.b16 %v194
      %v1217 = vunpack.c.h.b16 %v194
      %v1218 = vunpack.c.l.b16 %v195
      %v1219 = vunpack.c.l.b16 %v196
      %v1220 = vunpack.c.h.b16 %v196
      %v1221 = vunpack.c.l.b16 %v197
      %v1222 = vunpack.c.l.b16 %v198
      %v1223 = vunpack.c.h.b16 %v198
      %v1224 = vunpack.c.l.b16 %v199
      %v1225 = vunpack.c.l.b16 %v200
      %v1226 = vunpack.c.h.b16 %v200
      %v1227 = vunpack.c.l.b16 %v201
      %v1228 = vunpack.c.l.b16 %v202
      %v1229 = vunpack.c.h.b16 %v202
      %v1230 = vunpack.c.l.b16 %v203
      %v1231 = vunpack.c.l.b16 %v204
      %v1232 = vunpack.c.h.b16 %v204
      %v1233 = vunpack.c.l.b16 %v205
      %v1234 = vunpack.c.l.b16 %v206
      %v1235 = vunpack.c.h.b16 %v206
      %v1236 = vunpack.c.l.b16 %v207
      %v1237 = vunpack.c.l.b16 %v208
      %v1238 = vunpack.c.h.b16 %v208
      %v1239 = vunpack.c.l.b16 %v209
      %v1240 = vunpack.c.l.b16 %v210
      %v1241 = vunpack.c.h.b16 %v210
      %v1242 = vunpack.c.l.b16 %v211
      %v1243 = vunpack.c.l.b16 %v212
      %v1244 = vunpack.c.h.b16 %v212
      %v1245 = vunpack.c.l.b16 %v213
      %v1246 = vunpack.c.l.b16 %v214
      %v1247 = vunpack.c.h.b16 %v214
      %v1248 = vunpack.c.l.b16 %v215
      %v1249 = vunpack.c.l.b16 %v216
      %v1250 = vunpack.c.h.b16 %v216
      %v1251 = vunpack.c.l.b16 %v217
      %v1252 = vunpack.c.l.b16 %v218
      %v1253 = vunpack.c.h.b16 %v218
      %v1254 = vunpack.c.l.b16 %v219
      %v1255 = vunpack.c.l.b16 %v220
      %v1256 = vunpack.c.h.b16 %v220
      %v1257 = vunpack.c.l.b16 %v221
      %v1258 = vunpack.c.l.b16 %v222
      %v1259 = vunpack.c.h.b16 %v222
      %v1260 = vunpack.c.l.b16 %v223
      %v1261 = vunpack.c.l.b16 %v224
      %v1262 = vunpack.c.h.b16 %v224
      %v1263 = vunpack.c.l.b16 %v225
      %v1264 = vunpack.c.l.b16 %v226
      %v1265 = vunpack.c.h.b16 %v226
      %v1266 = vunpack.c.l.b16 %v227
      %v1267 = vunpack.c.l.b16 %v228
      %v1268 = vunpack.c.h.b16 %v228
      %v1269 = vunpack.c.l.b16 %v229
      %v1270 = vunpack.c.l.b16 %v230
      %v1271 = vunpack.c.h.b16 %v230
      %v1272 = vunpack.c.l.b16 %v231
      %v1273 = vunpack.c.l.b16 %v232
      %v1274 = vunpack.c.h.b16 %v232
      %v1275 = vunpack.c.l.b16 %v233
      %v1276 = vunpack.c.l.b16 %v234
      %v1277 = vunpack.c.h.b16 %v234
      %v1278 = vunpack.c.l.b16 %v235
      %v1279 = vpack.c.b16 %v1186, %v1183
      %v1280 = vpack.c.b16 %v1187, %v1184
      %v1281 = vpack.c.b16 %v1188, %v1185
      %v1282 = vpack.c.b16 %v1192, %v1189
      %v1283 = vpack.c.b16 %v1193, %v1190
      %v1284 = vpack.c.b16 %v1194, %v1191
      %v1285 = vpack.c.b16 %v1198, %v1195
      %v1286 = vpack.c.b16 %v1199, %v1196
      %v1287 = vpack.c.b16 %v1200, %v1197
      %v1288 = vpack.c.b16 %v1204, %v1201
      %v1289 = vpack.c.b16 %v1205, %v1202
      %v1290 = vpack.c.b16 %v1206, %v1203
      %v1291 = vpack.c.b16 %v1210, %v1207
      %v1292 = vpack.c.b16 %v1211, %v1208
      %v1293 = vpack.c.b16 %v1212, %v1209
      %v1294 = vpack.c.b16 %v1216, %v1213
      %v1295 = vpack.c.b16 %v1217, %v1214
      %v1296 = vpack.c.b16 %v1218, %v1215
      %v1297 = vpack.c.b16 %v1222, %v1219
      %v1298 = vpack.c.b16 %v1223, %v1220
      %v1299 = vpack.c.b16 %v1224, %v1221
      %v1300 = vpack.c.b16 %v1228, %v1225
      %v1301 = vpack.c.b16 %v1229, %v1226
      %v1302 = vpack.c.b16 %v1230, %v1227
      %v1303 = vpack.c.b16 %v1234, %v1231
      %v1304 = vpack.c.b16 %v1235, %v1232
      %v1305 = vpack.c.b16 %v1236, %v1233
      %v1306 = vpack.c.b16 %v1240, %v1237
      %v1307 = vpack.c.b16 %v1241, %v1238
      %v1308 = vpack.c.b16 %v1242, %v1239
      %v1309 = vpack.c.b16 %v1246, %v1243
      %v1310 = vpack.c.b16 %v1247, %v1244
      %v1311 = vpack.c.b16 %v1248, %v1245
      %v1312 = vpack.c.b16 %v1252, %v1249
      %v1313 = vpack.c.b16 %v1253, %v1250
      %v1314 = vpack.c.b16 %v1254, %v1251
      %v1315 = vpack.c.b16 %v1258, %v1255
      %v1316 = vpack.c.b16 %v1259, %v1256
      %v1317 = vpack.c.b16 %v1260, %v1257
      %v1318 = vpack.c.b16 %v1264, %v1261
      %v1319 = vpack.c.b16 %v1265, %v1262
      %v1320 = vpack.c.b16 %v1266, %v1263
      %v1321 = vpack.c.b16 %v1270, %v1267
      %v1322 = vpack.c.b16 %v1271, %v1268
      %v1323 = vpack.c.b16 %v1272, %v1269
      %v1324 = vpack.c.b16 %v1276, %v1273
      %v1325 = vpack.c.b16 %v1277, %v1274
      %v1326 = vpack.c.b16 %v1278, %v1275
      %v1423 = vunpack.c.l.b16 %v300
      %v1424 = vunpack.c.l.b16 %v301
      %v1425 = vunpack.c.l.b16 %v302
      %v1426 = vunpack.c.l.b16 %v303
      %v1427 = vunpack.c.l.b16 %v304
      %v1428 = vunpack.c.l.b16 %v305
      %v1429 = vunpack.c.l.b16 %v306
      %v1430 = vunpack.c.l.b16 %v307
      %v1431 = vunpack.c.l.b16 %v308
      %v1432 = vunpack.c.l.b16 %v309
      %v1433 = vunpack.c.l.b16 %v310
      %v1434 = vunpack.c.l.b16 %v311
      %v1435 = vunpack.c.l.b16 %v312
      %v1436 = vunpack.c.l.b16 %v313
      %v1437 = vunpack.c.l.b16 %v314
      %v1438 = vunpack.c.l.b16 %v315
      %v1439 = vunpack.c.l.b16 %v316
      %v1440 = vunpack.c.l.b16 %v317
      %v1441 = vunpack.c.l.b16 %v318
      %v1442 = vunpack.c.l.b16 %v319
      %v1443 = vunpack.c.l.b16 %v320
      %v1444 = vunpack.c.l.b16 %v321
      %v1445 = vunpack.c.l.b16 %v322
      %v1446 = vunpack.c.l.b16 %v323
      %v1447 = vunpack.c.l.b16 %v324
      %v1448 = vunpack.c.l.b16 %v325
      %v1449 = vunpack.c.l.b16 %v326
      %v1450 = vunpack.c.l.b16 %v327
      %v1451 = vunpack.c.l.b16 %v328
      %v1452 = vunpack.c.l.b16 %v329
      %v1453 = vunpack.c.l.b16 %v330
      %v1454 = vunpack.c.l.b16 %v331
      %v1455 = vunpack.c.l.b16 %v332
      %v1456 = vunpack.c.l.b16 %v333
      %v1457 = vunpack.c.l.b16 %v334
      %v1458 = vunpack.c.l.b16 %v335
      %v1459 = vunpack.c.l.b16 %v336
      %v1460 = vunpack.c.l.b16 %v337
      %v1461 = vunpack.c.l.b16 %v338
      %v1462 = vunpack.c.l.b16 %v339
      %v1463 = vunpack.c.l.b16 %v340
      %v1464 = vunpack.c.l.b16 %v341
      %v1465 = vunpack.c.l.b16 %v342
      %v1466 = vunpack.c.l.b16 %v343
      %v1467 = vunpack.c.l.b16 %v344
      %v1468 = vunpack.c.l.b16 %v345
      %v1469 = vunpack.c.l.b16 %v346
      %v1470 = vunpack.c.l.b16 %v347
      %v1471 = vpack.c.b16 %v1424, %v1423
      %v1472 = vpack.c.b16 %v1426, %v1425
      %v1473 = vpack.c.b16 %v1428, %v1427
      %v1474 = vpack.c.b16 %v1430, %v1429
      %v1475 = vpack.c.b16 %v1432, %v1431
      %v1476 = vpack.c.b16 %v1434, %v1433
      %v1477 = vpack.c.b16 %v1436, %v1435
      %v1478 = vpack.c.b16 %v1438, %v1437
      %v1479 = vpack.c.b16 %v1440, %v1439
      %v1480 = vpack.c.b16 %v1442, %v1441
      %v1481 = vpack.c.b16 %v1444, %v1443
      %v1482 = vpack.c.b16 %v1446, %v1445
      %v1483 = vpack.c.b16 %v1448, %v1447
      %v1484 = vpack.c.b16 %v1450, %v1449
      %v1485 = vpack.c.b16 %v1452, %v1451
      %v1486 = vpack.c.b16 %v1454, %v1453
      %v1487 = vpack.c.b16 %v1456, %v1455
      %v1488 = vpack.c.b16 %v1458, %v1457
      %v1489 = vpack.c.b16 %v1460, %v1459
      %v1490 = vpack.c.b16 %v1462, %v1461
      %v1491 = vpack.c.b16 %v1464, %v1463
      %v1492 = vpack.c.b16 %v1466, %v1465
      %v1493 = vpack.c.b16 %v1468, %v1467
      %v1494 = vpack.c.b16 %v1470, %v1469
      %1519 = vmatprep.subr.bf16.mxu0 0
      %1520 = vmatpush1.bf16.msra.mxu0 %v1471
      %1521 = vmatprep.subr.bf16.mxu0 0
      %1522 = vmatpush1.bf16.msra.mxu0 %v1472
      %1523 = vmatprep.subr.bf16.mxu0 0
      %1524 = vmatpush1.bf16.msra.mxu0 %v1473
      %1525 = vmatprep.subr.bf16.mxu0 0
      %1526 = vmatpush1.bf16.msra.mxu0 %v1474
      %1527 = vmatprep.subr.bf16.mxu0 0
      %1528 = vmatpush1.bf16.msra.mxu0 %v1475
      %1529 = vmatprep.subr.bf16.mxu0 0
      %1530 = vmatpush1.bf16.msra.mxu0 %v1476
      %1531 = vmatprep.subr.bf16.mxu0 0
      %1532 = vmatpush1.bf16.msra.mxu0 %v1477
      %1533 = vmatprep.subr.bf16.mxu0 0
      %1534 = vmatpush1.bf16.msra.mxu0 %v1478
      %1535 = vmatprep.subr.bf16.mxu0 0
      %1536 = vmatpush1.bf16.msra.mxu0 %v1479
      %1537 = vmatprep.subr.bf16.mxu0 0
      %1538 = vmatpush1.bf16.msra.mxu0 %v1480
      %1539 = vmatprep.subr.bf16.mxu0 0
      %1540 = vmatpush1.bf16.msra.mxu0 %v1481
      %1541 = vmatprep.subr.bf16.mxu0 0
      %1542 = vmatpush1.bf16.msra.mxu0 %v1482
      %1543 = vmatprep.subr.bf16.mxu0 0
      %1544 = vmatpush1.bf16.msra.mxu0 %v1483
      %1545 = vmatprep.subr.bf16.mxu0 0
      %1546 = vmatpush1.bf16.msra.mxu0 %v1484
      %1547 = vmatprep.subr.bf16.mxu0 0
      %1548 = vmatpush1.bf16.msra.mxu0 %v1485
      %1549 = vmatprep.subr.bf16.mxu0 0
      %1550 = vmatpush1.bf16.msra.mxu0 %v1486
      %1551 = vmatprep.mubr.bf16.mxu0 %v1280
      %1552 = vmatmul.mubr.bf16.gmra.mrb[0].mxu0 %v1279
      %v1553 = vpop.f32.mrb[0].mxu0
      %v1554 = vadd.f32 %v993, %v1553
      %v1555 = vpop.f32.mrb[0].mxu0
      %v1556 = vpop.f32.mrb[0].mxu0
      %v1557 = vadd.f32 %v996, %v1556
      %v1558 = vpop.f32.mrb[0].mxu0
      %1559 = vmatprep.mubr.bf16.mxu0 %v1283
      %1560 = vmatmul.mubr.bf16.gmra.mrb[0].mxu0 %v1282
      %v1561 = vpop.f32.mrb[0].mxu0
      %v1562 = vadd.f32 %v1001, %v1561
      %v1563 = vpop.f32.mrb[0].mxu0
      %v1564 = vpop.f32.mrb[0].mxu0
      %v1565 = vadd.f32 %v1004, %v1564
      %v1566 = vpop.f32.mrb[0].mxu0
      %1567 = vmatprep.mubr.bf16.mxu0 %v1286
      %1568 = vmatmul.mubr.bf16.gmra.mrb[0].mxu0 %v1285
      %v1569 = vpop.f32.mrb[0].mxu0
      %v1570 = vadd.f32 %v1009, %v1569
      %v1571 = vpop.f32.mrb[0].mxu0
      %v1572 = vpop.f32.mrb[0].mxu0
      %v1573 = vadd.f32 %v1012, %v1572
      %v1574 = vpop.f32.mrb[0].mxu0
      %1575 = vmatprep.mubr.bf16.mxu0 %v1289
      %1576 = vmatmul.mubr.bf16.gmra.mrb[0].mxu0 %v1288
      %v1577 = vpop.f32.mrb[0].mxu0
      %v1578 = vadd.f32 %v1017, %v1577
      %v1579 = vpop.f32.mrb[0].mxu0
      %v1580 = vpop.f32.mrb[0].mxu0
      %v1581 = vadd.f32 %v1020, %v1580
      %v1582 = vpop.f32.mrb[0].mxu0
      %1583 = vmatprep.mubr.bf16.mxu0 %v1292
      %1584 = vmatmul.mubr.bf16.gmra.mrb[0].mxu0 %v1291
      %v1585 = vpop.f32.mrb[0].mxu0
      %v1586 = vadd.f32 %v1025, %v1585
      %v1587 = vpop.f32.mrb[0].mxu0
      %v1588 = vpop.f32.mrb[0].mxu0
      %v1589 = vadd.f32 %v1028, %v1588
      %v1590 = vpop.f32.mrb[0].mxu0
      %1591 = vmatprep.mubr.bf16.mxu0 %v1295
      %1592 = vmatmul.mubr.bf16.gmra.mrb[0].mxu0 %v1294
      %v1593 = vpop.f32.mrb[0].mxu0
      %v1594 = vadd.f32 %v1033, %v1593
      %v1595 = vpop.f32.mrb[0].mxu0
      %v1596 = vpop.f32.mrb[0].mxu0
      %v1597 = vadd.f32 %v1036, %v1596
      %v1598 = vpop.f32.mrb[0].mxu0
      %1599 = vmatprep.mubr.bf16.mxu0 %v1298
      %1600 = vmatmul.mubr.bf16.gmra.mrb[0].mxu0 %v1297
      %v1601 = vpop.f32.mrb[0].mxu0
      %v1602 = vadd.f32 %v1041, %v1601
      %v1603 = vpop.f32.mrb[0].mxu0
      %v1604 = vpop.f32.mrb[0].mxu0
      %v1605 = vadd.f32 %v1044, %v1604
      %v1606 = vpop.f32.mrb[0].mxu0
      %1607 = vmatprep.mubr.bf16.mxu0 %v1301
      %1608 = vmatmul.mubr.bf16.gmra.mrb[0].mxu0 %v1300
      %v1609 = vpop.f32.mrb[0].mxu0
      %v1610 = vadd.f32 %v1049, %v1609
      %v1611 = vpop.f32.mrb[0].mxu0
      %v1612 = vpop.f32.mrb[0].mxu0
      %v1613 = vadd.f32 %v1052, %v1612
      %v1614 = vpop.f32.mrb[0].mxu0
      %1615 = vmatprep.mubr.bf16.mxu0 %v1304
      %1616 = vmatmul.mubr.bf16.gmra.mrb[0].mxu0 %v1303
      %v1617 = vpop.f32.mrb[0].mxu0
      %v1618 = vadd.f32 %v1057, %v1617
      %v1619 = vpop.f32.mrb[0].mxu0
      %v1620 = vpop.f32.mrb[0].mxu0
      %v1621 = vadd.f32 %v1060, %v1620
      %v1622 = vpop.f32.mrb[0].mxu0
      %1623 = vmatprep.mubr.bf16.mxu0 %v1307
      %1624 = vmatmul.mubr.bf16.gmra.mrb[0].mxu0 %v1306
      %v1625 = vpop.f32.mrb[0].mxu0
      %v1626 = vadd.f32 %v1065, %v1625
      %v1627 = vpop.f32.mrb[0].mxu0
      %v1628 = vpop.f32.mrb[0].mxu0
      %v1629 = vadd.f32 %v1068, %v1628
      %v1630 = vpop.f32.mrb[0].mxu0
      %1631 = vmatprep.mubr.bf16.mxu0 %v1310
      %1632 = vmatmul.mubr.bf16.gmra.mrb[0].mxu0 %v1309
      %v1633 = vpop.f32.mrb[0].mxu0
      %v1634 = vadd.f32 %v1073, %v1633
      %v1635 = vpop.f32.mrb[0].mxu0
      %v1636 = vpop.f32.mrb[0].mxu0
      %v1637 = vadd.f32 %v1076, %v1636
      %v1638 = vpop.f32.mrb[0].mxu0
      %1639 = vmatprep.mubr.bf16.mxu0 %v1313
      %1640 = vmatmul.mubr.bf16.gmra.mrb[0].mxu0 %v1312
      %v1641 = vpop.f32.mrb[0].mxu0
      %v1642 = vadd.f32 %v1081, %v1641
      %v1643 = vpop.f32.mrb[0].mxu0
      %v1644 = vpop.f32.mrb[0].mxu0
      %v1645 = vadd.f32 %v1084, %v1644
      %v1646 = vpop.f32.mrb[0].mxu0
      %1647 = vmatprep.mubr.bf16.mxu0 %v1316
      %1648 = vmatmul.mubr.bf16.gmra.mrb[0].mxu0 %v1315
      %v1649 = vpop.f32.mrb[0].mxu0
      %v1650 = vadd.f32 %v1089, %v1649
      %v1651 = vpop.f32.mrb[0].mxu0
      %v1652 = vpop.f32.mrb[0].mxu0
      %v1653 = vadd.f32 %v1092, %v1652
      %v1654 = vpop.f32.mrb[0].mxu0
      %1655 = vmatprep.mubr.bf16.mxu0 %v1319
      %1656 = vmatmul.mubr.bf16.gmra.mrb[0].mxu0 %v1318
      %v1657 = vpop.f32.mrb[0].mxu0
      %v1658 = vadd.f32 %v1097, %v1657
      %v1659 = vpop.f32.mrb[0].mxu0
      %v1660 = vpop.f32.mrb[0].mxu0
      %v1661 = vadd.f32 %v1100, %v1660
      %v1662 = vpop.f32.mrb[0].mxu0
      %1663 = vmatprep.mubr.bf16.mxu0 %v1322
      %1664 = vmatmul.mubr.bf16.gmra.mrb[0].mxu0 %v1321
      %v1665 = vpop.f32.mrb[0].mxu0
      %v1666 = vadd.f32 %v1105, %v1665
      %v1667 = vpop.f32.mrb[0].mxu0
      %v1668 = vpop.f32.mrb[0].mxu0
      %v1669 = vadd.f32 %v1108, %v1668
      %v1670 = vpop.f32.mrb[0].mxu0
      %1671 = vmatprep.mubr.bf16.mxu0 %v1325
      %1672 = vmatmul.mubr.bf16.gmra.mrb[0].mxu0 %v1324
      %v1673 = vpop.f32.mrb[0].mxu0
      %v1674 = vadd.f32 %v1113, %v1673
      %v1675 = vpop.f32.mrb[0].mxu0
      %v1676 = vpop.f32.mrb[0].mxu0
      %v1677 = vadd.f32 %v1116, %v1676
      %v1678 = vpop.f32.mrb[0].mxu0
      %1679 = vdwg.mxu0
      %1680 = vmatprep.subr.bf16.mxu0 0
      %1681 = vmatpush1.bf16.msra.mxu0 %v1487
      %1682 = vmatprep.subr.bf16.mxu0 0
      %1683 = vmatpush1.bf16.msra.mxu0 %v1488
      %1684 = vmatprep.subr.bf16.mxu0 0
      %1685 = vmatpush1.bf16.msra.mxu0 %v1489
      %1686 = vmatprep.subr.bf16.mxu0 0
      %1687 = vmatpush1.bf16.msra.mxu0 %v1490
      %1688 = vmatprep.subr.bf16.mxu0 0
      %1689 = vmatpush1.bf16.msra.mxu0 %v1491
      %1690 = vmatprep.subr.bf16.mxu0 0
      %1691 = vmatpush1.bf16.msra.mxu0 %v1492
      %1692 = vmatprep.subr.bf16.mxu0 0
      %1693 = vmatpush1.bf16.msra.mxu0 %v1493
      %1694 = vmatprep.subr.bf16.mxu0 0
      %1695 = vmatpush1.bf16.msra.mxu0 %v1494
      %1696 = vmatprep.subr.bf16.mxu0 0
      %1697 = vmatpush1.bf16.msra.mxu0 0
      %1698 = vmatprep.subr.bf16.mxu0 0
      %1699 = vmatpush1.bf16.msra.mxu0 0
      %1700 = vmatprep.subr.bf16.mxu0 0
      %1701 = vmatpush1.bf16.msra.mxu0 0
      %1702 = vmatprep.subr.bf16.mxu0 0
      %1703 = vmatpush1.bf16.msra.mxu0 0
      %1704 = vmatprep.subr.bf16.mxu0 0
      %1705 = vmatpush1.bf16.msra.mxu0 0
      %1706 = vmatprep.subr.bf16.mxu0 0
      %1707 = vmatpush1.bf16.msra.mxu0 0
      %1708 = vmatprep.subr.bf16.mxu0 0
      %1709 = vmatpush1.bf16.msra.mxu0 0
      %1710 = vmatprep.subr.bf16.mxu0 0
      %1711 = vmatpush1.bf16.msra.mxu0 0
      %1712 = vmatprep.mubr.bf16.mxu0 0
      %1713 = vmatmul.mubr.bf16.gmra.mrb[0].mxu0 %v1281
      %v1714 = vpop.f32.mrb[0].mxu0
      %v1715 = vadd.f32 %v1554, %v1714
      %v1716 = vpop.f32.mrb[0].mxu0
      %v1717 = vpop.f32.mrb[0].mxu0
      %v1718 = vadd.f32 %v1557, %v1717
      %v1719 = vpop.f32.mrb[0].mxu0
      %1720 = vmatprep.mubr.bf16.mxu0 0
      %1721 = vmatmul.mubr.bf16.gmra.mrb[0].mxu0 %v1284
      %v1722 = vpop.f32.mrb[0].mxu0
      %v1723 = vadd.f32 %v1562, %v1722
      %v1724 = vpop.f32.mrb[0].mxu0
      %v1725 = vpop.f32.mrb[0].mxu0
      %v1726 = vadd.f32 %v1565, %v1725
      %v1727 = vpop.f32.mrb[0].mxu0
      %1728 = vmatprep.mubr.bf16.mxu0 0
      %1729 = vmatmul.mubr.bf16.gmra.mrb[0].mxu0 %v1287
      %v1730 = vpop.f32.mrb[0].mxu0
      %v1731 = vadd.f32 %v1570, %v1730
      %v1732 = vpop.f32.mrb[0].mxu0
      %v1733 = vpop.f32.mrb[0].mxu0
      %v1734 = vadd.f32 %v1573, %v1733
      %v1735 = vpop.f32.mrb[0].mxu0
      %1736 = vmatprep.mubr.bf16.mxu0 0
      %1737 = vmatmul.mubr.bf16.gmra.mrb[0].mxu0 %v1290
      %v1738 = vpop.f32.mrb[0].mxu0
      %v1739 = vadd.f32 %v1578, %v1738
      %v1740 = vpop.f32.mrb[0].mxu0
      %v1741 = vpop.f32.mrb[0].mxu0
      %v1742 = vadd.f32 %v1581, %v1741
      %v1743 = vpop.f32.mrb[0].mxu0
      %1744 = vmatprep.mubr.bf16.mxu0 0
      %1745 = vmatmul.mubr.bf16.gmra.mrb[0].mxu0 %v1293
      %v1746 = vpop.f32.mrb[0].mxu0
      %v1747 = vadd.f32 %v1586, %v1746
      %v1748 = vpop.f32.mrb[0].mxu0
      %v1749 = vpop.f32.mrb[0].mxu0
      %v1750 = vadd.f32 %v1589, %v1749
      %v1751 = vpop.f32.mrb[0].mxu0
      %1752 = vmatprep.mubr.bf16.mxu0 0
      %1753 = vmatmul.mubr.bf16.gmra.mrb[0].mxu0 %v1296
      %v1754 = vpop.f32.mrb[0].mxu0
      %v1755 = vadd.f32 %v1594, %v1754
      %v1756 = vpop.f32.mrb[0].mxu0
      %v1757 = vpop.f32.mrb[0].mxu0
      %v1758 = vadd.f32 %v1597, %v1757
      %v1759 = vpop.f32.mrb[0].mxu0
      %1760 = vmatprep.mubr.bf16.mxu0 0
      %1761 = vmatmul.mubr.bf16.gmra.mrb[0].mxu0 %v1299
      %v1762 = vpop.f32.mrb[0].mxu0
      %v1763 = vadd.f32 %v1602, %v1762
      %v1764 = vpop.f32.mrb[0].mxu0
      %v1765 = vpop.f32.mrb[0].mxu0
      %v1766 = vadd.f32 %v1605, %v1765
      %v1767 = vpop.f32.mrb[0].mxu0
      %1768 = vmatprep.mubr.bf16.mxu0 0
      %1769 = vmatmul.mubr.bf16.gmra.mrb[0].mxu0 %v1302
      %v1770 = vpop.f32.mrb[0].mxu0
      %v1771 = vadd.f32 %v1610, %v1770
      %v1772 = vpop.f32.mrb[0].mxu0
      %v1773 = vpop.f32.mrb[0].mxu0
      %v1774 = vadd.f32 %v1613, %v1773
      %v1775 = vpop.f32.mrb[0].mxu0
      %1776 = vmatprep.mubr.bf16.mxu0 0
      %1777 = vmatmul.mubr.bf16.gmra.mrb[0].mxu0 %v1305
      %v1778 = vpop.f32.mrb[0].mxu0
      %v1779 = vadd.f32 %v1618, %v1778
      %v1780 = vpop.f32.mrb[0].mxu0
      %v1781 = vpop.f32.mrb[0].mxu0
      %v1782 = vadd.f32 %v1621, %v1781
      %v1783 = vpop.f32.mrb[0].mxu0
      %1784 = vmatprep.mubr.bf16.mxu0 0
      %1785 = vmatmul.mubr.bf16.gmra.mrb[0].mxu0 %v1308
      %v1786 = vpop.f32.mrb[0].mxu0
      %v1787 = vadd.f32 %v1626, %v1786
      %v1788 = vpop.f32.mrb[0].mxu0
      %v1789 = vpop.f32.mrb[0].mxu0
      %v1790 = vadd.f32 %v1629, %v1789
      %v1791 = vpop.f32.mrb[0].mxu0
      %1792 = vmatprep.mubr.bf16.mxu0 0
      %1793 = vmatmul.mubr.bf16.gmra.mrb[0].mxu0 %v1311
      %v1794 = vpop.f32.mrb[0].mxu0
      %v1795 = vadd.f32 %v1634, %v1794
      %v1796 = vpop.f32.mrb[0].mxu0
      %v1797 = vpop.f32.mrb[0].mxu0
      %v1798 = vadd.f32 %v1637, %v1797
      %v1799 = vpop.f32.mrb[0].mxu0
      %1800 = vmatprep.mubr.bf16.mxu0 0
      %1801 = vmatmul.mubr.bf16.gmra.mrb[0].mxu0 %v1314
      %v1802 = vpop.f32.mrb[0].mxu0
      %v1803 = vadd.f32 %v1642, %v1802
      %v1804 = vpop.f32.mrb[0].mxu0
      %v1805 = vpop.f32.mrb[0].mxu0
      %v1806 = vadd.f32 %v1645, %v1805
      %v1807 = vpop.f32.mrb[0].mxu0
      %1808 = vmatprep.mubr.bf16.mxu0 0
      %1809 = vmatmul.mubr.bf16.gmra.mrb[0].mxu0 %v1317
      %v1810 = vpop.f32.mrb[0].mxu0
      %v1811 = vadd.f32 %v1650, %v1810
      %v1812 = vpop.f32.mrb[0].mxu0
      %v1813 = vpop.f32.mrb[0].mxu0
      %v1814 = vadd.f32 %v1653, %v1813
      %v1815 = vpop.f32.mrb[0].mxu0
      %1816 = vmatprep.mubr.bf16.mxu0 0
      %1817 = vmatmul.mubr.bf16.gmra.mrb[0].mxu0 %v1320
      %v1818 = vpop.f32.mrb[0].mxu0
      %v1819 = vadd.f32 %v1658, %v1818
      %v1820 = vpop.f32.mrb[0].mxu0
      %v1821 = vpop.f32.mrb[0].mxu0
      %v1822 = vadd.f32 %v1661, %v1821
      %v1823 = vpop.f32.mrb[0].mxu0
      %1824 = vmatprep.mubr.bf16.mxu0 0
      %1825 = vmatmul.mubr.bf16.gmra.mrb[0].mxu0 %v1323
      %v1826 = vpop.f32.mrb[0].mxu0
      %v1827 = vadd.f32 %v1666, %v1826
      %v1828 = vpop.f32.mrb[0].mxu0
      %v1829 = vpop.f32.mrb[0].mxu0
      %v1830 = vadd.f32 %v1669, %v1829
      %v1831 = vpop.f32.mrb[0].mxu0
      %1832 = vmatprep.mubr.bf16.mxu0 0
      %1833 = vmatmul.mubr.bf16.gmra.mrb[0].mxu0 %v1326
      %v1834 = vpop.f32.mrb[0].mxu0
      %v1835 = vadd.f32 %v1674, %v1834
      %v1836 = vpop.f32.mrb[0].mxu0
      %v1837 = vpop.f32.mrb[0].mxu0
      %v1838 = vadd.f32 %v1677, %v1837
      %v1839 = vpop.f32.mrb[0].mxu0
      %1840 = vdwg.mxu0
      %v1841 = vld [vmem:[%s2] sm:$0x1]
      %v1843 = vlaneseq
      %v1844 = vshrl.u32 %v1843, 7
      %v1845 = vsub.s32 0, %v1844
      %v1846 = vrot.slane %v1841, %v1845
      %v1848 = vadd.f32 %v1715, %v1846
      %v1849 = vadd.f32 %v1718, %v1846
      %v1850 = vadd.f32 %v1723, %v1846
      %v1851 = vadd.f32 %v1726, %v1846
      %v1852 = vadd.f32 %v1731, %v1846
      %v1853 = vadd.f32 %v1734, %v1846
      %v1854 = vadd.f32 %v1739, %v1846
      %v1855 = vadd.f32 %v1742, %v1846
      %v1856 = vadd.f32 %v1747, %v1846
      %v1857 = vadd.f32 %v1750, %v1846
      %v1858 = vadd.f32 %v1755, %v1846
      %v1859 = vadd.f32 %v1758, %v1846
      %v1860 = vadd.f32 %v1763, %v1846
      %v1861 = vadd.f32 %v1766, %v1846
      %v1862 = vadd.f32 %v1771, %v1846
      %v1863 = vadd.f32 %v1774, %v1846
      %v1864 = vadd.f32 %v1779, %v1846
      %v1865 = vadd.f32 %v1782, %v1846
      %v1866 = vadd.f32 %v1787, %v1846
      %v1867 = vadd.f32 %v1790, %v1846
      %v1868 = vadd.f32 %v1795, %v1846
      %v1869 = vadd.f32 %v1798, %v1846
      %v1870 = vadd.f32 %v1803, %v1846
      %v1871 = vadd.f32 %v1806, %v1846
      %v1872 = vadd.f32 %v1811, %v1846
      %v1873 = vadd.f32 %v1814, %v1846
      %v1874 = vadd.f32 %v1819, %v1846
      %v1875 = vadd.f32 %v1822, %v1846
      %v1876 = vadd.f32 %v1827, %v1846
      %v1877 = vadd.f32 %v1830, %v1846
      %v1878 = vadd.f32 %v1835, %v1846
      %v1879 = vadd.f32 %v1838, %v1846
      %v1880 = vmax.f32 %v1848, 0.0
      %v1881 = vmax.f32 %v1849, 0.0
      %v1882 = vmax.f32 %v1850, 0.0
      %v1883 = vmax.f32 %v1851, 0.0
      %v1884 = vmax.f32 %v1852, 0.0
      %v1885 = vmax.f32 %v1853, 0.0
      %v1886 = vmax.f32 %v1854, 0.0
      %v1887 = vmax.f32 %v1855, 0.0
      %v1888 = vmax.f32 %v1856, 0.0
      %v1889 = vmax.f32 %v1857, 0.0
      %v1890 = vmax.f32 %v1858, 0.0
      %v1891 = vmax.f32 %v1859, 0.0
      %v1892 = vmax.f32 %v1860, 0.0
      %v1893 = vmax.f32 %v1861, 0.0
      %v1894 = vmax.f32 %v1862, 0.0
      %v1895 = vmax.f32 %v1863, 0.0
      %v1896 = vmax.f32 %v1864, 0.0
      %v1897 = vmax.f32 %v1865, 0.0
      %v1898 = vmax.f32 %v1866, 0.0
      %v1899 = vmax.f32 %v1867, 0.0
      %v1900 = vmax.f32 %v1868, 0.0
      %v1901 = vmax.f32 %v1869, 0.0
      %v1902 = vmax.f32 %v1870, 0.0
      %v1903 = vmax.f32 %v1871, 0.0
      %v1904 = vmax.f32 %v1872, 0.0
      %v1905 = vmax.f32 %v1873, 0.0
      %v1906 = vmax.f32 %v1874, 0.0
      %v1907 = vmax.f32 %v1875, 0.0
      %v1908 = vmax.f32 %v1876, 0.0
      %v1909 = vmax.f32 %v1877, 0.0
      %v1910 = vmax.f32 %v1878, 0.0
      %v1911 = vmax.f32 %v1879, 0.0
      %v1912 = vpack.c.bf16 %v1881, %v1880
      %v1913 = vpack.c.bf16 %v1883, %v1882
      %v1914 = vpack.c.bf16 %v1885, %v1884
      %v1915 = vpack.c.bf16 %v1887, %v1886
      %v1916 = vpack.c.bf16 %v1889, %v1888
      %v1917 = vpack.c.bf16 %v1891, %v1890
      %v1918 = vpack.c.bf16 %v1893, %v1892
      %v1919 = vpack.c.bf16 %v1895, %v1894
      %v1920 = vpack.c.bf16 %v1897, %v1896
      %v1921 = vpack.c.bf16 %v1899, %v1898
      %v1922 = vpack.c.bf16 %v1901, %v1900
      %v1923 = vpack.c.bf16 %v1903, %v1902
      %v1924 = vpack.c.bf16 %v1905, %v1904
      %v1925 = vpack.c.bf16 %v1907, %v1906
      %v1926 = vpack.c.bf16 %v1909, %v1908
      %v1927 = vpack.c.bf16 %v1911, %v1910
      %v1944 = vunpack.c.l.b16 %v1912
      %v1945 = vunpack.c.h.b16 %v1912
      %v1946 = vunpack.c.l.b16 %v1913
      %v1947 = vunpack.c.h.b16 %v1913
      %v1948 = vunpack.c.l.b16 %v1914
      %v1949 = vunpack.c.h.b16 %v1914
      %v1950 = vunpack.c.l.b16 %v1915
      %v1951 = vunpack.c.h.b16 %v1915
      %v1952 = vunpack.c.l.b16 %v1916
      %v1953 = vunpack.c.h.b16 %v1916
      %v1954 = vunpack.c.l.b16 %v1917
      %v1955 = vunpack.c.h.b16 %v1917
      %v1956 = vunpack.c.l.b16 %v1918
      %v1957 = vunpack.c.h.b16 %v1918
      %v1958 = vunpack.c.l.b16 %v1919
      %v1959 = vunpack.c.h.b16 %v1919
      %v1960 = vunpack.c.l.b16 %v1920
      %v1961 = vunpack.c.h.b16 %v1920
      %v1962 = vunpack.c.l.b16 %v1921
      %v1963 = vunpack.c.h.b16 %v1921
      %v1964 = vunpack.c.l.b16 %v1922
      %v1965 = vunpack.c.h.b16 %v1922
      %v1966 = vunpack.c.l.b16 %v1923
      %v1967 = vunpack.c.h.b16 %v1923
      %v1968 = vunpack.c.l.b16 %v1924
      %v1969 = vunpack.c.h.b16 %v1924
      %v1970 = vunpack.c.l.b16 %v1925
      %v1971 = vunpack.c.h.b16 %v1925
      %v1972 = vunpack.c.l.b16 %v1926
      %v1973 = vunpack.c.h.b16 %v1926
      %v1974 = vunpack.c.l.b16 %v1927
      %v1975 = vunpack.c.h.b16 %v1927
      %v1976 = vpack.c.b16 %v1944, %v1944
      %v1977 = vpack.c.b16 %v1945, %v1945
      %v1978 = vpack.c.b16 %v1946, %v1946
      %v1979 = vpack.c.b16 %v1947, %v1947
      %v1980 = vpack.c.b16 %v1948, %v1948
      %v1981 = vpack.c.b16 %v1949, %v1949
      %v1982 = vpack.c.b16 %v1950, %v1950
      %v1983 = vpack.c.b16 %v1951, %v1951
      %v1984 = vpack.c.b16 %v1952, %v1952
      %v1985 = vpack.c.b16 %v1953, %v1953
      %v1986 = vpack.c.b16 %v1954, %v1954
      %v1987 = vpack.c.b16 %v1955, %v1955
      %v1988 = vpack.c.b16 %v1956, %v1956
      %v1989 = vpack.c.b16 %v1957, %v1957
      %v1990 = vpack.c.b16 %v1958, %v1958
      %v1991 = vpack.c.b16 %v1959, %v1959
      %v1992 = vpack.c.b16 %v1960, %v1960
      %v1993 = vpack.c.b16 %v1961, %v1961
      %v1994 = vpack.c.b16 %v1962, %v1962
      %v1995 = vpack.c.b16 %v1963, %v1963
      %v1996 = vpack.c.b16 %v1964, %v1964
      %v1997 = vpack.c.b16 %v1965, %v1965
      %v1998 = vpack.c.b16 %v1966, %v1966
      %v1999 = vpack.c.b16 %v1967, %v1967
      %v2000 = vpack.c.b16 %v1968, %v1968
      %v2001 = vpack.c.b16 %v1969, %v1969
      %v2002 = vpack.c.b16 %v1970, %v1970
      %v2003 = vpack.c.b16 %v1971, %v1971
      %v2004 = vpack.c.b16 %v1972, %v1972
      %v2005 = vpack.c.b16 %v1973, %v1973
      %v2006 = vpack.c.b16 %v1974, %v1974
      %v2007 = vpack.c.b16 %v1975, %v1975
      %2040 = vst [vmem:[%s170] sm:$0xf] %v1976
      %2041 = vst [vmem:[%s170 + $0x4] sm:$0xf] %v1977
      %2042 = vst [vmem:[%s170 + $0x8] sm:$0xf] %v1978
      %2043 = vst [vmem:[%s170 + $0xc] sm:$0xf] %v1979
      %2044 = vst [vmem:[%s170 + $0x10] sm:$0xf] %v1980
      %2045 = vst [vmem:[%s170 + $0x14] sm:$0xf] %v1981
      %2046 = vst [vmem:[%s170 + $0x18] sm:$0xf] %v1982
      %2047 = vst [vmem:[%s170 + $0x1c] sm:$0xf] %v1983
      %2048 = vst [vmem:[%s170 + $0x20] sm:$0xf] %v1984
      %2049 = vst [vmem:[%s170 + $0x24] sm:$0xf] %v1985
      %2050 = vst [vmem:[%s170 + $0x28] sm:$0xf] %v1986
      %2051 = vst [vmem:[%s170 + $0x2c] sm:$0xf] %v1987
      %2052 = vst [vmem:[%s170 + $0x30] sm:$0xf] %v1988
      %2053 = vst [vmem:[%s170 + $0x34] sm:$0xf] %v1989
      %2054 = vst [vmem:[%s170 + $0x38] sm:$0xf] %v1990
      %2055 = vst [vmem:[%s170 + $0x3c] sm:$0xf] %v1991
      %2056 = vst [vmem:[%s170 + $0x40] sm:$0xf] %v1992
      %2057 = vst [vmem:[%s170 + $0x44] sm:$0xf] %v1993
      %2058 = vst [vmem:[%s170 + $0x48] sm:$0xf] %v1994
      %2059 = vst [vmem:[%s170 + $0x4c] sm:$0xf] %v1995
      %2060 = vst [vmem:[%s170 + $0x50] sm:$0xf] %v1996
      %2061 = vst [vmem:[%s170 + $0x54] sm:$0xf] %v1997
      %2062 = vst [vmem:[%s170 + $0x58] sm:$0xf] %v1998
      %2063 = vst [vmem:[%s170 + $0x5c] sm:$0xf] %v1999
      %2064 = vst [vmem:[%s170 + $0x60] sm:$0xf] %v2000
      %2065 = vst [vmem:[%s170 + $0x64] sm:$0xf] %v2001
      %2066 = vst [vmem:[%s170 + $0x68] sm:$0xf] %v2002
      %2067 = vst [vmem:[%s170 + $0x6c] sm:$0xf] %v2003
      %2068 = vst [vmem:[%s170 + $0x70] sm:$0xf] %v2004
      %2069 = vst [vmem:[%s170 + $0x74] sm:$0xf] %v2005
      %2070 = vst [vmem:[%s170 + $0x78] sm:$0xf] %v2006
      %2071 = vst [vmem:[%s170 + $0x7c] sm:$0xf] %v2007
      %p2072 = scmp.lt.s32.totalorder %s14, 1
      %s2073 = scalar_select %p2072, %s14, 1
      %s2074 = smul.addr %s2073, 32
      %s2075 = smul.addr %s2074, 4
      %s2076 = scalar_lea.vmem %s3, %s2075
      // Predicated region
      $region33: #{variational_encoder_forward.5} parent=31 // pred_check
        %p2077 = pneg %p100
      $region34: #{variational_encoder_forward.5} parent=31 // pred_check_branch
        %2079 = sbr.rel (%p2077) target = $region36
      $region35: #{variational_encoder_forward.5} parent=31 // pred_region
        _
      $region36: #{variational_encoder_forward.5} parent=31 // pred_fallthru
        _
    $region32: #{variational_encoder_forward.5} parent=5 // pred_fallthru
      _
    %p2080 = scmp.le.s32.totalorder 2, %s9
    // Predicated region
    $region37: #{variational_encoder_forward.5} parent=5 // pred_check
      %p2081 = pneg %p2080
    $region38: #{variational_encoder_forward.5} parent=5 // pred_check_branch
      %2083 = sbr.rel (%p2081) target = $region40
    $region39: #{variational_encoder_forward.5} parent=5 // pred_region
      %s2084 = ssub.s32 %s9, 2
      // Predicated region
      $region41: #{variational_encoder_forward.5} parent=39 // pred_check
        %p2085 = pneg %p106
      $region42: #{variational_encoder_forward.5} parent=39 // pred_check_branch
        %2087 = sbr.rel (%p2085) target = $region44
      $region43: #{variational_encoder_forward.5} parent=39 // pred_region
        %p2088 = scmp.lt.s32.totalorder %s15, 1
        %s2089 = scalar_select %p2088, %s15, 1
        %s2090 = smul.addr %s2089, 32
        %s2091 = smul.addr %s2090, 4
        %s2092 = scalar_lea.vmem %s3, %s2091
      $region44: #{variational_encoder_forward.5} parent=39 // pred_fallthru
        _
    $region40: #{variational_encoder_forward.5} parent=5 // pred_fallthru
      _
  $region6: #{variational_encoder_forward.5} parent=0 // loop_footer
    %s13 = sadd.s32 1, %s9
  $region7: #{variational_encoder_forward.5} parent=0 // loop_footer_branch
    %8 = sbr.rel target = $region3
  $region8: #{variational_encoder_forward.5} parent=0 // loop_exit
    _

// kernel: variational_encoder_forward.6
$region0: #{variational_encoder_forward.6}
  #allocation0 [shape = 'u32[]', space=smem, size = 0x4, offset = 0x4, fixed_abs, tag = 'smem constant byte address 0x4 - core index']
  #allocation1 [shape = 'u32[144,128]{1,0:T(1,128)}', space=vmem, size = 0x12000, scoped, tag = 'internal scratch']
  %s0 = inlined_call_operand.vmem [shape: bf16[2,2,64,768], index: 0, kind: input, shape index: {}]
  %s1 = inlined_call_operand.vmem [shape: bf16[2,768,128], index: 1, kind: input, shape index: {}]
  %s2 = inlined_call_operand.vmem [shape: f32[1,128], index: 2, kind: input, shape index: {}]
  %s3 = inlined_call_operand.vmem [shape: f32[2,64,128], index: 3, kind: output, shape index: {}]
  %s4 = sld [smem:[#allocation0]]
  $region45: #{variational_encoder_forward.6} parent=0
    _
  %s6 = ssub.s32 1, %s4
  %s7 = scalar_select 0, %s6, %s4
  loop: start=0, step=1, limit=4
  $region2: #{variational_encoder_forward.6} parent=0 // loop_pre_header
    _
  $region3: #{variational_encoder_forward.6} parent=0 // loop_header
    %s9 = sphi 0, %s13
    %p10 = scmp.ge.s32.totalorder %s9, 4
    %s19 = sphi 0, %s21
    %s22 = sphi 0, %s19
    %s23 = sphi 0, %s22
    %s39 = sphi 0, %s23
    %s43 = sphi 0, %s43
    %s45 = sphi 0, %s43
    %s46 = sphi 0, %s45
    %s60 = sphi 0, %s46
    %s64 = sphi 0, %s64
    %s66 = sphi 0, %s64
    %s67 = sphi 0, %s66
    %s81 = sphi 0, %s67
    %s87 = sphi 0, %s89
    %s90 = sphi 0, %s87
    %s91 = sphi 0, %s90
    %s107 = sphi 0, %s91
  $region4: #{variational_encoder_forward.6} parent=0 // loop_header_branch
    %12 = sbr.rel (%p10) target = $region8
  $region5: #{variational_encoder_forward.6} parent=0 // loop_body
    %s14 = ssub.s32 %s9, 1
    %s15 = ssub.s32 %s9, 2
    %s16 = sadd.s32 %s9, 1
    %s17 = ssub.s32 %s9, %s16
    %p18 = scmp.eq.s32.totalorder %s17, 0
    %s20 = sadd.s32 %s19, 1
    %s21 = scalar_select %p18, %s19, %s20
    %p24 = pneg %p18
    %p25 = scmp.eq.s32.totalorder %s9, 1
    %p26 = por %p24, %p25
    %p27 = scmp.ne.s32.totalorder %s19, %s22
    %p28 = scmp.eq.s32.totalorder %s9, 0
    %p29 = por %p27, %p28
    %p30 = scmp.ne.s32.totalorder %s19, %s22
    %p31 = scmp.eq.s32.totalorder %s14, 1
    %p32 = por %p30, %p31
    %p33 = scmp.ne.s32.totalorder %s22, %s23
    %p34 = scmp.eq.s32.totalorder %s14, 0
    %p35 = por %p33, %p34
    %p36 = scmp.ne.s32.totalorder %s22, %s23
    %p37 = scmp.eq.s32.totalorder %s15, 1
    %p38 = por %p36, %p37
    %p40 = scmp.ne.s32.totalorder %s23, %s39
    %p41 = scmp.eq.s32.totalorder %s15, 0
    %p42 = por %p40, %p41
    %s44 = sadd.s32 %s43, 1
    %p47 = scmp.eq.s32.totalorder %s9, 1
    %p48 = scmp.ne.s32.totalorder %s43, %s45
    %p49 = scmp.eq.s32.totalorder %s9, 0
    %p50 = por %p48, %p49
    %p51 = scmp.ne.s32.totalorder %s43, %s45
    %p52 = scmp.eq.s32.totalorder %s14, 1
    %p53 = por %p51, %p52
    %p54 = scmp.ne.s32.totalorder %s45, %s46
    %p55 = scmp.eq.s32.totalorder %s14, 0
    %p56 = por %p54, %p55
    %p57 = scmp.ne.s32.totalorder %s45, %s46
    %p58 = scmp.eq.s32.totalorder %s15, 1
    %p59 = por %p57, %p58
    %p61 = scmp.ne.s32.totalorder %s46, %s60
    %p62 = scmp.eq.s32.totalorder %s15, 0
    %p63 = por %p61, %p62
    %s65 = sadd.s32 %s64, 1
    %p68 = scmp.eq.s32.totalorder %s9, 1
    %p69 = scmp.ne.s32.totalorder %s64, %s66
    %p70 = scmp.eq.s32.totalorder %s9, 0
    %p71 = por %p69, %p70
    %p72 = scmp.ne.s32.totalorder %s64, %s66
    %p73 = scmp.eq.s32.totalorder %s14, 1
    %p74 = por %p72, %p73
    %p75 = scmp.ne.s32.totalorder %s66, %s67
    %p76 = scmp.eq.s32.totalorder %s14, 0
    %p77 = por %p75, %p76
    %p78 = scmp.ne.s32.totalorder %s66, %s67
    %p79 = scmp.eq.s32.totalorder %s15, 1
    %p80 = por %p78, %p79
    %p82 = scmp.ne.s32.totalorder %s67, %s81
    %p83 = scmp.eq.s32.totalorder %s15, 0
    %p84 = por %p82, %p83
    %s85 = ssub.s32 %s9, %s16
    %p86 = scmp.eq.s32.totalorder %s85, 0
    %s88 = sadd.s32 %s87, 1
    %s89 = scalar_select %p86, %s87, %s88
    %p92 = pneg %p86
    %p93 = scmp.eq.s32.totalorder %s9, 1
    %p94 = por %p92, %p93
    %p95 = scmp.ne.s32.totalorder %s87, %s90
    %p96 = scmp.eq.s32.totalorder %s9, 0
    %p97 = por %p95, %p96
    %p98 = scmp.ne.s32.totalorder %s87, %s90
    %p99 = scmp.eq.s32.totalorder %s14, 1
    %p100 = por %p98, %p99
    %p101 = scmp.ne.s32.totalorder %s90, %s91
    %p102 = scmp.eq.s32.totalorder %s14, 0
    %p103 = por %p101, %p102
    %p104 = scmp.ne.s32.totalorder %s90, %s91
    %p105 = scmp.eq.s32.totalorder %s15, 1
    %p106 = por %p104, %p105
    %p108 = scmp.ne.s32.totalorder %s91, %s107
    %p109 = scmp.eq.s32.totalorder %s15, 0
    %p110 = por %p108, %p109
    %p111 = scmp.le.s32.totalorder 1, %s9
    %p112 = scmp.lt.s32.totalorder %s9, 3
    %p113 = pnand %p111, %p112
    %p114 = pneg %p113
    // Predicated region
    $region9: #{variational_encoder_forward.6} parent=5 // pred_check
      _
    $region10: #{variational_encoder_forward.6} parent=5 // pred_check_branch
      %116 = sbr.rel (%p113) target = $region12
    $region11: #{variational_encoder_forward.6} parent=5 // pred_region
      %s117 = ssub.s32 %s9, 1
      // Predicated region
      $region13: #{variational_encoder_forward.6} parent=11 // pred_check
        %p118 = pneg %p56
      $region14: #{variational_encoder_forward.6} parent=11 // pred_check_branch
        %120 = sbr.rel (%p118) target = $region16
      $region15: #{variational_encoder_forward.6} parent=11 // pred_region
        _
      $region16: #{variational_encoder_forward.6} parent=11 // pred_fallthru
        _
      // Predicated region
      $region17: #{variational_encoder_forward.6} parent=11 // pred_check
        %p121 = pneg %p77
      $region18: #{variational_encoder_forward.6} parent=11 // pred_check_branch
        %123 = sbr.rel (%p121) target = $region20
      $region19: #{variational_encoder_forward.6} parent=11 // pred_region
        _
      $region20: #{variational_encoder_forward.6} parent=11 // pred_fallthru
        _
    $region12: #{variational_encoder_forward.6} parent=5 // pred_fallthru
      _
    %p124 = scmp.lt.s32.totalorder %s9, 2
    // Predicated region
    $region21: #{variational_encoder_forward.6} parent=5 // pred_check
      %p125 = pneg %p124
    $region22: #{variational_encoder_forward.6} parent=5 // pred_check_branch
      %127 = sbr.rel (%p125) target = $region24
    $region23: #{variational_encoder_forward.6} parent=5 // pred_region
      // Predicated region
      $region25: #{variational_encoder_forward.6} parent=23 // pred_check
        %p128 = pneg %p29
      $region26: #{variational_encoder_forward.6} parent=23 // pred_check_branch
        %130 = sbr.rel (%p128) target = $region28
      $region27: #{variational_encoder_forward.6} parent=23 // pred_region
        %p131 = scmp.lt.s32.totalorder %s9, 1
        %s132 = scalar_select %p131, %s9, 1
        %s133 = smul.addr %s132, 96
        %s134 = smul.addr %s133, 4
        %s135 = scalar_lea.vmem %s0, %s134
      $region28: #{variational_encoder_forward.6} parent=23 // pred_fallthru
        _
    $region24: #{variational_encoder_forward.6} parent=5 // pred_fallthru
      _
    %p136 = scmp.le.s32.totalorder 1, %s9
    %p137 = scmp.lt.s32.totalorder %s9, 3
    %p138 = pnand %p136, %p137
    %p139 = pneg %p138
    // Predicated region
    $region29: #{variational_encoder_forward.6} parent=5 // pred_check
      _
    $region30: #{variational_encoder_forward.6} parent=5 // pred_check_branch
      %141 = sbr.rel (%p138) target = $region32
    $region31: #{variational_encoder_forward.6} parent=5 // pred_region
      %s142 = ssub.s32 %s9, 1
      %p143 = scmp.lt.s32.totalorder %s14, 1
      %s144 = scalar_select %p143, %s14, 1
      %s145 = smul.addr %s144, 96
      %s146 = smul.addr %s145, 4
      %s147 = scalar_lea.vmem %s0, %s146
      %p148 = pneg %p35
      %p149 = pneg %p32
      %p150 = pneg %p56
      %p151 = pneg %p53
      %p152 = pneg %p77
      %p153 = pneg %p74
      %p154 = pneg %p103
      %p155 = pneg %p100
      %p156 = scmp.lt.s32.totalorder %s14, 1
      %s157 = scalar_select %p156, %s14, 1
      %s158 = smul.addr %s157, 8
      %s159 = smul.addr %s158, 8
      %s160 = scalar_lea.vmem %s3, %s159
      %p161 = scmp.lt.s32.totalorder %s14, 1
      %s162 = scalar_select %p161, %s14, 1
      %s163 = smul.addr %s162, 96
      %s164 = smul.addr %s163, 4
      %s165 = scalar_lea.vmem %s0, %s164
      %p166 = scmp.lt.s32.totalorder %s14, 1
      %s167 = scalar_select %p166, %s14, 1
      %s168 = smul.addr %s167, 8
      %s169 = smul.addr %s168, 8
      %s170 = scalar_lea.vmem %s3, %s169
      %v172 = vld [vmem:[%s165] sm:$0xff]
      %v173 = vld [vmem:[%s165 + $0x8] sm:$0xff]
      %v174 = vld [vmem:[%s165 + $0x10] sm:$0xff]
      %v175 = vld [vmem:[%s165 + $0x18] sm:$0xff]
      %v176 = vld [vmem:[%s165 + $0x20] sm:$0xff]
      %v177 = vld [vmem:[%s165 + $0x28] sm:$0xff]
      %v178 = vld [vmem:[%s165 + $0x30] sm:$0xff]
      %v179 = vld [vmem:[%s165 + $0x38] sm:$0xff]
      %v180 = vld [vmem:[%s165 + $0x40] sm:$0xff]
      %v181 = vld [vmem:[%s165 + $0x48] sm:$0xff]
      %v182 = vld [vmem:[%s165 + $0x50] sm:$0xff]
      %v183 = vld [vmem:[%s165 + $0x58] sm:$0xff]
      %v184 = vld [vmem:[%s165 + $0x60] sm:$0xff]
      %v185 = vld [vmem:[%s165 + $0x68] sm:$0xff]
      %v186 = vld [vmem:[%s165 + $0x70] sm:$0xff]
      %v187 = vld [vmem:[%s165 + $0x78] sm:$0xff]
      %v188 = vld [vmem:[%s165 + $0x80] sm:$0xff]
      %v189 = vld [vmem:[%s165 + $0x88] sm:$0xff]
      %v190 = vld [vmem:[%s165 + $0x90] sm:$0xff]
      %v191 = vld [vmem:[%s165 + $0x98] sm:$0xff]
      %v192 = vld [vmem:[%s165 + $0xa0] sm:$0xff]
      %v193 = vld [vmem:[%s165 + $0xa8] sm:$0xff]
      %v194 = vld [vmem:[%s165 + $0xb0] sm:$0xff]
      %v195 = vld [vmem:[%s165 + $0xb8] sm:$0xff]
      %v196 = vld [vmem:[%s1] sm:$0xf]
      %v197 = vld [vmem:[%s1 + $0x4] sm:$0xf]
      %v198 = vld [vmem:[%s1 + $0x8] sm:$0xf]
      %v199 = vld [vmem:[%s1 + $0xc] sm:$0xf]
      %v200 = vld [vmem:[%s1 + $0x10] sm:$0xf]
      %v201 = vld [vmem:[%s1 + $0x14] sm:$0xf]
      %v202 = vld [vmem:[%s1 + $0x18] sm:$0xf]
      %v203 = vld [vmem:[%s1 + $0x1c] sm:$0xf]
      %v204 = vld [vmem:[%s1 + $0x20] sm:$0xf]
      %v205 = vld [vmem:[%s1 + $0x24] sm:$0xf]
      %v206 = vld [vmem:[%s1 + $0x28] sm:$0xf]
      %v207 = vld [vmem:[%s1 + $0x2c] sm:$0xf]
      %v208 = vld [vmem:[%s1 + $0x30] sm:$0xf]
      %v209 = vld [vmem:[%s1 + $0x34] sm:$0xf]
      %v210 = vld [vmem:[%s1 + $0x38] sm:$0xf]
      %v211 = vld [vmem:[%s1 + $0x3c] sm:$0xf]
      %v212 = vld [vmem:[%s1 + $0x40] sm:$0xf]
      %v213 = vld [vmem:[%s1 + $0x44] sm:$0xf]
      %v214 = vld [vmem:[%s1 + $0x48] sm:$0xf]
      %v215 = vld [vmem:[%s1 + $0x4c] sm:$0xf]
      %v216 = vld [vmem:[%s1 + $0x50] sm:$0xf]
      %v217 = vld [vmem:[%s1 + $0x54] sm:$0xf]
      %v218 = vld [vmem:[%s1 + $0x58] sm:$0xf]
      %v219 = vld [vmem:[%s1 + $0x5c] sm:$0xf]
      %v220 = vld [vmem:[%s1 + $0x60] sm:$0xf]
      %v221 = vld [vmem:[%s1 + $0x64] sm:$0xf]
      %v222 = vld [vmem:[%s1 + $0x68] sm:$0xf]
      %v223 = vld [vmem:[%s1 + $0x6c] sm:$0xf]
      %v224 = vld [vmem:[%s1 + $0x70] sm:$0xf]
      %v225 = vld [vmem:[%s1 + $0x74] sm:$0xf]
      %v226 = vld [vmem:[%s1 + $0x78] sm:$0xf]
      %v227 = vld [vmem:[%s1 + $0x7c] sm:$0xf]
      %v228 = vld [vmem:[%s1 + $0x80] sm:$0xf]
      %v229 = vld [vmem:[%s1 + $0x84] sm:$0xf]
      %v230 = vld [vmem:[%s1 + $0x88] sm:$0xf]
      %v231 = vld [vmem:[%s1 + $0x8c] sm:$0xf]
      %v232 = vld [vmem:[%s1 + $0x90] sm:$0xf]
      %v233 = vld [vmem:[%s1 + $0x94] sm:$0xf]
      %v234 = vld [vmem:[%s1 + $0x98] sm:$0xf]
      %v235 = vld [vmem:[%s1 + $0x9c] sm:$0xf]
      %v236 = vld [vmem:[%s1 + $0xa0] sm:$0xf]
      %v237 = vld [vmem:[%s1 + $0xa4] sm:$0xf]
      %v238 = vld [vmem:[%s1 + $0xa8] sm:$0xf]
      %v239 = vld [vmem:[%s1 + $0xac] sm:$0xf]
      %v240 = vld [vmem:[%s1 + $0xb0] sm:$0xf]
      %v241 = vld [vmem:[%s1 + $0xb4] sm:$0xf]
      %v242 = vld [vmem:[%s1 + $0xb8] sm:$0xf]
      %v243 = vld [vmem:[%s1 + $0xbc] sm:$0xf]
      %v244 = vld [vmem:[%s1 + $0xc0] sm:$0xf]
      %v245 = vld [vmem:[%s1 + $0xc4] sm:$0xf]
      %v246 = vld [vmem:[%s1 + $0xc8] sm:$0xf]
      %v247 = vld [vmem:[%s1 + $0xcc] sm:$0xf]
      %v248 = vld [vmem:[%s1 + $0xd0] sm:$0xf]
      %v249 = vld [vmem:[%s1 + $0xd4] sm:$0xf]
      %v250 = vld [vmem:[%s1 + $0xd8] sm:$0xf]
      %v251 = vld [vmem:[%s1 + $0xdc] sm:$0xf]
      %v252 = vld [vmem:[%s1 + $0xe0] sm:$0xf]
      %v253 = vld [vmem:[%s1 + $0xe4] sm:$0xf]
      %v254 = vld [vmem:[%s1 + $0xe8] sm:$0xf]
      %v255 = vld [vmem:[%s1 + $0xec] sm:$0xf]
      %v256 = vld [vmem:[%s1 + $0xf0] sm:$0xf]
      %v257 = vld [vmem:[%s1 + $0xf4] sm:$0xf]
      %v258 = vld [vmem:[%s1 + $0xf8] sm:$0xf]
      %v259 = vld [vmem:[%s1 + $0xfc] sm:$0xf]
      %v260 = vld [vmem:[%s1 + $0x100] sm:$0xf]
      %v261 = vld [vmem:[%s1 + $0x104] sm:$0xf]
      %v262 = vld [vmem:[%s1 + $0x108] sm:$0xf]
      %v263 = vld [vmem:[%s1 + $0x10c] sm:$0xf]
      %v264 = vld [vmem:[%s1 + $0x110] sm:$0xf]
      %v265 = vld [vmem:[%s1 + $0x114] sm:$0xf]
      %v266 = vld [vmem:[%s1 + $0x118] sm:$0xf]
      %v267 = vld [vmem:[%s1 + $0x11c] sm:$0xf]
      %v268 = vld [vmem:[%s1 + $0x120] sm:$0xf]
      %v269 = vld [vmem:[%s1 + $0x124] sm:$0xf]
      %v270 = vld [vmem:[%s1 + $0x128] sm:$0xf]
      %v271 = vld [vmem:[%s1 + $0x12c] sm:$0xf]
      %v272 = vld [vmem:[%s1 + $0x130] sm:$0xf]
      %v273 = vld [vmem:[%s1 + $0x134] sm:$0xf]
      %v274 = vld [vmem:[%s1 + $0x138] sm:$0xf]
      %v275 = vld [vmem:[%s1 + $0x13c] sm:$0xf]
      %v276 = vld [vmem:[%s1 + $0x140] sm:$0xf]
      %v277 = vld [vmem:[%s1 + $0x144] sm:$0xf]
      %v278 = vld [vmem:[%s1 + $0x148] sm:$0xf]
      %v279 = vld [vmem:[%s1 + $0x14c] sm:$0xf]
      %v280 = vld [vmem:[%s1 + $0x150] sm:$0xf]
      %v281 = vld [vmem:[%s1 + $0x154] sm:$0xf]
      %v282 = vld [vmem:[%s1 + $0x158] sm:$0xf]
      %v283 = vld [vmem:[%s1 + $0x15c] sm:$0xf]
      %v284 = vld [vmem:[%s1 + $0x160] sm:$0xf]
      %v285 = vld [vmem:[%s1 + $0x164] sm:$0xf]
      %v286 = vld [vmem:[%s1 + $0x168] sm:$0xf]
      %v287 = vld [vmem:[%s1 + $0x16c] sm:$0xf]
      %v288 = vld [vmem:[%s1 + $0x170] sm:$0xf]
      %v289 = vld [vmem:[%s1 + $0x174] sm:$0xf]
      %v290 = vld [vmem:[%s1 + $0x178] sm:$0xf]
      %v291 = vld [vmem:[%s1 + $0x17c] sm:$0xf]
      %s292 = scalar_lea.vmem %s165, 192
      %v293 = vld [vmem:[%s292] sm:$0xff]
      %v294 = vld [vmem:[%s292 + $0x8] sm:$0xff]
      %v295 = vld [vmem:[%s292 + $0x10] sm:$0xff]
      %v296 = vld [vmem:[%s292 + $0x18] sm:$0xff]
      %v297 = vld [vmem:[%s292 + $0x20] sm:$0xff]
      %v298 = vld [vmem:[%s292 + $0x28] sm:$0xff]
      %v299 = vld [vmem:[%s292 + $0x30] sm:$0xff]
      %v300 = vld [vmem:[%s292 + $0x38] sm:$0xff]
      %v301 = vld [vmem:[%s292 + $0x40] sm:$0xff]
      %v302 = vld [vmem:[%s292 + $0x48] sm:$0xff]
      %v303 = vld [vmem:[%s292 + $0x50] sm:$0xff]
      %v304 = vld [vmem:[%s292 + $0x58] sm:$0xff]
      %v305 = vld [vmem:[%s292 + $0x60] sm:$0xff]
      %v306 = vld [vmem:[%s292 + $0x68] sm:$0xff]
      %v307 = vld [vmem:[%s292 + $0x70] sm:$0xff]
      %v308 = vld [vmem:[%s292 + $0x78] sm:$0xff]
      %v309 = vld [vmem:[%s292 + $0x80] sm:$0xff]
      %v310 = vld [vmem:[%s292 + $0x88] sm:$0xff]
      %v311 = vld [vmem:[%s292 + $0x90] sm:$0xff]
      %v312 = vld [vmem:[%s292 + $0x98] sm:$0xff]
      %v313 = vld [vmem:[%s292 + $0xa0] sm:$0xff]
      %v314 = vld [vmem:[%s292 + $0xa8] sm:$0xff]
      %v315 = vld [vmem:[%s292 + $0xb0] sm:$0xff]
      %v316 = vld [vmem:[%s292 + $0xb8] sm:$0xff]
      %s317 = scalar_lea.vmem %s1, 384
      %v318 = vld [vmem:[%s317] sm:$0xf]
      %v319 = vld [vmem:[%s317 + $0x4] sm:$0xf]
      %v320 = vld [vmem:[%s317 + $0x8] sm:$0xf]
      %v321 = vld [vmem:[%s317 + $0xc] sm:$0xf]
      %v322 = vld [vmem:[%s317 + $0x10] sm:$0xf]
      %v323 = vld [vmem:[%s317 + $0x14] sm:$0xf]
      %v324 = vld [vmem:[%s317 + $0x18] sm:$0xf]
      %v325 = vld [vmem:[%s317 + $0x1c] sm:$0xf]
      %v326 = vld [vmem:[%s317 + $0x20] sm:$0xf]
      %v327 = vld [vmem:[%s317 + $0x24] sm:$0xf]
      %v328 = vld [vmem:[%s317 + $0x28] sm:$0xf]
      %v329 = vld [vmem:[%s317 + $0x2c] sm:$0xf]
      %v330 = vld [vmem:[%s317 + $0x30] sm:$0xf]
      %v331 = vld [vmem:[%s317 + $0x34] sm:$0xf]
      %v332 = vld [vmem:[%s317 + $0x38] sm:$0xf]
      %v333 = vld [vmem:[%s317 + $0x3c] sm:$0xf]
      %v334 = vld [vmem:[%s317 + $0x40] sm:$0xf]
      %v335 = vld [vmem:[%s317 + $0x44] sm:$0xf]
      %v336 = vld [vmem:[%s317 + $0x48] sm:$0xf]
      %v337 = vld [vmem:[%s317 + $0x4c] sm:$0xf]
      %v338 = vld [vmem:[%s317 + $0x50] sm:$0xf]
      %v339 = vld [vmem:[%s317 + $0x54] sm:$0xf]
      %v340 = vld [vmem:[%s317 + $0x58] sm:$0xf]
      %v341 = vld [vmem:[%s317 + $0x5c] sm:$0xf]
      %v342 = vld [vmem:[%s317 + $0x60] sm:$0xf]
      %v343 = vld [vmem:[%s317 + $0x64] sm:$0xf]
      %v344 = vld [vmem:[%s317 + $0x68] sm:$0xf]
      %v345 = vld [vmem:[%s317 + $0x6c] sm:$0xf]
      %v346 = vld [vmem:[%s317 + $0x70] sm:$0xf]
      %v347 = vld [vmem:[%s317 + $0x74] sm:$0xf]
      %v348 = vld [vmem:[%s317 + $0x78] sm:$0xf]
      %v349 = vld [vmem:[%s317 + $0x7c] sm:$0xf]
      %v350 = vld [vmem:[%s317 + $0x80] sm:$0xf]
      %v351 = vld [vmem:[%s317 + $0x84] sm:$0xf]
      %v352 = vld [vmem:[%s317 + $0x88] sm:$0xf]
      %v353 = vld [vmem:[%s317 + $0x8c] sm:$0xf]
      %v354 = vld [vmem:[%s317 + $0x90] sm:$0xf]
      %v355 = vld [vmem:[%s317 + $0x94] sm:$0xf]
      %v356 = vld [vmem:[%s317 + $0x98] sm:$0xf]
      %v357 = vld [vmem:[%s317 + $0x9c] sm:$0xf]
      %v358 = vld [vmem:[%s317 + $0xa0] sm:$0xf]
      %v359 = vld [vmem:[%s317 + $0xa4] sm:$0xf]
      %v360 = vld [vmem:[%s317 + $0xa8] sm:$0xf]
      %v361 = vld [vmem:[%s317 + $0xac] sm:$0xf]
      %v362 = vld [vmem:[%s317 + $0xb0] sm:$0xf]
      %v363 = vld [vmem:[%s317 + $0xb4] sm:$0xf]
      %v364 = vld [vmem:[%s317 + $0xb8] sm:$0xf]
      %v365 = vld [vmem:[%s317 + $0xbc] sm:$0xf]
      %v366 = vld [vmem:[%s317 + $0xc0] sm:$0xf]
      %v367 = vld [vmem:[%s317 + $0xc4] sm:$0xf]
      %v368 = vld [vmem:[%s317 + $0xc8] sm:$0xf]
      %v369 = vld [vmem:[%s317 + $0xcc] sm:$0xf]
      %v370 = vld [vmem:[%s317 + $0xd0] sm:$0xf]
      %v371 = vld [vmem:[%s317 + $0xd4] sm:$0xf]
      %v372 = vld [vmem:[%s317 + $0xd8] sm:$0xf]
      %v373 = vld [vmem:[%s317 + $0xdc] sm:$0xf]
      %v374 = vld [vmem:[%s317 + $0xe0] sm:$0xf]
      %v375 = vld [vmem:[%s317 + $0xe4] sm:$0xf]
      %v376 = vld [vmem:[%s317 + $0xe8] sm:$0xf]
      %v377 = vld [vmem:[%s317 + $0xec] sm:$0xf]
      %v378 = vld [vmem:[%s317 + $0xf0] sm:$0xf]
      %v379 = vld [vmem:[%s317 + $0xf4] sm:$0xf]
      %v380 = vld [vmem:[%s317 + $0xf8] sm:$0xf]
      %v381 = vld [vmem:[%s317 + $0xfc] sm:$0xf]
      %v382 = vld [vmem:[%s317 + $0x100] sm:$0xf]
      %v383 = vld [vmem:[%s317 + $0x104] sm:$0xf]
      %v384 = vld [vmem:[%s317 + $0x108] sm:$0xf]
      %v385 = vld [vmem:[%s317 + $0x10c] sm:$0xf]
      %v386 = vld [vmem:[%s317 + $0x110] sm:$0xf]
      %v387 = vld [vmem:[%s317 + $0x114] sm:$0xf]
      %v388 = vld [vmem:[%s317 + $0x118] sm:$0xf]
      %v389 = vld [vmem:[%s317 + $0x11c] sm:$0xf]
      %v390 = vld [vmem:[%s317 + $0x120] sm:$0xf]
      %v391 = vld [vmem:[%s317 + $0x124] sm:$0xf]
      %v392 = vld [vmem:[%s317 + $0x128] sm:$0xf]
      %v393 = vld [vmem:[%s317 + $0x12c] sm:$0xf]
      %v394 = vld [vmem:[%s317 + $0x130] sm:$0xf]
      %v395 = vld [vmem:[%s317 + $0x134] sm:$0xf]
      %v396 = vld [vmem:[%s317 + $0x138] sm:$0xf]
      %v397 = vld [vmem:[%s317 + $0x13c] sm:$0xf]
      %v398 = vld [vmem:[%s317 + $0x140] sm:$0xf]
      %v399 = vld [vmem:[%s317 + $0x144] sm:$0xf]
      %v400 = vld [vmem:[%s317 + $0x148] sm:$0xf]
      %v401 = vld [vmem:[%s317 + $0x14c] sm:$0xf]
      %v402 = vld [vmem:[%s317 + $0x150] sm:$0xf]
      %v403 = vld [vmem:[%s317 + $0x154] sm:$0xf]
      %v404 = vld [vmem:[%s317 + $0x158] sm:$0xf]
      %v405 = vld [vmem:[%s317 + $0x15c] sm:$0xf]
      %v406 = vld [vmem:[%s317 + $0x160] sm:$0xf]
      %v407 = vld [vmem:[%s317 + $0x164] sm:$0xf]
      %v408 = vld [vmem:[%s317 + $0x168] sm:$0xf]
      %v409 = vld [vmem:[%s317 + $0x16c] sm:$0xf]
      %v410 = vld [vmem:[%s317 + $0x170] sm:$0xf]
      %v411 = vld [vmem:[%s317 + $0x174] sm:$0xf]
      %v412 = vld [vmem:[%s317 + $0x178] sm:$0xf]
      %v413 = vld [vmem:[%s317 + $0x17c] sm:$0xf]
      %v438 = vunpack.c.l.b16 %v293
      %v439 = vunpack.c.h.b16 %v293
      %v440 = vunpack.c.l.b16 %v294
      %v441 = vunpack.c.h.b16 %v294
      %v442 = vunpack.c.l.b16 %v295
      %v443 = vunpack.c.h.b16 %v295
      %v444 = vunpack.c.l.b16 %v296
      %v445 = vunpack.c.h.b16 %v296
      %v446 = vunpack.c.l.b16 %v297
      %v447 = vunpack.c.h.b16 %v297
      %v448 = vunpack.c.l.b16 %v298
      %v449 = vunpack.c.h.b16 %v298
      %v450 = vunpack.c.l.b16 %v299
      %v451 = vunpack.c.h.b16 %v299
      %v452 = vunpack.c.l.b16 %v300
      %v453 = vunpack.c.h.b16 %v300
      %v454 = vunpack.c.l.b16 %v301
      %v455 = vunpack.c.h.b16 %v301
      %v456 = vunpack.c.l.b16 %v302
      %v457 = vunpack.c.h.b16 %v302
      %v458 = vunpack.c.l.b16 %v303
      %v459 = vunpack.c.h.b16 %v303
      %v460 = vunpack.c.l.b16 %v304
      %v461 = vunpack.c.h.b16 %v304
      %v462 = vunpack.c.l.b16 %v305
      %v463 = vunpack.c.h.b16 %v305
      %v464 = vunpack.c.l.b16 %v306
      %v465 = vunpack.c.h.b16 %v306
      %v466 = vunpack.c.l.b16 %v307
      %v467 = vunpack.c.h.b16 %v307
      %v468 = vunpack.c.l.b16 %v308
      %v469 = vunpack.c.h.b16 %v308
      %v470 = vunpack.c.l.b16 %v309
      %v471 = vunpack.c.h.b16 %v309
      %v472 = vunpack.c.l.b16 %v310
      %v473 = vunpack.c.h.b16 %v310
      %v474 = vunpack.c.l.b16 %v311
      %v475 = vunpack.c.h.b16 %v311
      %v476 = vunpack.c.l.b16 %v312
      %v477 = vunpack.c.h.b16 %v312
      %v478 = vunpack.c.l.b16 %v313
      %v479 = vunpack.c.h.b16 %v313
      %v480 = vunpack.c.l.b16 %v314
      %v481 = vunpack.c.h.b16 %v314
      %v482 = vunpack.c.l.b16 %v315
      %v483 = vunpack.c.h.b16 %v315
      %v484 = vunpack.c.l.b16 %v316
      %v485 = vunpack.c.h.b16 %v316
      %v486 = vpack.c.b16 %v444, %v438
      %v487 = vpack.c.b16 %v445, %v439
      %v488 = vpack.c.b16 %v446, %v440
      %v489 = vpack.c.b16 %v447, %v441
      %v490 = vpack.c.b16 %v448, %v442
      %v491 = vpack.c.b16 %v449, %v443
      %v492 = vpack.c.b16 %v456, %v450
      %v493 = vpack.c.b16 %v457, %v451
      %v494 = vpack.c.b16 %v458, %v452
      %v495 = vpack.c.b16 %v459, %v453
      %v496 = vpack.c.b16 %v460, %v454
      %v497 = vpack.c.b16 %v461, %v455
      %v498 = vpack.c.b16 %v468, %v462
      %v499 = vpack.c.b16 %v469, %v463
      %v500 = vpack.c.b16 %v470, %v464
      %v501 = vpack.c.b16 %v471, %v465
      %v502 = vpack.c.b16 %v472, %v466
      %v503 = vpack.c.b16 %v473, %v467
      %v504 = vpack.c.b16 %v480, %v474
      %v505 = vpack.c.b16 %v481, %v475
      %v506 = vpack.c.b16 %v482, %v476
      %v507 = vpack.c.b16 %v483, %v477
      %v508 = vpack.c.b16 %v484, %v478
      %v509 = vpack.c.b16 %v485, %v479
      %v630 = vunpack.c.l.b16 %v318
      %v631 = vunpack.c.l.b16 %v319
      %v632 = vunpack.c.l.b16 %v320
      %v633 = vunpack.c.l.b16 %v321
      %v634 = vunpack.c.l.b16 %v322
      %v635 = vunpack.c.l.b16 %v323
      %v636 = vunpack.c.l.b16 %v324
      %v637 = vunpack.c.l.b16 %v325
      %v638 = vunpack.c.l.b16 %v326
      %v639 = vunpack.c.l.b16 %v327
      %v640 = vunpack.c.l.b16 %v328
      %v641 = vunpack.c.l.b16 %v329
      %v642 = vunpack.c.l.b16 %v330
      %v643 = vunpack.c.l.b16 %v331
      %v644 = vunpack.c.l.b16 %v332
      %v645 = vunpack.c.l.b16 %v333
      %v646 = vunpack.c.l.b16 %v334
      %v647 = vunpack.c.l.b16 %v335
      %v648 = vunpack.c.l.b16 %v336
      %v649 = vunpack.c.l.b16 %v337
      %v650 = vunpack.c.l.b16 %v338
      %v651 = vunpack.c.l.b16 %v339
      %v652 = vunpack.c.l.b16 %v340
      %v653 = vunpack.c.l.b16 %v341
      %v654 = vunpack.c.l.b16 %v342
      %v655 = vunpack.c.l.b16 %v343
      %v656 = vunpack.c.l.b16 %v344
      %v657 = vunpack.c.l.b16 %v345
      %v658 = vunpack.c.l.b16 %v346
      %v659 = vunpack.c.l.b16 %v347
      %v660 = vunpack.c.l.b16 %v348
      %v661 = vunpack.c.l.b16 %v349
      %v662 = vunpack.c.l.b16 %v350
      %v663 = vunpack.c.l.b16 %v351
      %v664 = vunpack.c.l.b16 %v352
      %v665 = vunpack.c.l.b16 %v353
      %v666 = vunpack.c.l.b16 %v354
      %v667 = vunpack.c.l.b16 %v355
      %v668 = vunpack.c.l.b16 %v356
      %v669 = vunpack.c.l.b16 %v357
      %v670 = vunpack.c.l.b16 %v358
      %v671 = vunpack.c.l.b16 %v359
      %v672 = vunpack.c.l.b16 %v360
      %v673 = vunpack.c.l.b16 %v361
      %v674 = vunpack.c.l.b16 %v362
      %v675 = vunpack.c.l.b16 %v363
      %v676 = vunpack.c.l.b16 %v364
      %v677 = vunpack.c.l.b16 %v365
      %v678 = vunpack.c.l.b16 %v366
      %v679 = vunpack.c.l.b16 %v367
      %v680 = vunpack.c.l.b16 %v368
      %v681 = vunpack.c.l.b16 %v369
      %v682 = vunpack.c.l.b16 %v370
      %v683 = vunpack.c.l.b16 %v371
      %v684 = vunpack.c.l.b16 %v372
      %v685 = vunpack.c.l.b16 %v373
      %v686 = vunpack.c.l.b16 %v374
      %v687 = vunpack.c.l.b16 %v375
      %v688 = vunpack.c.l.b16 %v376
      %v689 = vunpack.c.l.b16 %v377
      %v690 = vunpack.c.l.b16 %v378
      %v691 = vunpack.c.l.b16 %v379
      %v692 = vunpack.c.l.b16 %v380
      %v693 = vunpack.c.l.b16 %v381
      %v694 = vunpack.c.l.b16 %v382
      %v695 = vunpack.c.l.b16 %v383
      %v696 = vunpack.c.l.b16 %v384
      %v697 = vunpack.c.l.b16 %v385
      %v698 = vunpack.c.l.b16 %v386
      %v699 = vunpack.c.l.b16 %v387
      %v700 = vunpack.c.l.b16 %v388
      %v701 = vunpack.c.l.b16 %v389
      %v702 = vunpack.c.l.b16 %v390
      %v703 = vunpack.c.l.b16 %v391
      %v704 = vunpack.c.l.b16 %v392
      %v705 = vunpack.c.l.b16 %v393
      %v706 = vunpack.c.l.b16 %v394
      %v707 = vunpack.c.l.b16 %v395
      %v708 = vunpack.c.l.b16 %v396
      %v709 = vunpack.c.l.b16 %v397
      %v710 = vunpack.c.l.b16 %v398
      %v711 = vunpack.c.l.b16 %v399
      %v712 = vunpack.c.l.b16 %v400
      %v713 = vunpack.c.l.b16 %v401
      %v714 = vunpack.c.l.b16 %v402
      %v715 = vunpack.c.l.b16 %v403
      %v716 = vunpack.c.l.b16 %v404
      %v717 = vunpack.c.l.b16 %v405
      %v718 = vunpack.c.l.b16 %v406
      %v719 = vunpack.c.l.b16 %v407
      %v720 = vunpack.c.l.b16 %v408
      %v721 = vunpack.c.l.b16 %v409
      %v722 = vunpack.c.l.b16 %v410
      %v723 = vunpack.c.l.b16 %v411
      %v724 = vunpack.c.l.b16 %v412
      %v725 = vunpack.c.l.b16 %v413
      %v726 = vpack.c.b16 %v631, %v630
      %v727 = vpack.c.b16 %v633, %v632
      %v728 = vpack.c.b16 %v635, %v634
      %v729 = vpack.c.b16 %v637, %v636
      %v730 = vpack.c.b16 %v639, %v638
      %v731 = vpack.c.b16 %v641, %v640
      %v732 = vpack.c.b16 %v643, %v642
      %v733 = vpack.c.b16 %v645, %v644
      %v734 = vpack.c.b16 %v647, %v646
      %v735 = vpack.c.b16 %v649, %v648
      %v736 = vpack.c.b16 %v651, %v650
      %v737 = vpack.c.b16 %v653, %v652
      %v738 = vpack.c.b16 %v655, %v654
      %v739 = vpack.c.b16 %v657, %v656
      %v740 = vpack.c.b16 %v659, %v658
      %v741 = vpack.c.b16 %v661, %v660
      %v742 = vpack.c.b16 %v663, %v662
      %v743 = vpack.c.b16 %v665, %v664
      %v744 = vpack.c.b16 %v667, %v666
      %v745 = vpack.c.b16 %v669, %v668
      %v746 = vpack.c.b16 %v671, %v670
      %v747 = vpack.c.b16 %v673, %v672
      %v748 = vpack.c.b16 %v675, %v674
      %v749 = vpack.c.b16 %v677, %v676
      %v750 = vpack.c.b16 %v679, %v678
      %v751 = vpack.c.b16 %v681, %v680
      %v752 = vpack.c.b16 %v683, %v682
      %v753 = vpack.c.b16 %v685, %v684
      %v754 = vpack.c.b16 %v687, %v686
      %v755 = vpack.c.b16 %v689, %v688
      %v756 = vpack.c.b16 %v691, %v690
      %v757 = vpack.c.b16 %v693, %v692
      %v758 = vpack.c.b16 %v695, %v694
      %v759 = vpack.c.b16 %v697, %v696
      %v760 = vpack.c.b16 %v699, %v698
      %v761 = vpack.c.b16 %v701, %v700
      %v762 = vpack.c.b16 %v703, %v702
      %v763 = vpack.c.b16 %v705, %v704
      %v764 = vpack.c.b16 %v707, %v706
      %v765 = vpack.c.b16 %v709, %v708
      %v766 = vpack.c.b16 %v711, %v710
      %v767 = vpack.c.b16 %v713, %v712
      %v768 = vpack.c.b16 %v715, %v714
      %v769 = vpack.c.b16 %v717, %v716
      %v770 = vpack.c.b16 %v719, %v718
      %v771 = vpack.c.b16 %v721, %v720
      %v772 = vpack.c.b16 %v723, %v722
      %v773 = vpack.c.b16 %v725, %v724
      %822 = vmatprep.subr.bf16.mxu0 0
      %823 = vmatpush1.bf16.msra.mxu0 %v726
      %824 = vmatprep.subr.bf16.mxu0 0
      %825 = vmatpush1.bf16.msra.mxu0 %v727
      %826 = vmatprep.subr.bf16.mxu0 0
      %827 = vmatpush1.bf16.msra.mxu0 %v728
      %828 = vmatprep.subr.bf16.mxu0 0
      %829 = vmatpush1.bf16.msra.mxu0 %v729
      %830 = vmatprep.subr.bf16.mxu0 0
      %831 = vmatpush1.bf16.msra.mxu0 %v730
      %832 = vmatprep.subr.bf16.mxu0 0
      %833 = vmatpush1.bf16.msra.mxu0 %v731
      %834 = vmatprep.subr.bf16.mxu0 0
      %835 = vmatpush1.bf16.msra.mxu0 %v732
      %836 = vmatprep.subr.bf16.mxu0 0
      %837 = vmatpush1.bf16.msra.mxu0 %v733
      %838 = vmatprep.subr.bf16.mxu0 0
      %839 = vmatpush1.bf16.msra.mxu0 %v734
      %840 = vmatprep.subr.bf16.mxu0 0
      %841 = vmatpush1.bf16.msra.mxu0 %v735
      %842 = vmatprep.subr.bf16.mxu0 0
      %843 = vmatpush1.bf16.msra.mxu0 %v736
      %844 = vmatprep.subr.bf16.mxu0 0
      %845 = vmatpush1.bf16.msra.mxu0 %v737
      %846 = vmatprep.subr.bf16.mxu0 0
      %847 = vmatpush1.bf16.msra.mxu0 %v738
      %848 = vmatprep.subr.bf16.mxu0 0
      %849 = vmatpush1.bf16.msra.mxu0 %v739
      %850 = vmatprep.subr.bf16.mxu0 0
      %851 = vmatpush1.bf16.msra.mxu0 %v740
      %852 = vmatprep.subr.bf16.mxu0 0
      %853 = vmatpush1.bf16.msra.mxu0 %v741
      %854 = vmatprep.mubr.bf16.mxu0 %v487
      %855 = vmatmul.mubr.bf16.gmra.mrb[0].mxu0 %v486
      %v856 = vpop.f32.mrb[0].mxu0
      %v857 = vadd.f32 0.0, %v856
      %v858 = vpop.f32.mrb[0].mxu0
      %v859 = vpop.f32.mrb[0].mxu0
      %v860 = vadd.f32 0.0, %v859
      %v861 = vpop.f32.mrb[0].mxu0
      %862 = vmatprep.mubr.bf16.mxu0 %v493
      %863 = vmatmul.mubr.bf16.gmra.mrb[0].mxu0 %v492
      %v864 = vpop.f32.mrb[0].mxu0
      %v865 = vadd.f32 0.0, %v864
      %v866 = vpop.f32.mrb[0].mxu0
      %v867 = vpop.f32.mrb[0].mxu0
      %v868 = vadd.f32 0.0, %v867
      %v869 = vpop.f32.mrb[0].mxu0
      %870 = vmatprep.mubr.bf16.mxu0 %v499
      %871 = vmatmul.mubr.bf16.gmra.mrb[0].mxu0 %v498
      %v872 = vpop.f32.mrb[0].mxu0
      %v873 = vadd.f32 0.0, %v872
      %v874 = vpop.f32.mrb[0].mxu0
      %v875 = vpop.f32.mrb[0].mxu0
      %v876 = vadd.f32 0.0, %v875
      %v877 = vpop.f32.mrb[0].mxu0
      %878 = vmatprep.mubr.bf16.mxu0 %v505
      %879 = vmatmul.mubr.bf16.gmra.mrb[0].mxu0 %v504
      %v880 = vpop.f32.mrb[0].mxu0
      %v881 = vadd.f32 0.0, %v880
      %v882 = vpop.f32.mrb[0].mxu0
      %v883 = vpop.f32.mrb[0].mxu0
      %v884 = vadd.f32 0.0, %v883
      %v885 = vpop.f32.mrb[0].mxu0
      %886 = vdwg.mxu0
      %887 = vmatprep.subr.bf16.mxu0 0
      %888 = vmatpush1.bf16.msra.mxu0 %v742
      %889 = vmatprep.subr.bf16.mxu0 0
      %890 = vmatpush1.bf16.msra.mxu0 %v743
      %891 = vmatprep.subr.bf16.mxu0 0
      %892 = vmatpush1.bf16.msra.mxu0 %v744
      %893 = vmatprep.subr.bf16.mxu0 0
      %894 = vmatpush1.bf16.msra.mxu0 %v745
      %895 = vmatprep.subr.bf16.mxu0 0
      %896 = vmatpush1.bf16.msra.mxu0 %v746
      %897 = vmatprep.subr.bf16.mxu0 0
      %898 = vmatpush1.bf16.msra.mxu0 %v747
      %899 = vmatprep.subr.bf16.mxu0 0
      %900 = vmatpush1.bf16.msra.mxu0 %v748
      %901 = vmatprep.subr.bf16.mxu0 0
      %902 = vmatpush1.bf16.msra.mxu0 %v749
      %903 = vmatprep.subr.bf16.mxu0 0
      %904 = vmatpush1.bf16.msra.mxu0 %v750
      %905 = vmatprep.subr.bf16.mxu0 0
      %906 = vmatpush1.bf16.msra.mxu0 %v751
      %907 = vmatprep.subr.bf16.mxu0 0
      %908 = vmatpush1.bf16.msra.mxu0 %v752
      %909 = vmatprep.subr.bf16.mxu0 0
      %910 = vmatpush1.bf16.msra.mxu0 %v753
      %911 = vmatprep.subr.bf16.mxu0 0
      %912 = vmatpush1.bf16.msra.mxu0 %v754
      %913 = vmatprep.subr.bf16.mxu0 0
      %914 = vmatpush1.bf16.msra.mxu0 %v755
      %915 = vmatprep.subr.bf16.mxu0 0
      %916 = vmatpush1.bf16.msra.mxu0 %v756
      %917 = vmatprep.subr.bf16.mxu0 0
      %918 = vmatpush1.bf16.msra.mxu0 %v757
      %919 = vmatprep.mubr.bf16.mxu0 %v489
      %920 = vmatmul.mubr.bf16.gmra.mrb[0].mxu0 %v488
      %v921 = vpop.f32.mrb[0].mxu0
      %v922 = vadd.f32 %v857, %v921
      %v923 = vpop.f32.mrb[0].mxu0
      %v924 = vpop.f32.mrb[0].mxu0
      %v925 = vadd.f32 %v860, %v924
      %v926 = vpop.f32.mrb[0].mxu0
      %927 = vmatprep.mubr.bf16.mxu0 %v495
      %928 = vmatmul.mubr.bf16.gmra.mrb[0].mxu0 %v494
      %v929 = vpop.f32.mrb[0].mxu0
      %v930 = vadd.f32 %v865, %v929
      %v931 = vpop.f32.mrb[0].mxu0
      %v932 = vpop.f32.mrb[0].mxu0
      %v933 = vadd.f32 %v868, %v932
      %v934 = vpop.f32.mrb[0].mxu0
      %935 = vmatprep.mubr.bf16.mxu0 %v501
      %936 = vmatmul.mubr.bf16.gmra.mrb[0].mxu0 %v500
      %v937 = vpop.f32.mrb[0].mxu0
      %v938 = vadd.f32 %v873, %v937
      %v939 = vpop.f32.mrb[0].mxu0
      %v940 = vpop.f32.mrb[0].mxu0
      %v941 = vadd.f32 %v876, %v940
      %v942 = vpop.f32.mrb[0].mxu0
      %943 = vmatprep.mubr.bf16.mxu0 %v507
      %944 = vmatmul.mubr.bf16.gmra.mrb[0].mxu0 %v506
      %v945 = vpop.f32.mrb[0].mxu0
      %v946 = vadd.f32 %v881, %v945
      %v947 = vpop.f32.mrb[0].mxu0
      %v948 = vpop.f32.mrb[0].mxu0
      %v949 = vadd.f32 %v884, %v948
      %v950 = vpop.f32.mrb[0].mxu0
      %951 = vdwg.mxu0
      %952 = vmatprep.subr.bf16.mxu0 0
      %953 = vmatpush1.bf16.msra.mxu0 %v758
      %954 = vmatprep.subr.bf16.mxu0 0
      %955 = vmatpush1.bf16.msra.mxu0 %v759
      %956 = vmatprep.subr.bf16.mxu0 0
      %957 = vmatpush1.bf16.msra.mxu0 %v760
      %958 = vmatprep.subr.bf16.mxu0 0
      %959 = vmatpush1.bf16.msra.mxu0 %v761
      %960 = vmatprep.subr.bf16.mxu0 0
      %961 = vmatpush1.bf16.msra.mxu0 %v762
      %962 = vmatprep.subr.bf16.mxu0 0
      %963 = vmatpush1.bf16.msra.mxu0 %v763
      %964 = vmatprep.subr.bf16.mxu0 0
      %965 = vmatpush1.bf16.msra.mxu0 %v764
      %966 = vmatprep.subr.bf16.mxu0 0
      %967 = vmatpush1.bf16.msra.mxu0 %v765
      %968 = vmatprep.subr.bf16.mxu0 0
      %969 = vmatpush1.bf16.msra.mxu0 %v766
      %970 = vmatprep.subr.bf16.mxu0 0
      %971 = vmatpush1.bf16.msra.mxu0 %v767
      %972 = vmatprep.subr.bf16.mxu0 0
      %973 = vmatpush1.bf16.msra.mxu0 %v768
      %974 = vmatprep.subr.bf16.mxu0 0
      %975 = vmatpush1.bf16.msra.mxu0 %v769
      %976 = vmatprep.subr.bf16.mxu0 0
      %977 = vmatpush1.bf16.msra.mxu0 %v770
      %978 = vmatprep.subr.bf16.mxu0 0
      %979 = vmatpush1.bf16.msra.mxu0 %v771
      %980 = vmatprep.subr.bf16.mxu0 0
      %981 = vmatpush1.bf16.msra.mxu0 %v772
      %982 = vmatprep.subr.bf16.mxu0 0
      %983 = vmatpush1.bf16.msra.mxu0 %v773
      %984 = vmatprep.mubr.bf16.mxu0 %v491
      %985 = vmatmul.mubr.bf16.gmra.mrb[0].mxu0 %v490
      %v986 = vpop.f32.mrb[0].mxu0
      %v987 = vadd.f32 %v922, %v986
      %v988 = vpop.f32.mrb[0].mxu0
      %v989 = vpop.f32.mrb[0].mxu0
      %v990 = vadd.f32 %v925, %v989
      %v991 = vpop.f32.mrb[0].mxu0
      %992 = vmatprep.mubr.bf16.mxu0 %v497
      %993 = vmatmul.mubr.bf16.gmra.mrb[0].mxu0 %v496
      %v994 = vpop.f32.mrb[0].mxu0
      %v995 = vadd.f32 %v930, %v994
      %v996 = vpop.f32.mrb[0].mxu0
      %v997 = vpop.f32.mrb[0].mxu0
      %v998 = vadd.f32 %v933, %v997
      %v999 = vpop.f32.mrb[0].mxu0
      %1000 = vmatprep.mubr.bf16.mxu0 %v503
      %1001 = vmatmul.mubr.bf16.gmra.mrb[0].mxu0 %v502
      %v1002 = vpop.f32.mrb[0].mxu0
      %v1003 = vadd.f32 %v938, %v1002
      %v1004 = vpop.f32.mrb[0].mxu0
      %v1005 = vpop.f32.mrb[0].mxu0
      %v1006 = vadd.f32 %v941, %v1005
      %v1007 = vpop.f32.mrb[0].mxu0
      %1008 = vmatprep.mubr.bf16.mxu0 %v509
      %1009 = vmatmul.mubr.bf16.gmra.mrb[0].mxu0 %v508
      %v1010 = vpop.f32.mrb[0].mxu0
      %v1011 = vadd.f32 %v946, %v1010
      %v1012 = vpop.f32.mrb[0].mxu0
      %v1013 = vpop.f32.mrb[0].mxu0
      %v1014 = vadd.f32 %v949, %v1013
      %v1015 = vpop.f32.mrb[0].mxu0
      %1016 = vdwg.mxu0
      %v1041 = vunpack.c.l.b16 %v172
      %v1042 = vunpack.c.h.b16 %v172
      %v1043 = vunpack.c.l.b16 %v173
      %v1044 = vunpack.c.h.b16 %v173
      %v1045 = vunpack.c.l.b16 %v174
      %v1046 = vunpack.c.h.b16 %v174
      %v1047 = vunpack.c.l.b16 %v175
      %v1048 = vunpack.c.h.b16 %v175
      %v1049 = vunpack.c.l.b16 %v176
      %v1050 = vunpack.c.h.b16 %v176
      %v1051 = vunpack.c.l.b16 %v177
      %v1052 = vunpack.c.h.b16 %v177
      %v1053 = vunpack.c.l.b16 %v178
      %v1054 = vunpack.c.h.b16 %v178
      %v1055 = vunpack.c.l.b16 %v179
      %v1056 = vunpack.c.h.b16 %v179
      %v1057 = vunpack.c.l.b16 %v180
      %v1058 = vunpack.c.h.b16 %v180
      %v1059 = vunpack.c.l.b16 %v181
      %v1060 = vunpack.c.h.b16 %v181
      %v1061 = vunpack.c.l.b16 %v182
      %v1062 = vunpack.c.h.b16 %v182
      %v1063 = vunpack.c.l.b16 %v183
      %v1064 = vunpack.c.h.b16 %v183
      %v1065 = vunpack.c.l.b16 %v184
      %v1066 = vunpack.c.h.b16 %v184
      %v1067 = vunpack.c.l.b16 %v185
      %v1068 = vunpack.c.h.b16 %v185
      %v1069 = vunpack.c.l.b16 %v186
      %v1070 = vunpack.c.h.b16 %v186
      %v1071 = vunpack.c.l.b16 %v187
      %v1072 = vunpack.c.h.b16 %v187
      %v1073 = vunpack.c.l.b16 %v188
      %v1074 = vunpack.c.h.b16 %v188
      %v1075 = vunpack.c.l.b16 %v189
      %v1076 = vunpack.c.h.b16 %v189
      %v1077 = vunpack.c.l.b16 %v190
      %v1078 = vunpack.c.h.b16 %v190
      %v1079 = vunpack.c.l.b16 %v191
      %v1080 = vunpack.c.h.b16 %v191
      %v1081 = vunpack.c.l.b16 %v192
      %v1082 = vunpack.c.h.b16 %v192
      %v1083 = vunpack.c.l.b16 %v193
      %v1084 = vunpack.c.h.b16 %v193
      %v1085 = vunpack.c.l.b16 %v194
      %v1086 = vunpack.c.h.b16 %v194
      %v1087 = vunpack.c.l.b16 %v195
      %v1088 = vunpack.c.h.b16 %v195
      %v1089 = vpack.c.b16 %v1047, %v1041
      %v1090 = vpack.c.b16 %v1048, %v1042
      %v1091 = vpack.c.b16 %v1049, %v1043
      %v1092 = vpack.c.b16 %v1050, %v1044
      %v1093 = vpack.c.b16 %v1051, %v1045
      %v1094 = vpack.c.b16 %v1052, %v1046
      %v1095 = vpack.c.b16 %v1059, %v1053
      %v1096 = vpack.c.b16 %v1060, %v1054
      %v1097 = vpack.c.b16 %v1061, %v1055
      %v1098 = vpack.c.b16 %v1062, %v1056
      %v1099 = vpack.c.b16 %v1063, %v1057
      %v1100 = vpack.c.b16 %v1064, %v1058
      %v1101 = vpack.c.b16 %v1071, %v1065
      %v1102 = vpack.c.b16 %v1072, %v1066
      %v1103 = vpack.c.b16 %v1073, %v1067
      %v1104 = vpack.c.b16 %v1074, %v1068
      %v1105 = vpack.c.b16 %v1075, %v1069
      %v1106 = vpack.c.b16 %v1076, %v1070
      %v1107 = vpack.c.b16 %v1083, %v1077
      %v1108 = vpack.c.b16 %v1084, %v1078
      %v1109 = vpack.c.b16 %v1085, %v1079
      %v1110 = vpack.c.b16 %v1086, %v1080
      %v1111 = vpack.c.b16 %v1087, %v1081
      %v1112 = vpack.c.b16 %v1088, %v1082
      %v1233 = vunpack.c.l.b16 %v196
      %v1234 = vunpack.c.l.b16 %v197
      %v1235 = vunpack.c.l.b16 %v198
      %v1236 = vunpack.c.l.b16 %v199
      %v1237 = vunpack.c.l.b16 %v200
      %v1238 = vunpack.c.l.b16 %v201
      %v1239 = vunpack.c.l.b16 %v202
      %v1240 = vunpack.c.l.b16 %v203
      %v1241 = vunpack.c.l.b16 %v204
      %v1242 = vunpack.c.l.b16 %v205
      %v1243 = vunpack.c.l.b16 %v206
      %v1244 = vunpack.c.l.b16 %v207
      %v1245 = vunpack.c.l.b16 %v208
      %v1246 = vunpack.c.l.b16 %v209
      %v1247 = vunpack.c.l.b16 %v210
      %v1248 = vunpack.c.l.b16 %v211
      %v1249 = vunpack.c.l.b16 %v212
      %v1250 = vunpack.c.l.b16 %v213
      %v1251 = vunpack.c.l.b16 %v214
      %v1252 = vunpack.c.l.b16 %v215
      %v1253 = vunpack.c.l.b16 %v216
      %v1254 = vunpack.c.l.b16 %v217
      %v1255 = vunpack.c.l.b16 %v218
      %v1256 = vunpack.c.l.b16 %v219
      %v1257 = vunpack.c.l.b16 %v220
      %v1258 = vunpack.c.l.b16 %v221
      %v1259 = vunpack.c.l.b16 %v222
      %v1260 = vunpack.c.l.b16 %v223
      %v1261 = vunpack.c.l.b16 %v224
      %v1262 = vunpack.c.l.b16 %v225
      %v1263 = vunpack.c.l.b16 %v226
      %v1264 = vunpack.c.l.b16 %v227
      %v1265 = vunpack.c.l.b16 %v228
      %v1266 = vunpack.c.l.b16 %v229
      %v1267 = vunpack.c.l.b16 %v230
      %v1268 = vunpack.c.l.b16 %v231
      %v1269 = vunpack.c.l.b16 %v232
      %v1270 = vunpack.c.l.b16 %v233
      %v1271 = vunpack.c.l.b16 %v234
      %v1272 = vunpack.c.l.b16 %v235
      %v1273 = vunpack.c.l.b16 %v236
      %v1274 = vunpack.c.l.b16 %v237
      %v1275 = vunpack.c.l.b16 %v238
      %v1276 = vunpack.c.l.b16 %v239
      %v1277 = vunpack.c.l.b16 %v240
      %v1278 = vunpack.c.l.b16 %v241
      %v1279 = vunpack.c.l.b16 %v242
      %v1280 = vunpack.c.l.b16 %v243
      %v1281 = vunpack.c.l.b16 %v244
      %v1282 = vunpack.c.l.b16 %v245
      %v1283 = vunpack.c.l.b16 %v246
      %v1284 = vunpack.c.l.b16 %v247
      %v1285 = vunpack.c.l.b16 %v248
      %v1286 = vunpack.c.l.b16 %v249
      %v1287 = vunpack.c.l.b16 %v250
      %v1288 = vunpack.c.l.b16 %v251
      %v1289 = vunpack.c.l.b16 %v252
      %v1290 = vunpack.c.l.b16 %v253
      %v1291 = vunpack.c.l.b16 %v254
      %v1292 = vunpack.c.l.b16 %v255
      %v1293 = vunpack.c.l.b16 %v256
      %v1294 = vunpack.c.l.b16 %v257
      %v1295 = vunpack.c.l.b16 %v258
      %v1296 = vunpack.c.l.b16 %v259
      %v1297 = vunpack.c.l.b16 %v260
      %v1298 = vunpack.c.l.b16 %v261
      %v1299 = vunpack.c.l.b16 %v262
      %v1300 = vunpack.c.l.b16 %v263
      %v1301 = vunpack.c.l.b16 %v264
      %v1302 = vunpack.c.l.b16 %v265
      %v1303 = vunpack.c.l.b16 %v266
      %v1304 = vunpack.c.l.b16 %v267
      %v1305 = vunpack.c.l.b16 %v268
      %v1306 = vunpack.c.l.b16 %v269
      %v1307 = vunpack.c.l.b16 %v270
      %v1308 = vunpack.c.l.b16 %v271
      %v1309 = vunpack.c.l.b16 %v272
      %v1310 = vunpack.c.l.b16 %v273
      %v1311 = vunpack.c.l.b16 %v274
      %v1312 = vunpack.c.l.b16 %v275
      %v1313 = vunpack.c.l.b16 %v276
      %v1314 = vunpack.c.l.b16 %v277
      %v1315 = vunpack.c.l.b16 %v278
      %v1316 = vunpack.c.l.b16 %v279
      %v1317 = vunpack.c.l.b16 %v280
      %v1318 = vunpack.c.l.b16 %v281
      %v1319 = vunpack.c.l.b16 %v282
      %v1320 = vunpack.c.l.b16 %v283
      %v1321 = vunpack.c.l.b16 %v284
      %v1322 = vunpack.c.l.b16 %v285
      %v1323 = vunpack.c.l.b16 %v286
      %v1324 = vunpack.c.l.b16 %v287
      %v1325 = vunpack.c.l.b16 %v288
      %v1326 = vunpack.c.l.b16 %v289
      %v1327 = vunpack.c.l.b16 %v290
      %v1328 = vunpack.c.l.b16 %v291
      %v1329 = vpack.c.b16 %v1234, %v1233
      %v1330 = vpack.c.b16 %v1236, %v1235
      %v1331 = vpack.c.b16 %v1238, %v1237
      %v1332 = vpack.c.b16 %v1240, %v1239
      %v1333 = vpack.c.b16 %v1242, %v1241
      %v1334 = vpack.c.b16 %v1244, %v1243
      %v1335 = vpack.c.b16 %v1246, %v1245
      %v1336 = vpack.c.b16 %v1248, %v1247
      %v1337 = vpack.c.b16 %v1250, %v1249
      %v1338 = vpack.c.b16 %v1252, %v1251
      %v1339 = vpack.c.b16 %v1254, %v1253
      %v1340 = vpack.c.b16 %v1256, %v1255
      %v1341 = vpack.c.b16 %v1258, %v1257
      %v1342 = vpack.c.b16 %v1260, %v1259
      %v1343 = vpack.c.b16 %v1262, %v1261
      %v1344 = vpack.c.b16 %v1264, %v1263
      %v1345 = vpack.c.b16 %v1266, %v1265
      %v1346 = vpack.c.b16 %v1268, %v1267
      %v1347 = vpack.c.b16 %v1270, %v1269
      %v1348 = vpack.c.b16 %v1272, %v1271
      %v1349 = vpack.c.b16 %v1274, %v1273
      %v1350 = vpack.c.b16 %v1276, %v1275
      %v1351 = vpack.c.b16 %v1278, %v1277
      %v1352 = vpack.c.b16 %v1280, %v1279
      %v1353 = vpack.c.b16 %v1282, %v1281
      %v1354 = vpack.c.b16 %v1284, %v1283
      %v1355 = vpack.c.b16 %v1286, %v1285
      %v1356 = vpack.c.b16 %v1288, %v1287
      %v1357 = vpack.c.b16 %v1290, %v1289
      %v1358 = vpack.c.b16 %v1292, %v1291
      %v1359 = vpack.c.b16 %v1294, %v1293
      %v1360 = vpack.c.b16 %v1296, %v1295
      %v1361 = vpack.c.b16 %v1298, %v1297
      %v1362 = vpack.c.b16 %v1300, %v1299
      %v1363 = vpack.c.b16 %v1302, %v1301
      %v1364 = vpack.c.b16 %v1304, %v1303
      %v1365 = vpack.c.b16 %v1306, %v1305
      %v1366 = vpack.c.b16 %v1308, %v1307
      %v1367 = vpack.c.b16 %v1310, %v1309
      %v1368 = vpack.c.b16 %v1312, %v1311
      %v1369 = vpack.c.b16 %v1314, %v1313
      %v1370 = vpack.c.b16 %v1316, %v1315
      %v1371 = vpack.c.b16 %v1318, %v1317
      %v1372 = vpack.c.b16 %v1320, %v1319
      %v1373 = vpack.c.b16 %v1322, %v1321
      %v1374 = vpack.c.b16 %v1324, %v1323
      %v1375 = vpack.c.b16 %v1326, %v1325
      %v1376 = vpack.c.b16 %v1328, %v1327
      %1425 = vmatprep.subr.bf16.mxu0 0
      %1426 = vmatpush1.bf16.msra.mxu0 %v1329
      %1427 = vmatprep.subr.bf16.mxu0 0
      %1428 = vmatpush1.bf16.msra.mxu0 %v1330
      %1429 = vmatprep.subr.bf16.mxu0 0
      %1430 = vmatpush1.bf16.msra.mxu0 %v1331
      %1431 = vmatprep.subr.bf16.mxu0 0
      %1432 = vmatpush1.bf16.msra.mxu0 %v1332
      %1433 = vmatprep.subr.bf16.mxu0 0
      %1434 = vmatpush1.bf16.msra.mxu0 %v1333
      %1435 = vmatprep.subr.bf16.mxu0 0
      %1436 = vmatpush1.bf16.msra.mxu0 %v1334
      %1437 = vmatprep.subr.bf16.mxu0 0
      %1438 = vmatpush1.bf16.msra.mxu0 %v1335
      %1439 = vmatprep.subr.bf16.mxu0 0
      %1440 = vmatpush1.bf16.msra.mxu0 %v1336
      %1441 = vmatprep.subr.bf16.mxu0 0
      %1442 = vmatpush1.bf16.msra.mxu0 %v1337
      %1443 = vmatprep.subr.bf16.mxu0 0
      %1444 = vmatpush1.bf16.msra.mxu0 %v1338
      %1445 = vmatprep.subr.bf16.mxu0 0
      %1446 = vmatpush1.bf16.msra.mxu0 %v1339
      %1447 = vmatprep.subr.bf16.mxu0 0
      %1448 = vmatpush1.bf16.msra.mxu0 %v1340
      %1449 = vmatprep.subr.bf16.mxu0 0
      %1450 = vmatpush1.bf16.msra.mxu0 %v1341
      %1451 = vmatprep.subr.bf16.mxu0 0
      %1452 = vmatpush1.bf16.msra.mxu0 %v1342
      %1453 = vmatprep.subr.bf16.mxu0 0
      %1454 = vmatpush1.bf16.msra.mxu0 %v1343
      %1455 = vmatprep.subr.bf16.mxu0 0
      %1456 = vmatpush1.bf16.msra.mxu0 %v1344
      %1457 = vmatprep.mubr.bf16.mxu0 %v1090
      %1458 = vmatmul.mubr.bf16.gmra.mrb[0].mxu0 %v1089
      %v1459 = vpop.f32.mrb[0].mxu0
      %v1460 = vadd.f32 %v987, %v1459
      %v1461 = vpop.f32.mrb[0].mxu0
      %v1462 = vpop.f32.mrb[0].mxu0
      %v1463 = vadd.f32 %v990, %v1462
      %v1464 = vpop.f32.mrb[0].mxu0
      %1465 = vmatprep.mubr.bf16.mxu0 %v1096
      %1466 = vmatmul.mubr.bf16.gmra.mrb[0].mxu0 %v1095
      %v1467 = vpop.f32.mrb[0].mxu0
      %v1468 = vadd.f32 %v995, %v1467
      %v1469 = vpop.f32.mrb[0].mxu0
      %v1470 = vpop.f32.mrb[0].mxu0
      %v1471 = vadd.f32 %v998, %v1470
      %v1472 = vpop.f32.mrb[0].mxu0
      %1473 = vmatprep.mubr.bf16.mxu0 %v1102
      %1474 = vmatmul.mubr.bf16.gmra.mrb[0].mxu0 %v1101
      %v1475 = vpop.f32.mrb[0].mxu0
      %v1476 = vadd.f32 %v1003, %v1475
      %v1477 = vpop.f32.mrb[0].mxu0
      %v1478 = vpop.f32.mrb[0].mxu0
      %v1479 = vadd.f32 %v1006, %v1478
      %v1480 = vpop.f32.mrb[0].mxu0
      %1481 = vmatprep.mubr.bf16.mxu0 %v1108
      %1482 = vmatmul.mubr.bf16.gmra.mrb[0].mxu0 %v1107
      %v1483 = vpop.f32.mrb[0].mxu0
      %v1484 = vadd.f32 %v1011, %v1483
      %v1485 = vpop.f32.mrb[0].mxu0
      %v1486 = vpop.f32.mrb[0].mxu0
      %v1487 = vadd.f32 %v1014, %v1486
      %v1488 = vpop.f32.mrb[0].mxu0
      %1489 = vdwg.mxu0
      %1490 = vmatprep.subr.bf16.mxu0 0
      %1491 = vmatpush1.bf16.msra.mxu0 %v1345
      %1492 = vmatprep.subr.bf16.mxu0 0
      %1493 = vmatpush1.bf16.msra.mxu0 %v1346
      %1494 = vmatprep.subr.bf16.mxu0 0
      %1495 = vmatpush1.bf16.msra.mxu0 %v1347
      %1496 = vmatprep.subr.bf16.mxu0 0
      %1497 = vmatpush1.bf16.msra.mxu0 %v1348
      %1498 = vmatprep.subr.bf16.mxu0 0
      %1499 = vmatpush1.bf16.msra.mxu0 %v1349
      %1500 = vmatprep.subr.bf16.mxu0 0
      %1501 = vmatpush1.bf16.msra.mxu0 %v1350
      %1502 = vmatprep.subr.bf16.mxu0 0
      %1503 = vmatpush1.bf16.msra.mxu0 %v1351
      %1504 = vmatprep.subr.bf16.mxu0 0
      %1505 = vmatpush1.bf16.msra.mxu0 %v1352
      %1506 = vmatprep.subr.bf16.mxu0 0
      %1507 = vmatpush1.bf16.msra.mxu0 %v1353
      %1508 = vmatprep.subr.bf16.mxu0 0
      %1509 = vmatpush1.bf16.msra.mxu0 %v1354
      %1510 = vmatprep.subr.bf16.mxu0 0
      %1511 = vmatpush1.bf16.msra.mxu0 %v1355
      %1512 = vmatprep.subr.bf16.mxu0 0
      %1513 = vmatpush1.bf16.msra.mxu0 %v1356
      %1514 = vmatprep.subr.bf16.mxu0 0
      %1515 = vmatpush1.bf16.msra.mxu0 %v1357
      %1516 = vmatprep.subr.bf16.mxu0 0
      %1517 = vmatpush1.bf16.msra.mxu0 %v1358
      %1518 = vmatprep.subr.bf16.mxu0 0
      %1519 = vmatpush1.bf16.msra.mxu0 %v1359
      %1520 = vmatprep.subr.bf16.mxu0 0
      %1521 = vmatpush1.bf16.msra.mxu0 %v1360
      %1522 = vmatprep.mubr.bf16.mxu0 %v1092
      %1523 = vmatmul.mubr.bf16.gmra.mrb[0].mxu0 %v1091
      %v1524 = vpop.f32.mrb[0].mxu0
      %v1525 = vadd.f32 %v1460, %v1524
      %v1526 = vpop.f32.mrb[0].mxu0
      %v1527 = vpop.f32.mrb[0].mxu0
      %v1528 = vadd.f32 %v1463, %v1527
      %v1529 = vpop.f32.mrb[0].mxu0
      %1530 = vmatprep.mubr.bf16.mxu0 %v1098
      %1531 = vmatmul.mubr.bf16.gmra.mrb[0].mxu0 %v1097
      %v1532 = vpop.f32.mrb[0].mxu0
      %v1533 = vadd.f32 %v1468, %v1532
      %v1534 = vpop.f32.mrb[0].mxu0
      %v1535 = vpop.f32.mrb[0].mxu0
      %v1536 = vadd.f32 %v1471, %v1535
      %v1537 = vpop.f32.mrb[0].mxu0
      %1538 = vmatprep.mubr.bf16.mxu0 %v1104
      %1539 = vmatmul.mubr.bf16.gmra.mrb[0].mxu0 %v1103
      %v1540 = vpop.f32.mrb[0].mxu0
      %v1541 = vadd.f32 %v1476, %v1540
      %v1542 = vpop.f32.mrb[0].mxu0
      %v1543 = vpop.f32.mrb[0].mxu0
      %v1544 = vadd.f32 %v1479, %v1543
      %v1545 = vpop.f32.mrb[0].mxu0
      %1546 = vmatprep.mubr.bf16.mxu0 %v1110
      %1547 = vmatmul.mubr.bf16.gmra.mrb[0].mxu0 %v1109
      %v1548 = vpop.f32.mrb[0].mxu0
      %v1549 = vadd.f32 %v1484, %v1548
      %v1550 = vpop.f32.mrb[0].mxu0
      %v1551 = vpop.f32.mrb[0].mxu0
      %v1552 = vadd.f32 %v1487, %v1551
      %v1553 = vpop.f32.mrb[0].mxu0
      %1554 = vdwg.mxu0
      %1555 = vmatprep.subr.bf16.mxu0 0
      %1556 = vmatpush1.bf16.msra.mxu0 %v1361
      %1557 = vmatprep.subr.bf16.mxu0 0
      %1558 = vmatpush1.bf16.msra.mxu0 %v1362
      %1559 = vmatprep.subr.bf16.mxu0 0
      %1560 = vmatpush1.bf16.msra.mxu0 %v1363
      %1561 = vmatprep.subr.bf16.mxu0 0
      %1562 = vmatpush1.bf16.msra.mxu0 %v1364
      %1563 = vmatprep.subr.bf16.mxu0 0
      %1564 = vmatpush1.bf16.msra.mxu0 %v1365
      %1565 = vmatprep.subr.bf16.mxu0 0
      %1566 = vmatpush1.bf16.msra.mxu0 %v1366
      %1567 = vmatprep.subr.bf16.mxu0 0
      %1568 = vmatpush1.bf16.msra.mxu0 %v1367
      %1569 = vmatprep.subr.bf16.mxu0 0
      %1570 = vmatpush1.bf16.msra.mxu0 %v1368
      %1571 = vmatprep.subr.bf16.mxu0 0
      %1572 = vmatpush1.bf16.msra.mxu0 %v1369
      %1573 = vmatprep.subr.bf16.mxu0 0
      %1574 = vmatpush1.bf16.msra.mxu0 %v1370
      %1575 = vmatprep.subr.bf16.mxu0 0
      %1576 = vmatpush1.bf16.msra.mxu0 %v1371
      %1577 = vmatprep.subr.bf16.mxu0 0
      %1578 = vmatpush1.bf16.msra.mxu0 %v1372
      %1579 = vmatprep.subr.bf16.mxu0 0
      %1580 = vmatpush1.bf16.msra.mxu0 %v1373
      %1581 = vmatprep.subr.bf16.mxu0 0
      %1582 = vmatpush1.bf16.msra.mxu0 %v1374
      %1583 = vmatprep.subr.bf16.mxu0 0
      %1584 = vmatpush1.bf16.msra.mxu0 %v1375
      %1585 = vmatprep.subr.bf16.mxu0 0
      %1586 = vmatpush1.bf16.msra.mxu0 %v1376
      %1587 = vmatprep.mubr.bf16.mxu0 %v1094
      %1588 = vmatmul.mubr.bf16.gmra.mrb[0].mxu0 %v1093
      %v1589 = vpop.f32.mrb[0].mxu0
      %v1590 = vadd.f32 %v1525, %v1589
      %v1591 = vpop.f32.mrb[0].mxu0
      %v1592 = vpop.f32.mrb[0].mxu0
      %v1593 = vadd.f32 %v1528, %v1592
      %v1594 = vpop.f32.mrb[0].mxu0
      %1595 = vmatprep.mubr.bf16.mxu0 %v1100
      %1596 = vmatmul.mubr.bf16.gmra.mrb[0].mxu0 %v1099
      %v1597 = vpop.f32.mrb[0].mxu0
      %v1598 = vadd.f32 %v1533, %v1597
      %v1599 = vpop.f32.mrb[0].mxu0
      %v1600 = vpop.f32.mrb[0].mxu0
      %v1601 = vadd.f32 %v1536, %v1600
      %v1602 = vpop.f32.mrb[0].mxu0
      %1603 = vmatprep.mubr.bf16.mxu0 %v1106
      %1604 = vmatmul.mubr.bf16.gmra.mrb[0].mxu0 %v1105
      %v1605 = vpop.f32.mrb[0].mxu0
      %v1606 = vadd.f32 %v1541, %v1605
      %v1607 = vpop.f32.mrb[0].mxu0
      %v1608 = vpop.f32.mrb[0].mxu0
      %v1609 = vadd.f32 %v1544, %v1608
      %v1610 = vpop.f32.mrb[0].mxu0
      %1611 = vmatprep.mubr.bf16.mxu0 %v1112
      %1612 = vmatmul.mubr.bf16.gmra.mrb[0].mxu0 %v1111
      %v1613 = vpop.f32.mrb[0].mxu0
      %v1614 = vadd.f32 %v1549, %v1613
      %v1615 = vpop.f32.mrb[0].mxu0
      %v1616 = vpop.f32.mrb[0].mxu0
      %v1617 = vadd.f32 %v1552, %v1616
      %v1618 = vpop.f32.mrb[0].mxu0
      %1619 = vdwg.mxu0
      %v1620 = vld [vmem:[%s2] sm:$0x1]
      %v1622 = vlaneseq
      %v1623 = vshrl.u32 %v1622, 7
      %v1624 = vsub.s32 0, %v1623
      %v1625 = vrot.slane %v1620, %v1624
      %v1627 = vadd.f32 %v1590, %v1625
      %v1628 = vadd.f32 %v1593, %v1625
      %v1629 = vadd.f32 %v1598, %v1625
      %v1630 = vadd.f32 %v1601, %v1625
      %v1631 = vadd.f32 %v1606, %v1625
      %v1632 = vadd.f32 %v1609, %v1625
      %v1633 = vadd.f32 %v1614, %v1625
      %v1634 = vadd.f32 %v1617, %v1625
      %v1635 = vmax.f32 %v1627, 0.0
      %v1636 = vmax.f32 %v1628, 0.0
      %v1637 = vmax.f32 %v1629, 0.0
      %v1638 = vmax.f32 %v1630, 0.0
      %v1639 = vmax.f32 %v1631, 0.0
      %v1640 = vmax.f32 %v1632, 0.0
      %v1641 = vmax.f32 %v1633, 0.0
      %v1642 = vmax.f32 %v1634, 0.0
      %1643 = vst [vmem:[%s170] sm:$0xff] %v1635
      %1644 = vst [vmem:[%s170 + $0x8] sm:$0xff] %v1636
      %1645 = vst [vmem:[%s170 + $0x10] sm:$0xff] %v1637
      %1646 = vst [vmem:[%s170 + $0x18] sm:$0xff] %v1638
      %1647 = vst [vmem:[%s170 + $0x20] sm:$0xff] %v1639
      %1648 = vst [vmem:[%s170 + $0x28] sm:$0xff] %v1640
      %1649 = vst [vmem:[%s170 + $0x30] sm:$0xff] %v1641
      %1650 = vst [vmem:[%s170 + $0x38] sm:$0xff] %v1642
      %p1651 = scmp.lt.s32.totalorder %s14, 1
      %s1652 = scalar_select %p1651, %s14, 1
      %s1653 = smul.addr %s1652, 8
      %s1654 = smul.addr %s1653, 8
      %s1655 = scalar_lea.vmem %s3, %s1654
      // Predicated region
      $region33: #{variational_encoder_forward.6} parent=31 // pred_check
        %p1656 = pneg %p100
      $region34: #{variational_encoder_forward.6} parent=31 // pred_check_branch
        %1658 = sbr.rel (%p1656) target = $region36
      $region35: #{variational_encoder_forward.6} parent=31 // pred_region
        _
      $region36: #{variational_encoder_forward.6} parent=31 // pred_fallthru
        _
    $region32: #{variational_encoder_forward.6} parent=5 // pred_fallthru
      _
    %p1659 = scmp.le.s32.totalorder 2, %s9
    // Predicated region
    $region37: #{variational_encoder_forward.6} parent=5 // pred_check
      %p1660 = pneg %p1659
    $region38: #{variational_encoder_forward.6} parent=5 // pred_check_branch
      %1662 = sbr.rel (%p1660) target = $region40
    $region39: #{variational_encoder_forward.6} parent=5 // pred_region
      %s1663 = ssub.s32 %s9, 2
      // Predicated region
      $region41: #{variational_encoder_forward.6} parent=39 // pred_check
        %p1664 = pneg %p106
      $region42: #{variational_encoder_forward.6} parent=39 // pred_check_branch
        %1666 = sbr.rel (%p1664) target = $region44
      $region43: #{variational_encoder_forward.6} parent=39 // pred_region
        %p1667 = scmp.lt.s32.totalorder %s15, 1
        %s1668 = scalar_select %p1667, %s15, 1
        %s1669 = smul.addr %s1668, 8
        %s1670 = smul.addr %s1669, 8
        %s1671 = scalar_lea.vmem %s3, %s1670
      $region44: #{variational_encoder_forward.6} parent=39 // pred_fallthru
        _
    $region40: #{variational_encoder_forward.6} parent=5 // pred_fallthru
      _
  $region6: #{variational_encoder_forward.6} parent=0 // loop_footer
    %s13 = sadd.s32 1, %s9
  $region7: #{variational_encoder_forward.6} parent=0 // loop_footer_branch
    %8 = sbr.rel target = $region3
  $region8: #{variational_encoder_forward.6} parent=0 // loop_exit
    _

// kernel: variational_encoder_forward.7
$region0: #{variational_encoder_forward.7}
  #allocation0 [shape = 'u32[]', space=smem, size = 0x4, offset = 0x4, fixed_abs, tag = 'smem constant byte address 0x4 - core index']
  #allocation1 [shape = 'u32[144,128]{1,0:T(1,128)}', space=vmem, size = 0x12000, scoped, tag = 'internal scratch']
  %s0 = inlined_call_operand.vmem [shape: f32[2,8192], index: 0, kind: input, shape index: {}]
  %s1 = inlined_call_operand.vmem [shape: f32[8192,16], index: 1, kind: input, shape index: {}]
  %s2 = inlined_call_operand.vmem [shape: f32[1,16], index: 2, kind: input, shape index: {}]
  %s3 = inlined_call_operand.vmem [shape: f32[2,8], index: 3, kind: input, shape index: {}]
  %s4 = inlined_call_operand.hbm [shape: f32[2,8], index: 4, kind: output, shape index: {0}]
  %s5 = inlined_call_operand.hbm [shape: f32[1,1], index: 5, kind: output, shape index: {1}]
  %6 = xla_tuple %s4, %s5
  %s7 = sld [smem:[#allocation0]]
  $region34: #{variational_encoder_forward.7} parent=0
    _
  %s9 = ssub.s32 1, %s7
  %s10 = scalar_select 0, %s9, %s7
  $region1: #{variational_encoder_forward.7} parent=0
    #allocation2 [shape = 'u8[1024]{0}', space=vmem, size = 0x400, scoped, tag = 'output window, operand 0, single buffered']
    #allocation3 [shape = 's32[1]{0}', space=sflag, size = 0x4, scoped, tag = 'scoped memory for variational_encoder_forward.7']
    #allocation4 [shape = 'u8[512]{0}', space=vmem, size = 0x400, scoped, tag = 'output window, operand 1, single buffered']
    #allocation5 [shape = 's32[1]{0}', space=sflag, size = 0x4, scoped, tag = 'scoped memory for variational_encoder_forward.7']
    %11 = vsyncpa [#allocation3], 0
    %12 = vsyncpa [#allocation5], 0
    // Predicated region
    $region2: #{variational_encoder_forward.7} parent=1 // pred_check
      _
    $region3: #{variational_encoder_forward.7} parent=1 // pred_check_branch
      %14 = sbr.rel (0) target = $region5
    $region4: #{variational_encoder_forward.7} parent=1 // pred_region
      _
    $region5: #{variational_encoder_forward.7} parent=1 // pred_fallthru
      _
    // Predicated region
    $region6: #{variational_encoder_forward.7} parent=1 // pred_check
      _
    $region7: #{variational_encoder_forward.7} parent=1 // pred_check_branch
      %16 = sbr.rel (0) target = $region9
    $region8: #{variational_encoder_forward.7} parent=1 // pred_region
      _
    $region9: #{variational_encoder_forward.7} parent=1 // pred_fallthru
      _
    // Predicated region
    $region10: #{variational_encoder_forward.7} parent=1 // pred_check
      _
    $region11: #{variational_encoder_forward.7} parent=1 // pred_check_branch
      %18 = sbr.rel (0) target = $region13
    $region12: #{variational_encoder_forward.7} parent=1 // pred_region
      _
    $region13: #{variational_encoder_forward.7} parent=1 // pred_fallthru
      _
    // Predicated region
    $region14: #{variational_encoder_forward.7} parent=1 // pred_check
      _
    $region15: #{variational_encoder_forward.7} parent=1 // pred_check_branch
      %20 = sbr.rel (0) target = $region17
    $region16: #{variational_encoder_forward.7} parent=1 // pred_region
      _
    $region17: #{variational_encoder_forward.7} parent=1 // pred_fallthru
      _
    %v21 = vld [vmem:[%s0] sm:$0xff]
    %v22 = vld [vmem:[%s0 + $0x8] sm:$0xff]
    %v23 = vld [vmem:[%s0 + $0x10] sm:$0xff]
    %v24 = vld [vmem:[%s0 + $0x18] sm:$0xff]
    %v25 = vld [vmem:[%s0 + $0x20] sm:$0xff]
    %v26 = vld [vmem:[%s0 + $0x28] sm:$0xff]
    %v27 = vld [vmem:[%s0 + $0x30] sm:$0xff]
    %v28 = vld [vmem:[%s0 + $0x38] sm:$0xff]
    %v29 = vld [vmem:[%s0 + $0x40] sm:$0xff]
    %v30 = vld [vmem:[%s0 + $0x48] sm:$0xff]
    %v31 = vld [vmem:[%s0 + $0x50] sm:$0xff]
    %v32 = vld [vmem:[%s0 + $0x58] sm:$0xff]
    %v33 = vld [vmem:[%s0 + $0x60] sm:$0xff]
    %v34 = vld [vmem:[%s0 + $0x68] sm:$0xff]
    %v35 = vld [vmem:[%s0 + $0x70] sm:$0xff]
    %v36 = vld [vmem:[%s0 + $0x78] sm:$0xff]
    %v37 = vld [vmem:[%s1] sm:$0xff]
    %v38 = vld [vmem:[%s1 + $0x8] sm:$0xff]
    %v39 = vld [vmem:[%s1 + $0x10] sm:$0xff]
    %v40 = vld [vmem:[%s1 + $0x18] sm:$0xff]
    %v41 = vld [vmem:[%s1 + $0x20] sm:$0xff]
    %v42 = vld [vmem:[%s1 + $0x28] sm:$0xff]
    %v43 = vld [vmem:[%s1 + $0x30] sm:$0xff]
    %v44 = vld [vmem:[%s1 + $0x38] sm:$0xff]
    %v45 = vld [vmem:[%s1 + $0x40] sm:$0xff]
    %v46 = vld [vmem:[%s1 + $0x48] sm:$0xff]
    %v47 = vld [vmem:[%s1 + $0x50] sm:$0xff]
    %v48 = vld [vmem:[%s1 + $0x58] sm:$0xff]
    %v49 = vld [vmem:[%s1 + $0x60] sm:$0xff]
    %v50 = vld [vmem:[%s1 + $0x68] sm:$0xff]
    %v51 = vld [vmem:[%s1 + $0x70] sm:$0xff]
    %v52 = vld [vmem:[%s1 + $0x78] sm:$0xff]
    %v53 = vld [vmem:[%s1 + $0x80] sm:$0xff]
    %v54 = vld [vmem:[%s1 + $0x88] sm:$0xff]
    %v55 = vld [vmem:[%s1 + $0x90] sm:$0xff]
    %v56 = vld [vmem:[%s1 + $0x98] sm:$0xff]
    %v57 = vld [vmem:[%s1 + $0xa0] sm:$0xff]
    %v58 = vld [vmem:[%s1 + $0xa8] sm:$0xff]
    %v59 = vld [vmem:[%s1 + $0xb0] sm:$0xff]
    %v60 = vld [vmem:[%s1 + $0xb8] sm:$0xff]
    %v61 = vld [vmem:[%s1 + $0xc0] sm:$0xff]
    %v62 = vld [vmem:[%s1 + $0xc8] sm:$0xff]
    %v63 = vld [vmem:[%s1 + $0xd0] sm:$0xff]
    %v64 = vld [vmem:[%s1 + $0xd8] sm:$0xff]
    %v65 = vld [vmem:[%s1 + $0xe0] sm:$0xff]
    %v66 = vld [vmem:[%s1 + $0xe8] sm:$0xff]
    %v67 = vld [vmem:[%s1 + $0xf0] sm:$0xff]
    %v68 = vld [vmem:[%s1 + $0xf8] sm:$0xff]
    %v69 = vld [vmem:[%s1 + $0x100] sm:$0xff]
    %v70 = vld [vmem:[%s1 + $0x108] sm:$0xff]
    %v71 = vld [vmem:[%s1 + $0x110] sm:$0xff]
    %v72 = vld [vmem:[%s1 + $0x118] sm:$0xff]
    %v73 = vld [vmem:[%s1 + $0x120] sm:$0xff]
    %v74 = vld [vmem:[%s1 + $0x128] sm:$0xff]
    %v75 = vld [vmem:[%s1 + $0x130] sm:$0xff]
    %v76 = vld [vmem:[%s1 + $0x138] sm:$0xff]
    %v77 = vld [vmem:[%s1 + $0x140] sm:$0xff]
    %v78 = vld [vmem:[%s1 + $0x148] sm:$0xff]
    %v79 = vld [vmem:[%s1 + $0x150] sm:$0xff]
    %v80 = vld [vmem:[%s1 + $0x158] sm:$0xff]
    %v81 = vld [vmem:[%s1 + $0x160] sm:$0xff]
    %v82 = vld [vmem:[%s1 + $0x168] sm:$0xff]
    %v83 = vld [vmem:[%s1 + $0x170] sm:$0xff]
    %v84 = vld [vmem:[%s1 + $0x178] sm:$0xff]
    %v85 = vld [vmem:[%s1 + $0x180] sm:$0xff]
    %v86 = vld [vmem:[%s1 + $0x188] sm:$0xff]
    %v87 = vld [vmem:[%s1 + $0x190] sm:$0xff]
    %v88 = vld [vmem:[%s1 + $0x198] sm:$0xff]
    %v89 = vld [vmem:[%s1 + $0x1a0] sm:$0xff]
    %v90 = vld [vmem:[%s1 + $0x1a8] sm:$0xff]
    %v91 = vld [vmem:[%s1 + $0x1b0] sm:$0xff]
    %v92 = vld [vmem:[%s1 + $0x1b8] sm:$0xff]
    %v93 = vld [vmem:[%s1 + $0x1c0] sm:$0xff]
    %v94 = vld [vmem:[%s1 + $0x1c8] sm:$0xff]
    %v95 = vld [vmem:[%s1 + $0x1d0] sm:$0xff]
    %v96 = vld [vmem:[%s1 + $0x1d8] sm:$0xff]
    %v97 = vld [vmem:[%s1 + $0x1e0] sm:$0xff]
    %v98 = vld [vmem:[%s1 + $0x1e8] sm:$0xff]
    %v99 = vld [vmem:[%s1 + $0x1f0] sm:$0xff]
    %v100 = vld [vmem:[%s1 + $0x1f8] sm:$0xff]
    %v101 = vld [vmem:[%s1 + $0x200] sm:$0xff]
    %v102 = vld [vmem:[%s1 + $0x208] sm:$0xff]
    %v103 = vld [vmem:[%s1 + $0x210] sm:$0xff]
    %v104 = vld [vmem:[%s1 + $0x218] sm:$0xff]
    %v105 = vld [vmem:[%s1 + $0x220] sm:$0xff]
    %v106 = vld [vmem:[%s1 + $0x228] sm:$0xff]
    %v107 = vld [vmem:[%s1 + $0x230] sm:$0xff]
    %v108 = vld [vmem:[%s1 + $0x238] sm:$0xff]
    %v109 = vld [vmem:[%s1 + $0x240] sm:$0xff]
    %v110 = vld [vmem:[%s1 + $0x248] sm:$0xff]
    %v111 = vld [vmem:[%s1 + $0x250] sm:$0xff]
    %v112 = vld [vmem:[%s1 + $0x258] sm:$0xff]
    %v113 = vld [vmem:[%s1 + $0x260] sm:$0xff]
    %v114 = vld [vmem:[%s1 + $0x268] sm:$0xff]
    %v115 = vld [vmem:[%s1 + $0x270] sm:$0xff]
    %v116 = vld [vmem:[%s1 + $0x278] sm:$0xff]
    %v117 = vld [vmem:[%s1 + $0x280] sm:$0xff]
    %v118 = vld [vmem:[%s1 + $0x288] sm:$0xff]
    %v119 = vld [vmem:[%s1 + $0x290] sm:$0xff]
    %v120 = vld [vmem:[%s1 + $0x298] sm:$0xff]
    %v121 = vld [vmem:[%s1 + $0x2a0] sm:$0xff]
    %v122 = vld [vmem:[%s1 + $0x2a8] sm:$0xff]
    %v123 = vld [vmem:[%s1 + $0x2b0] sm:$0xff]
    %v124 = vld [vmem:[%s1 + $0x2b8] sm:$0xff]
    %v125 = vld [vmem:[%s1 + $0x2c0] sm:$0xff]
    %v126 = vld [vmem:[%s1 + $0x2c8] sm:$0xff]
    %v127 = vld [vmem:[%s1 + $0x2d0] sm:$0xff]
    %v128 = vld [vmem:[%s1 + $0x2d8] sm:$0xff]
    %v129 = vld [vmem:[%s1 + $0x2e0] sm:$0xff]
    %v130 = vld [vmem:[%s1 + $0x2e8] sm:$0xff]
    %v131 = vld [vmem:[%s1 + $0x2f0] sm:$0xff]
    %v132 = vld [vmem:[%s1 + $0x2f8] sm:$0xff]
    %v133 = vld [vmem:[%s1 + $0x300] sm:$0xff]
    %v134 = vld [vmem:[%s1 + $0x308] sm:$0xff]
    %v135 = vld [vmem:[%s1 + $0x310] sm:$0xff]
    %v136 = vld [vmem:[%s1 + $0x318] sm:$0xff]
    %v137 = vld [vmem:[%s1 + $0x320] sm:$0xff]
    %v138 = vld [vmem:[%s1 + $0x328] sm:$0xff]
    %v139 = vld [vmem:[%s1 + $0x330] sm:$0xff]
    %v140 = vld [vmem:[%s1 + $0x338] sm:$0xff]
    %v141 = vld [vmem:[%s1 + $0x340] sm:$0xff]
    %v142 = vld [vmem:[%s1 + $0x348] sm:$0xff]
    %v143 = vld [vmem:[%s1 + $0x350] sm:$0xff]
    %v144 = vld [vmem:[%s1 + $0x358] sm:$0xff]
    %v145 = vld [vmem:[%s1 + $0x360] sm:$0xff]
    %v146 = vld [vmem:[%s1 + $0x368] sm:$0xff]
    %v147 = vld [vmem:[%s1 + $0x370] sm:$0xff]
    %v148 = vld [vmem:[%s1 + $0x378] sm:$0xff]
    %v149 = vld [vmem:[%s1 + $0x380] sm:$0xff]
    %v150 = vld [vmem:[%s1 + $0x388] sm:$0xff]
    %v151 = vld [vmem:[%s1 + $0x390] sm:$0xff]
    %v152 = vld [vmem:[%s1 + $0x398] sm:$0xff]
    %v153 = vld [vmem:[%s1 + $0x3a0] sm:$0xff]
    %v154 = vld [vmem:[%s1 + $0x3a8] sm:$0xff]
    %v155 = vld [vmem:[%s1 + $0x3b0] sm:$0xff]
    %v156 = vld [vmem:[%s1 + $0x3b8] sm:$0xff]
    %v157 = vld [vmem:[%s1 + $0x3c0] sm:$0xff]
    %v158 = vld [vmem:[%s1 + $0x3c8] sm:$0xff]
    %v159 = vld [vmem:[%s1 + $0x3d0] sm:$0xff]
    %v160 = vld [vmem:[%s1 + $0x3d8] sm:$0xff]
    %v161 = vld [vmem:[%s1 + $0x3e0] sm:$0xff]
    %v162 = vld [vmem:[%s1 + $0x3e8] sm:$0xff]
    %v163 = vld [vmem:[%s1 + $0x3f0] sm:$0xff]
    %v164 = vld [vmem:[%s1 + $0x3f8] sm:$0xff]
    %v165 = vld [vmem:[%s1 + $0x400] sm:$0xff]
    %v166 = vld [vmem:[%s1 + $0x408] sm:$0xff]
    %v167 = vld [vmem:[%s1 + $0x410] sm:$0xff]
    %v168 = vld [vmem:[%s1 + $0x418] sm:$0xff]
    %v169 = vld [vmem:[%s1 + $0x420] sm:$0xff]
    %v170 = vld [vmem:[%s1 + $0x428] sm:$0xff]
    %v171 = vld [vmem:[%s1 + $0x430] sm:$0xff]
    %v172 = vld [vmem:[%s1 + $0x438] sm:$0xff]
    %v173 = vld [vmem:[%s1 + $0x440] sm:$0xff]
    %v174 = vld [vmem:[%s1 + $0x448] sm:$0xff]
    %v175 = vld [vmem:[%s1 + $0x450] sm:$0xff]
    %v176 = vld [vmem:[%s1 + $0x458] sm:$0xff]
    %v177 = vld [vmem:[%s1 + $0x460] sm:$0xff]
    %v178 = vld [vmem:[%s1 + $0x468] sm:$0xff]
    %v179 = vld [vmem:[%s1 + $0x470] sm:$0xff]
    %v180 = vld [vmem:[%s1 + $0x478] sm:$0xff]
    %v181 = vld [vmem:[%s1 + $0x480] sm:$0xff]
    %v182 = vld [vmem:[%s1 + $0x488] sm:$0xff]
    %v183 = vld [vmem:[%s1 + $0x490] sm:$0xff]
    %v184 = vld [vmem:[%s1 + $0x498] sm:$0xff]
    %v185 = vld [vmem:[%s1 + $0x4a0] sm:$0xff]
    %v186 = vld [vmem:[%s1 + $0x4a8] sm:$0xff]
    %v187 = vld [vmem:[%s1 + $0x4b0] sm:$0xff]
    %v188 = vld [vmem:[%s1 + $0x4b8] sm:$0xff]
    %v189 = vld [vmem:[%s1 + $0x4c0] sm:$0xff]
    %v190 = vld [vmem:[%s1 + $0x4c8] sm:$0xff]
    %v191 = vld [vmem:[%s1 + $0x4d0] sm:$0xff]
    %v192 = vld [vmem:[%s1 + $0x4d8] sm:$0xff]
    %v193 = vld [vmem:[%s1 + $0x4e0] sm:$0xff]
    %v194 = vld [vmem:[%s1 + $0x4e8] sm:$0xff]
    %v195 = vld [vmem:[%s1 + $0x4f0] sm:$0xff]
    %v196 = vld [vmem:[%s1 + $0x4f8] sm:$0xff]
    %v197 = vld [vmem:[%s1 + $0x500] sm:$0xff]
    %v198 = vld [vmem:[%s1 + $0x508] sm:$0xff]
    %v199 = vld [vmem:[%s1 + $0x510] sm:$0xff]
    %v200 = vld [vmem:[%s1 + $0x518] sm:$0xff]
    %v201 = vld [vmem:[%s1 + $0x520] sm:$0xff]
    %v202 = vld [vmem:[%s1 + $0x528] sm:$0xff]
    %v203 = vld [vmem:[%s1 + $0x530] sm:$0xff]
    %v204 = vld [vmem:[%s1 + $0x538] sm:$0xff]
    %v205 = vld [vmem:[%s1 + $0x540] sm:$0xff]
    %v206 = vld [vmem:[%s1 + $0x548] sm:$0xff]
    %v207 = vld [vmem:[%s1 + $0x550] sm:$0xff]
    %v208 = vld [vmem:[%s1 + $0x558] sm:$0xff]
    %v209 = vld [vmem:[%s1 + $0x560] sm:$0xff]
    %v210 = vld [vmem:[%s1 + $0x568] sm:$0xff]
    %v211 = vld [vmem:[%s1 + $0x570] sm:$0xff]
    %v212 = vld [vmem:[%s1 + $0x578] sm:$0xff]
    %v213 = vld [vmem:[%s1 + $0x580] sm:$0xff]
    %v214 = vld [vmem:[%s1 + $0x588] sm:$0xff]
    %v215 = vld [vmem:[%s1 + $0x590] sm:$0xff]
    %v216 = vld [vmem:[%s1 + $0x598] sm:$0xff]
    %v217 = vld [vmem:[%s1 + $0x5a0] sm:$0xff]
    %v218 = vld [vmem:[%s1 + $0x5a8] sm:$0xff]
    %v219 = vld [vmem:[%s1 + $0x5b0] sm:$0xff]
    %v220 = vld [vmem:[%s1 + $0x5b8] sm:$0xff]
    %v221 = vld [vmem:[%s1 + $0x5c0] sm:$0xff]
    %v222 = vld [vmem:[%s1 + $0x5c8] sm:$0xff]
    %v223 = vld [vmem:[%s1 + $0x5d0] sm:$0xff]
    %v224 = vld [vmem:[%s1 + $0x5d8] sm:$0xff]
    %v225 = vld [vmem:[%s1 + $0x5e0] sm:$0xff]
    %v226 = vld [vmem:[%s1 + $0x5e8] sm:$0xff]
    %v227 = vld [vmem:[%s1 + $0x5f0] sm:$0xff]
    %v228 = vld [vmem:[%s1 + $0x5f8] sm:$0xff]
    %v229 = vld [vmem:[%s1 + $0x600] sm:$0xff]
    %v230 = vld [vmem:[%s1 + $0x608] sm:$0xff]
    %v231 = vld [vmem:[%s1 + $0x610] sm:$0xff]
    %v232 = vld [vmem:[%s1 + $0x618] sm:$0xff]
    %v233 = vld [vmem:[%s1 + $0x620] sm:$0xff]
    %v234 = vld [vmem:[%s1 + $0x628] sm:$0xff]
    %v235 = vld [vmem:[%s1 + $0x630] sm:$0xff]
    %v236 = vld [vmem:[%s1 + $0x638] sm:$0xff]
    %v237 = vld [vmem:[%s1 + $0x640] sm:$0xff]
    %v238 = vld [vmem:[%s1 + $0x648] sm:$0xff]
    %v239 = vld [vmem:[%s1 + $0x650] sm:$0xff]
    %v240 = vld [vmem:[%s1 + $0x658] sm:$0xff]
    %v241 = vld [vmem:[%s1 + $0x660] sm:$0xff]
    %v242 = vld [vmem:[%s1 + $0x668] sm:$0xff]
    %v243 = vld [vmem:[%s1 + $0x670] sm:$0xff]
    %v244 = vld [vmem:[%s1 + $0x678] sm:$0xff]
    %v245 = vld [vmem:[%s1 + $0x680] sm:$0xff]
    %v246 = vld [vmem:[%s1 + $0x688] sm:$0xff]
    %v247 = vld [vmem:[%s1 + $0x690] sm:$0xff]
    %v248 = vld [vmem:[%s1 + $0x698] sm:$0xff]
    %v249 = vld [vmem:[%s1 + $0x6a0] sm:$0xff]
    %v250 = vld [vmem:[%s1 + $0x6a8] sm:$0xff]
    %v251 = vld [vmem:[%s1 + $0x6b0] sm:$0xff]
    %v252 = vld [vmem:[%s1 + $0x6b8] sm:$0xff]
    %v253 = vld [vmem:[%s1 + $0x6c0] sm:$0xff]
    %v254 = vld [vmem:[%s1 + $0x6c8] sm:$0xff]
    %v255 = vld [vmem:[%s1 + $0x6d0] sm:$0xff]
    %v256 = vld [vmem:[%s1 + $0x6d8] sm:$0xff]
    %v257 = vld [vmem:[%s1 + $0x6e0] sm:$0xff]
    %v258 = vld [vmem:[%s1 + $0x6e8] sm:$0xff]
    %v259 = vld [vmem:[%s1 + $0x6f0] sm:$0xff]
    %v260 = vld [vmem:[%s1 + $0x6f8] sm:$0xff]
    %v261 = vld [vmem:[%s1 + $0x700] sm:$0xff]
    %v262 = vld [vmem:[%s1 + $0x708] sm:$0xff]
    %v263 = vld [vmem:[%s1 + $0x710] sm:$0xff]
    %v264 = vld [vmem:[%s1 + $0x718] sm:$0xff]
    %v265 = vld [vmem:[%s1 + $0x720] sm:$0xff]
    %v266 = vld [vmem:[%s1 + $0x728] sm:$0xff]
    %v267 = vld [vmem:[%s1 + $0x730] sm:$0xff]
    %v268 = vld [vmem:[%s1 + $0x738] sm:$0xff]
    %v269 = vld [vmem:[%s1 + $0x740] sm:$0xff]
    %v270 = vld [vmem:[%s1 + $0x748] sm:$0xff]
    %v271 = vld [vmem:[%s1 + $0x750] sm:$0xff]
    %v272 = vld [vmem:[%s1 + $0x758] sm:$0xff]
    %v273 = vld [vmem:[%s1 + $0x760] sm:$0xff]
    %v274 = vld [vmem:[%s1 + $0x768] sm:$0xff]
    %v275 = vld [vmem:[%s1 + $0x770] sm:$0xff]
    %v276 = vld [vmem:[%s1 + $0x778] sm:$0xff]
    %v277 = vld [vmem:[%s1 + $0x780] sm:$0xff]
    %v278 = vld [vmem:[%s1 + $0x788] sm:$0xff]
    %v279 = vld [vmem:[%s1 + $0x790] sm:$0xff]
    %v280 = vld [vmem:[%s1 + $0x798] sm:$0xff]
    %v281 = vld [vmem:[%s1 + $0x7a0] sm:$0xff]
    %v282 = vld [vmem:[%s1 + $0x7a8] sm:$0xff]
    %v283 = vld [vmem:[%s1 + $0x7b0] sm:$0xff]
    %v284 = vld [vmem:[%s1 + $0x7b8] sm:$0xff]
    %v285 = vld [vmem:[%s1 + $0x7c0] sm:$0xff]
    %v286 = vld [vmem:[%s1 + $0x7c8] sm:$0xff]
    %v287 = vld [vmem:[%s1 + $0x7d0] sm:$0xff]
    %v288 = vld [vmem:[%s1 + $0x7d8] sm:$0xff]
    %v289 = vld [vmem:[%s1 + $0x7e0] sm:$0xff]
    %v290 = vld [vmem:[%s1 + $0x7e8] sm:$0xff]
    %v291 = vld [vmem:[%s1 + $0x7f0] sm:$0xff]
    %v292 = vld [vmem:[%s1 + $0x7f8] sm:$0xff]
    %v293 = vld [vmem:[%s1 + $0x800] sm:$0xff]
    %v294 = vld [vmem:[%s1 + $0x808] sm:$0xff]
    %v295 = vld [vmem:[%s1 + $0x810] sm:$0xff]
    %v296 = vld [vmem:[%s1 + $0x818] sm:$0xff]
    %v297 = vld [vmem:[%s1 + $0x820] sm:$0xff]
    %v298 = vld [vmem:[%s1 + $0x828] sm:$0xff]
    %v299 = vld [vmem:[%s1 + $0x830] sm:$0xff]
    %v300 = vld [vmem:[%s1 + $0x838] sm:$0xff]
    %v301 = vld [vmem:[%s1 + $0x840] sm:$0xff]
    %v302 = vld [vmem:[%s1 + $0x848] sm:$0xff]
    %v303 = vld [vmem:[%s1 + $0x850] sm:$0xff]
    %v304 = vld [vmem:[%s1 + $0x858] sm:$0xff]
    %v305 = vld [vmem:[%s1 + $0x860] sm:$0xff]
    %v306 = vld [vmem:[%s1 + $0x868] sm:$0xff]
    %v307 = vld [vmem:[%s1 + $0x870] sm:$0xff]
    %v308 = vld [vmem:[%s1 + $0x878] sm:$0xff]
    %v309 = vld [vmem:[%s1 + $0x880] sm:$0xff]
    %v310 = vld [vmem:[%s1 + $0x888] sm:$0xff]
    %v311 = vld [vmem:[%s1 + $0x890] sm:$0xff]
    %v312 = vld [vmem:[%s1 + $0x898] sm:$0xff]
    %v313 = vld [vmem:[%s1 + $0x8a0] sm:$0xff]
    %v314 = vld [vmem:[%s1 + $0x8a8] sm:$0xff]
    %v315 = vld [vmem:[%s1 + $0x8b0] sm:$0xff]
    %v316 = vld [vmem:[%s1 + $0x8b8] sm:$0xff]
    %v317 = vld [vmem:[%s1 + $0x8c0] sm:$0xff]
    %v318 = vld [vmem:[%s1 + $0x8c8] sm:$0xff]
    %v319 = vld [vmem:[%s1 + $0x8d0] sm:$0xff]
    %v320 = vld [vmem:[%s1 + $0x8d8] sm:$0xff]
    %v321 = vld [vmem:[%s1 + $0x8e0] sm:$0xff]
    %v322 = vld [vmem:[%s1 + $0x8e8] sm:$0xff]
    %v323 = vld [vmem:[%s1 + $0x8f0] sm:$0xff]
    %v324 = vld [vmem:[%s1 + $0x8f8] sm:$0xff]
    %v325 = vld [vmem:[%s1 + $0x900] sm:$0xff]
    %v326 = vld [vmem:[%s1 + $0x908] sm:$0xff]
    %v327 = vld [vmem:[%s1 + $0x910] sm:$0xff]
    %v328 = vld [vmem:[%s1 + $0x918] sm:$0xff]
    %v329 = vld [vmem:[%s1 + $0x920] sm:$0xff]
    %v330 = vld [vmem:[%s1 + $0x928] sm:$0xff]
    %v331 = vld [vmem:[%s1 + $0x930] sm:$0xff]
    %v332 = vld [vmem:[%s1 + $0x938] sm:$0xff]
    %v333 = vld [vmem:[%s1 + $0x940] sm:$0xff]
    %v334 = vld [vmem:[%s1 + $0x948] sm:$0xff]
    %v335 = vld [vmem:[%s1 + $0x950] sm:$0xff]
    %v336 = vld [vmem:[%s1 + $0x958] sm:$0xff]
    %v337 = vld [vmem:[%s1 + $0x960] sm:$0xff]
    %v338 = vld [vmem:[%s1 + $0x968] sm:$0xff]
    %v339 = vld [vmem:[%s1 + $0x970] sm:$0xff]
    %v340 = vld [vmem:[%s1 + $0x978] sm:$0xff]
    %v341 = vld [vmem:[%s1 + $0x980] sm:$0xff]
    %v342 = vld [vmem:[%s1 + $0x988] sm:$0xff]
    %v343 = vld [vmem:[%s1 + $0x990] sm:$0xff]
    %v344 = vld [vmem:[%s1 + $0x998] sm:$0xff]
    %v345 = vld [vmem:[%s1 + $0x9a0] sm:$0xff]
    %v346 = vld [vmem:[%s1 + $0x9a8] sm:$0xff]
    %v347 = vld [vmem:[%s1 + $0x9b0] sm:$0xff]
    %v348 = vld [vmem:[%s1 + $0x9b8] sm:$0xff]
    %v349 = vld [vmem:[%s1 + $0x9c0] sm:$0xff]
    %v350 = vld [vmem:[%s1 + $0x9c8] sm:$0xff]
    %v351 = vld [vmem:[%s1 + $0x9d0] sm:$0xff]
    %v352 = vld [vmem:[%s1 + $0x9d8] sm:$0xff]
    %v353 = vld [vmem:[%s1 + $0x9e0] sm:$0xff]
    %v354 = vld [vmem:[%s1 + $0x9e8] sm:$0xff]
    %v355 = vld [vmem:[%s1 + $0x9f0] sm:$0xff]
    %v356 = vld [vmem:[%s1 + $0x9f8] sm:$0xff]
    %v357 = vld [vmem:[%s1 + $0xa00] sm:$0xff]
    %v358 = vld [vmem:[%s1 + $0xa08] sm:$0xff]
    %v359 = vld [vmem:[%s1 + $0xa10] sm:$0xff]
    %v360 = vld [vmem:[%s1 + $0xa18] sm:$0xff]
    %v361 = vld [vmem:[%s1 + $0xa20] sm:$0xff]
    %v362 = vld [vmem:[%s1 + $0xa28] sm:$0xff]
    %v363 = vld [vmem:[%s1 + $0xa30] sm:$0xff]
    %v364 = vld [vmem:[%s1 + $0xa38] sm:$0xff]
    %v365 = vld [vmem:[%s1 + $0xa40] sm:$0xff]
    %v366 = vld [vmem:[%s1 + $0xa48] sm:$0xff]
    %v367 = vld [vmem:[%s1 + $0xa50] sm:$0xff]
    %v368 = vld [vmem:[%s1 + $0xa58] sm:$0xff]
    %v369 = vld [vmem:[%s1 + $0xa60] sm:$0xff]
    %v370 = vld [vmem:[%s1 + $0xa68] sm:$0xff]
    %v371 = vld [vmem:[%s1 + $0xa70] sm:$0xff]
    %v372 = vld [vmem:[%s1 + $0xa78] sm:$0xff]
    %v373 = vld [vmem:[%s1 + $0xa80] sm:$0xff]
    %v374 = vld [vmem:[%s1 + $0xa88] sm:$0xff]
    %v375 = vld [vmem:[%s1 + $0xa90] sm:$0xff]
    %v376 = vld [vmem:[%s1 + $0xa98] sm:$0xff]
    %v377 = vld [vmem:[%s1 + $0xaa0] sm:$0xff]
    %v378 = vld [vmem:[%s1 + $0xaa8] sm:$0xff]
    %v379 = vld [vmem:[%s1 + $0xab0] sm:$0xff]
    %v380 = vld [vmem:[%s1 + $0xab8] sm:$0xff]
    %v381 = vld [vmem:[%s1 + $0xac0] sm:$0xff]
    %v382 = vld [vmem:[%s1 + $0xac8] sm:$0xff]
    %v383 = vld [vmem:[%s1 + $0xad0] sm:$0xff]
    %v384 = vld [vmem:[%s1 + $0xad8] sm:$0xff]
    %v385 = vld [vmem:[%s1 + $0xae0] sm:$0xff]
    %v386 = vld [vmem:[%s1 + $0xae8] sm:$0xff]
    %v387 = vld [vmem:[%s1 + $0xaf0] sm:$0xff]
    %v388 = vld [vmem:[%s1 + $0xaf8] sm:$0xff]
    %v389 = vld [vmem:[%s1 + $0xb00] sm:$0xff]
    %v390 = vld [vmem:[%s1 + $0xb08] sm:$0xff]
    %v391 = vld [vmem:[%s1 + $0xb10] sm:$0xff]
    %v392 = vld [vmem:[%s1 + $0xb18] sm:$0xff]
    %v393 = vld [vmem:[%s1 + $0xb20] sm:$0xff]
    %v394 = vld [vmem:[%s1 + $0xb28] sm:$0xff]
    %v395 = vld [vmem:[%s1 + $0xb30] sm:$0xff]
    %v396 = vld [vmem:[%s1 + $0xb38] sm:$0xff]
    %v397 = vld [vmem:[%s1 + $0xb40] sm:$0xff]
    %v398 = vld [vmem:[%s1 + $0xb48] sm:$0xff]
    %v399 = vld [vmem:[%s1 + $0xb50] sm:$0xff]
    %v400 = vld [vmem:[%s1 + $0xb58] sm:$0xff]
    %v401 = vld [vmem:[%s1 + $0xb60] sm:$0xff]
    %v402 = vld [vmem:[%s1 + $0xb68] sm:$0xff]
    %v403 = vld [vmem:[%s1 + $0xb70] sm:$0xff]
    %v404 = vld [vmem:[%s1 + $0xb78] sm:$0xff]
    %v405 = vld [vmem:[%s1 + $0xb80] sm:$0xff]
    %v406 = vld [vmem:[%s1 + $0xb88] sm:$0xff]
    %v407 = vld [vmem:[%s1 + $0xb90] sm:$0xff]
    %v408 = vld [vmem:[%s1 + $0xb98] sm:$0xff]
    %v409 = vld [vmem:[%s1 + $0xba0] sm:$0xff]
    %v410 = vld [vmem:[%s1 + $0xba8] sm:$0xff]
    %v411 = vld [vmem:[%s1 + $0xbb0] sm:$0xff]
    %v412 = vld [vmem:[%s1 + $0xbb8] sm:$0xff]
    %v413 = vld [vmem:[%s1 + $0xbc0] sm:$0xff]
    %v414 = vld [vmem:[%s1 + $0xbc8] sm:$0xff]
    %v415 = vld [vmem:[%s1 + $0xbd0] sm:$0xff]
    %v416 = vld [vmem:[%s1 + $0xbd8] sm:$0xff]
    %v417 = vld [vmem:[%s1 + $0xbe0] sm:$0xff]
    %v418 = vld [vmem:[%s1 + $0xbe8] sm:$0xff]
    %v419 = vld [vmem:[%s1 + $0xbf0] sm:$0xff]
    %v420 = vld [vmem:[%s1 + $0xbf8] sm:$0xff]
    %v421 = vld [vmem:[%s1 + $0xc00] sm:$0xff]
    %v422 = vld [vmem:[%s1 + $0xc08] sm:$0xff]
    %v423 = vld [vmem:[%s1 + $0xc10] sm:$0xff]
    %v424 = vld [vmem:[%s1 + $0xc18] sm:$0xff]
    %v425 = vld [vmem:[%s1 + $0xc20] sm:$0xff]
    %v426 = vld [vmem:[%s1 + $0xc28] sm:$0xff]
    %v427 = vld [vmem:[%s1 + $0xc30] sm:$0xff]
    %v428 = vld [vmem:[%s1 + $0xc38] sm:$0xff]
    %v429 = vld [vmem:[%s1 + $0xc40] sm:$0xff]
    %v430 = vld [vmem:[%s1 + $0xc48] sm:$0xff]
    %v431 = vld [vmem:[%s1 + $0xc50] sm:$0xff]
    %v432 = vld [vmem:[%s1 + $0xc58] sm:$0xff]
    %v433 = vld [vmem:[%s1 + $0xc60] sm:$0xff]
    %v434 = vld [vmem:[%s1 + $0xc68] sm:$0xff]
    %v435 = vld [vmem:[%s1 + $0xc70] sm:$0xff]
    %v436 = vld [vmem:[%s1 + $0xc78] sm:$0xff]
    %v437 = vld [vmem:[%s1 + $0xc80] sm:$0xff]
    %v438 = vld [vmem:[%s1 + $0xc88] sm:$0xff]
    %v439 = vld [vmem:[%s1 + $0xc90] sm:$0xff]
    %v440 = vld [vmem:[%s1 + $0xc98] sm:$0xff]
    %v441 = vld [vmem:[%s1 + $0xca0] sm:$0xff]
    %v442 = vld [vmem:[%s1 + $0xca8] sm:$0xff]
    %v443 = vld [vmem:[%s1 + $0xcb0] sm:$0xff]
    %v444 = vld [vmem:[%s1 + $0xcb8] sm:$0xff]
    %v445 = vld [vmem:[%s1 + $0xcc0] sm:$0xff]
    %v446 = vld [vmem:[%s1 + $0xcc8] sm:$0xff]
    %v447 = vld [vmem:[%s1 + $0xcd0] sm:$0xff]
    %v448 = vld [vmem:[%s1 + $0xcd8] sm:$0xff]
    %v449 = vld [vmem:[%s1 + $0xce0] sm:$0xff]
    %v450 = vld [vmem:[%s1 + $0xce8] sm:$0xff]
    %v451 = vld [vmem:[%s1 + $0xcf0] sm:$0xff]
    %v452 = vld [vmem:[%s1 + $0xcf8] sm:$0xff]
    %v453 = vld [vmem:[%s1 + $0xd00] sm:$0xff]
    %v454 = vld [vmem:[%s1 + $0xd08] sm:$0xff]
    %v455 = vld [vmem:[%s1 + $0xd10] sm:$0xff]
    %v456 = vld [vmem:[%s1 + $0xd18] sm:$0xff]
    %v457 = vld [vmem:[%s1 + $0xd20] sm:$0xff]
    %v458 = vld [vmem:[%s1 + $0xd28] sm:$0xff]
    %v459 = vld [vmem:[%s1 + $0xd30] sm:$0xff]
    %v460 = vld [vmem:[%s1 + $0xd38] sm:$0xff]
    %v461 = vld [vmem:[%s1 + $0xd40] sm:$0xff]
    %v462 = vld [vmem:[%s1 + $0xd48] sm:$0xff]
    %v463 = vld [vmem:[%s1 + $0xd50] sm:$0xff]
    %v464 = vld [vmem:[%s1 + $0xd58] sm:$0xff]
    %v465 = vld [vmem:[%s1 + $0xd60] sm:$0xff]
    %v466 = vld [vmem:[%s1 + $0xd68] sm:$0xff]
    %v467 = vld [vmem:[%s1 + $0xd70] sm:$0xff]
    %v468 = vld [vmem:[%s1 + $0xd78] sm:$0xff]
    %v469 = vld [vmem:[%s1 + $0xd80] sm:$0xff]
    %v470 = vld [vmem:[%s1 + $0xd88] sm:$0xff]
    %v471 = vld [vmem:[%s1 + $0xd90] sm:$0xff]
    %v472 = vld [vmem:[%s1 + $0xd98] sm:$0xff]
    %v473 = vld [vmem:[%s1 + $0xda0] sm:$0xff]
    %v474 = vld [vmem:[%s1 + $0xda8] sm:$0xff]
    %v475 = vld [vmem:[%s1 + $0xdb0] sm:$0xff]
    %v476 = vld [vmem:[%s1 + $0xdb8] sm:$0xff]
    %v477 = vld [vmem:[%s1 + $0xdc0] sm:$0xff]
    %v478 = vld [vmem:[%s1 + $0xdc8] sm:$0xff]
    %v479 = vld [vmem:[%s1 + $0xdd0] sm:$0xff]
    %v480 = vld [vmem:[%s1 + $0xdd8] sm:$0xff]
    %v481 = vld [vmem:[%s1 + $0xde0] sm:$0xff]
    %v482 = vld [vmem:[%s1 + $0xde8] sm:$0xff]
    %v483 = vld [vmem:[%s1 + $0xdf0] sm:$0xff]
    %v484 = vld [vmem:[%s1 + $0xdf8] sm:$0xff]
    %v485 = vld [vmem:[%s1 + $0xe00] sm:$0xff]
    %v486 = vld [vmem:[%s1 + $0xe08] sm:$0xff]
    %v487 = vld [vmem:[%s1 + $0xe10] sm:$0xff]
    %v488 = vld [vmem:[%s1 + $0xe18] sm:$0xff]
    %v489 = vld [vmem:[%s1 + $0xe20] sm:$0xff]
    %v490 = vld [vmem:[%s1 + $0xe28] sm:$0xff]
    %v491 = vld [vmem:[%s1 + $0xe30] sm:$0xff]
    %v492 = vld [vmem:[%s1 + $0xe38] sm:$0xff]
    %v493 = vld [vmem:[%s1 + $0xe40] sm:$0xff]
    %v494 = vld [vmem:[%s1 + $0xe48] sm:$0xff]
    %v495 = vld [vmem:[%s1 + $0xe50] sm:$0xff]
    %v496 = vld [vmem:[%s1 + $0xe58] sm:$0xff]
    %v497 = vld [vmem:[%s1 + $0xe60] sm:$0xff]
    %v498 = vld [vmem:[%s1 + $0xe68] sm:$0xff]
    %v499 = vld [vmem:[%s1 + $0xe70] sm:$0xff]
    %v500 = vld [vmem:[%s1 + $0xe78] sm:$0xff]
    %v501 = vld [vmem:[%s1 + $0xe80] sm:$0xff]
    %v502 = vld [vmem:[%s1 + $0xe88] sm:$0xff]
    %v503 = vld [vmem:[%s1 + $0xe90] sm:$0xff]
    %v504 = vld [vmem:[%s1 + $0xe98] sm:$0xff]
    %v505 = vld [vmem:[%s1 + $0xea0] sm:$0xff]
    %v506 = vld [vmem:[%s1 + $0xea8] sm:$0xff]
    %v507 = vld [vmem:[%s1 + $0xeb0] sm:$0xff]
    %v508 = vld [vmem:[%s1 + $0xeb8] sm:$0xff]
    %v509 = vld [vmem:[%s1 + $0xec0] sm:$0xff]
    %v510 = vld [vmem:[%s1 + $0xec8] sm:$0xff]
    %v511 = vld [vmem:[%s1 + $0xed0] sm:$0xff]
    %v512 = vld [vmem:[%s1 + $0xed8] sm:$0xff]
    %v513 = vld [vmem:[%s1 + $0xee0] sm:$0xff]
    %v514 = vld [vmem:[%s1 + $0xee8] sm:$0xff]
    %v515 = vld [vmem:[%s1 + $0xef0] sm:$0xff]
    %v516 = vld [vmem:[%s1 + $0xef8] sm:$0xff]
    %v517 = vld [vmem:[%s1 + $0xf00] sm:$0xff]
    %v518 = vld [vmem:[%s1 + $0xf08] sm:$0xff]
    %v519 = vld [vmem:[%s1 + $0xf10] sm:$0xff]
    %v520 = vld [vmem:[%s1 + $0xf18] sm:$0xff]
    %v521 = vld [vmem:[%s1 + $0xf20] sm:$0xff]
    %v522 = vld [vmem:[%s1 + $0xf28] sm:$0xff]
    %v523 = vld [vmem:[%s1 + $0xf30] sm:$0xff]
    %v524 = vld [vmem:[%s1 + $0xf38] sm:$0xff]
    %v525 = vld [vmem:[%s1 + $0xf40] sm:$0xff]
    %v526 = vld [vmem:[%s1 + $0xf48] sm:$0xff]
    %v527 = vld [vmem:[%s1 + $0xf50] sm:$0xff]
    %v528 = vld [vmem:[%s1 + $0xf58] sm:$0xff]
    %v529 = vld [vmem:[%s1 + $0xf60] sm:$0xff]
    %v530 = vld [vmem:[%s1 + $0xf68] sm:$0xff]
    %v531 = vld [vmem:[%s1 + $0xf70] sm:$0xff]
    %v532 = vld [vmem:[%s1 + $0xf78] sm:$0xff]
    %v533 = vld [vmem:[%s1 + $0xf80] sm:$0xff]
    %v534 = vld [vmem:[%s1 + $0xf88] sm:$0xff]
    %v535 = vld [vmem:[%s1 + $0xf90] sm:$0xff]
    %v536 = vld [vmem:[%s1 + $0xf98] sm:$0xff]
    %v537 = vld [vmem:[%s1 + $0xfa0] sm:$0xff]
    %v538 = vld [vmem:[%s1 + $0xfa8] sm:$0xff]
    %v539 = vld [vmem:[%s1 + $0xfb0] sm:$0xff]
    %v540 = vld [vmem:[%s1 + $0xfb8] sm:$0xff]
    %v541 = vld [vmem:[%s1 + $0xfc0] sm:$0xff]
    %v542 = vld [vmem:[%s1 + $0xfc8] sm:$0xff]
    %v543 = vld [vmem:[%s1 + $0xfd0] sm:$0xff]
    %v544 = vld [vmem:[%s1 + $0xfd8] sm:$0xff]
    %v545 = vld [vmem:[%s1 + $0xfe0] sm:$0xff]
    %v546 = vld [vmem:[%s1 + $0xfe8] sm:$0xff]
    %v547 = vld [vmem:[%s1 + $0xff0] sm:$0xff]
    %v548 = vld [vmem:[%s1 + $0xff8] sm:$0xff]
    %v549 = vld [vmem:[%s1 + $0x1000] sm:$0xff]
    %v550 = vld [vmem:[%s1 + $0x1008] sm:$0xff]
    %v551 = vld [vmem:[%s1 + $0x1010] sm:$0xff]
    %v552 = vld [vmem:[%s1 + $0x1018] sm:$0xff]
    %v553 = vld [vmem:[%s1 + $0x1020] sm:$0xff]
    %v554 = vld [vmem:[%s1 + $0x1028] sm:$0xff]
    %v555 = vld [vmem:[%s1 + $0x1030] sm:$0xff]
    %v556 = vld [vmem:[%s1 + $0x1038] sm:$0xff]
    %v557 = vld [vmem:[%s1 + $0x1040] sm:$0xff]
    %v558 = vld [vmem:[%s1 + $0x1048] sm:$0xff]
    %v559 = vld [vmem:[%s1 + $0x1050] sm:$0xff]
    %v560 = vld [vmem:[%s1 + $0x1058] sm:$0xff]
    %v561 = vld [vmem:[%s1 + $0x1060] sm:$0xff]
    %v562 = vld [vmem:[%s1 + $0x1068] sm:$0xff]
    %v563 = vld [vmem:[%s1 + $0x1070] sm:$0xff]
    %v564 = vld [vmem:[%s1 + $0x1078] sm:$0xff]
    %v565 = vld [vmem:[%s1 + $0x1080] sm:$0xff]
    %v566 = vld [vmem:[%s1 + $0x1088] sm:$0xff]
    %v567 = vld [vmem:[%s1 + $0x1090] sm:$0xff]
    %v568 = vld [vmem:[%s1 + $0x1098] sm:$0xff]
    %v569 = vld [vmem:[%s1 + $0x10a0] sm:$0xff]
    %v570 = vld [vmem:[%s1 + $0x10a8] sm:$0xff]
    %v571 = vld [vmem:[%s1 + $0x10b0] sm:$0xff]
    %v572 = vld [vmem:[%s1 + $0x10b8] sm:$0xff]
    %v573 = vld [vmem:[%s1 + $0x10c0] sm:$0xff]
    %v574 = vld [vmem:[%s1 + $0x10c8] sm:$0xff]
    %v575 = vld [vmem:[%s1 + $0x10d0] sm:$0xff]
    %v576 = vld [vmem:[%s1 + $0x10d8] sm:$0xff]
    %v577 = vld [vmem:[%s1 + $0x10e0] sm:$0xff]
    %v578 = vld [vmem:[%s1 + $0x10e8] sm:$0xff]
    %v579 = vld [vmem:[%s1 + $0x10f0] sm:$0xff]
    %v580 = vld [vmem:[%s1 + $0x10f8] sm:$0xff]
    %v581 = vld [vmem:[%s1 + $0x1100] sm:$0xff]
    %v582 = vld [vmem:[%s1 + $0x1108] sm:$0xff]
    %v583 = vld [vmem:[%s1 + $0x1110] sm:$0xff]
    %v584 = vld [vmem:[%s1 + $0x1118] sm:$0xff]
    %v585 = vld [vmem:[%s1 + $0x1120] sm:$0xff]
    %v586 = vld [vmem:[%s1 + $0x1128] sm:$0xff]
    %v587 = vld [vmem:[%s1 + $0x1130] sm:$0xff]
    %v588 = vld [vmem:[%s1 + $0x1138] sm:$0xff]
    %v589 = vld [vmem:[%s1 + $0x1140] sm:$0xff]
    %v590 = vld [vmem:[%s1 + $0x1148] sm:$0xff]
    %v591 = vld [vmem:[%s1 + $0x1150] sm:$0xff]
    %v592 = vld [vmem:[%s1 + $0x1158] sm:$0xff]
    %v593 = vld [vmem:[%s1 + $0x1160] sm:$0xff]
    %v594 = vld [vmem:[%s1 + $0x1168] sm:$0xff]
    %v595 = vld [vmem:[%s1 + $0x1170] sm:$0xff]
    %v596 = vld [vmem:[%s1 + $0x1178] sm:$0xff]
    %v597 = vld [vmem:[%s1 + $0x1180] sm:$0xff]
    %v598 = vld [vmem:[%s1 + $0x1188] sm:$0xff]
    %v599 = vld [vmem:[%s1 + $0x1190] sm:$0xff]
    %v600 = vld [vmem:[%s1 + $0x1198] sm:$0xff]
    %v601 = vld [vmem:[%s1 + $0x11a0] sm:$0xff]
    %v602 = vld [vmem:[%s1 + $0x11a8] sm:$0xff]
    %v603 = vld [vmem:[%s1 + $0x11b0] sm:$0xff]
    %v604 = vld [vmem:[%s1 + $0x11b8] sm:$0xff]
    %v605 = vld [vmem:[%s1 + $0x11c0] sm:$0xff]
    %v606 = vld [vmem:[%s1 + $0x11c8] sm:$0xff]
    %v607 = vld [vmem:[%s1 + $0x11d0] sm:$0xff]
    %v608 = vld [vmem:[%s1 + $0x11d8] sm:$0xff]
    %v609 = vld [vmem:[%s1 + $0x11e0] sm:$0xff]
    %v610 = vld [vmem:[%s1 + $0x11e8] sm:$0xff]
    %v611 = vld [vmem:[%s1 + $0x11f0] sm:$0xff]
    %v612 = vld [vmem:[%s1 + $0x11f8] sm:$0xff]
    %v613 = vld [vmem:[%s1 + $0x1200] sm:$0xff]
    %v614 = vld [vmem:[%s1 + $0x1208] sm:$0xff]
    %v615 = vld [vmem:[%s1 + $0x1210] sm:$0xff]
    %v616 = vld [vmem:[%s1 + $0x1218] sm:$0xff]
    %v617 = vld [vmem:[%s1 + $0x1220] sm:$0xff]
    %v618 = vld [vmem:[%s1 + $0x1228] sm:$0xff]
    %v619 = vld [vmem:[%s1 + $0x1230] sm:$0xff]
    %v620 = vld [vmem:[%s1 + $0x1238] sm:$0xff]
    %v621 = vld [vmem:[%s1 + $0x1240] sm:$0xff]
    %v622 = vld [vmem:[%s1 + $0x1248] sm:$0xff]
    %v623 = vld [vmem:[%s1 + $0x1250] sm:$0xff]
    %v624 = vld [vmem:[%s1 + $0x1258] sm:$0xff]
    %v625 = vld [vmem:[%s1 + $0x1260] sm:$0xff]
    %v626 = vld [vmem:[%s1 + $0x1268] sm:$0xff]
    %v627 = vld [vmem:[%s1 + $0x1270] sm:$0xff]
    %v628 = vld [vmem:[%s1 + $0x1278] sm:$0xff]
    %v629 = vld [vmem:[%s1 + $0x1280] sm:$0xff]
    %v630 = vld [vmem:[%s1 + $0x1288] sm:$0xff]
    %v631 = vld [vmem:[%s1 + $0x1290] sm:$0xff]
    %v632 = vld [vmem:[%s1 + $0x1298] sm:$0xff]
    %v633 = vld [vmem:[%s1 + $0x12a0] sm:$0xff]
    %v634 = vld [vmem:[%s1 + $0x12a8] sm:$0xff]
    %v635 = vld [vmem:[%s1 + $0x12b0] sm:$0xff]
    %v636 = vld [vmem:[%s1 + $0x12b8] sm:$0xff]
    %v637 = vld [vmem:[%s1 + $0x12c0] sm:$0xff]
    %v638 = vld [vmem:[%s1 + $0x12c8] sm:$0xff]
    %v639 = vld [vmem:[%s1 + $0x12d0] sm:$0xff]
    %v640 = vld [vmem:[%s1 + $0x12d8] sm:$0xff]
    %v641 = vld [vmem:[%s1 + $0x12e0] sm:$0xff]
    %v642 = vld [vmem:[%s1 + $0x12e8] sm:$0xff]
    %v643 = vld [vmem:[%s1 + $0x12f0] sm:$0xff]
    %v644 = vld [vmem:[%s1 + $0x12f8] sm:$0xff]
    %v645 = vld [vmem:[%s1 + $0x1300] sm:$0xff]
    %v646 = vld [vmem:[%s1 + $0x1308] sm:$0xff]
    %v647 = vld [vmem:[%s1 + $0x1310] sm:$0xff]
    %v648 = vld [vmem:[%s1 + $0x1318] sm:$0xff]
    %v649 = vld [vmem:[%s1 + $0x1320] sm:$0xff]
    %v650 = vld [vmem:[%s1 + $0x1328] sm:$0xff]
    %v651 = vld [vmem:[%s1 + $0x1330] sm:$0xff]
    %v652 = vld [vmem:[%s1 + $0x1338] sm:$0xff]
    %v653 = vld [vmem:[%s1 + $0x1340] sm:$0xff]
    %v654 = vld [vmem:[%s1 + $0x1348] sm:$0xff]
    %v655 = vld [vmem:[%s1 + $0x1350] sm:$0xff]
    %v656 = vld [vmem:[%s1 + $0x1358] sm:$0xff]
    %v657 = vld [vmem:[%s1 + $0x1360] sm:$0xff]
    %v658 = vld [vmem:[%s1 + $0x1368] sm:$0xff]
    %v659 = vld [vmem:[%s1 + $0x1370] sm:$0xff]
    %v660 = vld [vmem:[%s1 + $0x1378] sm:$0xff]
    %v661 = vld [vmem:[%s1 + $0x1380] sm:$0xff]
    %v662 = vld [vmem:[%s1 + $0x1388] sm:$0xff]
    %v663 = vld [vmem:[%s1 + $0x1390] sm:$0xff]
    %v664 = vld [vmem:[%s1 + $0x1398] sm:$0xff]
    %v665 = vld [vmem:[%s1 + $0x13a0] sm:$0xff]
    %v666 = vld [vmem:[%s1 + $0x13a8] sm:$0xff]
    %v667 = vld [vmem:[%s1 + $0x13b0] sm:$0xff]
    %v668 = vld [vmem:[%s1 + $0x13b8] sm:$0xff]
    %v669 = vld [vmem:[%s1 + $0x13c0] sm:$0xff]
    %v670 = vld [vmem:[%s1 + $0x13c8] sm:$0xff]
    %v671 = vld [vmem:[%s1 + $0x13d0] sm:$0xff]
    %v672 = vld [vmem:[%s1 + $0x13d8] sm:$0xff]
    %v673 = vld [vmem:[%s1 + $0x13e0] sm:$0xff]
    %v674 = vld [vmem:[%s1 + $0x13e8] sm:$0xff]
    %v675 = vld [vmem:[%s1 + $0x13f0] sm:$0xff]
    %v676 = vld [vmem:[%s1 + $0x13f8] sm:$0xff]
    %v677 = vld [vmem:[%s1 + $0x1400] sm:$0xff]
    %v678 = vld [vmem:[%s1 + $0x1408] sm:$0xff]
    %v679 = vld [vmem:[%s1 + $0x1410] sm:$0xff]
    %v680 = vld [vmem:[%s1 + $0x1418] sm:$0xff]
    %v681 = vld [vmem:[%s1 + $0x1420] sm:$0xff]
    %v682 = vld [vmem:[%s1 + $0x1428] sm:$0xff]
    %v683 = vld [vmem:[%s1 + $0x1430] sm:$0xff]
    %v684 = vld [vmem:[%s1 + $0x1438] sm:$0xff]
    %v685 = vld [vmem:[%s1 + $0x1440] sm:$0xff]
    %v686 = vld [vmem:[%s1 + $0x1448] sm:$0xff]
    %v687 = vld [vmem:[%s1 + $0x1450] sm:$0xff]
    %v688 = vld [vmem:[%s1 + $0x1458] sm:$0xff]
    %v689 = vld [vmem:[%s1 + $0x1460] sm:$0xff]
    %v690 = vld [vmem:[%s1 + $0x1468] sm:$0xff]
    %v691 = vld [vmem:[%s1 + $0x1470] sm:$0xff]
    %v692 = vld [vmem:[%s1 + $0x1478] sm:$0xff]
    %v693 = vld [vmem:[%s1 + $0x1480] sm:$0xff]
    %v694 = vld [vmem:[%s1 + $0x1488] sm:$0xff]
    %v695 = vld [vmem:[%s1 + $0x1490] sm:$0xff]
    %v696 = vld [vmem:[%s1 + $0x1498] sm:$0xff]
    %v697 = vld [vmem:[%s1 + $0x14a0] sm:$0xff]
    %v698 = vld [vmem:[%s1 + $0x14a8] sm:$0xff]
    %v699 = vld [vmem:[%s1 + $0x14b0] sm:$0xff]
    %v700 = vld [vmem:[%s1 + $0x14b8] sm:$0xff]
    %v701 = vld [vmem:[%s1 + $0x14c0] sm:$0xff]
    %v702 = vld [vmem:[%s1 + $0x14c8] sm:$0xff]
    %v703 = vld [vmem:[%s1 + $0x14d0] sm:$0xff]
    %v704 = vld [vmem:[%s1 + $0x14d8] sm:$0xff]
    %v705 = vld [vmem:[%s1 + $0x14e0] sm:$0xff]
    %v706 = vld [vmem:[%s1 + $0x14e8] sm:$0xff]
    %v707 = vld [vmem:[%s1 + $0x14f0] sm:$0xff]
    %v708 = vld [vmem:[%s1 + $0x14f8] sm:$0xff]
    %v709 = vld [vmem:[%s1 + $0x1500] sm:$0xff]
    %v710 = vld [vmem:[%s1 + $0x1508] sm:$0xff]
    %v711 = vld [vmem:[%s1 + $0x1510] sm:$0xff]
    %v712 = vld [vmem:[%s1 + $0x1518] sm:$0xff]
    %v713 = vld [vmem:[%s1 + $0x1520] sm:$0xff]
    %v714 = vld [vmem:[%s1 + $0x1528] sm:$0xff]
    %v715 = vld [vmem:[%s1 + $0x1530] sm:$0xff]
    %v716 = vld [vmem:[%s1 + $0x1538] sm:$0xff]
    %v717 = vld [vmem:[%s1 + $0x1540] sm:$0xff]
    %v718 = vld [vmem:[%s1 + $0x1548] sm:$0xff]
    %v719 = vld [vmem:[%s1 + $0x1550] sm:$0xff]
    %v720 = vld [vmem:[%s1 + $0x1558] sm:$0xff]
    %v721 = vld [vmem:[%s1 + $0x1560] sm:$0xff]
    %v722 = vld [vmem:[%s1 + $0x1568] sm:$0xff]
    %v723 = vld [vmem:[%s1 + $0x1570] sm:$0xff]
    %v724 = vld [vmem:[%s1 + $0x1578] sm:$0xff]
    %v725 = vld [vmem:[%s1 + $0x1580] sm:$0xff]
    %v726 = vld [vmem:[%s1 + $0x1588] sm:$0xff]
    %v727 = vld [vmem:[%s1 + $0x1590] sm:$0xff]
    %v728 = vld [vmem:[%s1 + $0x1598] sm:$0xff]
    %v729 = vld [vmem:[%s1 + $0x15a0] sm:$0xff]
    %v730 = vld [vmem:[%s1 + $0x15a8] sm:$0xff]
    %v731 = vld [vmem:[%s1 + $0x15b0] sm:$0xff]
    %v732 = vld [vmem:[%s1 + $0x15b8] sm:$0xff]
    %v733 = vld [vmem:[%s1 + $0x15c0] sm:$0xff]
    %v734 = vld [vmem:[%s1 + $0x15c8] sm:$0xff]
    %v735 = vld [vmem:[%s1 + $0x15d0] sm:$0xff]
    %v736 = vld [vmem:[%s1 + $0x15d8] sm:$0xff]
    %v737 = vld [vmem:[%s1 + $0x15e0] sm:$0xff]
    %v738 = vld [vmem:[%s1 + $0x15e8] sm:$0xff]
    %v739 = vld [vmem:[%s1 + $0x15f0] sm:$0xff]
    %v740 = vld [vmem:[%s1 + $0x15f8] sm:$0xff]
    %v741 = vld [vmem:[%s1 + $0x1600] sm:$0xff]
    %v742 = vld [vmem:[%s1 + $0x1608] sm:$0xff]
    %v743 = vld [vmem:[%s1 + $0x1610] sm:$0xff]
    %v744 = vld [vmem:[%s1 + $0x1618] sm:$0xff]
    %v745 = vld [vmem:[%s1 + $0x1620] sm:$0xff]
    %v746 = vld [vmem:[%s1 + $0x1628] sm:$0xff]
    %v747 = vld [vmem:[%s1 + $0x1630] sm:$0xff]
    %v748 = vld [vmem:[%s1 + $0x1638] sm:$0xff]
    %v749 = vld [vmem:[%s1 + $0x1640] sm:$0xff]
    %v750 = vld [vmem:[%s1 + $0x1648] sm:$0xff]
    %v751 = vld [vmem:[%s1 + $0x1650] sm:$0xff]
    %v752 = vld [vmem:[%s1 + $0x1658] sm:$0xff]
    %v753 = vld [vmem:[%s1 + $0x1660] sm:$0xff]
    %v754 = vld [vmem:[%s1 + $0x1668] sm:$0xff]
    %v755 = vld [vmem:[%s1 + $0x1670] sm:$0xff]
    %v756 = vld [vmem:[%s1 + $0x1678] sm:$0xff]
    %v757 = vld [vmem:[%s1 + $0x1680] sm:$0xff]
    %v758 = vld [vmem:[%s1 + $0x1688] sm:$0xff]
    %v759 = vld [vmem:[%s1 + $0x1690] sm:$0xff]
    %v760 = vld [vmem:[%s1 + $0x1698] sm:$0xff]
    %v761 = vld [vmem:[%s1 + $0x16a0] sm:$0xff]
    %v762 = vld [vmem:[%s1 + $0x16a8] sm:$0xff]
    %v763 = vld [vmem:[%s1 + $0x16b0] sm:$0xff]
    %v764 = vld [vmem:[%s1 + $0x16b8] sm:$0xff]
    %v765 = vld [vmem:[%s1 + $0x16c0] sm:$0xff]
    %v766 = vld [vmem:[%s1 + $0x16c8] sm:$0xff]
    %v767 = vld [vmem:[%s1 + $0x16d0] sm:$0xff]
    %v768 = vld [vmem:[%s1 + $0x16d8] sm:$0xff]
    %v769 = vld [vmem:[%s1 + $0x16e0] sm:$0xff]
    %v770 = vld [vmem:[%s1 + $0x16e8] sm:$0xff]
    %v771 = vld [vmem:[%s1 + $0x16f0] sm:$0xff]
    %v772 = vld [vmem:[%s1 + $0x16f8] sm:$0xff]
    %v773 = vld [vmem:[%s1 + $0x1700] sm:$0xff]
    %v774 = vld [vmem:[%s1 + $0x1708] sm:$0xff]
    %v775 = vld [vmem:[%s1 + $0x1710] sm:$0xff]
    %v776 = vld [vmem:[%s1 + $0x1718] sm:$0xff]
    %v777 = vld [vmem:[%s1 + $0x1720] sm:$0xff]
    %v778 = vld [vmem:[%s1 + $0x1728] sm:$0xff]
    %v779 = vld [vmem:[%s1 + $0x1730] sm:$0xff]
    %v780 = vld [vmem:[%s1 + $0x1738] sm:$0xff]
    %v781 = vld [vmem:[%s1 + $0x1740] sm:$0xff]
    %v782 = vld [vmem:[%s1 + $0x1748] sm:$0xff]
    %v783 = vld [vmem:[%s1 + $0x1750] sm:$0xff]
    %v784 = vld [vmem:[%s1 + $0x1758] sm:$0xff]
    %v785 = vld [vmem:[%s1 + $0x1760] sm:$0xff]
    %v786 = vld [vmem:[%s1 + $0x1768] sm:$0xff]
    %v787 = vld [vmem:[%s1 + $0x1770] sm:$0xff]
    %v788 = vld [vmem:[%s1 + $0x1778] sm:$0xff]
    %v789 = vld [vmem:[%s1 + $0x1780] sm:$0xff]
    %v790 = vld [vmem:[%s1 + $0x1788] sm:$0xff]
    %v791 = vld [vmem:[%s1 + $0x1790] sm:$0xff]
    %v792 = vld [vmem:[%s1 + $0x1798] sm:$0xff]
    %v793 = vld [vmem:[%s1 + $0x17a0] sm:$0xff]
    %v794 = vld [vmem:[%s1 + $0x17a8] sm:$0xff]
    %v795 = vld [vmem:[%s1 + $0x17b0] sm:$0xff]
    %v796 = vld [vmem:[%s1 + $0x17b8] sm:$0xff]
    %v797 = vld [vmem:[%s1 + $0x17c0] sm:$0xff]
    %v798 = vld [vmem:[%s1 + $0x17c8] sm:$0xff]
    %v799 = vld [vmem:[%s1 + $0x17d0] sm:$0xff]
    %v800 = vld [vmem:[%s1 + $0x17d8] sm:$0xff]
    %v801 = vld [vmem:[%s1 + $0x17e0] sm:$0xff]
    %v802 = vld [vmem:[%s1 + $0x17e8] sm:$0xff]
    %v803 = vld [vmem:[%s1 + $0x17f0] sm:$0xff]
    %v804 = vld [vmem:[%s1 + $0x17f8] sm:$0xff]
    %v805 = vld [vmem:[%s1 + $0x1800] sm:$0xff]
    %v806 = vld [vmem:[%s1 + $0x1808] sm:$0xff]
    %v807 = vld [vmem:[%s1 + $0x1810] sm:$0xff]
    %v808 = vld [vmem:[%s1 + $0x1818] sm:$0xff]
    %v809 = vld [vmem:[%s1 + $0x1820] sm:$0xff]
    %v810 = vld [vmem:[%s1 + $0x1828] sm:$0xff]
    %v811 = vld [vmem:[%s1 + $0x1830] sm:$0xff]
    %v812 = vld [vmem:[%s1 + $0x1838] sm:$0xff]
    %v813 = vld [vmem:[%s1 + $0x1840] sm:$0xff]
    %v814 = vld [vmem:[%s1 + $0x1848] sm:$0xff]
    %v815 = vld [vmem:[%s1 + $0x1850] sm:$0xff]
    %v816 = vld [vmem:[%s1 + $0x1858] sm:$0xff]
    %v817 = vld [vmem:[%s1 + $0x1860] sm:$0xff]
    %v818 = vld [vmem:[%s1 + $0x1868] sm:$0xff]
    %v819 = vld [vmem:[%s1 + $0x1870] sm:$0xff]
    %v820 = vld [vmem:[%s1 + $0x1878] sm:$0xff]
    %v821 = vld [vmem:[%s1 + $0x1880] sm:$0xff]
    %v822 = vld [vmem:[%s1 + $0x1888] sm:$0xff]
    %v823 = vld [vmem:[%s1 + $0x1890] sm:$0xff]
    %v824 = vld [vmem:[%s1 + $0x1898] sm:$0xff]
    %v825 = vld [vmem:[%s1 + $0x18a0] sm:$0xff]
    %v826 = vld [vmem:[%s1 + $0x18a8] sm:$0xff]
    %v827 = vld [vmem:[%s1 + $0x18b0] sm:$0xff]
    %v828 = vld [vmem:[%s1 + $0x18b8] sm:$0xff]
    %v829 = vld [vmem:[%s1 + $0x18c0] sm:$0xff]
    %v830 = vld [vmem:[%s1 + $0x18c8] sm:$0xff]
    %v831 = vld [vmem:[%s1 + $0x18d0] sm:$0xff]
    %v832 = vld [vmem:[%s1 + $0x18d8] sm:$0xff]
    %v833 = vld [vmem:[%s1 + $0x18e0] sm:$0xff]
    %v834 = vld [vmem:[%s1 + $0x18e8] sm:$0xff]
    %v835 = vld [vmem:[%s1 + $0x18f0] sm:$0xff]
    %v836 = vld [vmem:[%s1 + $0x18f8] sm:$0xff]
    %v837 = vld [vmem:[%s1 + $0x1900] sm:$0xff]
    %v838 = vld [vmem:[%s1 + $0x1908] sm:$0xff]
    %v839 = vld [vmem:[%s1 + $0x1910] sm:$0xff]
    %v840 = vld [vmem:[%s1 + $0x1918] sm:$0xff]
    %v841 = vld [vmem:[%s1 + $0x1920] sm:$0xff]
    %v842 = vld [vmem:[%s1 + $0x1928] sm:$0xff]
    %v843 = vld [vmem:[%s1 + $0x1930] sm:$0xff]
    %v844 = vld [vmem:[%s1 + $0x1938] sm:$0xff]
    %v845 = vld [vmem:[%s1 + $0x1940] sm:$0xff]
    %v846 = vld [vmem:[%s1 + $0x1948] sm:$0xff]
    %v847 = vld [vmem:[%s1 + $0x1950] sm:$0xff]
    %v848 = vld [vmem:[%s1 + $0x1958] sm:$0xff]
    %v849 = vld [vmem:[%s1 + $0x1960] sm:$0xff]
    %v850 = vld [vmem:[%s1 + $0x1968] sm:$0xff]
    %v851 = vld [vmem:[%s1 + $0x1970] sm:$0xff]
    %v852 = vld [vmem:[%s1 + $0x1978] sm:$0xff]
    %v853 = vld [vmem:[%s1 + $0x1980] sm:$0xff]
    %v854 = vld [vmem:[%s1 + $0x1988] sm:$0xff]
    %v855 = vld [vmem:[%s1 + $0x1990] sm:$0xff]
    %v856 = vld [vmem:[%s1 + $0x1998] sm:$0xff]
    %v857 = vld [vmem:[%s1 + $0x19a0] sm:$0xff]
    %v858 = vld [vmem:[%s1 + $0x19a8] sm:$0xff]
    %v859 = vld [vmem:[%s1 + $0x19b0] sm:$0xff]
    %v860 = vld [vmem:[%s1 + $0x19b8] sm:$0xff]
    %v861 = vld [vmem:[%s1 + $0x19c0] sm:$0xff]
    %v862 = vld [vmem:[%s1 + $0x19c8] sm:$0xff]
    %v863 = vld [vmem:[%s1 + $0x19d0] sm:$0xff]
    %v864 = vld [vmem:[%s1 + $0x19d8] sm:$0xff]
    %v865 = vld [vmem:[%s1 + $0x19e0] sm:$0xff]
    %v866 = vld [vmem:[%s1 + $0x19e8] sm:$0xff]
    %v867 = vld [vmem:[%s1 + $0x19f0] sm:$0xff]
    %v868 = vld [vmem:[%s1 + $0x19f8] sm:$0xff]
    %v869 = vld [vmem:[%s1 + $0x1a00] sm:$0xff]
    %v870 = vld [vmem:[%s1 + $0x1a08] sm:$0xff]
    %v871 = vld [vmem:[%s1 + $0x1a10] sm:$0xff]
    %v872 = vld [vmem:[%s1 + $0x1a18] sm:$0xff]
    %v873 = vld [vmem:[%s1 + $0x1a20] sm:$0xff]
    %v874 = vld [vmem:[%s1 + $0x1a28] sm:$0xff]
    %v875 = vld [vmem:[%s1 + $0x1a30] sm:$0xff]
    %v876 = vld [vmem:[%s1 + $0x1a38] sm:$0xff]
    %v877 = vld [vmem:[%s1 + $0x1a40] sm:$0xff]
    %v878 = vld [vmem:[%s1 + $0x1a48] sm:$0xff]
    %v879 = vld [vmem:[%s1 + $0x1a50] sm:$0xff]
    %v880 = vld [vmem:[%s1 + $0x1a58] sm:$0xff]
    %v881 = vld [vmem:[%s1 + $0x1a60] sm:$0xff]
    %v882 = vld [vmem:[%s1 + $0x1a68] sm:$0xff]
    %v883 = vld [vmem:[%s1 + $0x1a70] sm:$0xff]
    %v884 = vld [vmem:[%s1 + $0x1a78] sm:$0xff]
    %v885 = vld [vmem:[%s1 + $0x1a80] sm:$0xff]
    %v886 = vld [vmem:[%s1 + $0x1a88] sm:$0xff]
    %v887 = vld [vmem:[%s1 + $0x1a90] sm:$0xff]
    %v888 = vld [vmem:[%s1 + $0x1a98] sm:$0xff]
    %v889 = vld [vmem:[%s1 + $0x1aa0] sm:$0xff]
    %v890 = vld [vmem:[%s1 + $0x1aa8] sm:$0xff]
    %v891 = vld [vmem:[%s1 + $0x1ab0] sm:$0xff]
    %v892 = vld [vmem:[%s1 + $0x1ab8] sm:$0xff]
    %v893 = vld [vmem:[%s1 + $0x1ac0] sm:$0xff]
    %v894 = vld [vmem:[%s1 + $0x1ac8] sm:$0xff]
    %v895 = vld [vmem:[%s1 + $0x1ad0] sm:$0xff]
    %v896 = vld [vmem:[%s1 + $0x1ad8] sm:$0xff]
    %v897 = vld [vmem:[%s1 + $0x1ae0] sm:$0xff]
    %v898 = vld [vmem:[%s1 + $0x1ae8] sm:$0xff]
    %v899 = vld [vmem:[%s1 + $0x1af0] sm:$0xff]
    %v900 = vld [vmem:[%s1 + $0x1af8] sm:$0xff]
    %v901 = vld [vmem:[%s1 + $0x1b00] sm:$0xff]
    %v902 = vld [vmem:[%s1 + $0x1b08] sm:$0xff]
    %v903 = vld [vmem:[%s1 + $0x1b10] sm:$0xff]
    %v904 = vld [vmem:[%s1 + $0x1b18] sm:$0xff]
    %v905 = vld [vmem:[%s1 + $0x1b20] sm:$0xff]
    %v906 = vld [vmem:[%s1 + $0x1b28] sm:$0xff]
    %v907 = vld [vmem:[%s1 + $0x1b30] sm:$0xff]
    %v908 = vld [vmem:[%s1 + $0x1b38] sm:$0xff]
    %v909 = vld [vmem:[%s1 + $0x1b40] sm:$0xff]
    %v910 = vld [vmem:[%s1 + $0x1b48] sm:$0xff]
    %v911 = vld [vmem:[%s1 + $0x1b50] sm:$0xff]
    %v912 = vld [vmem:[%s1 + $0x1b58] sm:$0xff]
    %v913 = vld [vmem:[%s1 + $0x1b60] sm:$0xff]
    %v914 = vld [vmem:[%s1 + $0x1b68] sm:$0xff]
    %v915 = vld [vmem:[%s1 + $0x1b70] sm:$0xff]
    %v916 = vld [vmem:[%s1 + $0x1b78] sm:$0xff]
    %v917 = vld [vmem:[%s1 + $0x1b80] sm:$0xff]
    %v918 = vld [vmem:[%s1 + $0x1b88] sm:$0xff]
    %v919 = vld [vmem:[%s1 + $0x1b90] sm:$0xff]
    %v920 = vld [vmem:[%s1 + $0x1b98] sm:$0xff]
    %v921 = vld [vmem:[%s1 + $0x1ba0] sm:$0xff]
    %v922 = vld [vmem:[%s1 + $0x1ba8] sm:$0xff]
    %v923 = vld [vmem:[%s1 + $0x1bb0] sm:$0xff]
    %v924 = vld [vmem:[%s1 + $0x1bb8] sm:$0xff]
    %v925 = vld [vmem:[%s1 + $0x1bc0] sm:$0xff]
    %v926 = vld [vmem:[%s1 + $0x1bc8] sm:$0xff]
    %v927 = vld [vmem:[%s1 + $0x1bd0] sm:$0xff]
    %v928 = vld [vmem:[%s1 + $0x1bd8] sm:$0xff]
    %v929 = vld [vmem:[%s1 + $0x1be0] sm:$0xff]
    %v930 = vld [vmem:[%s1 + $0x1be8] sm:$0xff]
    %v931 = vld [vmem:[%s1 + $0x1bf0] sm:$0xff]
    %v932 = vld [vmem:[%s1 + $0x1bf8] sm:$0xff]
    %v933 = vld [vmem:[%s1 + $0x1c00] sm:$0xff]
    %v934 = vld [vmem:[%s1 + $0x1c08] sm:$0xff]
    %v935 = vld [vmem:[%s1 + $0x1c10] sm:$0xff]
    %v936 = vld [vmem:[%s1 + $0x1c18] sm:$0xff]
    %v937 = vld [vmem:[%s1 + $0x1c20] sm:$0xff]
    %v938 = vld [vmem:[%s1 + $0x1c28] sm:$0xff]
    %v939 = vld [vmem:[%s1 + $0x1c30] sm:$0xff]
    %v940 = vld [vmem:[%s1 + $0x1c38] sm:$0xff]
    %v941 = vld [vmem:[%s1 + $0x1c40] sm:$0xff]
    %v942 = vld [vmem:[%s1 + $0x1c48] sm:$0xff]
    %v943 = vld [vmem:[%s1 + $0x1c50] sm:$0xff]
    %v944 = vld [vmem:[%s1 + $0x1c58] sm:$0xff]
    %v945 = vld [vmem:[%s1 + $0x1c60] sm:$0xff]
    %v946 = vld [vmem:[%s1 + $0x1c68] sm:$0xff]
    %v947 = vld [vmem:[%s1 + $0x1c70] sm:$0xff]
    %v948 = vld [vmem:[%s1 + $0x1c78] sm:$0xff]
    %v949 = vld [vmem:[%s1 + $0x1c80] sm:$0xff]
    %v950 = vld [vmem:[%s1 + $0x1c88] sm:$0xff]
    %v951 = vld [vmem:[%s1 + $0x1c90] sm:$0xff]
    %v952 = vld [vmem:[%s1 + $0x1c98] sm:$0xff]
    %v953 = vld [vmem:[%s1 + $0x1ca0] sm:$0xff]
    %v954 = vld [vmem:[%s1 + $0x1ca8] sm:$0xff]
    %v955 = vld [vmem:[%s1 + $0x1cb0] sm:$0xff]
    %v956 = vld [vmem:[%s1 + $0x1cb8] sm:$0xff]
    %v957 = vld [vmem:[%s1 + $0x1cc0] sm:$0xff]
    %v958 = vld [vmem:[%s1 + $0x1cc8] sm:$0xff]
    %v959 = vld [vmem:[%s1 + $0x1cd0] sm:$0xff]
    %v960 = vld [vmem:[%s1 + $0x1cd8] sm:$0xff]
    %v961 = vld [vmem:[%s1 + $0x1ce0] sm:$0xff]
    %v962 = vld [vmem:[%s1 + $0x1ce8] sm:$0xff]
    %v963 = vld [vmem:[%s1 + $0x1cf0] sm:$0xff]
    %v964 = vld [vmem:[%s1 + $0x1cf8] sm:$0xff]
    %v965 = vld [vmem:[%s1 + $0x1d00] sm:$0xff]
    %v966 = vld [vmem:[%s1 + $0x1d08] sm:$0xff]
    %v967 = vld [vmem:[%s1 + $0x1d10] sm:$0xff]
    %v968 = vld [vmem:[%s1 + $0x1d18] sm:$0xff]
    %v969 = vld [vmem:[%s1 + $0x1d20] sm:$0xff]
    %v970 = vld [vmem:[%s1 + $0x1d28] sm:$0xff]
    %v971 = vld [vmem:[%s1 + $0x1d30] sm:$0xff]
    %v972 = vld [vmem:[%s1 + $0x1d38] sm:$0xff]
    %v973 = vld [vmem:[%s1 + $0x1d40] sm:$0xff]
    %v974 = vld [vmem:[%s1 + $0x1d48] sm:$0xff]
    %v975 = vld [vmem:[%s1 + $0x1d50] sm:$0xff]
    %v976 = vld [vmem:[%s1 + $0x1d58] sm:$0xff]
    %v977 = vld [vmem:[%s1 + $0x1d60] sm:$0xff]
    %v978 = vld [vmem:[%s1 + $0x1d68] sm:$0xff]
    %v979 = vld [vmem:[%s1 + $0x1d70] sm:$0xff]
    %v980 = vld [vmem:[%s1 + $0x1d78] sm:$0xff]
    %v981 = vld [vmem:[%s1 + $0x1d80] sm:$0xff]
    %v982 = vld [vmem:[%s1 + $0x1d88] sm:$0xff]
    %v983 = vld [vmem:[%s1 + $0x1d90] sm:$0xff]
    %v984 = vld [vmem:[%s1 + $0x1d98] sm:$0xff]
    %v985 = vld [vmem:[%s1 + $0x1da0] sm:$0xff]
    %v986 = vld [vmem:[%s1 + $0x1da8] sm:$0xff]
    %v987 = vld [vmem:[%s1 + $0x1db0] sm:$0xff]
    %v988 = vld [vmem:[%s1 + $0x1db8] sm:$0xff]
    %v989 = vld [vmem:[%s1 + $0x1dc0] sm:$0xff]
    %v990 = vld [vmem:[%s1 + $0x1dc8] sm:$0xff]
    %v991 = vld [vmem:[%s1 + $0x1dd0] sm:$0xff]
    %v992 = vld [vmem:[%s1 + $0x1dd8] sm:$0xff]
    %v993 = vld [vmem:[%s1 + $0x1de0] sm:$0xff]
    %v994 = vld [vmem:[%s1 + $0x1de8] sm:$0xff]
    %v995 = vld [vmem:[%s1 + $0x1df0] sm:$0xff]
    %v996 = vld [vmem:[%s1 + $0x1df8] sm:$0xff]
    %v997 = vld [vmem:[%s1 + $0x1e00] sm:$0xff]
    %v998 = vld [vmem:[%s1 + $0x1e08] sm:$0xff]
    %v999 = vld [vmem:[%s1 + $0x1e10] sm:$0xff]
    %v1000 = vld [vmem:[%s1 + $0x1e18] sm:$0xff]
    %v1001 = vld [vmem:[%s1 + $0x1e20] sm:$0xff]
    %v1002 = vld [vmem:[%s1 + $0x1e28] sm:$0xff]
    %v1003 = vld [vmem:[%s1 + $0x1e30] sm:$0xff]
    %v1004 = vld [vmem:[%s1 + $0x1e38] sm:$0xff]
    %v1005 = vld [vmem:[%s1 + $0x1e40] sm:$0xff]
    %v1006 = vld [vmem:[%s1 + $0x1e48] sm:$0xff]
    %v1007 = vld [vmem:[%s1 + $0x1e50] sm:$0xff]
    %v1008 = vld [vmem:[%s1 + $0x1e58] sm:$0xff]
    %v1009 = vld [vmem:[%s1 + $0x1e60] sm:$0xff]
    %v1010 = vld [vmem:[%s1 + $0x1e68] sm:$0xff]
    %v1011 = vld [vmem:[%s1 + $0x1e70] sm:$0xff]
    %v1012 = vld [vmem:[%s1 + $0x1e78] sm:$0xff]
    %v1013 = vld [vmem:[%s1 + $0x1e80] sm:$0xff]
    %v1014 = vld [vmem:[%s1 + $0x1e88] sm:$0xff]
    %v1015 = vld [vmem:[%s1 + $0x1e90] sm:$0xff]
    %v1016 = vld [vmem:[%s1 + $0x1e98] sm:$0xff]
    %v1017 = vld [vmem:[%s1 + $0x1ea0] sm:$0xff]
    %v1018 = vld [vmem:[%s1 + $0x1ea8] sm:$0xff]
    %v1019 = vld [vmem:[%s1 + $0x1eb0] sm:$0xff]
    %v1020 = vld [vmem:[%s1 + $0x1eb8] sm:$0xff]
    %v1021 = vld [vmem:[%s1 + $0x1ec0] sm:$0xff]
    %v1022 = vld [vmem:[%s1 + $0x1ec8] sm:$0xff]
    %v1023 = vld [vmem:[%s1 + $0x1ed0] sm:$0xff]
    %v1024 = vld [vmem:[%s1 + $0x1ed8] sm:$0xff]
    %v1025 = vld [vmem:[%s1 + $0x1ee0] sm:$0xff]
    %v1026 = vld [vmem:[%s1 + $0x1ee8] sm:$0xff]
    %v1027 = vld [vmem:[%s1 + $0x1ef0] sm:$0xff]
    %v1028 = vld [vmem:[%s1 + $0x1ef8] sm:$0xff]
    %v1029 = vld [vmem:[%s1 + $0x1f00] sm:$0xff]
    %v1030 = vld [vmem:[%s1 + $0x1f08] sm:$0xff]
    %v1031 = vld [vmem:[%s1 + $0x1f10] sm:$0xff]
    %v1032 = vld [vmem:[%s1 + $0x1f18] sm:$0xff]
    %v1033 = vld [vmem:[%s1 + $0x1f20] sm:$0xff]
    %v1034 = vld [vmem:[%s1 + $0x1f28] sm:$0xff]
    %v1035 = vld [vmem:[%s1 + $0x1f30] sm:$0xff]
    %v1036 = vld [vmem:[%s1 + $0x1f38] sm:$0xff]
    %v1037 = vld [vmem:[%s1 + $0x1f40] sm:$0xff]
    %v1038 = vld [vmem:[%s1 + $0x1f48] sm:$0xff]
    %v1039 = vld [vmem:[%s1 + $0x1f50] sm:$0xff]
    %v1040 = vld [vmem:[%s1 + $0x1f58] sm:$0xff]
    %v1041 = vld [vmem:[%s1 + $0x1f60] sm:$0xff]
    %v1042 = vld [vmem:[%s1 + $0x1f68] sm:$0xff]
    %v1043 = vld [vmem:[%s1 + $0x1f70] sm:$0xff]
    %v1044 = vld [vmem:[%s1 + $0x1f78] sm:$0xff]
    %v1045 = vld [vmem:[%s1 + $0x1f80] sm:$0xff]
    %v1046 = vld [vmem:[%s1 + $0x1f88] sm:$0xff]
    %v1047 = vld [vmem:[%s1 + $0x1f90] sm:$0xff]
    %v1048 = vld [vmem:[%s1 + $0x1f98] sm:$0xff]
    %v1049 = vld [vmem:[%s1 + $0x1fa0] sm:$0xff]
    %v1050 = vld [vmem:[%s1 + $0x1fa8] sm:$0xff]
    %v1051 = vld [vmem:[%s1 + $0x1fb0] sm:$0xff]
    %v1052 = vld [vmem:[%s1 + $0x1fb8] sm:$0xff]
    %v1053 = vld [vmem:[%s1 + $0x1fc0] sm:$0xff]
    %v1054 = vld [vmem:[%s1 + $0x1fc8] sm:$0xff]
    %v1055 = vld [vmem:[%s1 + $0x1fd0] sm:$0xff]
    %v1056 = vld [vmem:[%s1 + $0x1fd8] sm:$0xff]
    %v1057 = vld [vmem:[%s1 + $0x1fe0] sm:$0xff]
    %v1058 = vld [vmem:[%s1 + $0x1fe8] sm:$0xff]
    %v1059 = vld [vmem:[%s1 + $0x1ff0] sm:$0xff]
    %v1060 = vld [vmem:[%s1 + $0x1ff8] sm:$0xff]
    %v1061 = vld [vmem:[%s2] sm:$0x1]
    %v1063 = vlaneseq
    %v1064 = vshrl.u32 %v1063, 7
    %v1065 = vsub.s32 0, %v1064
    %v1066 = vrot.slane %v1061, %v1065
    %v1084 = vcombine.high %v21, %v21
    %v1086 = vunpack.c.l.s4 1983009808
    %v1087 = vunpack.c.0.s8 %v1086
    %v1088 = vlaneseq
    %v1089 = vshrl.u32 %v1088, 7
    %v1090 = vsub.s32 %v1087, %v1089
    %v1091 = vrot.slane %v21, %v1090
    %v1093 = vunpack.c.l.s4 1983009808
    %v1094 = vunpack.c.0.s8 %v1093
    %v1095 = vlaneseq
    %v1096 = vshrl.u32 %v1095, 7
    %v1097 = vsub.s32 %v1094, %v1096
    %v1098 = vrot.slane %v1084, %v1097
    %v1099 = vcombine.high %v1091, %v1091
    %v1100 = vcombine.high %v1098, %v1098
    %v1101 = vcombine.high %v22, %v22
    %v1103 = vunpack.c.l.s4 1983009808
    %v1104 = vunpack.c.0.s8 %v1103
    %v1105 = vlaneseq
    %v1106 = vshrl.u32 %v1105, 7
    %v1107 = vsub.s32 %v1104, %v1106
    %v1108 = vrot.slane %v22, %v1107
    %v1110 = vunpack.c.l.s4 1983009808
    %v1111 = vunpack.c.0.s8 %v1110
    %v1112 = vlaneseq
    %v1113 = vshrl.u32 %v1112, 7
    %v1114 = vsub.s32 %v1111, %v1113
    %v1115 = vrot.slane %v1101, %v1114
    %v1116 = vcombine.high %v1108, %v1108
    %v1117 = vcombine.high %v1115, %v1115
    %v1118 = vcombine.high %v23, %v23
    %v1120 = vunpack.c.l.s4 1983009808
    %v1121 = vunpack.c.0.s8 %v1120
    %v1122 = vlaneseq
    %v1123 = vshrl.u32 %v1122, 7
    %v1124 = vsub.s32 %v1121, %v1123
    %v1125 = vrot.slane %v23, %v1124
    %v1127 = vunpack.c.l.s4 1983009808
    %v1128 = vunpack.c.0.s8 %v1127
    %v1129 = vlaneseq
    %v1130 = vshrl.u32 %v1129, 7
    %v1131 = vsub.s32 %v1128, %v1130
    %v1132 = vrot.slane %v1118, %v1131
    %v1133 = vcombine.high %v1125, %v1125
    %v1134 = vcombine.high %v1132, %v1132
    %v1135 = vcombine.high %v24, %v24
    %v1137 = vunpack.c.l.s4 1983009808
    %v1138 = vunpack.c.0.s8 %v1137
    %v1139 = vlaneseq
    %v1140 = vshrl.u32 %v1139, 7
    %v1141 = vsub.s32 %v1138, %v1140
    %v1142 = vrot.slane %v24, %v1141
    %v1144 = vunpack.c.l.s4 1983009808
    %v1145 = vunpack.c.0.s8 %v1144
    %v1146 = vlaneseq
    %v1147 = vshrl.u32 %v1146, 7
    %v1148 = vsub.s32 %v1145, %v1147
    %v1149 = vrot.slane %v1135, %v1148
    %v1150 = vcombine.high %v1142, %v1142
    %v1151 = vcombine.high %v1149, %v1149
    %v1152 = vcombine.high %v25, %v25
    %v1154 = vunpack.c.l.s4 1983009808
    %v1155 = vunpack.c.0.s8 %v1154
    %v1156 = vlaneseq
    %v1157 = vshrl.u32 %v1156, 7
    %v1158 = vsub.s32 %v1155, %v1157
    %v1159 = vrot.slane %v25, %v1158
    %v1161 = vunpack.c.l.s4 1983009808
    %v1162 = vunpack.c.0.s8 %v1161
    %v1163 = vlaneseq
    %v1164 = vshrl.u32 %v1163, 7
    %v1165 = vsub.s32 %v1162, %v1164
    %v1166 = vrot.slane %v1152, %v1165
    %v1167 = vcombine.high %v1159, %v1159
    %v1168 = vcombine.high %v1166, %v1166
    %v1169 = vcombine.high %v26, %v26
    %v1171 = vunpack.c.l.s4 1983009808
    %v1172 = vunpack.c.0.s8 %v1171
    %v1173 = vlaneseq
    %v1174 = vshrl.u32 %v1173, 7
    %v1175 = vsub.s32 %v1172, %v1174
    %v1176 = vrot.slane %v26, %v1175
    %v1178 = vunpack.c.l.s4 1983009808
    %v1179 = vunpack.c.0.s8 %v1178
    %v1180 = vlaneseq
    %v1181 = vshrl.u32 %v1180, 7
    %v1182 = vsub.s32 %v1179, %v1181
    %v1183 = vrot.slane %v1169, %v1182
    %v1184 = vcombine.high %v1176, %v1176
    %v1185 = vcombine.high %v1183, %v1183
    %v1186 = vcombine.high %v27, %v27
    %v1188 = vunpack.c.l.s4 1983009808
    %v1189 = vunpack.c.0.s8 %v1188
    %v1190 = vlaneseq
    %v1191 = vshrl.u32 %v1190, 7
    %v1192 = vsub.s32 %v1189, %v1191
    %v1193 = vrot.slane %v27, %v1192
    %v1195 = vunpack.c.l.s4 1983009808
    %v1196 = vunpack.c.0.s8 %v1195
    %v1197 = vlaneseq
    %v1198 = vshrl.u32 %v1197, 7
    %v1199 = vsub.s32 %v1196, %v1198
    %v1200 = vrot.slane %v1186, %v1199
    %v1201 = vcombine.high %v1193, %v1193
    %v1202 = vcombine.high %v1200, %v1200
    %v1203 = vcombine.high %v28, %v28
    %v1205 = vunpack.c.l.s4 1983009808
    %v1206 = vunpack.c.0.s8 %v1205
    %v1207 = vlaneseq
    %v1208 = vshrl.u32 %v1207, 7
    %v1209 = vsub.s32 %v1206, %v1208
    %v1210 = vrot.slane %v28, %v1209
    %v1212 = vunpack.c.l.s4 1983009808
    %v1213 = vunpack.c.0.s8 %v1212
    %v1214 = vlaneseq
    %v1215 = vshrl.u32 %v1214, 7
    %v1216 = vsub.s32 %v1213, %v1215
    %v1217 = vrot.slane %v1203, %v1216
    %v1218 = vcombine.high %v1210, %v1210
    %v1219 = vcombine.high %v1217, %v1217
    %v1220 = vcombine.high %v29, %v29
    %v1222 = vunpack.c.l.s4 1983009808
    %v1223 = vunpack.c.0.s8 %v1222
    %v1224 = vlaneseq
    %v1225 = vshrl.u32 %v1224, 7
    %v1226 = vsub.s32 %v1223, %v1225
    %v1227 = vrot.slane %v29, %v1226
    %v1229 = vunpack.c.l.s4 1983009808
    %v1230 = vunpack.c.0.s8 %v1229
    %v1231 = vlaneseq
    %v1232 = vshrl.u32 %v1231, 7
    %v1233 = vsub.s32 %v1230, %v1232
    %v1234 = vrot.slane %v1220, %v1233
    %v1235 = vcombine.high %v1227, %v1227
    %v1236 = vcombine.high %v1234, %v1234
    %v1237 = vcombine.high %v30, %v30
    %v1239 = vunpack.c.l.s4 1983009808
    %v1240 = vunpack.c.0.s8 %v1239
    %v1241 = vlaneseq
    %v1242 = vshrl.u32 %v1241, 7
    %v1243 = vsub.s32 %v1240, %v1242
    %v1244 = vrot.slane %v30, %v1243
    %v1246 = vunpack.c.l.s4 1983009808
    %v1247 = vunpack.c.0.s8 %v1246
    %v1248 = vlaneseq
    %v1249 = vshrl.u32 %v1248, 7
    %v1250 = vsub.s32 %v1247, %v1249
    %v1251 = vrot.slane %v1237, %v1250
    %v1252 = vcombine.high %v1244, %v1244
    %v1253 = vcombine.high %v1251, %v1251
    %v1254 = vcombine.high %v31, %v31
    %v1256 = vunpack.c.l.s4 1983009808
    %v1257 = vunpack.c.0.s8 %v1256
    %v1258 = vlaneseq
    %v1259 = vshrl.u32 %v1258, 7
    %v1260 = vsub.s32 %v1257, %v1259
    %v1261 = vrot.slane %v31, %v1260
    %v1263 = vunpack.c.l.s4 1983009808
    %v1264 = vunpack.c.0.s8 %v1263
    %v1265 = vlaneseq
    %v1266 = vshrl.u32 %v1265, 7
    %v1267 = vsub.s32 %v1264, %v1266
    %v1268 = vrot.slane %v1254, %v1267
    %v1269 = vcombine.high %v1261, %v1261
    %v1270 = vcombine.high %v1268, %v1268
    %v1271 = vcombine.high %v32, %v32
    %v1273 = vunpack.c.l.s4 1983009808
    %v1274 = vunpack.c.0.s8 %v1273
    %v1275 = vlaneseq
    %v1276 = vshrl.u32 %v1275, 7
    %v1277 = vsub.s32 %v1274, %v1276
    %v1278 = vrot.slane %v32, %v1277
    %v1280 = vunpack.c.l.s4 1983009808
    %v1281 = vunpack.c.0.s8 %v1280
    %v1282 = vlaneseq
    %v1283 = vshrl.u32 %v1282, 7
    %v1284 = vsub.s32 %v1281, %v1283
    %v1285 = vrot.slane %v1271, %v1284
    %v1286 = vcombine.high %v1278, %v1278
    %v1287 = vcombine.high %v1285, %v1285
    %v1288 = vcombine.high %v33, %v33
    %v1290 = vunpack.c.l.s4 1983009808
    %v1291 = vunpack.c.0.s8 %v1290
    %v1292 = vlaneseq
    %v1293 = vshrl.u32 %v1292, 7
    %v1294 = vsub.s32 %v1291, %v1293
    %v1295 = vrot.slane %v33, %v1294
    %v1297 = vunpack.c.l.s4 1983009808
    %v1298 = vunpack.c.0.s8 %v1297
    %v1299 = vlaneseq
    %v1300 = vshrl.u32 %v1299, 7
    %v1301 = vsub.s32 %v1298, %v1300
    %v1302 = vrot.slane %v1288, %v1301
    %v1303 = vcombine.high %v1295, %v1295
    %v1304 = vcombine.high %v1302, %v1302
    %v1305 = vcombine.high %v34, %v34
    %v1307 = vunpack.c.l.s4 1983009808
    %v1308 = vunpack.c.0.s8 %v1307
    %v1309 = vlaneseq
    %v1310 = vshrl.u32 %v1309, 7
    %v1311 = vsub.s32 %v1308, %v1310
    %v1312 = vrot.slane %v34, %v1311
    %v1314 = vunpack.c.l.s4 1983009808
    %v1315 = vunpack.c.0.s8 %v1314
    %v1316 = vlaneseq
    %v1317 = vshrl.u32 %v1316, 7
    %v1318 = vsub.s32 %v1315, %v1317
    %v1319 = vrot.slane %v1305, %v1318
    %v1320 = vcombine.high %v1312, %v1312
    %v1321 = vcombine.high %v1319, %v1319
    %v1322 = vcombine.high %v35, %v35
    %v1324 = vunpack.c.l.s4 1983009808
    %v1325 = vunpack.c.0.s8 %v1324
    %v1326 = vlaneseq
    %v1327 = vshrl.u32 %v1326, 7
    %v1328 = vsub.s32 %v1325, %v1327
    %v1329 = vrot.slane %v35, %v1328
    %v1331 = vunpack.c.l.s4 1983009808
    %v1332 = vunpack.c.0.s8 %v1331
    %v1333 = vlaneseq
    %v1334 = vshrl.u32 %v1333, 7
    %v1335 = vsub.s32 %v1332, %v1334
    %v1336 = vrot.slane %v1322, %v1335
    %v1337 = vcombine.high %v1329, %v1329
    %v1338 = vcombine.high %v1336, %v1336
    %v1339 = vcombine.high %v36, %v36
    %v1341 = vunpack.c.l.s4 1983009808
    %v1342 = vunpack.c.0.s8 %v1341
    %v1343 = vlaneseq
    %v1344 = vshrl.u32 %v1343, 7
    %v1345 = vsub.s32 %v1342, %v1344
    %v1346 = vrot.slane %v36, %v1345
    %v1348 = vunpack.c.l.s4 1983009808
    %v1349 = vunpack.c.0.s8 %v1348
    %v1350 = vlaneseq
    %v1351 = vshrl.u32 %v1350, 7
    %v1352 = vsub.s32 %v1349, %v1351
    %v1353 = vrot.slane %v1339, %v1352
    %v1354 = vcombine.high %v1346, %v1346
    %v1355 = vcombine.high %v1353, %v1353
    %1420 = vmatprep.subr.mxu0 0.0
    %1421 = vmatpush1.msra.mxu0 %v37
    %1422 = vmatprep.subr.mxu0 0.0
    %1423 = vmatpush1.msra.mxu0 %v38
    %1424 = vmatprep.subr.mxu0 0.0
    %1425 = vmatpush1.msra.mxu0 %v39
    %1426 = vmatprep.subr.mxu0 0.0
    %1427 = vmatpush1.msra.mxu0 %v40
    %1428 = vmatprep.subr.mxu0 0.0
    %1429 = vmatpush1.msra.mxu0 %v41
    %1430 = vmatprep.subr.mxu0 0.0
    %1431 = vmatpush1.msra.mxu0 %v42
    %1432 = vmatprep.subr.mxu0 0.0
    %1433 = vmatpush1.msra.mxu0 %v43
    %1434 = vmatprep.subr.mxu0 0.0
    %1435 = vmatpush1.msra.mxu0 %v44
    %1436 = vmatprep.subr.mxu0 0.0
    %1437 = vmatpush1.msra.mxu0 %v45
    %1438 = vmatprep.subr.mxu0 0.0
    %1439 = vmatpush1.msra.mxu0 %v46
    %1440 = vmatprep.subr.mxu0 0.0
    %1441 = vmatpush1.msra.mxu0 %v47
    %1442 = vmatprep.subr.mxu0 0.0
    %1443 = vmatpush1.msra.mxu0 %v48
    %1444 = vmatprep.subr.mxu0 0.0
    %1445 = vmatpush1.msra.mxu0 %v49
    %1446 = vmatprep.subr.mxu0 0.0
    %1447 = vmatpush1.msra.mxu0 %v50
    %1448 = vmatprep.subr.mxu0 0.0
    %1449 = vmatpush1.msra.mxu0 %v51
    %1450 = vmatprep.subr.mxu0 0.0
    %1451 = vmatpush1.msra.mxu0 %v52
    %1452 = vmatprep.subr.mxu0 0.0
    %1453 = vmatpush1.msra.mxu0 %v53
    %1454 = vmatprep.subr.mxu0 0.0
    %1455 = vmatpush1.msra.mxu0 %v54
    %1456 = vmatprep.subr.mxu0 0.0
    %1457 = vmatpush1.msra.mxu0 %v55
    %1458 = vmatprep.subr.mxu0 0.0
    %1459 = vmatpush1.msra.mxu0 %v56
    %1460 = vmatprep.subr.mxu0 0.0
    %1461 = vmatpush1.msra.mxu0 %v57
    %1462 = vmatprep.subr.mxu0 0.0
    %1463 = vmatpush1.msra.mxu0 %v58
    %1464 = vmatprep.subr.mxu0 0.0
    %1465 = vmatpush1.msra.mxu0 %v59
    %1466 = vmatprep.subr.mxu0 0.0
    %1467 = vmatpush1.msra.mxu0 %v60
    %1468 = vmatprep.subr.mxu0 0.0
    %1469 = vmatpush1.msra.mxu0 %v61
    %1470 = vmatprep.subr.mxu0 0.0
    %1471 = vmatpush1.msra.mxu0 %v62
    %1472 = vmatprep.subr.mxu0 0.0
    %1473 = vmatpush1.msra.mxu0 %v63
    %1474 = vmatprep.subr.mxu0 0.0
    %1475 = vmatpush1.msra.mxu0 %v64
    %1476 = vmatprep.subr.mxu0 0.0
    %1477 = vmatpush1.msra.mxu0 %v65
    %1478 = vmatprep.subr.mxu0 0.0
    %1479 = vmatpush1.msra.mxu0 %v66
    %1480 = vmatprep.subr.mxu0 0.0
    %1481 = vmatpush1.msra.mxu0 %v67
    %1482 = vmatprep.subr.mxu0 0.0
    %1483 = vmatpush1.msra.mxu0 %v68
    %1484 = vmatprep.mubr.f32.mxu0 %v1099
    %1485 = vmatmul.mubr.f32.gmra.mrb[0].mxu0 %v1091
    %v1486 = vpop.f32.mrb[0].mxu0
    %v1487 = vadd.f32 %v1066, %v1486
    %v1488 = vpop.f32.mrb[0].mxu0
    %1489 = vdwg.mxu0
    %1490 = vmatprep.subr.mxu0 0.0
    %1491 = vmatpush1.msra.mxu0 %v69
    %1492 = vmatprep.subr.mxu0 0.0
    %1493 = vmatpush1.msra.mxu0 %v70
    %1494 = vmatprep.subr.mxu0 0.0
    %1495 = vmatpush1.msra.mxu0 %v71
    %1496 = vmatprep.subr.mxu0 0.0
    %1497 = vmatpush1.msra.mxu0 %v72
    %1498 = vmatprep.subr.mxu0 0.0
    %1499 = vmatpush1.msra.mxu0 %v73
    %1500 = vmatprep.subr.mxu0 0.0
    %1501 = vmatpush1.msra.mxu0 %v74
    %1502 = vmatprep.subr.mxu0 0.0
    %1503 = vmatpush1.msra.mxu0 %v75
    %1504 = vmatprep.subr.mxu0 0.0
    %1505 = vmatpush1.msra.mxu0 %v76
    %1506 = vmatprep.subr.mxu0 0.0
    %1507 = vmatpush1.msra.mxu0 %v77
    %1508 = vmatprep.subr.mxu0 0.0
    %1509 = vmatpush1.msra.mxu0 %v78
    %1510 = vmatprep.subr.mxu0 0.0
    %1511 = vmatpush1.msra.mxu0 %v79
    %1512 = vmatprep.subr.mxu0 0.0
    %1513 = vmatpush1.msra.mxu0 %v80
    %1514 = vmatprep.subr.mxu0 0.0
    %1515 = vmatpush1.msra.mxu0 %v81
    %1516 = vmatprep.subr.mxu0 0.0
    %1517 = vmatpush1.msra.mxu0 %v82
    %1518 = vmatprep.subr.mxu0 0.0
    %1519 = vmatpush1.msra.mxu0 %v83
    %1520 = vmatprep.subr.mxu0 0.0
    %1521 = vmatpush1.msra.mxu0 %v84
    %1522 = vmatprep.subr.mxu0 0.0
    %1523 = vmatpush1.msra.mxu0 %v85
    %1524 = vmatprep.subr.mxu0 0.0
    %1525 = vmatpush1.msra.mxu0 %v86
    %1526 = vmatprep.subr.mxu0 0.0
    %1527 = vmatpush1.msra.mxu0 %v87
    %1528 = vmatprep.subr.mxu0 0.0
    %1529 = vmatpush1.msra.mxu0 %v88
    %1530 = vmatprep.subr.mxu0 0.0
    %1531 = vmatpush1.msra.mxu0 %v89
    %1532 = vmatprep.subr.mxu0 0.0
    %1533 = vmatpush1.msra.mxu0 %v90
    %1534 = vmatprep.subr.mxu0 0.0
    %1535 = vmatpush1.msra.mxu0 %v91
    %1536 = vmatprep.subr.mxu0 0.0
    %1537 = vmatpush1.msra.mxu0 %v92
    %1538 = vmatprep.subr.mxu0 0.0
    %1539 = vmatpush1.msra.mxu0 %v93
    %1540 = vmatprep.subr.mxu0 0.0
    %1541 = vmatpush1.msra.mxu0 %v94
    %1542 = vmatprep.subr.mxu0 0.0
    %1543 = vmatpush1.msra.mxu0 %v95
    %1544 = vmatprep.subr.mxu0 0.0
    %1545 = vmatpush1.msra.mxu0 %v96
    %1546 = vmatprep.subr.mxu0 0.0
    %1547 = vmatpush1.msra.mxu0 %v97
    %1548 = vmatprep.subr.mxu0 0.0
    %1549 = vmatpush1.msra.mxu0 %v98
    %1550 = vmatprep.subr.mxu0 0.0
    %1551 = vmatpush1.msra.mxu0 %v99
    %1552 = vmatprep.subr.mxu0 0.0
    %1553 = vmatpush1.msra.mxu0 %v100
    %1554 = vmatprep.mubr.f32.mxu0 %v1100
    %1555 = vmatmul.mubr.f32.gmra.mrb[0].mxu0 %v1098
    %v1556 = vpop.f32.mrb[0].mxu0
    %v1557 = vadd.f32 %v1487, %v1556
    %v1558 = vpop.f32.mrb[0].mxu0
    %1559 = vdwg.mxu0
    %1560 = vmatprep.subr.mxu0 0.0
    %1561 = vmatpush1.msra.mxu0 %v101
    %1562 = vmatprep.subr.mxu0 0.0
    %1563 = vmatpush1.msra.mxu0 %v102
    %1564 = vmatprep.subr.mxu0 0.0
    %1565 = vmatpush1.msra.mxu0 %v103
    %1566 = vmatprep.subr.mxu0 0.0
    %1567 = vmatpush1.msra.mxu0 %v104
    %1568 = vmatprep.subr.mxu0 0.0
    %1569 = vmatpush1.msra.mxu0 %v105
    %1570 = vmatprep.subr.mxu0 0.0
    %1571 = vmatpush1.msra.mxu0 %v106
    %1572 = vmatprep.subr.mxu0 0.0
    %1573 = vmatpush1.msra.mxu0 %v107
    %1574 = vmatprep.subr.mxu0 0.0
    %1575 = vmatpush1.msra.mxu0 %v108
    %1576 = vmatprep.subr.mxu0 0.0
    %1577 = vmatpush1.msra.mxu0 %v109
    %1578 = vmatprep.subr.mxu0 0.0
    %1579 = vmatpush1.msra.mxu0 %v110
    %1580 = vmatprep.subr.mxu0 0.0
    %1581 = vmatpush1.msra.mxu0 %v111
    %1582 = vmatprep.subr.mxu0 0.0
    %1583 = vmatpush1.msra.mxu0 %v112
    %1584 = vmatprep.subr.mxu0 0.0
    %1585 = vmatpush1.msra.mxu0 %v113
    %1586 = vmatprep.subr.mxu0 0.0
    %1587 = vmatpush1.msra.mxu0 %v114
    %1588 = vmatprep.subr.mxu0 0.0
    %1589 = vmatpush1.msra.mxu0 %v115
    %1590 = vmatprep.subr.mxu0 0.0
    %1591 = vmatpush1.msra.mxu0 %v116
    %1592 = vmatprep.subr.mxu0 0.0
    %1593 = vmatpush1.msra.mxu0 %v117
    %1594 = vmatprep.subr.mxu0 0.0
    %1595 = vmatpush1.msra.mxu0 %v118
    %1596 = vmatprep.subr.mxu0 0.0
    %1597 = vmatpush1.msra.mxu0 %v119
    %1598 = vmatprep.subr.mxu0 0.0
    %1599 = vmatpush1.msra.mxu0 %v120
    %1600 = vmatprep.subr.mxu0 0.0
    %1601 = vmatpush1.msra.mxu0 %v121
    %1602 = vmatprep.subr.mxu0 0.0
    %1603 = vmatpush1.msra.mxu0 %v122
    %1604 = vmatprep.subr.mxu0 0.0
    %1605 = vmatpush1.msra.mxu0 %v123
    %1606 = vmatprep.subr.mxu0 0.0
    %1607 = vmatpush1.msra.mxu0 %v124
    %1608 = vmatprep.subr.mxu0 0.0
    %1609 = vmatpush1.msra.mxu0 %v125
    %1610 = vmatprep.subr.mxu0 0.0
    %1611 = vmatpush1.msra.mxu0 %v126
    %1612 = vmatprep.subr.mxu0 0.0
    %1613 = vmatpush1.msra.mxu0 %v127
    %1614 = vmatprep.subr.mxu0 0.0
    %1615 = vmatpush1.msra.mxu0 %v128
    %1616 = vmatprep.subr.mxu0 0.0
    %1617 = vmatpush1.msra.mxu0 %v129
    %1618 = vmatprep.subr.mxu0 0.0
    %1619 = vmatpush1.msra.mxu0 %v130
    %1620 = vmatprep.subr.mxu0 0.0
    %1621 = vmatpush1.msra.mxu0 %v131
    %1622 = vmatprep.subr.mxu0 0.0
    %1623 = vmatpush1.msra.mxu0 %v132
    %1624 = vmatprep.mubr.f32.mxu0 %v1116
    %1625 = vmatmul.mubr.f32.gmra.mrb[0].mxu0 %v1108
    %v1626 = vpop.f32.mrb[0].mxu0
    %v1627 = vadd.f32 %v1557, %v1626
    %v1628 = vpop.f32.mrb[0].mxu0
    %1629 = vdwg.mxu0
    %1630 = vmatprep.subr.mxu0 0.0
    %1631 = vmatpush1.msra.mxu0 %v133
    %1632 = vmatprep.subr.mxu0 0.0
    %1633 = vmatpush1.msra.mxu0 %v134
    %1634 = vmatprep.subr.mxu0 0.0
    %1635 = vmatpush1.msra.mxu0 %v135
    %1636 = vmatprep.subr.mxu0 0.0
    %1637 = vmatpush1.msra.mxu0 %v136
    %1638 = vmatprep.subr.mxu0 0.0
    %1639 = vmatpush1.msra.mxu0 %v137
    %1640 = vmatprep.subr.mxu0 0.0
    %1641 = vmatpush1.msra.mxu0 %v138
    %1642 = vmatprep.subr.mxu0 0.0
    %1643 = vmatpush1.msra.mxu0 %v139
    %1644 = vmatprep.subr.mxu0 0.0
    %1645 = vmatpush1.msra.mxu0 %v140
    %1646 = vmatprep.subr.mxu0 0.0
    %1647 = vmatpush1.msra.mxu0 %v141
    %1648 = vmatprep.subr.mxu0 0.0
    %1649 = vmatpush1.msra.mxu0 %v142
    %1650 = vmatprep.subr.mxu0 0.0
    %1651 = vmatpush1.msra.mxu0 %v143
    %1652 = vmatprep.subr.mxu0 0.0
    %1653 = vmatpush1.msra.mxu0 %v144
    %1654 = vmatprep.subr.mxu0 0.0
    %1655 = vmatpush1.msra.mxu0 %v145
    %1656 = vmatprep.subr.mxu0 0.0
    %1657 = vmatpush1.msra.mxu0 %v146
    %1658 = vmatprep.subr.mxu0 0.0
    %1659 = vmatpush1.msra.mxu0 %v147
    %1660 = vmatprep.subr.mxu0 0.0
    %1661 = vmatpush1.msra.mxu0 %v148
    %1662 = vmatprep.subr.mxu0 0.0
    %1663 = vmatpush1.msra.mxu0 %v149
    %1664 = vmatprep.subr.mxu0 0.0
    %1665 = vmatpush1.msra.mxu0 %v150
    %1666 = vmatprep.subr.mxu0 0.0
    %1667 = vmatpush1.msra.mxu0 %v151
    %1668 = vmatprep.subr.mxu0 0.0
    %1669 = vmatpush1.msra.mxu0 %v152
    %1670 = vmatprep.subr.mxu0 0.0
    %1671 = vmatpush1.msra.mxu0 %v153
    %1672 = vmatprep.subr.mxu0 0.0
    %1673 = vmatpush1.msra.mxu0 %v154
    %1674 = vmatprep.subr.mxu0 0.0
    %1675 = vmatpush1.msra.mxu0 %v155
    %1676 = vmatprep.subr.mxu0 0.0
    %1677 = vmatpush1.msra.mxu0 %v156
    %1678 = vmatprep.subr.mxu0 0.0
    %1679 = vmatpush1.msra.mxu0 %v157
    %1680 = vmatprep.subr.mxu0 0.0
    %1681 = vmatpush1.msra.mxu0 %v158
    %1682 = vmatprep.subr.mxu0 0.0
    %1683 = vmatpush1.msra.mxu0 %v159
    %1684 = vmatprep.subr.mxu0 0.0
    %1685 = vmatpush1.msra.mxu0 %v160
    %1686 = vmatprep.subr.mxu0 0.0
    %1687 = vmatpush1.msra.mxu0 %v161
    %1688 = vmatprep.subr.mxu0 0.0
    %1689 = vmatpush1.msra.mxu0 %v162
    %1690 = vmatprep.subr.mxu0 0.0
    %1691 = vmatpush1.msra.mxu0 %v163
    %1692 = vmatprep.subr.mxu0 0.0
    %1693 = vmatpush1.msra.mxu0 %v164
    %1694 = vmatprep.mubr.f32.mxu0 %v1117
    %1695 = vmatmul.mubr.f32.gmra.mrb[0].mxu0 %v1115
    %v1696 = vpop.f32.mrb[0].mxu0
    %v1697 = vadd.f32 %v1627, %v1696
    %v1698 = vpop.f32.mrb[0].mxu0
    %1699 = vdwg.mxu0
    %1700 = vmatprep.subr.mxu0 0.0
    %1701 = vmatpush1.msra.mxu0 %v165
    %1702 = vmatprep.subr.mxu0 0.0
    %1703 = vmatpush1.msra.mxu0 %v166
    %1704 = vmatprep.subr.mxu0 0.0
    %1705 = vmatpush1.msra.mxu0 %v167
    %1706 = vmatprep.subr.mxu0 0.0
    %1707 = vmatpush1.msra.mxu0 %v168
    %1708 = vmatprep.subr.mxu0 0.0
    %1709 = vmatpush1.msra.mxu0 %v169
    %1710 = vmatprep.subr.mxu0 0.0
    %1711 = vmatpush1.msra.mxu0 %v170
    %1712 = vmatprep.subr.mxu0 0.0
    %1713 = vmatpush1.msra.mxu0 %v171
    %1714 = vmatprep.subr.mxu0 0.0
    %1715 = vmatpush1.msra.mxu0 %v172
    %1716 = vmatprep.subr.mxu0 0.0
    %1717 = vmatpush1.msra.mxu0 %v173
    %1718 = vmatprep.subr.mxu0 0.0
    %1719 = vmatpush1.msra.mxu0 %v174
    %1720 = vmatprep.subr.mxu0 0.0
    %1721 = vmatpush1.msra.mxu0 %v175
    %1722 = vmatprep.subr.mxu0 0.0
    %1723 = vmatpush1.msra.mxu0 %v176
    %1724 = vmatprep.subr.mxu0 0.0
    %1725 = vmatpush1.msra.mxu0 %v177
    %1726 = vmatprep.subr.mxu0 0.0
    %1727 = vmatpush1.msra.mxu0 %v178
    %1728 = vmatprep.subr.mxu0 0.0
    %1729 = vmatpush1.msra.mxu0 %v179
    %1730 = vmatprep.subr.mxu0 0.0
    %1731 = vmatpush1.msra.mxu0 %v180
    %1732 = vmatprep.subr.mxu0 0.0
    %1733 = vmatpush1.msra.mxu0 %v181
    %1734 = vmatprep.subr.mxu0 0.0
    %1735 = vmatpush1.msra.mxu0 %v182
    %1736 = vmatprep.subr.mxu0 0.0
    %1737 = vmatpush1.msra.mxu0 %v183
    %1738 = vmatprep.subr.mxu0 0.0
    %1739 = vmatpush1.msra.mxu0 %v184
    %1740 = vmatprep.subr.mxu0 0.0
    %1741 = vmatpush1.msra.mxu0 %v185
    %1742 = vmatprep.subr.mxu0 0.0
    %1743 = vmatpush1.msra.mxu0 %v186
    %1744 = vmatprep.subr.mxu0 0.0
    %1745 = vmatpush1.msra.mxu0 %v187
    %1746 = vmatprep.subr.mxu0 0.0
    %1747 = vmatpush1.msra.mxu0 %v188
    %1748 = vmatprep.subr.mxu0 0.0
    %1749 = vmatpush1.msra.mxu0 %v189
    %1750 = vmatprep.subr.mxu0 0.0
    %1751 = vmatpush1.msra.mxu0 %v190
    %1752 = vmatprep.subr.mxu0 0.0
    %1753 = vmatpush1.msra.mxu0 %v191
    %1754 = vmatprep.subr.mxu0 0.0
    %1755 = vmatpush1.msra.mxu0 %v192
    %1756 = vmatprep.subr.mxu0 0.0
    %1757 = vmatpush1.msra.mxu0 %v193
    %1758 = vmatprep.subr.mxu0 0.0
    %1759 = vmatpush1.msra.mxu0 %v194
    %1760 = vmatprep.subr.mxu0 0.0
    %1761 = vmatpush1.msra.mxu0 %v195
    %1762 = vmatprep.subr.mxu0 0.0
    %1763 = vmatpush1.msra.mxu0 %v196
    %1764 = vmatprep.mubr.f32.mxu0 %v1133
    %1765 = vmatmul.mubr.f32.gmra.mrb[0].mxu0 %v1125
    %v1766 = vpop.f32.mrb[0].mxu0
    %v1767 = vadd.f32 %v1697, %v1766
    %v1768 = vpop.f32.mrb[0].mxu0
    %1769 = vdwg.mxu0
    %1770 = vmatprep.subr.mxu0 0.0
    %1771 = vmatpush1.msra.mxu0 %v197
    %1772 = vmatprep.subr.mxu0 0.0
    %1773 = vmatpush1.msra.mxu0 %v198
    %1774 = vmatprep.subr.mxu0 0.0
    %1775 = vmatpush1.msra.mxu0 %v199
    %1776 = vmatprep.subr.mxu0 0.0
    %1777 = vmatpush1.msra.mxu0 %v200
    %1778 = vmatprep.subr.mxu0 0.0
    %1779 = vmatpush1.msra.mxu0 %v201
    %1780 = vmatprep.subr.mxu0 0.0
    %1781 = vmatpush1.msra.mxu0 %v202
    %1782 = vmatprep.subr.mxu0 0.0
    %1783 = vmatpush1.msra.mxu0 %v203
    %1784 = vmatprep.subr.mxu0 0.0
    %1785 = vmatpush1.msra.mxu0 %v204
    %1786 = vmatprep.subr.mxu0 0.0
    %1787 = vmatpush1.msra.mxu0 %v205
    %1788 = vmatprep.subr.mxu0 0.0
    %1789 = vmatpush1.msra.mxu0 %v206
    %1790 = vmatprep.subr.mxu0 0.0
    %1791 = vmatpush1.msra.mxu0 %v207
    %1792 = vmatprep.subr.mxu0 0.0
    %1793 = vmatpush1.msra.mxu0 %v208
    %1794 = vmatprep.subr.mxu0 0.0
    %1795 = vmatpush1.msra.mxu0 %v209
    %1796 = vmatprep.subr.mxu0 0.0
    %1797 = vmatpush1.msra.mxu0 %v210
    %1798 = vmatprep.subr.mxu0 0.0
    %1799 = vmatpush1.msra.mxu0 %v211
    %1800 = vmatprep.subr.mxu0 0.0
    %1801 = vmatpush1.msra.mxu0 %v212
    %1802 = vmatprep.subr.mxu0 0.0
    %1803 = vmatpush1.msra.mxu0 %v213
    %1804 = vmatprep.subr.mxu0 0.0
    %1805 = vmatpush1.msra.mxu0 %v214
    %1806 = vmatprep.subr.mxu0 0.0
    %1807 = vmatpush1.msra.mxu0 %v215
    %1808 = vmatprep.subr.mxu0 0.0
    %1809 = vmatpush1.msra.mxu0 %v216
    %1810 = vmatprep.subr.mxu0 0.0
    %1811 = vmatpush1.msra.mxu0 %v217
    %1812 = vmatprep.subr.mxu0 0.0
    %1813 = vmatpush1.msra.mxu0 %v218
    %1814 = vmatprep.subr.mxu0 0.0
    %1815 = vmatpush1.msra.mxu0 %v219
    %1816 = vmatprep.subr.mxu0 0.0
    %1817 = vmatpush1.msra.mxu0 %v220
    %1818 = vmatprep.subr.mxu0 0.0
    %1819 = vmatpush1.msra.mxu0 %v221
    %1820 = vmatprep.subr.mxu0 0.0
    %1821 = vmatpush1.msra.mxu0 %v222
    %1822 = vmatprep.subr.mxu0 0.0
    %1823 = vmatpush1.msra.mxu0 %v223
    %1824 = vmatprep.subr.mxu0 0.0
    %1825 = vmatpush1.msra.mxu0 %v224
    %1826 = vmatprep.subr.mxu0 0.0
    %1827 = vmatpush1.msra.mxu0 %v225
    %1828 = vmatprep.subr.mxu0 0.0
    %1829 = vmatpush1.msra.mxu0 %v226
    %1830 = vmatprep.subr.mxu0 0.0
    %1831 = vmatpush1.msra.mxu0 %v227
    %1832 = vmatprep.subr.mxu0 0.0
    %1833 = vmatpush1.msra.mxu0 %v228
    %1834 = vmatprep.mubr.f32.mxu0 %v1134
    %1835 = vmatmul.mubr.f32.gmra.mrb[0].mxu0 %v1132
    %v1836 = vpop.f32.mrb[0].mxu0
    %v1837 = vadd.f32 %v1767, %v1836
    %v1838 = vpop.f32.mrb[0].mxu0
    %1839 = vdwg.mxu0
    %1840 = vmatprep.subr.mxu0 0.0
    %1841 = vmatpush1.msra.mxu0 %v229
    %1842 = vmatprep.subr.mxu0 0.0
    %1843 = vmatpush1.msra.mxu0 %v230
    %1844 = vmatprep.subr.mxu0 0.0
    %1845 = vmatpush1.msra.mxu0 %v231
    %1846 = vmatprep.subr.mxu0 0.0
    %1847 = vmatpush1.msra.mxu0 %v232
    %1848 = vmatprep.subr.mxu0 0.0
    %1849 = vmatpush1.msra.mxu0 %v233
    %1850 = vmatprep.subr.mxu0 0.0
    %1851 = vmatpush1.msra.mxu0 %v234
    %1852 = vmatprep.subr.mxu0 0.0
    %1853 = vmatpush1.msra.mxu0 %v235
    %1854 = vmatprep.subr.mxu0 0.0
    %1855 = vmatpush1.msra.mxu0 %v236
    %1856 = vmatprep.subr.mxu0 0.0
    %1857 = vmatpush1.msra.mxu0 %v237
    %1858 = vmatprep.subr.mxu0 0.0
    %1859 = vmatpush1.msra.mxu0 %v238
    %1860 = vmatprep.subr.mxu0 0.0
    %1861 = vmatpush1.msra.mxu0 %v239
    %1862 = vmatprep.subr.mxu0 0.0
    %1863 = vmatpush1.msra.mxu0 %v240
    %1864 = vmatprep.subr.mxu0 0.0
    %1865 = vmatpush1.msra.mxu0 %v241
    %1866 = vmatprep.subr.mxu0 0.0
    %1867 = vmatpush1.msra.mxu0 %v242
    %1868 = vmatprep.subr.mxu0 0.0
    %1869 = vmatpush1.msra.mxu0 %v243
    %1870 = vmatprep.subr.mxu0 0.0
    %1871 = vmatpush1.msra.mxu0 %v244
    %1872 = vmatprep.subr.mxu0 0.0
    %1873 = vmatpush1.msra.mxu0 %v245
    %1874 = vmatprep.subr.mxu0 0.0
    %1875 = vmatpush1.msra.mxu0 %v246
    %1876 = vmatprep.subr.mxu0 0.0
    %1877 = vmatpush1.msra.mxu0 %v247
    %1878 = vmatprep.subr.mxu0 0.0
    %1879 = vmatpush1.msra.mxu0 %v248
    %1880 = vmatprep.subr.mxu0 0.0
    %1881 = vmatpush1.msra.mxu0 %v249
    %1882 = vmatprep.subr.mxu0 0.0
    %1883 = vmatpush1.msra.mxu0 %v250
    %1884 = vmatprep.subr.mxu0 0.0
    %1885 = vmatpush1.msra.mxu0 %v251
    %1886 = vmatprep.subr.mxu0 0.0
    %1887 = vmatpush1.msra.mxu0 %v252
    %1888 = vmatprep.subr.mxu0 0.0
    %1889 = vmatpush1.msra.mxu0 %v253
    %1890 = vmatprep.subr.mxu0 0.0
    %1891 = vmatpush1.msra.mxu0 %v254
    %1892 = vmatprep.subr.mxu0 0.0
    %1893 = vmatpush1.msra.mxu0 %v255
    %1894 = vmatprep.subr.mxu0 0.0
    %1895 = vmatpush1.msra.mxu0 %v256
    %1896 = vmatprep.subr.mxu0 0.0
    %1897 = vmatpush1.msra.mxu0 %v257
    %1898 = vmatprep.subr.mxu0 0.0
    %1899 = vmatpush1.msra.mxu0 %v258
    %1900 = vmatprep.subr.mxu0 0.0
    %1901 = vmatpush1.msra.mxu0 %v259
    %1902 = vmatprep.subr.mxu0 0.0
    %1903 = vmatpush1.msra.mxu0 %v260
    %1904 = vmatprep.mubr.f32.mxu0 %v1150
    %1905 = vmatmul.mubr.f32.gmra.mrb[0].mxu0 %v1142
    %v1906 = vpop.f32.mrb[0].mxu0
    %v1907 = vadd.f32 %v1837, %v1906
    %v1908 = vpop.f32.mrb[0].mxu0
    %1909 = vdwg.mxu0
    %1910 = vmatprep.subr.mxu0 0.0
    %1911 = vmatpush1.msra.mxu0 %v261
    %1912 = vmatprep.subr.mxu0 0.0
    %1913 = vmatpush1.msra.mxu0 %v262
    %1914 = vmatprep.subr.mxu0 0.0
    %1915 = vmatpush1.msra.mxu0 %v263
    %1916 = vmatprep.subr.mxu0 0.0
    %1917 = vmatpush1.msra.mxu0 %v264
    %1918 = vmatprep.subr.mxu0 0.0
    %1919 = vmatpush1.msra.mxu0 %v265
    %1920 = vmatprep.subr.mxu0 0.0
    %1921 = vmatpush1.msra.mxu0 %v266
    %1922 = vmatprep.subr.mxu0 0.0
    %1923 = vmatpush1.msra.mxu0 %v267
    %1924 = vmatprep.subr.mxu0 0.0
    %1925 = vmatpush1.msra.mxu0 %v268
    %1926 = vmatprep.subr.mxu0 0.0
    %1927 = vmatpush1.msra.mxu0 %v269
    %1928 = vmatprep.subr.mxu0 0.0
    %1929 = vmatpush1.msra.mxu0 %v270
    %1930 = vmatprep.subr.mxu0 0.0
    %1931 = vmatpush1.msra.mxu0 %v271
    %1932 = vmatprep.subr.mxu0 0.0
    %1933 = vmatpush1.msra.mxu0 %v272
    %1934 = vmatprep.subr.mxu0 0.0
    %1935 = vmatpush1.msra.mxu0 %v273
    %1936 = vmatprep.subr.mxu0 0.0
    %1937 = vmatpush1.msra.mxu0 %v274
    %1938 = vmatprep.subr.mxu0 0.0
    %1939 = vmatpush1.msra.mxu0 %v275
    %1940 = vmatprep.subr.mxu0 0.0
    %1941 = vmatpush1.msra.mxu0 %v276
    %1942 = vmatprep.subr.mxu0 0.0
    %1943 = vmatpush1.msra.mxu0 %v277
    %1944 = vmatprep.subr.mxu0 0.0
    %1945 = vmatpush1.msra.mxu0 %v278
    %1946 = vmatprep.subr.mxu0 0.0
    %1947 = vmatpush1.msra.mxu0 %v279
    %1948 = vmatprep.subr.mxu0 0.0
    %1949 = vmatpush1.msra.mxu0 %v280
    %1950 = vmatprep.subr.mxu0 0.0
    %1951 = vmatpush1.msra.mxu0 %v281
    %1952 = vmatprep.subr.mxu0 0.0
    %1953 = vmatpush1.msra.mxu0 %v282
    %1954 = vmatprep.subr.mxu0 0.0
    %1955 = vmatpush1.msra.mxu0 %v283
    %1956 = vmatprep.subr.mxu0 0.0
    %1957 = vmatpush1.msra.mxu0 %v284
    %1958 = vmatprep.subr.mxu0 0.0
    %1959 = vmatpush1.msra.mxu0 %v285
    %1960 = vmatprep.subr.mxu0 0.0
    %1961 = vmatpush1.msra.mxu0 %v286
    %1962 = vmatprep.subr.mxu0 0.0
    %1963 = vmatpush1.msra.mxu0 %v287
    %1964 = vmatprep.subr.mxu0 0.0
    %1965 = vmatpush1.msra.mxu0 %v288
    %1966 = vmatprep.subr.mxu0 0.0
    %1967 = vmatpush1.msra.mxu0 %v289
    %1968 = vmatprep.subr.mxu0 0.0
    %1969 = vmatpush1.msra.mxu0 %v290
    %1970 = vmatprep.subr.mxu0 0.0
    %1971 = vmatpush1.msra.mxu0 %v291
    %1972 = vmatprep.subr.mxu0 0.0
    %1973 = vmatpush1.msra.mxu0 %v292
    %1974 = vmatprep.mubr.f32.mxu0 %v1151
    %1975 = vmatmul.mubr.f32.gmra.mrb[0].mxu0 %v1149
    %v1976 = vpop.f32.mrb[0].mxu0
    %v1977 = vadd.f32 %v1907, %v1976
    %v1978 = vpop.f32.mrb[0].mxu0
    %1979 = vdwg.mxu0
    %1980 = vmatprep.subr.mxu0 0.0
    %1981 = vmatpush1.msra.mxu0 %v293
    %1982 = vmatprep.subr.mxu0 0.0
    %1983 = vmatpush1.msra.mxu0 %v294
    %1984 = vmatprep.subr.mxu0 0.0
    %1985 = vmatpush1.msra.mxu0 %v295
    %1986 = vmatprep.subr.mxu0 0.0
    %1987 = vmatpush1.msra.mxu0 %v296
    %1988 = vmatprep.subr.mxu0 0.0
    %1989 = vmatpush1.msra.mxu0 %v297
    %1990 = vmatprep.subr.mxu0 0.0
    %1991 = vmatpush1.msra.mxu0 %v298
    %1992 = vmatprep.subr.mxu0 0.0
    %1993 = vmatpush1.msra.mxu0 %v299
    %1994 = vmatprep.subr.mxu0 0.0
    %1995 = vmatpush1.msra.mxu0 %v300
    %1996 = vmatprep.subr.mxu0 0.0
    %1997 = vmatpush1.msra.mxu0 %v301
    %1998 = vmatprep.subr.mxu0 0.0
    %1999 = vmatpush1.msra.mxu0 %v302
    %2000 = vmatprep.subr.mxu0 0.0
    %2001 = vmatpush1.msra.mxu0 %v303
    %2002 = vmatprep.subr.mxu0 0.0
    %2003 = vmatpush1.msra.mxu0 %v304
    %2004 = vmatprep.subr.mxu0 0.0
    %2005 = vmatpush1.msra.mxu0 %v305
    %2006 = vmatprep.subr.mxu0 0.0
    %2007 = vmatpush1.msra.mxu0 %v306
    %2008 = vmatprep.subr.mxu0 0.0
    %2009 = vmatpush1.msra.mxu0 %v307
    %2010 = vmatprep.subr.mxu0 0.0
    %2011 = vmatpush1.msra.mxu0 %v308
    %2012 = vmatprep.subr.mxu0 0.0
    %2013 = vmatpush1.msra.mxu0 %v309
    %2014 = vmatprep.subr.mxu0 0.0
    %2015 = vmatpush1.msra.mxu0 %v310
    %2016 = vmatprep.subr.mxu0 0.0
    %2017 = vmatpush1.msra.mxu0 %v311
    %2018 = vmatprep.subr.mxu0 0.0
    %2019 = vmatpush1.msra.mxu0 %v312
    %2020 = vmatprep.subr.mxu0 0.0
    %2021 = vmatpush1.msra.mxu0 %v313
    %2022 = vmatprep.subr.mxu0 0.0
    %2023 = vmatpush1.msra.mxu0 %v314
    %2024 = vmatprep.subr.mxu0 0.0
    %2025 = vmatpush1.msra.mxu0 %v315
    %2026 = vmatprep.subr.mxu0 0.0
    %2027 = vmatpush1.msra.mxu0 %v316
    %2028 = vmatprep.subr.mxu0 0.0
    %2029 = vmatpush1.msra.mxu0 %v317
    %2030 = vmatprep.subr.mxu0 0.0
    %2031 = vmatpush1.msra.mxu0 %v318
    %2032 = vmatprep.subr.mxu0 0.0
    %2033 = vmatpush1.msra.mxu0 %v319
    %2034 = vmatprep.subr.mxu0 0.0
    %2035 = vmatpush1.msra.mxu0 %v320
    %2036 = vmatprep.subr.mxu0 0.0
    %2037 = vmatpush1.msra.mxu0 %v321
    %2038 = vmatprep.subr.mxu0 0.0
    %2039 = vmatpush1.msra.mxu0 %v322
    %2040 = vmatprep.subr.mxu0 0.0
    %2041 = vmatpush1.msra.mxu0 %v323
    %2042 = vmatprep.subr.mxu0 0.0
    %2043 = vmatpush1.msra.mxu0 %v324
    %2044 = vmatprep.mubr.f32.mxu0 %v1167
    %2045 = vmatmul.mubr.f32.gmra.mrb[0].mxu0 %v1159
    %v2046 = vpop.f32.mrb[0].mxu0
    %v2047 = vadd.f32 %v1977, %v2046
    %v2048 = vpop.f32.mrb[0].mxu0
    %2049 = vdwg.mxu0
    %2050 = vmatprep.subr.mxu0 0.0
    %2051 = vmatpush1.msra.mxu0 %v325
    %2052 = vmatprep.subr.mxu0 0.0
    %2053 = vmatpush1.msra.mxu0 %v326
    %2054 = vmatprep.subr.mxu0 0.0
    %2055 = vmatpush1.msra.mxu0 %v327
    %2056 = vmatprep.subr.mxu0 0.0
    %2057 = vmatpush1.msra.mxu0 %v328
    %2058 = vmatprep.subr.mxu0 0.0
    %2059 = vmatpush1.msra.mxu0 %v329
    %2060 = vmatprep.subr.mxu0 0.0
    %2061 = vmatpush1.msra.mxu0 %v330
    %2062 = vmatprep.subr.mxu0 0.0
    %2063 = vmatpush1.msra.mxu0 %v331
    %2064 = vmatprep.subr.mxu0 0.0
    %2065 = vmatpush1.msra.mxu0 %v332
    %2066 = vmatprep.subr.mxu0 0.0
    %2067 = vmatpush1.msra.mxu0 %v333
    %2068 = vmatprep.subr.mxu0 0.0
    %2069 = vmatpush1.msra.mxu0 %v334
    %2070 = vmatprep.subr.mxu0 0.0
    %2071 = vmatpush1.msra.mxu0 %v335
    %2072 = vmatprep.subr.mxu0 0.0
    %2073 = vmatpush1.msra.mxu0 %v336
    %2074 = vmatprep.subr.mxu0 0.0
    %2075 = vmatpush1.msra.mxu0 %v337
    %2076 = vmatprep.subr.mxu0 0.0
    %2077 = vmatpush1.msra.mxu0 %v338
    %2078 = vmatprep.subr.mxu0 0.0
    %2079 = vmatpush1.msra.mxu0 %v339
    %2080 = vmatprep.subr.mxu0 0.0
    %2081 = vmatpush1.msra.mxu0 %v340
    %2082 = vmatprep.subr.mxu0 0.0
    %2083 = vmatpush1.msra.mxu0 %v341
    %2084 = vmatprep.subr.mxu0 0.0
    %2085 = vmatpush1.msra.mxu0 %v342
    %2086 = vmatprep.subr.mxu0 0.0
    %2087 = vmatpush1.msra.mxu0 %v343
    %2088 = vmatprep.subr.mxu0 0.0
    %2089 = vmatpush1.msra.mxu0 %v344
    %2090 = vmatprep.subr.mxu0 0.0
    %2091 = vmatpush1.msra.mxu0 %v345
    %2092 = vmatprep.subr.mxu0 0.0
    %2093 = vmatpush1.msra.mxu0 %v346
    %2094 = vmatprep.subr.mxu0 0.0
    %2095 = vmatpush1.msra.mxu0 %v347
    %2096 = vmatprep.subr.mxu0 0.0
    %2097 = vmatpush1.msra.mxu0 %v348
    %2098 = vmatprep.subr.mxu0 0.0
    %2099 = vmatpush1.msra.mxu0 %v349
    %2100 = vmatprep.subr.mxu0 0.0
    %2101 = vmatpush1.msra.mxu0 %v350
    %2102 = vmatprep.subr.mxu0 0.0
    %2103 = vmatpush1.msra.mxu0 %v351
    %2104 = vmatprep.subr.mxu0 0.0
    %2105 = vmatpush1.msra.mxu0 %v352
    %2106 = vmatprep.subr.mxu0 0.0
    %2107 = vmatpush1.msra.mxu0 %v353
    %2108 = vmatprep.subr.mxu0 0.0
    %2109 = vmatpush1.msra.mxu0 %v354
    %2110 = vmatprep.subr.mxu0 0.0
    %2111 = vmatpush1.msra.mxu0 %v355
    %2112 = vmatprep.subr.mxu0 0.0
    %2113 = vmatpush1.msra.mxu0 %v356
    %2114 = vmatprep.mubr.f32.mxu0 %v1168
    %2115 = vmatmul.mubr.f32.gmra.mrb[0].mxu0 %v1166
    %v2116 = vpop.f32.mrb[0].mxu0
    %v2117 = vadd.f32 %v2047, %v2116
    %v2118 = vpop.f32.mrb[0].mxu0
    %2119 = vdwg.mxu0
    %2120 = vmatprep.subr.mxu0 0.0
    %2121 = vmatpush1.msra.mxu0 %v357
    %2122 = vmatprep.subr.mxu0 0.0
    %2123 = vmatpush1.msra.mxu0 %v358
    %2124 = vmatprep.subr.mxu0 0.0
    %2125 = vmatpush1.msra.mxu0 %v359
    %2126 = vmatprep.subr.mxu0 0.0
    %2127 = vmatpush1.msra.mxu0 %v360
    %2128 = vmatprep.subr.mxu0 0.0
    %2129 = vmatpush1.msra.mxu0 %v361
    %2130 = vmatprep.subr.mxu0 0.0
    %2131 = vmatpush1.msra.mxu0 %v362
    %2132 = vmatprep.subr.mxu0 0.0
    %2133 = vmatpush1.msra.mxu0 %v363
    %2134 = vmatprep.subr.mxu0 0.0
    %2135 = vmatpush1.msra.mxu0 %v364
    %2136 = vmatprep.subr.mxu0 0.0
    %2137 = vmatpush1.msra.mxu0 %v365
    %2138 = vmatprep.subr.mxu0 0.0
    %2139 = vmatpush1.msra.mxu0 %v366
    %2140 = vmatprep.subr.mxu0 0.0
    %2141 = vmatpush1.msra.mxu0 %v367
    %2142 = vmatprep.subr.mxu0 0.0
    %2143 = vmatpush1.msra.mxu0 %v368
    %2144 = vmatprep.subr.mxu0 0.0
    %2145 = vmatpush1.msra.mxu0 %v369
    %2146 = vmatprep.subr.mxu0 0.0
    %2147 = vmatpush1.msra.mxu0 %v370
    %2148 = vmatprep.subr.mxu0 0.0
    %2149 = vmatpush1.msra.mxu0 %v371
    %2150 = vmatprep.subr.mxu0 0.0
    %2151 = vmatpush1.msra.mxu0 %v372
    %2152 = vmatprep.subr.mxu0 0.0
    %2153 = vmatpush1.msra.mxu0 %v373
    %2154 = vmatprep.subr.mxu0 0.0
    %2155 = vmatpush1.msra.mxu0 %v374
    %2156 = vmatprep.subr.mxu0 0.0
    %2157 = vmatpush1.msra.mxu0 %v375
    %2158 = vmatprep.subr.mxu0 0.0
    %2159 = vmatpush1.msra.mxu0 %v376
    %2160 = vmatprep.subr.mxu0 0.0
    %2161 = vmatpush1.msra.mxu0 %v377
    %2162 = vmatprep.subr.mxu0 0.0
    %2163 = vmatpush1.msra.mxu0 %v378
    %2164 = vmatprep.subr.mxu0 0.0
    %2165 = vmatpush1.msra.mxu0 %v379
    %2166 = vmatprep.subr.mxu0 0.0
    %2167 = vmatpush1.msra.mxu0 %v380
    %2168 = vmatprep.subr.mxu0 0.0
    %2169 = vmatpush1.msra.mxu0 %v381
    %2170 = vmatprep.subr.mxu0 0.0
    %2171 = vmatpush1.msra.mxu0 %v382
    %2172 = vmatprep.subr.mxu0 0.0
    %2173 = vmatpush1.msra.mxu0 %v383
    %2174 = vmatprep.subr.mxu0 0.0
    %2175 = vmatpush1.msra.mxu0 %v384
    %2176 = vmatprep.subr.mxu0 0.0
    %2177 = vmatpush1.msra.mxu0 %v385
    %2178 = vmatprep.subr.mxu0 0.0
    %2179 = vmatpush1.msra.mxu0 %v386
    %2180 = vmatprep.subr.mxu0 0.0
    %2181 = vmatpush1.msra.mxu0 %v387
    %2182 = vmatprep.subr.mxu0 0.0
    %2183 = vmatpush1.msra.mxu0 %v388
    %2184 = vmatprep.mubr.f32.mxu0 %v1184
    %2185 = vmatmul.mubr.f32.gmra.mrb[0].mxu0 %v1176
    %v2186 = vpop.f32.mrb[0].mxu0
    %v2187 = vadd.f32 %v2117, %v2186
    %v2188 = vpop.f32.mrb[0].mxu0
    %2189 = vdwg.mxu0
    %2190 = vmatprep.subr.mxu0 0.0
    %2191 = vmatpush1.msra.mxu0 %v389
    %2192 = vmatprep.subr.mxu0 0.0
    %2193 = vmatpush1.msra.mxu0 %v390
    %2194 = vmatprep.subr.mxu0 0.0
    %2195 = vmatpush1.msra.mxu0 %v391
    %2196 = vmatprep.subr.mxu0 0.0
    %2197 = vmatpush1.msra.mxu0 %v392
    %2198 = vmatprep.subr.mxu0 0.0
    %2199 = vmatpush1.msra.mxu0 %v393
    %2200 = vmatprep.subr.mxu0 0.0
    %2201 = vmatpush1.msra.mxu0 %v394
    %2202 = vmatprep.subr.mxu0 0.0
    %2203 = vmatpush1.msra.mxu0 %v395
    %2204 = vmatprep.subr.mxu0 0.0
    %2205 = vmatpush1.msra.mxu0 %v396
    %2206 = vmatprep.subr.mxu0 0.0
    %2207 = vmatpush1.msra.mxu0 %v397
    %2208 = vmatprep.subr.mxu0 0.0
    %2209 = vmatpush1.msra.mxu0 %v398
    %2210 = vmatprep.subr.mxu0 0.0
    %2211 = vmatpush1.msra.mxu0 %v399
    %2212 = vmatprep.subr.mxu0 0.0
    %2213 = vmatpush1.msra.mxu0 %v400
    %2214 = vmatprep.subr.mxu0 0.0
    %2215 = vmatpush1.msra.mxu0 %v401
    %2216 = vmatprep.subr.mxu0 0.0
    %2217 = vmatpush1.msra.mxu0 %v402
    %2218 = vmatprep.subr.mxu0 0.0
    %2219 = vmatpush1.msra.mxu0 %v403
    %2220 = vmatprep.subr.mxu0 0.0
    %2221 = vmatpush1.msra.mxu0 %v404
    %2222 = vmatprep.subr.mxu0 0.0
    %2223 = vmatpush1.msra.mxu0 %v405
    %2224 = vmatprep.subr.mxu0 0.0
    %2225 = vmatpush1.msra.mxu0 %v406
    %2226 = vmatprep.subr.mxu0 0.0
    %2227 = vmatpush1.msra.mxu0 %v407
    %2228 = vmatprep.subr.mxu0 0.0
    %2229 = vmatpush1.msra.mxu0 %v408
    %2230 = vmatprep.subr.mxu0 0.0
    %2231 = vmatpush1.msra.mxu0 %v409
    %2232 = vmatprep.subr.mxu0 0.0
    %2233 = vmatpush1.msra.mxu0 %v410
    %2234 = vmatprep.subr.mxu0 0.0
    %2235 = vmatpush1.msra.mxu0 %v411
    %2236 = vmatprep.subr.mxu0 0.0
    %2237 = vmatpush1.msra.mxu0 %v412
    %2238 = vmatprep.subr.mxu0 0.0
    %2239 = vmatpush1.msra.mxu0 %v413
    %2240 = vmatprep.subr.mxu0 0.0
    %2241 = vmatpush1.msra.mxu0 %v414
    %2242 = vmatprep.subr.mxu0 0.0
    %2243 = vmatpush1.msra.mxu0 %v415
    %2244 = vmatprep.subr.mxu0 0.0
    %2245 = vmatpush1.msra.mxu0 %v416
    %2246 = vmatprep.subr.mxu0 0.0
    %2247 = vmatpush1.msra.mxu0 %v417
    %2248 = vmatprep.subr.mxu0 0.0
    %2249 = vmatpush1.msra.mxu0 %v418
    %2250 = vmatprep.subr.mxu0 0.0
    %2251 = vmatpush1.msra.mxu0 %v419
    %2252 = vmatprep.subr.mxu0 0.0
    %2253 = vmatpush1.msra.mxu0 %v420
    %2254 = vmatprep.mubr.f32.mxu0 %v1185
    %2255 = vmatmul.mubr.f32.gmra.mrb[0].mxu0 %v1183
    %v2256 = vpop.f32.mrb[0].mxu0
    %v2257 = vadd.f32 %v2187, %v2256
    %v2258 = vpop.f32.mrb[0].mxu0
    %2259 = vdwg.mxu0
    %2260 = vmatprep.subr.mxu0 0.0
    %2261 = vmatpush1.msra.mxu0 %v421
    %2262 = vmatprep.subr.mxu0 0.0
    %2263 = vmatpush1.msra.mxu0 %v422
    %2264 = vmatprep.subr.mxu0 0.0
    %2265 = vmatpush1.msra.mxu0 %v423
    %2266 = vmatprep.subr.mxu0 0.0
    %2267 = vmatpush1.msra.mxu0 %v424
    %2268 = vmatprep.subr.mxu0 0.0
    %2269 = vmatpush1.msra.mxu0 %v425
    %2270 = vmatprep.subr.mxu0 0.0
    %2271 = vmatpush1.msra.mxu0 %v426
    %2272 = vmatprep.subr.mxu0 0.0
    %2273 = vmatpush1.msra.mxu0 %v427
    %2274 = vmatprep.subr.mxu0 0.0
    %2275 = vmatpush1.msra.mxu0 %v428
    %2276 = vmatprep.subr.mxu0 0.0
    %2277 = vmatpush1.msra.mxu0 %v429
    %2278 = vmatprep.subr.mxu0 0.0
    %2279 = vmatpush1.msra.mxu0 %v430
    %2280 = vmatprep.subr.mxu0 0.0
    %2281 = vmatpush1.msra.mxu0 %v431
    %2282 = vmatprep.subr.mxu0 0.0
    %2283 = vmatpush1.msra.mxu0 %v432
    %2284 = vmatprep.subr.mxu0 0.0
    %2285 = vmatpush1.msra.mxu0 %v433
    %2286 = vmatprep.subr.mxu0 0.0
    %2287 = vmatpush1.msra.mxu0 %v434
    %2288 = vmatprep.subr.mxu0 0.0
    %2289 = vmatpush1.msra.mxu0 %v435
    %2290 = vmatprep.subr.mxu0 0.0
    %2291 = vmatpush1.msra.mxu0 %v436
    %2292 = vmatprep.subr.mxu0 0.0
    %2293 = vmatpush1.msra.mxu0 %v437
    %2294 = vmatprep.subr.mxu0 0.0
    %2295 = vmatpush1.msra.mxu0 %v438
    %2296 = vmatprep.subr.mxu0 0.0
    %2297 = vmatpush1.msra.mxu0 %v439
    %2298 = vmatprep.subr.mxu0 0.0
    %2299 = vmatpush1.msra.mxu0 %v440
    %2300 = vmatprep.subr.mxu0 0.0
    %2301 = vmatpush1.msra.mxu0 %v441
    %2302 = vmatprep.subr.mxu0 0.0
    %2303 = vmatpush1.msra.mxu0 %v442
    %2304 = vmatprep.subr.mxu0 0.0
    %2305 = vmatpush1.msra.mxu0 %v443
    %2306 = vmatprep.subr.mxu0 0.0
    %2307 = vmatpush1.msra.mxu0 %v444
    %2308 = vmatprep.subr.mxu0 0.0
    %2309 = vmatpush1.msra.mxu0 %v445
    %2310 = vmatprep.subr.mxu0 0.0
    %2311 = vmatpush1.msra.mxu0 %v446
    %2312 = vmatprep.subr.mxu0 0.0
    %2313 = vmatpush1.msra.mxu0 %v447
    %2314 = vmatprep.subr.mxu0 0.0
    %2315 = vmatpush1.msra.mxu0 %v448
    %2316 = vmatprep.subr.mxu0 0.0
    %2317 = vmatpush1.msra.mxu0 %v449
    %2318 = vmatprep.subr.mxu0 0.0
    %2319 = vmatpush1.msra.mxu0 %v450
    %2320 = vmatprep.subr.mxu0 0.0
    %2321 = vmatpush1.msra.mxu0 %v451
    %2322 = vmatprep.subr.mxu0 0.0
    %2323 = vmatpush1.msra.mxu0 %v452
    %2324 = vmatprep.mubr.f32.mxu0 %v1201
    %2325 = vmatmul.mubr.f32.gmra.mrb[0].mxu0 %v1193
    %v2326 = vpop.f32.mrb[0].mxu0
    %v2327 = vadd.f32 %v2257, %v2326
    %v2328 = vpop.f32.mrb[0].mxu0
    %2329 = vdwg.mxu0
    %2330 = vmatprep.subr.mxu0 0.0
    %2331 = vmatpush1.msra.mxu0 %v453
    %2332 = vmatprep.subr.mxu0 0.0
    %2333 = vmatpush1.msra.mxu0 %v454
    %2334 = vmatprep.subr.mxu0 0.0
    %2335 = vmatpush1.msra.mxu0 %v455
    %2336 = vmatprep.subr.mxu0 0.0
    %2337 = vmatpush1.msra.mxu0 %v456
    %2338 = vmatprep.subr.mxu0 0.0
    %2339 = vmatpush1.msra.mxu0 %v457
    %2340 = vmatprep.subr.mxu0 0.0
    %2341 = vmatpush1.msra.mxu0 %v458
    %2342 = vmatprep.subr.mxu0 0.0
    %2343 = vmatpush1.msra.mxu0 %v459
    %2344 = vmatprep.subr.mxu0 0.0
    %2345 = vmatpush1.msra.mxu0 %v460
    %2346 = vmatprep.subr.mxu0 0.0
    %2347 = vmatpush1.msra.mxu0 %v461
    %2348 = vmatprep.subr.mxu0 0.0
    %2349 = vmatpush1.msra.mxu0 %v462
    %2350 = vmatprep.subr.mxu0 0.0
    %2351 = vmatpush1.msra.mxu0 %v463
    %2352 = vmatprep.subr.mxu0 0.0
    %2353 = vmatpush1.msra.mxu0 %v464
    %2354 = vmatprep.subr.mxu0 0.0
    %2355 = vmatpush1.msra.mxu0 %v465
    %2356 = vmatprep.subr.mxu0 0.0
    %2357 = vmatpush1.msra.mxu0 %v466
    %2358 = vmatprep.subr.mxu0 0.0
    %2359 = vmatpush1.msra.mxu0 %v467
    %2360 = vmatprep.subr.mxu0 0.0
    %2361 = vmatpush1.msra.mxu0 %v468
    %2362 = vmatprep.subr.mxu0 0.0
    %2363 = vmatpush1.msra.mxu0 %v469
    %2364 = vmatprep.subr.mxu0 0.0
    %2365 = vmatpush1.msra.mxu0 %v470
    %2366 = vmatprep.subr.mxu0 0.0
    %2367 = vmatpush1.msra.mxu0 %v471
    %2368 = vmatprep.subr.mxu0 0.0
    %2369 = vmatpush1.msra.mxu0 %v472
    %2370 = vmatprep.subr.mxu0 0.0
    %2371 = vmatpush1.msra.mxu0 %v473
    %2372 = vmatprep.subr.mxu0 0.0
    %2373 = vmatpush1.msra.mxu0 %v474
    %2374 = vmatprep.subr.mxu0 0.0
    %2375 = vmatpush1.msra.mxu0 %v475
    %2376 = vmatprep.subr.mxu0 0.0
    %2377 = vmatpush1.msra.mxu0 %v476
    %2378 = vmatprep.subr.mxu0 0.0
    %2379 = vmatpush1.msra.mxu0 %v477
    %2380 = vmatprep.subr.mxu0 0.0
    %2381 = vmatpush1.msra.mxu0 %v478
    %2382 = vmatprep.subr.mxu0 0.0
    %2383 = vmatpush1.msra.mxu0 %v479
    %2384 = vmatprep.subr.mxu0 0.0
    %2385 = vmatpush1.msra.mxu0 %v480
    %2386 = vmatprep.subr.mxu0 0.0
    %2387 = vmatpush1.msra.mxu0 %v481
    %2388 = vmatprep.subr.mxu0 0.0
    %2389 = vmatpush1.msra.mxu0 %v482
    %2390 = vmatprep.subr.mxu0 0.0
    %2391 = vmatpush1.msra.mxu0 %v483
    %2392 = vmatprep.subr.mxu0 0.0
    %2393 = vmatpush1.msra.mxu0 %v484
    %2394 = vmatprep.mubr.f32.mxu0 %v1202
    %2395 = vmatmul.mubr.f32.gmra.mrb[0].mxu0 %v1200
    %v2396 = vpop.f32.mrb[0].mxu0
    %v2397 = vadd.f32 %v2327, %v2396
    %v2398 = vpop.f32.mrb[0].mxu0
    %2399 = vdwg.mxu0
    %2400 = vmatprep.subr.mxu0 0.0
    %2401 = vmatpush1.msra.mxu0 %v485
    %2402 = vmatprep.subr.mxu0 0.0
    %2403 = vmatpush1.msra.mxu0 %v486
    %2404 = vmatprep.subr.mxu0 0.0
    %2405 = vmatpush1.msra.mxu0 %v487
    %2406 = vmatprep.subr.mxu0 0.0
    %2407 = vmatpush1.msra.mxu0 %v488
    %2408 = vmatprep.subr.mxu0 0.0
    %2409 = vmatpush1.msra.mxu0 %v489
    %2410 = vmatprep.subr.mxu0 0.0
    %2411 = vmatpush1.msra.mxu0 %v490
    %2412 = vmatprep.subr.mxu0 0.0
    %2413 = vmatpush1.msra.mxu0 %v491
    %2414 = vmatprep.subr.mxu0 0.0
    %2415 = vmatpush1.msra.mxu0 %v492
    %2416 = vmatprep.subr.mxu0 0.0
    %2417 = vmatpush1.msra.mxu0 %v493
    %2418 = vmatprep.subr.mxu0 0.0
    %2419 = vmatpush1.msra.mxu0 %v494
    %2420 = vmatprep.subr.mxu0 0.0
    %2421 = vmatpush1.msra.mxu0 %v495
    %2422 = vmatprep.subr.mxu0 0.0
    %2423 = vmatpush1.msra.mxu0 %v496
    %2424 = vmatprep.subr.mxu0 0.0
    %2425 = vmatpush1.msra.mxu0 %v497
    %2426 = vmatprep.subr.mxu0 0.0
    %2427 = vmatpush1.msra.mxu0 %v498
    %2428 = vmatprep.subr.mxu0 0.0
    %2429 = vmatpush1.msra.mxu0 %v499
    %2430 = vmatprep.subr.mxu0 0.0
    %2431 = vmatpush1.msra.mxu0 %v500
    %2432 = vmatprep.subr.mxu0 0.0
    %2433 = vmatpush1.msra.mxu0 %v501
    %2434 = vmatprep.subr.mxu0 0.0
    %2435 = vmatpush1.msra.mxu0 %v502
    %2436 = vmatprep.subr.mxu0 0.0
    %2437 = vmatpush1.msra.mxu0 %v503
    %2438 = vmatprep.subr.mxu0 0.0
    %2439 = vmatpush1.msra.mxu0 %v504
    %2440 = vmatprep.subr.mxu0 0.0
    %2441 = vmatpush1.msra.mxu0 %v505
    %2442 = vmatprep.subr.mxu0 0.0
    %2443 = vmatpush1.msra.mxu0 %v506
    %2444 = vmatprep.subr.mxu0 0.0
    %2445 = vmatpush1.msra.mxu0 %v507
    %2446 = vmatprep.subr.mxu0 0.0
    %2447 = vmatpush1.msra.mxu0 %v508
    %2448 = vmatprep.subr.mxu0 0.0
    %2449 = vmatpush1.msra.mxu0 %v509
    %2450 = vmatprep.subr.mxu0 0.0
    %2451 = vmatpush1.msra.mxu0 %v510
    %2452 = vmatprep.subr.mxu0 0.0
    %2453 = vmatpush1.msra.mxu0 %v511
    %2454 = vmatprep.subr.mxu0 0.0
    %2455 = vmatpush1.msra.mxu0 %v512
    %2456 = vmatprep.subr.mxu0 0.0
    %2457 = vmatpush1.msra.mxu0 %v513
    %2458 = vmatprep.subr.mxu0 0.0
    %2459 = vmatpush1.msra.mxu0 %v514
    %2460 = vmatprep.subr.mxu0 0.0
    %2461 = vmatpush1.msra.mxu0 %v515
    %2462 = vmatprep.subr.mxu0 0.0
    %2463 = vmatpush1.msra.mxu0 %v516
    %2464 = vmatprep.mubr.f32.mxu0 %v1218
    %2465 = vmatmul.mubr.f32.gmra.mrb[0].mxu0 %v1210
    %v2466 = vpop.f32.mrb[0].mxu0
    %v2467 = vadd.f32 %v2397, %v2466
    %v2468 = vpop.f32.mrb[0].mxu0
    %2469 = vdwg.mxu0
    %2470 = vmatprep.subr.mxu0 0.0
    %2471 = vmatpush1.msra.mxu0 %v517
    %2472 = vmatprep.subr.mxu0 0.0
    %2473 = vmatpush1.msra.mxu0 %v518
    %2474 = vmatprep.subr.mxu0 0.0
    %2475 = vmatpush1.msra.mxu0 %v519
    %2476 = vmatprep.subr.mxu0 0.0
    %2477 = vmatpush1.msra.mxu0 %v520
    %2478 = vmatprep.subr.mxu0 0.0
    %2479 = vmatpush1.msra.mxu0 %v521
    %2480 = vmatprep.subr.mxu0 0.0
    %2481 = vmatpush1.msra.mxu0 %v522
    %2482 = vmatprep.subr.mxu0 0.0
    %2483 = vmatpush1.msra.mxu0 %v523
    %2484 = vmatprep.subr.mxu0 0.0
    %2485 = vmatpush1.msra.mxu0 %v524
    %2486 = vmatprep.subr.mxu0 0.0
    %2487 = vmatpush1.msra.mxu0 %v525
    %2488 = vmatprep.subr.mxu0 0.0
    %2489 = vmatpush1.msra.mxu0 %v526
    %2490 = vmatprep.subr.mxu0 0.0
    %2491 = vmatpush1.msra.mxu0 %v527
    %2492 = vmatprep.subr.mxu0 0.0
    %2493 = vmatpush1.msra.mxu0 %v528
    %2494 = vmatprep.subr.mxu0 0.0
    %2495 = vmatpush1.msra.mxu0 %v529
    %2496 = vmatprep.subr.mxu0 0.0
    %2497 = vmatpush1.msra.mxu0 %v530
    %2498 = vmatprep.subr.mxu0 0.0
    %2499 = vmatpush1.msra.mxu0 %v531
    %2500 = vmatprep.subr.mxu0 0.0
    %2501 = vmatpush1.msra.mxu0 %v532
    %2502 = vmatprep.subr.mxu0 0.0
    %2503 = vmatpush1.msra.mxu0 %v533
    %2504 = vmatprep.subr.mxu0 0.0
    %2505 = vmatpush1.msra.mxu0 %v534
    %2506 = vmatprep.subr.mxu0 0.0
    %2507 = vmatpush1.msra.mxu0 %v535
    %2508 = vmatprep.subr.mxu0 0.0
    %2509 = vmatpush1.msra.mxu0 %v536
    %2510 = vmatprep.subr.mxu0 0.0
    %2511 = vmatpush1.msra.mxu0 %v537
    %2512 = vmatprep.subr.mxu0 0.0
    %2513 = vmatpush1.msra.mxu0 %v538
    %2514 = vmatprep.subr.mxu0 0.0
    %2515 = vmatpush1.msra.mxu0 %v539
    %2516 = vmatprep.subr.mxu0 0.0
    %2517 = vmatpush1.msra.mxu0 %v540
    %2518 = vmatprep.subr.mxu0 0.0
    %2519 = vmatpush1.msra.mxu0 %v541
    %2520 = vmatprep.subr.mxu0 0.0
    %2521 = vmatpush1.msra.mxu0 %v542
    %2522 = vmatprep.subr.mxu0 0.0
    %2523 = vmatpush1.msra.mxu0 %v543
    %2524 = vmatprep.subr.mxu0 0.0
    %2525 = vmatpush1.msra.mxu0 %v544
    %2526 = vmatprep.subr.mxu0 0.0
    %2527 = vmatpush1.msra.mxu0 %v545
    %2528 = vmatprep.subr.mxu0 0.0
    %2529 = vmatpush1.msra.mxu0 %v546
    %2530 = vmatprep.subr.mxu0 0.0
    %2531 = vmatpush1.msra.mxu0 %v547
    %2532 = vmatprep.subr.mxu0 0.0
    %2533 = vmatpush1.msra.mxu0 %v548
    %2534 = vmatprep.mubr.f32.mxu0 %v1219
    %2535 = vmatmul.mubr.f32.gmra.mrb[0].mxu0 %v1217
    %v2536 = vpop.f32.mrb[0].mxu0
    %v2537 = vadd.f32 %v2467, %v2536
    %v2538 = vpop.f32.mrb[0].mxu0
    %2539 = vdwg.mxu0
    %2540 = vmatprep.subr.mxu0 0.0
    %2541 = vmatpush1.msra.mxu0 %v549
    %2542 = vmatprep.subr.mxu0 0.0
    %2543 = vmatpush1.msra.mxu0 %v550
    %2544 = vmatprep.subr.mxu0 0.0
    %2545 = vmatpush1.msra.mxu0 %v551
    %2546 = vmatprep.subr.mxu0 0.0
    %2547 = vmatpush1.msra.mxu0 %v552
    %2548 = vmatprep.subr.mxu0 0.0
    %2549 = vmatpush1.msra.mxu0 %v553
    %2550 = vmatprep.subr.mxu0 0.0
    %2551 = vmatpush1.msra.mxu0 %v554
    %2552 = vmatprep.subr.mxu0 0.0
    %2553 = vmatpush1.msra.mxu0 %v555
    %2554 = vmatprep.subr.mxu0 0.0
    %2555 = vmatpush1.msra.mxu0 %v556
    %2556 = vmatprep.subr.mxu0 0.0
    %2557 = vmatpush1.msra.mxu0 %v557
    %2558 = vmatprep.subr.mxu0 0.0
    %2559 = vmatpush1.msra.mxu0 %v558
    %2560 = vmatprep.subr.mxu0 0.0
    %2561 = vmatpush1.msra.mxu0 %v559
    %2562 = vmatprep.subr.mxu0 0.0
    %2563 = vmatpush1.msra.mxu0 %v560
    %2564 = vmatprep.subr.mxu0 0.0
    %2565 = vmatpush1.msra.mxu0 %v561
    %2566 = vmatprep.subr.mxu0 0.0
    %2567 = vmatpush1.msra.mxu0 %v562
    %2568 = vmatprep.subr.mxu0 0.0
    %2569 = vmatpush1.msra.mxu0 %v563
    %2570 = vmatprep.subr.mxu0 0.0
    %2571 = vmatpush1.msra.mxu0 %v564
    %2572 = vmatprep.subr.mxu0 0.0
    %2573 = vmatpush1.msra.mxu0 %v565
    %2574 = vmatprep.subr.mxu0 0.0
    %2575 = vmatpush1.msra.mxu0 %v566
    %2576 = vmatprep.subr.mxu0 0.0
    %2577 = vmatpush1.msra.mxu0 %v567
    %2578 = vmatprep.subr.mxu0 0.0
    %2579 = vmatpush1.msra.mxu0 %v568
    %2580 = vmatprep.subr.mxu0 0.0
    %2581 = vmatpush1.msra.mxu0 %v569
    %2582 = vmatprep.subr.mxu0 0.0
    %2583 = vmatpush1.msra.mxu0 %v570
    %2584 = vmatprep.subr.mxu0 0.0
    %2585 = vmatpush1.msra.mxu0 %v571
    %2586 = vmatprep.subr.mxu0 0.0
    %2587 = vmatpush1.msra.mxu0 %v572
    %2588 = vmatprep.subr.mxu0 0.0
    %2589 = vmatpush1.msra.mxu0 %v573
    %2590 = vmatprep.subr.mxu0 0.0
    %2591 = vmatpush1.msra.mxu0 %v574
    %2592 = vmatprep.subr.mxu0 0.0
    %2593 = vmatpush1.msra.mxu0 %v575
    %2594 = vmatprep.subr.mxu0 0.0
    %2595 = vmatpush1.msra.mxu0 %v576
    %2596 = vmatprep.subr.mxu0 0.0
    %2597 = vmatpush1.msra.mxu0 %v577
    %2598 = vmatprep.subr.mxu0 0.0
    %2599 = vmatpush1.msra.mxu0 %v578
    %2600 = vmatprep.subr.mxu0 0.0
    %2601 = vmatpush1.msra.mxu0 %v579
    %2602 = vmatprep.subr.mxu0 0.0
    %2603 = vmatpush1.msra.mxu0 %v580
    %2604 = vmatprep.mubr.f32.mxu0 %v1235
    %2605 = vmatmul.mubr.f32.gmra.mrb[0].mxu0 %v1227
    %v2606 = vpop.f32.mrb[0].mxu0
    %v2607 = vadd.f32 %v2537, %v2606
    %v2608 = vpop.f32.mrb[0].mxu0
    %2609 = vdwg.mxu0
    %2610 = vmatprep.subr.mxu0 0.0
    %2611 = vmatpush1.msra.mxu0 %v581
    %2612 = vmatprep.subr.mxu0 0.0
    %2613 = vmatpush1.msra.mxu0 %v582
    %2614 = vmatprep.subr.mxu0 0.0
    %2615 = vmatpush1.msra.mxu0 %v583
    %2616 = vmatprep.subr.mxu0 0.0
    %2617 = vmatpush1.msra.mxu0 %v584
    %2618 = vmatprep.subr.mxu0 0.0
    %2619 = vmatpush1.msra.mxu0 %v585
    %2620 = vmatprep.subr.mxu0 0.0
    %2621 = vmatpush1.msra.mxu0 %v586
    %2622 = vmatprep.subr.mxu0 0.0
    %2623 = vmatpush1.msra.mxu0 %v587
    %2624 = vmatprep.subr.mxu0 0.0
    %2625 = vmatpush1.msra.mxu0 %v588
    %2626 = vmatprep.subr.mxu0 0.0
    %2627 = vmatpush1.msra.mxu0 %v589
    %2628 = vmatprep.subr.mxu0 0.0
    %2629 = vmatpush1.msra.mxu0 %v590
    %2630 = vmatprep.subr.mxu0 0.0
    %2631 = vmatpush1.msra.mxu0 %v591
    %2632 = vmatprep.subr.mxu0 0.0
    %2633 = vmatpush1.msra.mxu0 %v592
    %2634 = vmatprep.subr.mxu0 0.0
    %2635 = vmatpush1.msra.mxu0 %v593
    %2636 = vmatprep.subr.mxu0 0.0
    %2637 = vmatpush1.msra.mxu0 %v594
    %2638 = vmatprep.subr.mxu0 0.0
    %2639 = vmatpush1.msra.mxu0 %v595
    %2640 = vmatprep.subr.mxu0 0.0
    %2641 = vmatpush1.msra.mxu0 %v596
    %2642 = vmatprep.subr.mxu0 0.0
    %2643 = vmatpush1.msra.mxu0 %v597
    %2644 = vmatprep.subr.mxu0 0.0
    %2645 = vmatpush1.msra.mxu0 %v598
    %2646 = vmatprep.subr.mxu0 0.0
    %2647 = vmatpush1.msra.mxu0 %v599
    %2648 = vmatprep.subr.mxu0 0.0
    %2649 = vmatpush1.msra.mxu0 %v600
    %2650 = vmatprep.subr.mxu0 0.0
    %2651 = vmatpush1.msra.mxu0 %v601
    %2652 = vmatprep.subr.mxu0 0.0
    %2653 = vmatpush1.msra.mxu0 %v602
    %2654 = vmatprep.subr.mxu0 0.0
    %2655 = vmatpush1.msra.mxu0 %v603
    %2656 = vmatprep.subr.mxu0 0.0
    %2657 = vmatpush1.msra.mxu0 %v604
    %2658 = vmatprep.subr.mxu0 0.0
    %2659 = vmatpush1.msra.mxu0 %v605
    %2660 = vmatprep.subr.mxu0 0.0
    %2661 = vmatpush1.msra.mxu0 %v606
    %2662 = vmatprep.subr.mxu0 0.0
    %2663 = vmatpush1.msra.mxu0 %v607
    %2664 = vmatprep.subr.mxu0 0.0
    %2665 = vmatpush1.msra.mxu0 %v608
    %2666 = vmatprep.subr.mxu0 0.0
    %2667 = vmatpush1.msra.mxu0 %v609
    %2668 = vmatprep.subr.mxu0 0.0
    %2669 = vmatpush1.msra.mxu0 %v610
    %2670 = vmatprep.subr.mxu0 0.0
    %2671 = vmatpush1.msra.mxu0 %v611
    %2672 = vmatprep.subr.mxu0 0.0
    %2673 = vmatpush1.msra.mxu0 %v612
    %2674 = vmatprep.mubr.f32.mxu0 %v1236
    %2675 = vmatmul.mubr.f32.gmra.mrb[0].mxu0 %v1234
    %v2676 = vpop.f32.mrb[0].mxu0
    %v2677 = vadd.f32 %v2607, %v2676
    %v2678 = vpop.f32.mrb[0].mxu0
    %2679 = vdwg.mxu0
    %2680 = vmatprep.subr.mxu0 0.0
    %2681 = vmatpush1.msra.mxu0 %v613
    %2682 = vmatprep.subr.mxu0 0.0
    %2683 = vmatpush1.msra.mxu0 %v614
    %2684 = vmatprep.subr.mxu0 0.0
    %2685 = vmatpush1.msra.mxu0 %v615
    %2686 = vmatprep.subr.mxu0 0.0
    %2687 = vmatpush1.msra.mxu0 %v616
    %2688 = vmatprep.subr.mxu0 0.0
    %2689 = vmatpush1.msra.mxu0 %v617
    %2690 = vmatprep.subr.mxu0 0.0
    %2691 = vmatpush1.msra.mxu0 %v618
    %2692 = vmatprep.subr.mxu0 0.0
    %2693 = vmatpush1.msra.mxu0 %v619
    %2694 = vmatprep.subr.mxu0 0.0
    %2695 = vmatpush1.msra.mxu0 %v620
    %2696 = vmatprep.subr.mxu0 0.0
    %2697 = vmatpush1.msra.mxu0 %v621
    %2698 = vmatprep.subr.mxu0 0.0
    %2699 = vmatpush1.msra.mxu0 %v622
    %2700 = vmatprep.subr.mxu0 0.0
    %2701 = vmatpush1.msra.mxu0 %v623
    %2702 = vmatprep.subr.mxu0 0.0
    %2703 = vmatpush1.msra.mxu0 %v624
    %2704 = vmatprep.subr.mxu0 0.0
    %2705 = vmatpush1.msra.mxu0 %v625
    %2706 = vmatprep.subr.mxu0 0.0
    %2707 = vmatpush1.msra.mxu0 %v626
    %2708 = vmatprep.subr.mxu0 0.0
    %2709 = vmatpush1.msra.mxu0 %v627
    %2710 = vmatprep.subr.mxu0 0.0
    %2711 = vmatpush1.msra.mxu0 %v628
    %2712 = vmatprep.subr.mxu0 0.0
    %2713 = vmatpush1.msra.mxu0 %v629
    %2714 = vmatprep.subr.mxu0 0.0
    %2715 = vmatpush1.msra.mxu0 %v630
    %2716 = vmatprep.subr.mxu0 0.0
    %2717 = vmatpush1.msra.mxu0 %v631
    %2718 = vmatprep.subr.mxu0 0.0
    %2719 = vmatpush1.msra.mxu0 %v632
    %2720 = vmatprep.subr.mxu0 0.0
    %2721 = vmatpush1.msra.mxu0 %v633
    %2722 = vmatprep.subr.mxu0 0.0
    %2723 = vmatpush1.msra.mxu0 %v634
    %2724 = vmatprep.subr.mxu0 0.0
    %2725 = vmatpush1.msra.mxu0 %v635
    %2726 = vmatprep.subr.mxu0 0.0
    %2727 = vmatpush1.msra.mxu0 %v636
    %2728 = vmatprep.subr.mxu0 0.0
    %2729 = vmatpush1.msra.mxu0 %v637
    %2730 = vmatprep.subr.mxu0 0.0
    %2731 = vmatpush1.msra.mxu0 %v638
    %2732 = vmatprep.subr.mxu0 0.0
    %2733 = vmatpush1.msra.mxu0 %v639
    %2734 = vmatprep.subr.mxu0 0.0
    %2735 = vmatpush1.msra.mxu0 %v640
    %2736 = vmatprep.subr.mxu0 0.0
    %2737 = vmatpush1.msra.mxu0 %v641
    %2738 = vmatprep.subr.mxu0 0.0
    %2739 = vmatpush1.msra.mxu0 %v642
    %2740 = vmatprep.subr.mxu0 0.0
    %2741 = vmatpush1.msra.mxu0 %v643
    %2742 = vmatprep.subr.mxu0 0.0
    %2743 = vmatpush1.msra.mxu0 %v644
    %2744 = vmatprep.mubr.f32.mxu0 %v1252
    %2745 = vmatmul.mubr.f32.gmra.mrb[0].mxu0 %v1244
    %v2746 = vpop.f32.mrb[0].mxu0
    %v2747 = vadd.f32 %v2677, %v2746
    %v2748 = vpop.f32.mrb[0].mxu0
    %2749 = vdwg.mxu0
    %2750 = vmatprep.subr.mxu0 0.0
    %2751 = vmatpush1.msra.mxu0 %v645
    %2752 = vmatprep.subr.mxu0 0.0
    %2753 = vmatpush1.msra.mxu0 %v646
    %2754 = vmatprep.subr.mxu0 0.0
    %2755 = vmatpush1.msra.mxu0 %v647
    %2756 = vmatprep.subr.mxu0 0.0
    %2757 = vmatpush1.msra.mxu0 %v648
    %2758 = vmatprep.subr.mxu0 0.0
    %2759 = vmatpush1.msra.mxu0 %v649
    %2760 = vmatprep.subr.mxu0 0.0
    %2761 = vmatpush1.msra.mxu0 %v650
    %2762 = vmatprep.subr.mxu0 0.0
    %2763 = vmatpush1.msra.mxu0 %v651
    %2764 = vmatprep.subr.mxu0 0.0
    %2765 = vmatpush1.msra.mxu0 %v652
    %2766 = vmatprep.subr.mxu0 0.0
    %2767 = vmatpush1.msra.mxu0 %v653
    %2768 = vmatprep.subr.mxu0 0.0
    %2769 = vmatpush1.msra.mxu0 %v654
    %2770 = vmatprep.subr.mxu0 0.0
    %2771 = vmatpush1.msra.mxu0 %v655
    %2772 = vmatprep.subr.mxu0 0.0
    %2773 = vmatpush1.msra.mxu0 %v656
    %2774 = vmatprep.subr.mxu0 0.0
    %2775 = vmatpush1.msra.mxu0 %v657
    %2776 = vmatprep.subr.mxu0 0.0
    %2777 = vmatpush1.msra.mxu0 %v658
    %2778 = vmatprep.subr.mxu0 0.0
    %2779 = vmatpush1.msra.mxu0 %v659
    %2780 = vmatprep.subr.mxu0 0.0
    %2781 = vmatpush1.msra.mxu0 %v660
    %2782 = vmatprep.subr.mxu0 0.0
    %2783 = vmatpush1.msra.mxu0 %v661
    %2784 = vmatprep.subr.mxu0 0.0
    %2785 = vmatpush1.msra.mxu0 %v662
    %2786 = vmatprep.subr.mxu0 0.0
    %2787 = vmatpush1.msra.mxu0 %v663
    %2788 = vmatprep.subr.mxu0 0.0
    %2789 = vmatpush1.msra.mxu0 %v664
    %2790 = vmatprep.subr.mxu0 0.0
    %2791 = vmatpush1.msra.mxu0 %v665
    %2792 = vmatprep.subr.mxu0 0.0
    %2793 = vmatpush1.msra.mxu0 %v666
    %2794 = vmatprep.subr.mxu0 0.0
    %2795 = vmatpush1.msra.mxu0 %v667
    %2796 = vmatprep.subr.mxu0 0.0
    %2797 = vmatpush1.msra.mxu0 %v668
    %2798 = vmatprep.subr.mxu0 0.0
    %2799 = vmatpush1.msra.mxu0 %v669
    %2800 = vmatprep.subr.mxu0 0.0
    %2801 = vmatpush1.msra.mxu0 %v670
    %2802 = vmatprep.subr.mxu0 0.0
    %2803 = vmatpush1.msra.mxu0 %v671
    %2804 = vmatprep.subr.mxu0 0.0
    %2805 = vmatpush1.msra.mxu0 %v672
    %2806 = vmatprep.subr.mxu0 0.0
    %2807 = vmatpush1.msra.mxu0 %v673
    %2808 = vmatprep.subr.mxu0 0.0
    %2809 = vmatpush1.msra.mxu0 %v674
    %2810 = vmatprep.subr.mxu0 0.0
    %2811 = vmatpush1.msra.mxu0 %v675
    %2812 = vmatprep.subr.mxu0 0.0
    %2813 = vmatpush1.msra.mxu0 %v676
    %2814 = vmatprep.mubr.f32.mxu0 %v1253
    %2815 = vmatmul.mubr.f32.gmra.mrb[0].mxu0 %v1251
    %v2816 = vpop.f32.mrb[0].mxu0
    %v2817 = vadd.f32 %v2747, %v2816
    %v2818 = vpop.f32.mrb[0].mxu0
    %2819 = vdwg.mxu0
    %2820 = vmatprep.subr.mxu0 0.0
    %2821 = vmatpush1.msra.mxu0 %v677
    %2822 = vmatprep.subr.mxu0 0.0
    %2823 = vmatpush1.msra.mxu0 %v678
    %2824 = vmatprep.subr.mxu0 0.0
    %2825 = vmatpush1.msra.mxu0 %v679
    %2826 = vmatprep.subr.mxu0 0.0
    %2827 = vmatpush1.msra.mxu0 %v680
    %2828 = vmatprep.subr.mxu0 0.0
    %2829 = vmatpush1.msra.mxu0 %v681
    %2830 = vmatprep.subr.mxu0 0.0
    %2831 = vmatpush1.msra.mxu0 %v682
    %2832 = vmatprep.subr.mxu0 0.0
    %2833 = vmatpush1.msra.mxu0 %v683
    %2834 = vmatprep.subr.mxu0 0.0
    %2835 = vmatpush1.msra.mxu0 %v684
    %2836 = vmatprep.subr.mxu0 0.0
    %2837 = vmatpush1.msra.mxu0 %v685
    %2838 = vmatprep.subr.mxu0 0.0
    %2839 = vmatpush1.msra.mxu0 %v686
    %2840 = vmatprep.subr.mxu0 0.0
    %2841 = vmatpush1.msra.mxu0 %v687
    %2842 = vmatprep.subr.mxu0 0.0
    %2843 = vmatpush1.msra.mxu0 %v688
    %2844 = vmatprep.subr.mxu0 0.0
    %2845 = vmatpush1.msra.mxu0 %v689
    %2846 = vmatprep.subr.mxu0 0.0
    %2847 = vmatpush1.msra.mxu0 %v690
    %2848 = vmatprep.subr.mxu0 0.0
    %2849 = vmatpush1.msra.mxu0 %v691
    %2850 = vmatprep.subr.mxu0 0.0
    %2851 = vmatpush1.msra.mxu0 %v692
    %2852 = vmatprep.subr.mxu0 0.0
    %2853 = vmatpush1.msra.mxu0 %v693
    %2854 = vmatprep.subr.mxu0 0.0
    %2855 = vmatpush1.msra.mxu0 %v694
    %2856 = vmatprep.subr.mxu0 0.0
    %2857 = vmatpush1.msra.mxu0 %v695
    %2858 = vmatprep.subr.mxu0 0.0
    %2859 = vmatpush1.msra.mxu0 %v696
    %2860 = vmatprep.subr.mxu0 0.0
    %2861 = vmatpush1.msra.mxu0 %v697
    %2862 = vmatprep.subr.mxu0 0.0
    %2863 = vmatpush1.msra.mxu0 %v698
    %2864 = vmatprep.subr.mxu0 0.0
    %2865 = vmatpush1.msra.mxu0 %v699
    %2866 = vmatprep.subr.mxu0 0.0
    %2867 = vmatpush1.msra.mxu0 %v700
    %2868 = vmatprep.subr.mxu0 0.0
    %2869 = vmatpush1.msra.mxu0 %v701
    %2870 = vmatprep.subr.mxu0 0.0
    %2871 = vmatpush1.msra.mxu0 %v702
    %2872 = vmatprep.subr.mxu0 0.0
    %2873 = vmatpush1.msra.mxu0 %v703
    %2874 = vmatprep.subr.mxu0 0.0
    %2875 = vmatpush1.msra.mxu0 %v704
    %2876 = vmatprep.subr.mxu0 0.0
    %2877 = vmatpush1.msra.mxu0 %v705
    %2878 = vmatprep.subr.mxu0 0.0
    %2879 = vmatpush1.msra.mxu0 %v706
    %2880 = vmatprep.subr.mxu0 0.0
    %2881 = vmatpush1.msra.mxu0 %v707
    %2882 = vmatprep.subr.mxu0 0.0
    %2883 = vmatpush1.msra.mxu0 %v708
    %2884 = vmatprep.mubr.f32.mxu0 %v1269
    %2885 = vmatmul.mubr.f32.gmra.mrb[0].mxu0 %v1261
    %v2886 = vpop.f32.mrb[0].mxu0
    %v2887 = vadd.f32 %v2817, %v2886
    %v2888 = vpop.f32.mrb[0].mxu0
    %2889 = vdwg.mxu0
    %2890 = vmatprep.subr.mxu0 0.0
    %2891 = vmatpush1.msra.mxu0 %v709
    %2892 = vmatprep.subr.mxu0 0.0
    %2893 = vmatpush1.msra.mxu0 %v710
    %2894 = vmatprep.subr.mxu0 0.0
    %2895 = vmatpush1.msra.mxu0 %v711
    %2896 = vmatprep.subr.mxu0 0.0
    %2897 = vmatpush1.msra.mxu0 %v712
    %2898 = vmatprep.subr.mxu0 0.0
    %2899 = vmatpush1.msra.mxu0 %v713
    %2900 = vmatprep.subr.mxu0 0.0
    %2901 = vmatpush1.msra.mxu0 %v714
    %2902 = vmatprep.subr.mxu0 0.0
    %2903 = vmatpush1.msra.mxu0 %v715
    %2904 = vmatprep.subr.mxu0 0.0
    %2905 = vmatpush1.msra.mxu0 %v716
    %2906 = vmatprep.subr.mxu0 0.0
    %2907 = vmatpush1.msra.mxu0 %v717
    %2908 = vmatprep.subr.mxu0 0.0
    %2909 = vmatpush1.msra.mxu0 %v718
    %2910 = vmatprep.subr.mxu0 0.0
    %2911 = vmatpush1.msra.mxu0 %v719
    %2912 = vmatprep.subr.mxu0 0.0
    %2913 = vmatpush1.msra.mxu0 %v720
    %2914 = vmatprep.subr.mxu0 0.0
    %2915 = vmatpush1.msra.mxu0 %v721
    %2916 = vmatprep.subr.mxu0 0.0
    %2917 = vmatpush1.msra.mxu0 %v722
    %2918 = vmatprep.subr.mxu0 0.0
    %2919 = vmatpush1.msra.mxu0 %v723
    %2920 = vmatprep.subr.mxu0 0.0
    %2921 = vmatpush1.msra.mxu0 %v724
    %2922 = vmatprep.subr.mxu0 0.0
    %2923 = vmatpush1.msra.mxu0 %v725
    %2924 = vmatprep.subr.mxu0 0.0
    %2925 = vmatpush1.msra.mxu0 %v726
    %2926 = vmatprep.subr.mxu0 0.0
    %2927 = vmatpush1.msra.mxu0 %v727
    %2928 = vmatprep.subr.mxu0 0.0
    %2929 = vmatpush1.msra.mxu0 %v728
    %2930 = vmatprep.subr.mxu0 0.0
    %2931 = vmatpush1.msra.mxu0 %v729
    %2932 = vmatprep.subr.mxu0 0.0
    %2933 = vmatpush1.msra.mxu0 %v730
    %2934 = vmatprep.subr.mxu0 0.0
    %2935 = vmatpush1.msra.mxu0 %v731
    %2936 = vmatprep.subr.mxu0 0.0
    %2937 = vmatpush1.msra.mxu0 %v732
    %2938 = vmatprep.subr.mxu0 0.0
    %2939 = vmatpush1.msra.mxu0 %v733
    %2940 = vmatprep.subr.mxu0 0.0
    %2941 = vmatpush1.msra.mxu0 %v734
    %2942 = vmatprep.subr.mxu0 0.0
    %2943 = vmatpush1.msra.mxu0 %v735
    %2944 = vmatprep.subr.mxu0 0.0
    %2945 = vmatpush1.msra.mxu0 %v736
    %2946 = vmatprep.subr.mxu0 0.0
    %2947 = vmatpush1.msra.mxu0 %v737
    %2948 = vmatprep.subr.mxu0 0.0
    %2949 = vmatpush1.msra.mxu0 %v738
    %2950 = vmatprep.subr.mxu0 0.0
    %2951 = vmatpush1.msra.mxu0 %v739
    %2952 = vmatprep.subr.mxu0 0.0
    %2953 = vmatpush1.msra.mxu0 %v740
    %2954 = vmatprep.mubr.f32.mxu0 %v1270
    %2955 = vmatmul.mubr.f32.gmra.mrb[0].mxu0 %v1268
    %v2956 = vpop.f32.mrb[0].mxu0
    %v2957 = vadd.f32 %v2887, %v2956
    %v2958 = vpop.f32.mrb[0].mxu0
    %2959 = vdwg.mxu0
    %2960 = vmatprep.subr.mxu0 0.0
    %2961 = vmatpush1.msra.mxu0 %v741
    %2962 = vmatprep.subr.mxu0 0.0
    %2963 = vmatpush1.msra.mxu0 %v742
    %2964 = vmatprep.subr.mxu0 0.0
    %2965 = vmatpush1.msra.mxu0 %v743
    %2966 = vmatprep.subr.mxu0 0.0
    %2967 = vmatpush1.msra.mxu0 %v744
    %2968 = vmatprep.subr.mxu0 0.0
    %2969 = vmatpush1.msra.mxu0 %v745
    %2970 = vmatprep.subr.mxu0 0.0
    %2971 = vmatpush1.msra.mxu0 %v746
    %2972 = vmatprep.subr.mxu0 0.0
    %2973 = vmatpush1.msra.mxu0 %v747
    %2974 = vmatprep.subr.mxu0 0.0
    %2975 = vmatpush1.msra.mxu0 %v748
    %2976 = vmatprep.subr.mxu0 0.0
    %2977 = vmatpush1.msra.mxu0 %v749
    %2978 = vmatprep.subr.mxu0 0.0
    %2979 = vmatpush1.msra.mxu0 %v750
    %2980 = vmatprep.subr.mxu0 0.0
    %2981 = vmatpush1.msra.mxu0 %v751
    %2982 = vmatprep.subr.mxu0 0.0
    %2983 = vmatpush1.msra.mxu0 %v752
    %2984 = vmatprep.subr.mxu0 0.0
    %2985 = vmatpush1.msra.mxu0 %v753
    %2986 = vmatprep.subr.mxu0 0.0
    %2987 = vmatpush1.msra.mxu0 %v754
    %2988 = vmatprep.subr.mxu0 0.0
    %2989 = vmatpush1.msra.mxu0 %v755
    %2990 = vmatprep.subr.mxu0 0.0
    %2991 = vmatpush1.msra.mxu0 %v756
    %2992 = vmatprep.subr.mxu0 0.0
    %2993 = vmatpush1.msra.mxu0 %v757
    %2994 = vmatprep.subr.mxu0 0.0
    %2995 = vmatpush1.msra.mxu0 %v758
    %2996 = vmatprep.subr.mxu0 0.0
    %2997 = vmatpush1.msra.mxu0 %v759
    %2998 = vmatprep.subr.mxu0 0.0
    %2999 = vmatpush1.msra.mxu0 %v760
    %3000 = vmatprep.subr.mxu0 0.0
    %3001 = vmatpush1.msra.mxu0 %v761
    %3002 = vmatprep.subr.mxu0 0.0
    %3003 = vmatpush1.msra.mxu0 %v762
    %3004 = vmatprep.subr.mxu0 0.0
    %3005 = vmatpush1.msra.mxu0 %v763
    %3006 = vmatprep.subr.mxu0 0.0
    %3007 = vmatpush1.msra.mxu0 %v764
    %3008 = vmatprep.subr.mxu0 0.0
    %3009 = vmatpush1.msra.mxu0 %v765
    %3010 = vmatprep.subr.mxu0 0.0
    %3011 = vmatpush1.msra.mxu0 %v766
    %3012 = vmatprep.subr.mxu0 0.0
    %3013 = vmatpush1.msra.mxu0 %v767
    %3014 = vmatprep.subr.mxu0 0.0
    %3015 = vmatpush1.msra.mxu0 %v768
    %3016 = vmatprep.subr.mxu0 0.0
    %3017 = vmatpush1.msra.mxu0 %v769
    %3018 = vmatprep.subr.mxu0 0.0
    %3019 = vmatpush1.msra.mxu0 %v770
    %3020 = vmatprep.subr.mxu0 0.0
    %3021 = vmatpush1.msra.mxu0 %v771
    %3022 = vmatprep.subr.mxu0 0.0
    %3023 = vmatpush1.msra.mxu0 %v772
    %3024 = vmatprep.mubr.f32.mxu0 %v1286
    %3025 = vmatmul.mubr.f32.gmra.mrb[0].mxu0 %v1278
    %v3026 = vpop.f32.mrb[0].mxu0
    %v3027 = vadd.f32 %v2957, %v3026
    %v3028 = vpop.f32.mrb[0].mxu0
    %3029 = vdwg.mxu0
    %3030 = vmatprep.subr.mxu0 0.0
    %3031 = vmatpush1.msra.mxu0 %v773
    %3032 = vmatprep.subr.mxu0 0.0
    %3033 = vmatpush1.msra.mxu0 %v774
    %3034 = vmatprep.subr.mxu0 0.0
    %3035 = vmatpush1.msra.mxu0 %v775
    %3036 = vmatprep.subr.mxu0 0.0
    %3037 = vmatpush1.msra.mxu0 %v776
    %3038 = vmatprep.subr.mxu0 0.0
    %3039 = vmatpush1.msra.mxu0 %v777
    %3040 = vmatprep.subr.mxu0 0.0
    %3041 = vmatpush1.msra.mxu0 %v778
    %3042 = vmatprep.subr.mxu0 0.0
    %3043 = vmatpush1.msra.mxu0 %v779
    %3044 = vmatprep.subr.mxu0 0.0
    %3045 = vmatpush1.msra.mxu0 %v780
    %3046 = vmatprep.subr.mxu0 0.0
    %3047 = vmatpush1.msra.mxu0 %v781
    %3048 = vmatprep.subr.mxu0 0.0
    %3049 = vmatpush1.msra.mxu0 %v782
    %3050 = vmatprep.subr.mxu0 0.0
    %3051 = vmatpush1.msra.mxu0 %v783
    %3052 = vmatprep.subr.mxu0 0.0
    %3053 = vmatpush1.msra.mxu0 %v784
    %3054 = vmatprep.subr.mxu0 0.0
    %3055 = vmatpush1.msra.mxu0 %v785
    %3056 = vmatprep.subr.mxu0 0.0
    %3057 = vmatpush1.msra.mxu0 %v786
    %3058 = vmatprep.subr.mxu0 0.0
    %3059 = vmatpush1.msra.mxu0 %v787
    %3060 = vmatprep.subr.mxu0 0.0
    %3061 = vmatpush1.msra.mxu0 %v788
    %3062 = vmatprep.subr.mxu0 0.0
    %3063 = vmatpush1.msra.mxu0 %v789
    %3064 = vmatprep.subr.mxu0 0.0
    %3065 = vmatpush1.msra.mxu0 %v790
    %3066 = vmatprep.subr.mxu0 0.0
    %3067 = vmatpush1.msra.mxu0 %v791
    %3068 = vmatprep.subr.mxu0 0.0
    %3069 = vmatpush1.msra.mxu0 %v792
    %3070 = vmatprep.subr.mxu0 0.0
    %3071 = vmatpush1.msra.mxu0 %v793
    %3072 = vmatprep.subr.mxu0 0.0
    %3073 = vmatpush1.msra.mxu0 %v794
    %3074 = vmatprep.subr.mxu0 0.0
    %3075 = vmatpush1.msra.mxu0 %v795
    %3076 = vmatprep.subr.mxu0 0.0
    %3077 = vmatpush1.msra.mxu0 %v796
    %3078 = vmatprep.subr.mxu0 0.0
    %3079 = vmatpush1.msra.mxu0 %v797
    %3080 = vmatprep.subr.mxu0 0.0
    %3081 = vmatpush1.msra.mxu0 %v798
    %3082 = vmatprep.subr.mxu0 0.0
    %3083 = vmatpush1.msra.mxu0 %v799
    %3084 = vmatprep.subr.mxu0 0.0
    %3085 = vmatpush1.msra.mxu0 %v800
    %3086 = vmatprep.subr.mxu0 0.0
    %3087 = vmatpush1.msra.mxu0 %v801
    %3088 = vmatprep.subr.mxu0 0.0
    %3089 = vmatpush1.msra.mxu0 %v802
    %3090 = vmatprep.subr.mxu0 0.0
    %3091 = vmatpush1.msra.mxu0 %v803
    %3092 = vmatprep.subr.mxu0 0.0
    %3093 = vmatpush1.msra.mxu0 %v804
    %3094 = vmatprep.mubr.f32.mxu0 %v1287
    %3095 = vmatmul.mubr.f32.gmra.mrb[0].mxu0 %v1285
    %v3096 = vpop.f32.mrb[0].mxu0
    %v3097 = vadd.f32 %v3027, %v3096
    %v3098 = vpop.f32.mrb[0].mxu0
    %3099 = vdwg.mxu0
    %3100 = vmatprep.subr.mxu0 0.0
    %3101 = vmatpush1.msra.mxu0 %v805
    %3102 = vmatprep.subr.mxu0 0.0
    %3103 = vmatpush1.msra.mxu0 %v806
    %3104 = vmatprep.subr.mxu0 0.0
    %3105 = vmatpush1.msra.mxu0 %v807
    %3106 = vmatprep.subr.mxu0 0.0
    %3107 = vmatpush1.msra.mxu0 %v808
    %3108 = vmatprep.subr.mxu0 0.0
    %3109 = vmatpush1.msra.mxu0 %v809
    %3110 = vmatprep.subr.mxu0 0.0
    %3111 = vmatpush1.msra.mxu0 %v810
    %3112 = vmatprep.subr.mxu0 0.0
    %3113 = vmatpush1.msra.mxu0 %v811
    %3114 = vmatprep.subr.mxu0 0.0
    %3115 = vmatpush1.msra.mxu0 %v812
    %3116 = vmatprep.subr.mxu0 0.0
    %3117 = vmatpush1.msra.mxu0 %v813
    %3118 = vmatprep.subr.mxu0 0.0
    %3119 = vmatpush1.msra.mxu0 %v814
    %3120 = vmatprep.subr.mxu0 0.0
    %3121 = vmatpush1.msra.mxu0 %v815
    %3122 = vmatprep.subr.mxu0 0.0
    %3123 = vmatpush1.msra.mxu0 %v816
    %3124 = vmatprep.subr.mxu0 0.0
    %3125 = vmatpush1.msra.mxu0 %v817
    %3126 = vmatprep.subr.mxu0 0.0
    %3127 = vmatpush1.msra.mxu0 %v818
    %3128 = vmatprep.subr.mxu0 0.0
    %3129 = vmatpush1.msra.mxu0 %v819
    %3130 = vmatprep.subr.mxu0 0.0
    %3131 = vmatpush1.msra.mxu0 %v820
    %3132 = vmatprep.subr.mxu0 0.0
    %3133 = vmatpush1.msra.mxu0 %v821
    %3134 = vmatprep.subr.mxu0 0.0
    %3135 = vmatpush1.msra.mxu0 %v822
    %3136 = vmatprep.subr.mxu0 0.0
    %3137 = vmatpush1.msra.mxu0 %v823
    %3138 = vmatprep.subr.mxu0 0.0
    %3139 = vmatpush1.msra.mxu0 %v824
    %3140 = vmatprep.subr.mxu0 0.0
    %3141 = vmatpush1.msra.mxu0 %v825
    %3142 = vmatprep.subr.mxu0 0.0
    %3143 = vmatpush1.msra.mxu0 %v826
    %3144 = vmatprep.subr.mxu0 0.0
    %3145 = vmatpush1.msra.mxu0 %v827
    %3146 = vmatprep.subr.mxu0 0.0
    %3147 = vmatpush1.msra.mxu0 %v828
    %3148 = vmatprep.subr.mxu0 0.0
    %3149 = vmatpush1.msra.mxu0 %v829
    %3150 = vmatprep.subr.mxu0 0.0
    %3151 = vmatpush1.msra.mxu0 %v830
    %3152 = vmatprep.subr.mxu0 0.0
    %3153 = vmatpush1.msra.mxu0 %v831
    %3154 = vmatprep.subr.mxu0 0.0
    %3155 = vmatpush1.msra.mxu0 %v832
    %3156 = vmatprep.subr.mxu0 0.0
    %3157 = vmatpush1.msra.mxu0 %v833
    %3158 = vmatprep.subr.mxu0 0.0
    %3159 = vmatpush1.msra.mxu0 %v834
    %3160 = vmatprep.subr.mxu0 0.0
    %3161 = vmatpush1.msra.mxu0 %v835
    %3162 = vmatprep.subr.mxu0 0.0
    %3163 = vmatpush1.msra.mxu0 %v836
    %3164 = vmatprep.mubr.f32.mxu0 %v1303
    %3165 = vmatmul.mubr.f32.gmra.mrb[0].mxu0 %v1295
    %v3166 = vpop.f32.mrb[0].mxu0
    %v3167 = vadd.f32 %v3097, %v3166
    %v3168 = vpop.f32.mrb[0].mxu0
    %3169 = vdwg.mxu0
    %3170 = vmatprep.subr.mxu0 0.0
    %3171 = vmatpush1.msra.mxu0 %v837
    %3172 = vmatprep.subr.mxu0 0.0
    %3173 = vmatpush1.msra.mxu0 %v838
    %3174 = vmatprep.subr.mxu0 0.0
    %3175 = vmatpush1.msra.mxu0 %v839
    %3176 = vmatprep.subr.mxu0 0.0
    %3177 = vmatpush1.msra.mxu0 %v840
    %3178 = vmatprep.subr.mxu0 0.0
    %3179 = vmatpush1.msra.mxu0 %v841
    %3180 = vmatprep.subr.mxu0 0.0
    %3181 = vmatpush1.msra.mxu0 %v842
    %3182 = vmatprep.subr.mxu0 0.0
    %3183 = vmatpush1.msra.mxu0 %v843
    %3184 = vmatprep.subr.mxu0 0.0
    %3185 = vmatpush1.msra.mxu0 %v844
    %3186 = vmatprep.subr.mxu0 0.0
    %3187 = vmatpush1.msra.mxu0 %v845
    %3188 = vmatprep.subr.mxu0 0.0
    %3189 = vmatpush1.msra.mxu0 %v846
    %3190 = vmatprep.subr.mxu0 0.0
    %3191 = vmatpush1.msra.mxu0 %v847
    %3192 = vmatprep.subr.mxu0 0.0
    %3193 = vmatpush1.msra.mxu0 %v848
    %3194 = vmatprep.subr.mxu0 0.0
    %3195 = vmatpush1.msra.mxu0 %v849
    %3196 = vmatprep.subr.mxu0 0.0
    %3197 = vmatpush1.msra.mxu0 %v850
    %3198 = vmatprep.subr.mxu0 0.0
    %3199 = vmatpush1.msra.mxu0 %v851
    %3200 = vmatprep.subr.mxu0 0.0
    %3201 = vmatpush1.msra.mxu0 %v852
    %3202 = vmatprep.subr.mxu0 0.0
    %3203 = vmatpush1.msra.mxu0 %v853
    %3204 = vmatprep.subr.mxu0 0.0
    %3205 = vmatpush1.msra.mxu0 %v854
    %3206 = vmatprep.subr.mxu0 0.0
    %3207 = vmatpush1.msra.mxu0 %v855
    %3208 = vmatprep.subr.mxu0 0.0
    %3209 = vmatpush1.msra.mxu0 %v856
    %3210 = vmatprep.subr.mxu0 0.0
    %3211 = vmatpush1.msra.mxu0 %v857
    %3212 = vmatprep.subr.mxu0 0.0
    %3213 = vmatpush1.msra.mxu0 %v858
    %3214 = vmatprep.subr.mxu0 0.0
    %3215 = vmatpush1.msra.mxu0 %v859
    %3216 = vmatprep.subr.mxu0 0.0
    %3217 = vmatpush1.msra.mxu0 %v860
    %3218 = vmatprep.subr.mxu0 0.0
    %3219 = vmatpush1.msra.mxu0 %v861
    %3220 = vmatprep.subr.mxu0 0.0
    %3221 = vmatpush1.msra.mxu0 %v862
    %3222 = vmatprep.subr.mxu0 0.0
    %3223 = vmatpush1.msra.mxu0 %v863
    %3224 = vmatprep.subr.mxu0 0.0
    %3225 = vmatpush1.msra.mxu0 %v864
    %3226 = vmatprep.subr.mxu0 0.0
    %3227 = vmatpush1.msra.mxu0 %v865
    %3228 = vmatprep.subr.mxu0 0.0
    %3229 = vmatpush1.msra.mxu0 %v866
    %3230 = vmatprep.subr.mxu0 0.0
    %3231 = vmatpush1.msra.mxu0 %v867
    %3232 = vmatprep.subr.mxu0 0.0
    %3233 = vmatpush1.msra.mxu0 %v868
    %3234 = vmatprep.mubr.f32.mxu0 %v1304
    %3235 = vmatmul.mubr.f32.gmra.mrb[0].mxu0 %v1302
    %v3236 = vpop.f32.mrb[0].mxu0
    %v3237 = vadd.f32 %v3167, %v3236
    %v3238 = vpop.f32.mrb[0].mxu0
    %3239 = vdwg.mxu0
    %3240 = vmatprep.subr.mxu0 0.0
    %3241 = vmatpush1.msra.mxu0 %v869
    %3242 = vmatprep.subr.mxu0 0.0
    %3243 = vmatpush1.msra.mxu0 %v870
    %3244 = vmatprep.subr.mxu0 0.0
    %3245 = vmatpush1.msra.mxu0 %v871
    %3246 = vmatprep.subr.mxu0 0.0
    %3247 = vmatpush1.msra.mxu0 %v872
    %3248 = vmatprep.subr.mxu0 0.0
    %3249 = vmatpush1.msra.mxu0 %v873
    %3250 = vmatprep.subr.mxu0 0.0
    %3251 = vmatpush1.msra.mxu0 %v874
    %3252 = vmatprep.subr.mxu0 0.0
    %3253 = vmatpush1.msra.mxu0 %v875
    %3254 = vmatprep.subr.mxu0 0.0
    %3255 = vmatpush1.msra.mxu0 %v876
    %3256 = vmatprep.subr.mxu0 0.0
    %3257 = vmatpush1.msra.mxu0 %v877
    %3258 = vmatprep.subr.mxu0 0.0
    %3259 = vmatpush1.msra.mxu0 %v878
    %3260 = vmatprep.subr.mxu0 0.0
    %3261 = vmatpush1.msra.mxu0 %v879
    %3262 = vmatprep.subr.mxu0 0.0
    %3263 = vmatpush1.msra.mxu0 %v880
    %3264 = vmatprep.subr.mxu0 0.0
    %3265 = vmatpush1.msra.mxu0 %v881
    %3266 = vmatprep.subr.mxu0 0.0
    %3267 = vmatpush1.msra.mxu0 %v882
    %3268 = vmatprep.subr.mxu0 0.0
    %3269 = vmatpush1.msra.mxu0 %v883
    %3270 = vmatprep.subr.mxu0 0.0
    %3271 = vmatpush1.msra.mxu0 %v884
    %3272 = vmatprep.subr.mxu0 0.0
    %3273 = vmatpush1.msra.mxu0 %v885
    %3274 = vmatprep.subr.mxu0 0.0
    %3275 = vmatpush1.msra.mxu0 %v886
    %3276 = vmatprep.subr.mxu0 0.0
    %3277 = vmatpush1.msra.mxu0 %v887
    %3278 = vmatprep.subr.mxu0 0.0
    %3279 = vmatpush1.msra.mxu0 %v888
    %3280 = vmatprep.subr.mxu0 0.0
    %3281 = vmatpush1.msra.mxu0 %v889
    %3282 = vmatprep.subr.mxu0 0.0
    %3283 = vmatpush1.msra.mxu0 %v890
    %3284 = vmatprep.subr.mxu0 0.0
    %3285 = vmatpush1.msra.mxu0 %v891
    %3286 = vmatprep.subr.mxu0 0.0
    %3287 = vmatpush1.msra.mxu0 %v892
    %3288 = vmatprep.subr.mxu0 0.0
    %3289 = vmatpush1.msra.mxu0 %v893
    %3290 = vmatprep.subr.mxu0 0.0
    %3291 = vmatpush1.msra.mxu0 %v894
    %3292 = vmatprep.subr.mxu0 0.0
    %3293 = vmatpush1.msra.mxu0 %v895
    %3294 = vmatprep.subr.mxu0 0.0
    %3295 = vmatpush1.msra.mxu0 %v896
    %3296 = vmatprep.subr.mxu0 0.0
    %3297 = vmatpush1.msra.mxu0 %v897
    %3298 = vmatprep.subr.mxu0 0.0
    %3299 = vmatpush1.msra.mxu0 %v898
    %3300 = vmatprep.subr.mxu0 0.0
    %3301 = vmatpush1.msra.mxu0 %v899
    %3302 = vmatprep.subr.mxu0 0.0
    %3303 = vmatpush1.msra.mxu0 %v900
    %3304 = vmatprep.mubr.f32.mxu0 %v1320
    %3305 = vmatmul.mubr.f32.gmra.mrb[0].mxu0 %v1312
    %v3306 = vpop.f32.mrb[0].mxu0
    %v3307 = vadd.f32 %v3237, %v3306
    %v3308 = vpop.f32.mrb[0].mxu0
    %3309 = vdwg.mxu0
    %3310 = vmatprep.subr.mxu0 0.0
    %3311 = vmatpush1.msra.mxu0 %v901
    %3312 = vmatprep.subr.mxu0 0.0
    %3313 = vmatpush1.msra.mxu0 %v902
    %3314 = vmatprep.subr.mxu0 0.0
    %3315 = vmatpush1.msra.mxu0 %v903
    %3316 = vmatprep.subr.mxu0 0.0
    %3317 = vmatpush1.msra.mxu0 %v904
    %3318 = vmatprep.subr.mxu0 0.0
    %3319 = vmatpush1.msra.mxu0 %v905
    %3320 = vmatprep.subr.mxu0 0.0
    %3321 = vmatpush1.msra.mxu0 %v906
    %3322 = vmatprep.subr.mxu0 0.0
    %3323 = vmatpush1.msra.mxu0 %v907
    %3324 = vmatprep.subr.mxu0 0.0
    %3325 = vmatpush1.msra.mxu0 %v908
    %3326 = vmatprep.subr.mxu0 0.0
    %3327 = vmatpush1.msra.mxu0 %v909
    %3328 = vmatprep.subr.mxu0 0.0
    %3329 = vmatpush1.msra.mxu0 %v910
    %3330 = vmatprep.subr.mxu0 0.0
    %3331 = vmatpush1.msra.mxu0 %v911
    %3332 = vmatprep.subr.mxu0 0.0
    %3333 = vmatpush1.msra.mxu0 %v912
    %3334 = vmatprep.subr.mxu0 0.0
    %3335 = vmatpush1.msra.mxu0 %v913
    %3336 = vmatprep.subr.mxu0 0.0
    %3337 = vmatpush1.msra.mxu0 %v914
    %3338 = vmatprep.subr.mxu0 0.0
    %3339 = vmatpush1.msra.mxu0 %v915
    %3340 = vmatprep.subr.mxu0 0.0
    %3341 = vmatpush1.msra.mxu0 %v916
    %3342 = vmatprep.subr.mxu0 0.0
    %3343 = vmatpush1.msra.mxu0 %v917
    %3344 = vmatprep.subr.mxu0 0.0
    %3345 = vmatpush1.msra.mxu0 %v918
    %3346 = vmatprep.subr.mxu0 0.0
    %3347 = vmatpush1.msra.mxu0 %v919
    %3348 = vmatprep.subr.mxu0 0.0
    %3349 = vmatpush1.msra.mxu0 %v920
    %3350 = vmatprep.subr.mxu0 0.0
    %3351 = vmatpush1.msra.mxu0 %v921
    %3352 = vmatprep.subr.mxu0 0.0
    %3353 = vmatpush1.msra.mxu0 %v922
    %3354 = vmatprep.subr.mxu0 0.0
    %3355 = vmatpush1.msra.mxu0 %v923
    %3356 = vmatprep.subr.mxu0 0.0
    %3357 = vmatpush1.msra.mxu0 %v924
    %3358 = vmatprep.subr.mxu0 0.0
    %3359 = vmatpush1.msra.mxu0 %v925
    %3360 = vmatprep.subr.mxu0 0.0
    %3361 = vmatpush1.msra.mxu0 %v926
    %3362 = vmatprep.subr.mxu0 0.0
    %3363 = vmatpush1.msra.mxu0 %v927
    %3364 = vmatprep.subr.mxu0 0.0
    %3365 = vmatpush1.msra.mxu0 %v928
    %3366 = vmatprep.subr.mxu0 0.0
    %3367 = vmatpush1.msra.mxu0 %v929
    %3368 = vmatprep.subr.mxu0 0.0
    %3369 = vmatpush1.msra.mxu0 %v930
    %3370 = vmatprep.subr.mxu0 0.0
    %3371 = vmatpush1.msra.mxu0 %v931
    %3372 = vmatprep.subr.mxu0 0.0
    %3373 = vmatpush1.msra.mxu0 %v932
    %3374 = vmatprep.mubr.f32.mxu0 %v1321
    %3375 = vmatmul.mubr.f32.gmra.mrb[0].mxu0 %v1319
    %v3376 = vpop.f32.mrb[0].mxu0
    %v3377 = vadd.f32 %v3307, %v3376
    %v3378 = vpop.f32.mrb[0].mxu0
    %3379 = vdwg.mxu0
    %3380 = vmatprep.subr.mxu0 0.0
    %3381 = vmatpush1.msra.mxu0 %v933
    %3382 = vmatprep.subr.mxu0 0.0
    %3383 = vmatpush1.msra.mxu0 %v934
    %3384 = vmatprep.subr.mxu0 0.0
    %3385 = vmatpush1.msra.mxu0 %v935
    %3386 = vmatprep.subr.mxu0 0.0
    %3387 = vmatpush1.msra.mxu0 %v936
    %3388 = vmatprep.subr.mxu0 0.0
    %3389 = vmatpush1.msra.mxu0 %v937
    %3390 = vmatprep.subr.mxu0 0.0
    %3391 = vmatpush1.msra.mxu0 %v938
    %3392 = vmatprep.subr.mxu0 0.0
    %3393 = vmatpush1.msra.mxu0 %v939
    %3394 = vmatprep.subr.mxu0 0.0
    %3395 = vmatpush1.msra.mxu0 %v940
    %3396 = vmatprep.subr.mxu0 0.0
    %3397 = vmatpush1.msra.mxu0 %v941
    %3398 = vmatprep.subr.mxu0 0.0
    %3399 = vmatpush1.msra.mxu0 %v942
    %3400 = vmatprep.subr.mxu0 0.0
    %3401 = vmatpush1.msra.mxu0 %v943
    %3402 = vmatprep.subr.mxu0 0.0
    %3403 = vmatpush1.msra.mxu0 %v944
    %3404 = vmatprep.subr.mxu0 0.0
    %3405 = vmatpush1.msra.mxu0 %v945
    %3406 = vmatprep.subr.mxu0 0.0
    %3407 = vmatpush1.msra.mxu0 %v946
    %3408 = vmatprep.subr.mxu0 0.0
    %3409 = vmatpush1.msra.mxu0 %v947
    %3410 = vmatprep.subr.mxu0 0.0
    %3411 = vmatpush1.msra.mxu0 %v948
    %3412 = vmatprep.subr.mxu0 0.0
    %3413 = vmatpush1.msra.mxu0 %v949
    %3414 = vmatprep.subr.mxu0 0.0
    %3415 = vmatpush1.msra.mxu0 %v950
    %3416 = vmatprep.subr.mxu0 0.0
    %3417 = vmatpush1.msra.mxu0 %v951
    %3418 = vmatprep.subr.mxu0 0.0
    %3419 = vmatpush1.msra.mxu0 %v952
    %3420 = vmatprep.subr.mxu0 0.0
    %3421 = vmatpush1.msra.mxu0 %v953
    %3422 = vmatprep.subr.mxu0 0.0
    %3423 = vmatpush1.msra.mxu0 %v954
    %3424 = vmatprep.subr.mxu0 0.0
    %3425 = vmatpush1.msra.mxu0 %v955
    %3426 = vmatprep.subr.mxu0 0.0
    %3427 = vmatpush1.msra.mxu0 %v956
    %3428 = vmatprep.subr.mxu0 0.0
    %3429 = vmatpush1.msra.mxu0 %v957
    %3430 = vmatprep.subr.mxu0 0.0
    %3431 = vmatpush1.msra.mxu0 %v958
    %3432 = vmatprep.subr.mxu0 0.0
    %3433 = vmatpush1.msra.mxu0 %v959
    %3434 = vmatprep.subr.mxu0 0.0
    %3435 = vmatpush1.msra.mxu0 %v960
    %3436 = vmatprep.subr.mxu0 0.0
    %3437 = vmatpush1.msra.mxu0 %v961
    %3438 = vmatprep.subr.mxu0 0.0
    %3439 = vmatpush1.msra.mxu0 %v962
    %3440 = vmatprep.subr.mxu0 0.0
    %3441 = vmatpush1.msra.mxu0 %v963
    %3442 = vmatprep.subr.mxu0 0.0
    %3443 = vmatpush1.msra.mxu0 %v964
    %3444 = vmatprep.mubr.f32.mxu0 %v1337
    %3445 = vmatmul.mubr.f32.gmra.mrb[0].mxu0 %v1329
    %v3446 = vpop.f32.mrb[0].mxu0
    %v3447 = vadd.f32 %v3377, %v3446
    %v3448 = vpop.f32.mrb[0].mxu0
    %3449 = vdwg.mxu0
    %3450 = vmatprep.subr.mxu0 0.0
    %3451 = vmatpush1.msra.mxu0 %v965
    %3452 = vmatprep.subr.mxu0 0.0
    %3453 = vmatpush1.msra.mxu0 %v966
    %3454 = vmatprep.subr.mxu0 0.0
    %3455 = vmatpush1.msra.mxu0 %v967
    %3456 = vmatprep.subr.mxu0 0.0
    %3457 = vmatpush1.msra.mxu0 %v968
    %3458 = vmatprep.subr.mxu0 0.0
    %3459 = vmatpush1.msra.mxu0 %v969
    %3460 = vmatprep.subr.mxu0 0.0
    %3461 = vmatpush1.msra.mxu0 %v970
    %3462 = vmatprep.subr.mxu0 0.0
    %3463 = vmatpush1.msra.mxu0 %v971
    %3464 = vmatprep.subr.mxu0 0.0
    %3465 = vmatpush1.msra.mxu0 %v972
    %3466 = vmatprep.subr.mxu0 0.0
    %3467 = vmatpush1.msra.mxu0 %v973
    %3468 = vmatprep.subr.mxu0 0.0
    %3469 = vmatpush1.msra.mxu0 %v974
    %3470 = vmatprep.subr.mxu0 0.0
    %3471 = vmatpush1.msra.mxu0 %v975
    %3472 = vmatprep.subr.mxu0 0.0
    %3473 = vmatpush1.msra.mxu0 %v976
    %3474 = vmatprep.subr.mxu0 0.0
    %3475 = vmatpush1.msra.mxu0 %v977
    %3476 = vmatprep.subr.mxu0 0.0
    %3477 = vmatpush1.msra.mxu0 %v978
    %3478 = vmatprep.subr.mxu0 0.0
    %3479 = vmatpush1.msra.mxu0 %v979
    %3480 = vmatprep.subr.mxu0 0.0
    %3481 = vmatpush1.msra.mxu0 %v980
    %3482 = vmatprep.subr.mxu0 0.0
    %3483 = vmatpush1.msra.mxu0 %v981
    %3484 = vmatprep.subr.mxu0 0.0
    %3485 = vmatpush1.msra.mxu0 %v982
    %3486 = vmatprep.subr.mxu0 0.0
    %3487 = vmatpush1.msra.mxu0 %v983
    %3488 = vmatprep.subr.mxu0 0.0
    %3489 = vmatpush1.msra.mxu0 %v984
    %3490 = vmatprep.subr.mxu0 0.0
    %3491 = vmatpush1.msra.mxu0 %v985
    %3492 = vmatprep.subr.mxu0 0.0
    %3493 = vmatpush1.msra.mxu0 %v986
    %3494 = vmatprep.subr.mxu0 0.0
    %3495 = vmatpush1.msra.mxu0 %v987
    %3496 = vmatprep.subr.mxu0 0.0
    %3497 = vmatpush1.msra.mxu0 %v988
    %3498 = vmatprep.subr.mxu0 0.0
    %3499 = vmatpush1.msra.mxu0 %v989
    %3500 = vmatprep.subr.mxu0 0.0
    %3501 = vmatpush1.msra.mxu0 %v990
    %3502 = vmatprep.subr.mxu0 0.0
    %3503 = vmatpush1.msra.mxu0 %v991
    %3504 = vmatprep.subr.mxu0 0.0
    %3505 = vmatpush1.msra.mxu0 %v992
    %3506 = vmatprep.subr.mxu0 0.0
    %3507 = vmatpush1.msra.mxu0 %v993
    %3508 = vmatprep.subr.mxu0 0.0
    %3509 = vmatpush1.msra.mxu0 %v994
    %3510 = vmatprep.subr.mxu0 0.0
    %3511 = vmatpush1.msra.mxu0 %v995
    %3512 = vmatprep.subr.mxu0 0.0
    %3513 = vmatpush1.msra.mxu0 %v996
    %3514 = vmatprep.mubr.f32.mxu0 %v1338
    %3515 = vmatmul.mubr.f32.gmra.mrb[0].mxu0 %v1336
    %v3516 = vpop.f32.mrb[0].mxu0
    %v3517 = vadd.f32 %v3447, %v3516
    %v3518 = vpop.f32.mrb[0].mxu0
    %3519 = vdwg.mxu0
    %3520 = vmatprep.subr.mxu0 0.0
    %3521 = vmatpush1.msra.mxu0 %v997
    %3522 = vmatprep.subr.mxu0 0.0
    %3523 = vmatpush1.msra.mxu0 %v998
    %3524 = vmatprep.subr.mxu0 0.0
    %3525 = vmatpush1.msra.mxu0 %v999
    %3526 = vmatprep.subr.mxu0 0.0
    %3527 = vmatpush1.msra.mxu0 %v1000
    %3528 = vmatprep.subr.mxu0 0.0
    %3529 = vmatpush1.msra.mxu0 %v1001
    %3530 = vmatprep.subr.mxu0 0.0
    %3531 = vmatpush1.msra.mxu0 %v1002
    %3532 = vmatprep.subr.mxu0 0.0
    %3533 = vmatpush1.msra.mxu0 %v1003
    %3534 = vmatprep.subr.mxu0 0.0
    %3535 = vmatpush1.msra.mxu0 %v1004
    %3536 = vmatprep.subr.mxu0 0.0
    %3537 = vmatpush1.msra.mxu0 %v1005
    %3538 = vmatprep.subr.mxu0 0.0
    %3539 = vmatpush1.msra.mxu0 %v1006
    %3540 = vmatprep.subr.mxu0 0.0
    %3541 = vmatpush1.msra.mxu0 %v1007
    %3542 = vmatprep.subr.mxu0 0.0
    %3543 = vmatpush1.msra.mxu0 %v1008
    %3544 = vmatprep.subr.mxu0 0.0
    %3545 = vmatpush1.msra.mxu0 %v1009
    %3546 = vmatprep.subr.mxu0 0.0
    %3547 = vmatpush1.msra.mxu0 %v1010
    %3548 = vmatprep.subr.mxu0 0.0
    %3549 = vmatpush1.msra.mxu0 %v1011
    %3550 = vmatprep.subr.mxu0 0.0
    %3551 = vmatpush1.msra.mxu0 %v1012
    %3552 = vmatprep.subr.mxu0 0.0
    %3553 = vmatpush1.msra.mxu0 %v1013
    %3554 = vmatprep.subr.mxu0 0.0
    %3555 = vmatpush1.msra.mxu0 %v1014
    %3556 = vmatprep.subr.mxu0 0.0
    %3557 = vmatpush1.msra.mxu0 %v1015
    %3558 = vmatprep.subr.mxu0 0.0
    %3559 = vmatpush1.msra.mxu0 %v1016
    %3560 = vmatprep.subr.mxu0 0.0
    %3561 = vmatpush1.msra.mxu0 %v1017
    %3562 = vmatprep.subr.mxu0 0.0
    %3563 = vmatpush1.msra.mxu0 %v1018
    %3564 = vmatprep.subr.mxu0 0.0
    %3565 = vmatpush1.msra.mxu0 %v1019
    %3566 = vmatprep.subr.mxu0 0.0
    %3567 = vmatpush1.msra.mxu0 %v1020
    %3568 = vmatprep.subr.mxu0 0.0
    %3569 = vmatpush1.msra.mxu0 %v1021
    %3570 = vmatprep.subr.mxu0 0.0
    %3571 = vmatpush1.msra.mxu0 %v1022
    %3572 = vmatprep.subr.mxu0 0.0
    %3573 = vmatpush1.msra.mxu0 %v1023
    %3574 = vmatprep.subr.mxu0 0.0
    %3575 = vmatpush1.msra.mxu0 %v1024
    %3576 = vmatprep.subr.mxu0 0.0
    %3577 = vmatpush1.msra.mxu0 %v1025
    %3578 = vmatprep.subr.mxu0 0.0
    %3579 = vmatpush1.msra.mxu0 %v1026
    %3580 = vmatprep.subr.mxu0 0.0
    %3581 = vmatpush1.msra.mxu0 %v1027
    %3582 = vmatprep.subr.mxu0 0.0
    %3583 = vmatpush1.msra.mxu0 %v1028
    %3584 = vmatprep.mubr.f32.mxu0 %v1354
    %3585 = vmatmul.mubr.f32.gmra.mrb[0].mxu0 %v1346
    %v3586 = vpop.f32.mrb[0].mxu0
    %v3587 = vadd.f32 %v3517, %v3586
    %v3588 = vpop.f32.mrb[0].mxu0
    %3589 = vdwg.mxu0
    %3590 = vmatprep.subr.mxu0 0.0
    %3591 = vmatpush1.msra.mxu0 %v1029
    %3592 = vmatprep.subr.mxu0 0.0
    %3593 = vmatpush1.msra.mxu0 %v1030
    %3594 = vmatprep.subr.mxu0 0.0
    %3595 = vmatpush1.msra.mxu0 %v1031
    %3596 = vmatprep.subr.mxu0 0.0
    %3597 = vmatpush1.msra.mxu0 %v1032
    %3598 = vmatprep.subr.mxu0 0.0
    %3599 = vmatpush1.msra.mxu0 %v1033
    %3600 = vmatprep.subr.mxu0 0.0
    %3601 = vmatpush1.msra.mxu0 %v1034
    %3602 = vmatprep.subr.mxu0 0.0
    %3603 = vmatpush1.msra.mxu0 %v1035
    %3604 = vmatprep.subr.mxu0 0.0
    %3605 = vmatpush1.msra.mxu0 %v1036
    %3606 = vmatprep.subr.mxu0 0.0
    %3607 = vmatpush1.msra.mxu0 %v1037
    %3608 = vmatprep.subr.mxu0 0.0
    %3609 = vmatpush1.msra.mxu0 %v1038
    %3610 = vmatprep.subr.mxu0 0.0
    %3611 = vmatpush1.msra.mxu0 %v1039
    %3612 = vmatprep.subr.mxu0 0.0
    %3613 = vmatpush1.msra.mxu0 %v1040
    %3614 = vmatprep.subr.mxu0 0.0
    %3615 = vmatpush1.msra.mxu0 %v1041
    %3616 = vmatprep.subr.mxu0 0.0
    %3617 = vmatpush1.msra.mxu0 %v1042
    %3618 = vmatprep.subr.mxu0 0.0
    %3619 = vmatpush1.msra.mxu0 %v1043
    %3620 = vmatprep.subr.mxu0 0.0
    %3621 = vmatpush1.msra.mxu0 %v1044
    %3622 = vmatprep.subr.mxu0 0.0
    %3623 = vmatpush1.msra.mxu0 %v1045
    %3624 = vmatprep.subr.mxu0 0.0
    %3625 = vmatpush1.msra.mxu0 %v1046
    %3626 = vmatprep.subr.mxu0 0.0
    %3627 = vmatpush1.msra.mxu0 %v1047
    %3628 = vmatprep.subr.mxu0 0.0
    %3629 = vmatpush1.msra.mxu0 %v1048
    %3630 = vmatprep.subr.mxu0 0.0
    %3631 = vmatpush1.msra.mxu0 %v1049
    %3632 = vmatprep.subr.mxu0 0.0
    %3633 = vmatpush1.msra.mxu0 %v1050
    %3634 = vmatprep.subr.mxu0 0.0
    %3635 = vmatpush1.msra.mxu0 %v1051
    %3636 = vmatprep.subr.mxu0 0.0
    %3637 = vmatpush1.msra.mxu0 %v1052
    %3638 = vmatprep.subr.mxu0 0.0
    %3639 = vmatpush1.msra.mxu0 %v1053
    %3640 = vmatprep.subr.mxu0 0.0
    %3641 = vmatpush1.msra.mxu0 %v1054
    %3642 = vmatprep.subr.mxu0 0.0
    %3643 = vmatpush1.msra.mxu0 %v1055
    %3644 = vmatprep.subr.mxu0 0.0
    %3645 = vmatpush1.msra.mxu0 %v1056
    %3646 = vmatprep.subr.mxu0 0.0
    %3647 = vmatpush1.msra.mxu0 %v1057
    %3648 = vmatprep.subr.mxu0 0.0
    %3649 = vmatpush1.msra.mxu0 %v1058
    %3650 = vmatprep.subr.mxu0 0.0
    %3651 = vmatpush1.msra.mxu0 %v1059
    %3652 = vmatprep.subr.mxu0 0.0
    %3653 = vmatpush1.msra.mxu0 %v1060
    %3654 = vmatprep.mubr.f32.mxu0 %v1355
    %3655 = vmatmul.mubr.f32.gmra.mrb[0].mxu0 %v1353
    %v3656 = vpop.f32.mrb[0].mxu0
    %v3657 = vadd.f32 %v3587, %v3656
    %v3658 = vpop.f32.mrb[0].mxu0
    %3659 = vdwg.mxu0
    %v3660 = vmul.f32 %v3657, 0.5
    %v3661 = vmul.f32 %v3660, 1.442695
    %v3662 = vpow.pop %v3661
    %v3663 = vld [vmem:[%s3] sm:$0x3]
    %3665 = vrot.lane.b32.xlu0 %v3663, 8
    %v3666 = vpop.permute.xlu0 %3665
    %v3668 = vmul.f32 %v3662, %v3666
    %3670 = vrot.lane.b32.xlu0 %v3668, 120
    %v3671 = vpop.permute.xlu0 %3670
    %v3673 = vadd.f32 %v3657, %v3671
    %vm3674 = vcmask 58368
    %3675 = vst.msk [vmem:[#allocation2] sm:$0x3] %vm3674, %v3673
    %v3676 = vmul.f32 %v3657, 1.442695
    %v3677 = vpow.pop %v3676
    %v3678 = vmul.f32 %v3657, %v3657
    %3680 = vrot.lane.b32.xlu0 %v3678, 8
    %v3681 = vpop.permute.xlu0 %3680
    %v3683 = vadd.f32 %v3677, %v3681
    %v3684 = vsub.f32 %v3683, 1.0
    %v3685 = vsub.f32 %v3684, %v3657
    %3687 = vrot.lane.b32.xlu0 %v3685, 120
    %v3688 = vpop.permute.xlu0 %3687
    %v3690 = vsel %vm3674, %v3688, 0.0
    %3691 = vadd.xlane.f32.xlu0 %v3690
    %v3692 = vpop.xlane.xlu0 %3691
    %v3693 = vrot.slane %v3692, 4
    %v3694 = vadd.f32 %v3692, %v3693
    %v3695 = vrot.slane %v3694, 2
    %v3696 = vadd.f32 %v3694, %v3695
    %v3697 = vrot.slane %v3696, 1
    %v3698 = vadd.f32 %v3696, %v3697
    %s3699 = vtos %v3698
    %v3700 = vstv %s3699
    %v3701 = vmul.f32 %v3700, 0.5
    %vm3702 = vcmask 0
    %3703 = vst.msk [vmem:[#allocation4] sm:$0x1] %vm3702, %v3701
    // Predicated region
    $region18: #{variational_encoder_forward.7} parent=1 // pred_check
      _
    $region19: #{variational_encoder_forward.7} parent=1 // pred_check_branch
      %3705 = sbr.rel (0) target = $region21
    $region20: #{variational_encoder_forward.7} parent=1 // pred_region
      %s3707 = ssub.s32 32, 32
      %3708 = vsyncadd [#allocation3], %s3707
      %s3710 = sshll.u32 [#allocation2], 4
      %s3711 = int_to_ptr.vmem [resolvable:$true] %s3710
      %3713 = dma.vmem_to_hbm [thread:$0]  %s3711, 32, %s4, [#allocation3]
    $region21: #{variational_encoder_forward.7} parent=1 // pred_fallthru
      _
    // Predicated region
    $region22: #{variational_encoder_forward.7} parent=1 // pred_check
      _
    $region23: #{variational_encoder_forward.7} parent=1 // pred_check_branch
      %3715 = sbr.rel (0) target = $region25
    $region24: #{variational_encoder_forward.7} parent=1 // pred_region
      %s3717 = ssub.s32 16, 16
      %3718 = vsyncadd [#allocation5], %s3717
      %s3720 = sshll.u32 [#allocation4], 4
      %s3721 = int_to_ptr.vmem [resolvable:$true] %s3720
      %3723 = dma.vmem_to_hbm [thread:$0]  %s3721, 16, %s5, [#allocation5]
    $region25: #{variational_encoder_forward.7} parent=1 // pred_fallthru
      _
    // Predicated region
    $region26: #{variational_encoder_forward.7} parent=1 // pred_check
      _
    $region27: #{variational_encoder_forward.7} parent=1 // pred_check_branch
      %3725 = sbr.rel (0) target = $region29
    $region28: #{variational_encoder_forward.7} parent=1 // pred_region
      %3726 = dma.done [#allocation3], 32
    $region29: #{variational_encoder_forward.7} parent=1 // pred_fallthru
      _
    // Predicated region
    $region30: #{variational_encoder_forward.7} parent=1 // pred_check
      _
    $region31: #{variational_encoder_forward.7} parent=1 // pred_check_branch
      %3728 = sbr.rel (0) target = $region33
    $region32: #{variational_encoder_forward.7} parent=1 // pred_region
      %3729 = dma.done [#allocation5], 16
    $region33: #{variational_encoder_forward.7} parent=1 // pred_fallthru
      _
    %3730 = vsyncpa [#allocation3], 1
    %3731 = vsyncpa [#allocation5], 1

</llo_original>
